<compile_context>
chip_gen: v6e
topology: v6e:2x2x1
jax: 0.10.0
libtpu: 0.0.40
codegen_flags: <defaults>
</compile_context>

<pallas_src>
import math

import jax
import jax.numpy as jnp
from jax.experimental import pallas as pl
from jax.experimental.pallas import tpu as pltpu

_VMEM_LIMIT_BYTES = 32 * 1024 * 1024   # safe on v5e/v6e (128 MiB) and v7x (64 MiB)


# ----------------------------------------------------------------------------
# Tiling helpers
# ----------------------------------------------------------------------------
def _round_up(x, m):
    return ((x + m - 1) // m) * m


def _choose_m_tile(m):
    """(tm, m_pad): tm a multiple of 16, >= 2 M blocks whenever possible."""
    m16 = _round_up(m, 16)
    if m16 >= 256:
        tm = 128
    else:
        tm = max(16, _round_up(m16 // 2, 16))
    return tm, _round_up(m16, tm)


def _choose_n_tile(n_pad):
    # n_pad is always a multiple of 128 (weights are lane-padded at build time).
    return 256 if (n_pad % 256 == 0) else 128


def _choose_k_tile(k):
    if k <= 1024:          # single full-extent K block, no padding needed
        return k, k
    tk = 512
    return tk, _round_up(k, tk)


def _silu(y):
    # exp and the approximate reciprocal both land on the EUP slot.
    return y * pl.reciprocal(1.0 + jnp.exp(-y), approx=True)


# ----------------------------------------------------------------------------
# Kernel A: single-source matmul + bias + SiLU, tiled over (M, N, K)
# ----------------------------------------------------------------------------
def _mm_bias_silu_kernel(x_ref, w_ref, b_ref, o_ref, acc_ref):
    @pl.when(pl.program_id(2) == 0)
    def _():
        acc_ref[...] = jnp.zeros_like(acc_ref)

    acc_ref[...] += jnp.dot(x_ref[...], w_ref[...],
                            preferred_element_type=jnp.float32)

    @pl.when(pl.program_id(2) == pl.num_programs(2) - 1)
    def _():
        y = acc_ref[...] + b_ref[...]
        o_ref[...] = _silu(y).astype(o_ref.dtype)


def matmul_bias_silu(x, w, bias, n_valid, out_dtype=jnp.float32):
    """silu(x @ w + bias)[:, :n_valid].  x:(M,K) float, w:(K,N_pad) bf16,
    bias:(1,N_pad) f32.  Operands go to the MXU as bf16, accumulation in f32."""
    M, K = x.shape
    Kw, N_pad = w.shape
    assert Kw == K
    tm, M_pad = _choose_m_tile(M)
    tn = _choose_n_tile(N_pad)
    tk, K_pad = _choose_k_tile(K)

    xb = x.astype(jnp.bfloat16)
    if M_pad != M or K_pad != K:
        xb = jnp.pad(xb, ((0, M_pad - M), (0, K_pad - K)))
    wb = w if K_pad == K else jnp.pad(w, ((0, K_pad - K), (0, 0)))

    grid = (M_pad // tm, N_pad // tn, K_pad // tk)
    out = pl.pallas_call(
        _mm_bias_silu_kernel,
        out_shape=jax.ShapeDtypeStruct((M_pad, N_pad), out_dtype),
        grid_spec=pltpu.PrefetchScalarGridSpec(
            num_scalar_prefetch=0,
            grid=grid,
            in_specs=[
                pl.BlockSpec((tm, tk), lambda i, j, k: (i, k)),
                pl.BlockSpec((tk, tn), lambda i, j, k: (k, j)),
                pl.BlockSpec((1, tn), lambda i, j, k: (0, j)),
            ],
            out_specs=pl.BlockSpec((tm, tn), lambda i, j, k: (i, j)),
            scratch_shapes=[pltpu.VMEM((tm, tn), jnp.float32)]),
        compiler_params=pltpu.CompilerParams(
            dimension_semantics=("parallel", "parallel", "arbitrary"),
            vmem_limit_bytes=_VMEM_LIMIT_BYTES),
        cost_estimate=pl.CostEstimate(
            flops=2 * M_pad * N_pad * K_pad,
            transcendentals=M_pad * N_pad,
            bytes_accessed=(xb.size * 2 * (N_pad // tn) + wb.size * 2
                            + bias.size * 4 + M_pad * N_pad * 4)),
    )(xb, wb, bias)
    if M_pad != M or n_valid != N_pad:
        out = out[:M, :n_valid]
    return out


# ----------------------------------------------------------------------------
# Kernel B: fused channel-concat + 1x1 conv.  Each source contributes its own
# K segment to the same accumulator, so the concat never touches HBM.
# ----------------------------------------------------------------------------
def _make_fused_mm_kernel(nsrc):
    def kernel(*refs):
        x_refs = refs[:nsrc]
        w_refs = refs[nsrc:2 * nsrc]
        b_ref = refs[2 * nsrc]
        o_ref = refs[2 * nsrc + 1]
        acc = jnp.dot(x_refs[0][...], w_refs[0][...],
                      preferred_element_type=jnp.float32)
        for s in range(1, nsrc):
            acc = acc + jnp.dot(x_refs[s][...], w_refs[s][...],
                                preferred_element_type=jnp.float32)
        y = acc + b_ref[...]
        o_ref[...] = _silu(y).astype(o_ref.dtype)
    return kernel


def fused_matmul_bias_silu(xs, ws, bias, n_valid, out_dtype=jnp.float32):
    """silu(sum_s xs[s] @ ws[s] + bias)[:, :n_valid] == silu(concat(xs) @ W)."""
    nsrc = len(xs)
    if nsrc == 1:
        return matmul_bias_silu(xs[0], ws[0], bias, n_valid, out_dtype)
    M = xs[0].shape[0]
    N_pad = ws[0].shape[1]
    tm, M_pad = _choose_m_tile(M)
    tn = _choose_n_tile(N_pad)

    xs_b = []
    for x in xs:
        xb = x.astype(jnp.bfloat16)
        if M_pad != M:
            xb = jnp.pad(xb, ((0, M_pad - M), (0, 0)))
        xs_b.append(xb)

    in_specs = ([pl.BlockSpec((tm, int(x.shape[1])), lambda i, j: (i, 0))
                 for x in xs_b]
                + [pl.BlockSpec((int(w.shape[0]), tn), lambda i, j: (0, j))
                   for w in ws]
                + [pl.BlockSpec((1, tn), lambda i, j: (0, j))])
    k_total = sum(int(w.shape[0]) for w in ws)

    out = pl.pallas_call(
        _make_fused_mm_kernel(nsrc),
        out_shape=jax.ShapeDtypeStruct((M_pad, N_pad), out_dtype),
        grid_spec=pltpu.PrefetchScalarGridSpec(
            num_scalar_prefetch=0,
            grid=(M_pad // tm, N_pad // tn),
            in_specs=in_specs,
            out_specs=pl.BlockSpec((tm, tn), lambda i, j: (i, j))),
        compiler_params=pltpu.CompilerParams(
            dimension_semantics=("parallel", "parallel"),
            vmem_limit_bytes=_VMEM_LIMIT_BYTES),
        cost_estimate=pl.CostEstimate(
            flops=2 * M_pad * N_pad * k_total,
            transcendentals=M_pad * N_pad,
            bytes_accessed=(sum(x.size for x in xs_b) * 2 * (N_pad // tn)
                            + sum(w.size for w in ws) * 2
                            + bias.size * 4 + M_pad * N_pad * 4)),
    )(*xs_b, *ws, bias)
    if M_pad != M or n_valid != N_pad:
        out = out[:M, :n_valid]
    return out


# ----------------------------------------------------------------------------
# Conv / C2f building blocks (YOLOv8 conventions)
#   Conv(c1, c2, k, s) = Conv2d(k, s, pad=k//2, bias=False) + BN + SiLU
#   C2f(c1, c2, n, shortcut=False): cv1 -> split -> n Bottlenecks -> cat -> cv2
#   Bottleneck (e=1.0, shortcut=False): Conv(c,c,3,1) -> Conv(c,c,3,1)
# ----------------------------------------------------------------------------
def conv_apply(x, p, stride=1):
    """Single-input Conv + (folded) BN + SiLU.  x: NHWC f32."""
    k = p["k"]
    B, H, W, Cin = x.shape
    if k == 1 and stride == 1:
        patches = x.reshape(B * H * W, Cin)
        Hout, Wout = H, W
    else:
        pad = k // 2
        xp = jnp.pad(x, ((0, 0), (pad, pad), (pad, pad), (0, 0)))
        Hout = (H + 2 * pad - k) // stride + 1
        Wout = (W + 2 * pad - k) // stride + 1
        cols = []
        for dh in range(k):
            for dw in range(k):
                cols.append(
                    xp[:, dh:dh + stride * (Hout - 1) + 1:stride,
                          dw:dw + stride * (Wout - 1) + 1:stride, :])
        patches = jnp.concatenate(cols, axis=-1).reshape(
            B * Hout * Wout, k * k * Cin)
        # TODO(synk): eliminate the im2col HBM materialization by accumulating
        # the k*k taps inside the kernel with manual halo DMA of the padded x.
    out = matmul_bias_silu(patches, p["w"], p["bias"], p["cout"])
    return out.reshape(B, Hout, Wout, p["cout"])


def conv1x1_concat_apply(xs, p):
    """Fused channel-concat + 1x1 Conv + BN + SiLU.  xs: NHWC, same B/H/W."""
    assert p["k"] == 1
    B, H, W, _ = xs[0].shape
    M = B * H * W
    ks = [int(x.shape[-1]) for x in xs]
    assert sum(ks) == p["cin"]
    flat = [x.reshape(M, kc) for x, kc in zip(xs, ks)]
    offs = [0]
    for kc in ks:
        offs.append(offs[-1] + kc)
    ws = [p["w"][offs[s]:offs[s + 1], :] for s in range(len(xs))]
    out = fused_matmul_bias_silu(flat, ws, p["bias"], p["cout"])
    return out.reshape(B, H, W, p["cout"])


def c2f_apply(xs, p):
    """C2f where the input concat is fused into cv1 and the output concat is
    fused into cv2 (both 1x1 convs)."""
    y = conv1x1_concat_apply(xs, p["cv1"])      # (B, H, W, 2c)
    c = p["c"]
    cur = y[..., c:]
    cv2_sources = [y]                            # == concat([y1, y2]) along K
    for blk in p["m"]:
        cur = conv_apply(conv_apply(cur, blk["cv1"], 1), blk["cv2"], 1)
        cv2_sources.append(cur)                  # shortcut=False: no residual
    return conv1x1_concat_apply(cv2_sources, p["cv2"])


def upsample_nearest2x(x):
    # TODO(synk): fold the 2x nearest replication into the consuming fused
    # concat+1x1-conv kernel's index_map instead of materializing a 4x tensor.
    return jnp.repeat(jnp.repeat(x, 2, axis=1), 2, axis=2)


# ----------------------------------------------------------------------------
# Deterministic parameter construction
# ----------------------------------------------------------------------------
class _PGen:
    def __init__(self, key):
        self.key = key

    def next(self):
        self.key, k = jax.random.split(self.key)
        return k


def make_conv_params(pg, cin, cout, k):
    fan_in = k * k * cin
    w = jax.random.normal(pg.next(), (k, k, cin, cout), jnp.float32) / math.sqrt(fan_in)
    scale = 1.0 + 0.01 * jax.random.normal(pg.next(), (1, cout), jnp.float32)
    bias = 0.01 * jax.random.normal(pg.next(), (1, cout), jnp.float32)
    # Fold the BN scale into the weight columns (exact), pre-flatten to (K, N),
    # cast to bf16 for the MXU, and pad N to a multiple of 128 so kernel output
    # stores are lane-dense.  Bias stays f32 (applied on the f32 accumulator).
    wmat = (w.reshape(fan_in, cout) * scale).astype(jnp.bfloat16)
    cout_pad = _round_up(cout, 128)
    if cout_pad != cout:
        wmat = jnp.pad(wmat, ((0, 0), (0, cout_pad - cout)))
        bias = jnp.pad(bias, ((0, 0), (0, cout_pad - cout)))
    return {"k": k, "cin": cin, "cout": cout, "w": wmat, "bias": bias}


def make_c2f_params(pg, c1, c2, n):
    c = int(c2 * 0.5)
    return {
        "c": c,
        "cv1": make_conv_params(pg, c1, 2 * c, 1),
        "m": [{"cv1": make_conv_params(pg, c, c, 3),
               "cv2": make_conv_params(pg, c, c, 3)} for _ in range(n)],
        "cv2": make_conv_params(pg, (2 + n) * c, c2, 1),
    }


def make_neck_params(pg, w, r, n):
    c256 = int(256 * w)
    c512 = int(512 * w)
    c512r = int(512 * w * r)
    return {
        "conv_p5":     make_conv_params(pg, c512r, c512, 1),
        "c2f_p4p5":    make_c2f_params(pg, c512 + c512, c512, n),
        "conv_p4p5":   make_conv_params(pg, c512, c256, 1),
        "c2f_p3p4p5":  make_c2f_params(pg, c256 + c256, c256, n),
        "conv_down1":  make_conv_params(pg, c256, c256, 3),
        "c2f_down1":   make_c2f_params(pg, c256 + c512, c512, n),
        "conv_down2":  make_conv_params(pg, c512, c512, 3),
        "c2f_down2":   make_c2f_params(pg, c512 + c512r, c512r, n),
    }


# ----------------------------------------------------------------------------
# Neck forward (mirrors the PyTorch module, NHWC)
# ----------------------------------------------------------------------------
def neck_forward(params, feat1, feat2, feat3):
    p5_reduced = conv_apply(feat3, params["conv_p5"], 1)
    p5_up = upsample_nearest2x(p5_reduced)
    C = c2f_apply([feat2, p5_up], params["c2f_p4p5"])          # fused cat+cv1

    p4p5_reduced = conv_apply(C, params["conv_p4p5"], 1)
    p4p5_up = upsample_nearest2x(p4p5_reduced)
    X = c2f_apply([feat1, p4p5_up], params["c2f_p3p4p5"])      # fused cat+cv1

    x_down = conv_apply(X, params["conv_down1"], 2)
    Y = c2f_apply([x_down, C], params["c2f_down1"])            # fused cat+cv1

    y_down = conv_apply(Y, params["conv_down2"], 2)
    Z = c2f_apply([y_down, feat3], params["c2f_down2"])        # fused cat+cv1
    return C, X, Y, Z


if __name__ == "__main__":
    # Small synthetic config: w = 1/32, r = 2, n = 1
    #   256*w = 8, 512*w = 16, 512*w*r = 32
    w, r, n = 1.0 / 32.0, 2.0, 1
    B = 2
    H1 = 16  # feat1 spatial (reference: 80)
    c256, c512, c512r = int(256 * w), int(512 * w), int(512 * w * r)

    key = jax.random.PRNGKey(0)
    kf1, kf2, kf3, kp = jax.random.split(key, 4)

    # Reference NCHW inputs, transposed once to NHWC for the kernel pipeline.
    feat1_nchw = jax.random.normal(kf1, (B, c256, H1, H1), jnp.float32)
    feat2_nchw = jax.random.normal(kf2, (B, c512, H1 // 2, H1 // 2), jnp.float32)
    feat3_nchw = jax.random.normal(kf3, (B, c512r, H1 // 4, H1 // 4), jnp.float32)
    feat1 = jnp.transpose(feat1_nchw, (0, 2, 3, 1))
    feat2 = jnp.transpose(feat2_nchw, (0, 2, 3, 1))
    feat3 = jnp.transpose(feat3_nchw, (0, 2, 3, 1))

    params = make_neck_params(_PGen(kp), w, r, n)

    # Close over params so the Python-int metadata stays static under jit.
    fwd = jax.jit(lambda f1, f2, f3: neck_forward(params, f1, f2, f3))
    C, X, Y, Z = fwd(feat1, feat2, feat3)
    jax.block_until_ready((C, X, Y, Z))

    # Expected shapes (NHWC): C (B,H/2,W/2,512w), X (B,H,W,256w),
    #                         Y (B,H/2,W/2,512w), Z (B,H/4,W/4,512wr)
    assert C.shape == (B, H1 // 2, H1 // 2, c512), C.shape
    assert X.shape == (B, H1, H1, c256), X.shape
    assert Y.shape == (B, H1 // 2, H1 // 2, c512), Y.shape
    assert Z.shape == (B, H1 // 4, H1 // 4, c512r), Z.shape
    assert all(bool(jnp.all(jnp.isfinite(t))) for t in (C, X, Y, Z))

    print("KERNEL_OK")
</pallas_src>

<mosaic_0001>
module attributes {stable_mosaic.version = 11 : i64} {
  func.func @_mm_bias_silu_kernel(%arg0: i32, %arg1: i32, %arg2: i32, %arg3: memref<16x32xbf16, #tpu.memory_space<vmem>>, %arg4: memref<32x128xbf16, #tpu.memory_space<vmem>>, %arg5: memref<1x128xf32, #tpu.memory_space<vmem>>, %arg6: memref<16x128xf32, #tpu.memory_space<vmem>>, %arg7: memref<16x128xf32, #tpu.memory_space<vmem>>) attributes {dimension_semantics = [#tpu.dimension_semantics<parallel>, #tpu.dimension_semantics<parallel>, #tpu.dimension_semantics<arbitrary>], iteration_bounds = array<i64: 2, 1, 1>, scalar_prefetch = 0 : i64, scratch_operands = 1 : i64, tpu.core_type = #tpu.core_type<tc>, window_params = [{transform_indices = @transform_0, window_bounds = array<i64: 16, 32>}, {transform_indices = @transform_1, window_bounds = array<i64: 32, 128>}, {transform_indices = @transform_2, window_bounds = array<i64: 1, 128>}, {transform_indices = @transform_3, window_bounds = array<i64: 16, 128>}]} {
    %c0_i32 = arith.constant 0 : i32
    %0 = arith.cmpi eq, %arg2, %c0_i32 : i32
    %1 = arith.extui %0 : i1 to i32
    %c0_i32_0 = arith.constant 0 : i32
    %2 = arith.cmpi ne, %1, %c0_i32_0 : i32
    scf.if %2 {
      %cst_10 = arith.constant 0.000000e+00 : f32
      %12 = vector.broadcast %cst_10 : f32 to vector<16x128xf32>
      %c0_11 = arith.constant 0 : index
      %c0_12 = arith.constant 0 : index
      %13 = vector.load %arg7[%c0_11, %c0_12] : memref<16x128xf32, #tpu.memory_space<vmem>>, vector<16x128xf32>
      tpu.vector_store %arg7[%c0_11, %c0_12], %12 {strides = array<i32>} : memref<16x128xf32, #tpu.memory_space<vmem>>, vector<16x128xf32>,
    } else {
    }
    %c0 = arith.constant 0 : index
    %c0_1 = arith.constant 0 : index
    %3 = vector.load %arg7[%c0, %c0_1] : memref<16x128xf32, #tpu.memory_space<vmem>>, vector<16x128xf32>
    %c0_2 = arith.constant 0 : index
    %c0_3 = arith.constant 0 : index
    %4 = vector.load %arg3[%c0_2, %c0_3] : memref<16x32xbf16, #tpu.memory_space<vmem>>, vector<16x32xbf16>
    %c0_4 = arith.constant 0 : index
    %c0_5 = arith.constant 0 : index
    %5 = vector.load %arg4[%c0_4, %c0_5] : memref<32x128xbf16, #tpu.memory_space<vmem>>, vector<32x128xbf16>
    %cst = arith.constant dense<0.000000e+00> : vector<16x128xf32>
    %6 = tpu.matmul %4, %5, %cst {dimension_numbers = #tpu.dot_dimension_numbers<[1], [0], [0], [1], [0, 0, 1, 1], [], []>} : vector<16x32xbf16>, vector<32x128xbf16>, vector<16x128xf32> -> vector<16x128xf32>
    %7 = arith.addf %3, %6 : vector<16x128xf32>
    %c0_6 = arith.constant 0 : index
    %c0_7 = arith.constant 0 : index
    %8 = vector.load %arg7[%c0_6, %c0_7] : memref<16x128xf32, #tpu.memory_space<vmem>>, vector<16x128xf32>
    tpu.vector_store %arg7[%c0_6, %c0_7], %7 {strides = array<i32>} : memref<16x128xf32, #tpu.memory_space<vmem>>, vector<16x128xf32>,
    %c0_i32_8 = arith.constant 0 : i32
    %9 = arith.cmpi eq, %arg2, %c0_i32_8 : i32
    %10 = arith.extui %9 : i1 to i32
    %c0_i32_9 = arith.constant 0 : i32
    %11 = arith.cmpi ne, %10, %c0_i32_9 : i32
    scf.if %11 {
      %c0_10 = arith.constant 0 : index
      %c0_11 = arith.constant 0 : index
      %12 = vector.load %arg7[%c0_10, %c0_11] : memref<16x128xf32, #tpu.memory_space<vmem>>, vector<16x128xf32>
      %c0_12 = arith.constant 0 : index
      %c0_13 = arith.constant 0 : index
      %13 = vector.load %arg5[%c0_12, %c0_13] : memref<1x128xf32, #tpu.memory_space<vmem>>, vector<1x128xf32>
      %14 = vector.broadcast %13 : vector<1x128xf32> to vector<16x128xf32>
      %15 = arith.addf %12, %14 : vector<16x128xf32>
      %cst_14 = arith.constant 0.000000e+00 : f32
      %16 = vector.broadcast %cst_14 : f32 to vector<16x128xf32>
      %17 = arith.subf %16, %15 : vector<16x128xf32>
      %18 = math.exp %17 : vector<16x128xf32>
      %cst_15 = arith.constant 1.000000e+00 : f32
      %19 = vector.broadcast %cst_15 : f32 to vector<16x128xf32>
      %20 = arith.addf %19, %18 : vector<16x128xf32>
      %21 = tpu.reciprocal %20 {approx = true} : vector<16x128xf32> -> vector<16x128xf32>
      %22 = arith.mulf %15, %21 : vector<16x128xf32>
      %c0_16 = arith.constant 0 : index
      %c0_17 = arith.constant 0 : index
      %23 = vector.load %arg6[%c0_16, %c0_17] : memref<16x128xf32, #tpu.memory_space<vmem>>, vector<16x128xf32>
      tpu.vector_store %arg6[%c0_16, %c0_17], %22 {strides = array<i32>} : memref<16x128xf32, #tpu.memory_space<vmem>>, vector<16x128xf32>,
    } else {
    }
    return
  }
  func.func @transform_0(%arg0: i32, %arg1: i32, %arg2: i32) -> (i32, i32) {
    %c0_i32 = arith.constant 0 : i32
    return %arg0, %arg2 : i32, i32
  }
  func.func @transform_1(%arg0: i32, %arg1: i32, %arg2: i32) -> (i32, i32) {
    %c0_i32 = arith.constant 0 : i32
    return %arg2, %arg1 : i32, i32
  }
  func.func @transform_2(%arg0: i32, %arg1: i32, %arg2: i32) -> (i32, i32) {
    %c0_i32 = arith.constant 0 : i32
    %c0_i32_0 = arith.constant 0 : i32
    return %c0_i32, %arg1 : i32, i32
  }
  func.func @transform_3(%arg0: i32, %arg1: i32, %arg2: i32) -> (i32, i32) {
    %c0_i32 = arith.constant 0 : i32
    return %arg0, %arg1 : i32, i32
  }
}

module attributes {stable_mosaic.version = 11 : i64} {
  func.func @kernel(%arg0: i32, %arg1: i32, %arg2: memref<64x16xbf16, #tpu.memory_space<vmem>>, %arg3: memref<64x16xbf16, #tpu.memory_space<vmem>>, %arg4: memref<16x128xbf16, #tpu.memory_space<vmem>>, %arg5: memref<16x128xbf16, #tpu.memory_space<vmem>>, %arg6: memref<1x128xf32, #tpu.memory_space<vmem>>, %arg7: memref<64x128xf32, #tpu.memory_space<vmem>>) attributes {dimension_semantics = [#tpu.dimension_semantics<parallel>, #tpu.dimension_semantics<parallel>], iteration_bounds = array<i64: 2, 1>, scalar_prefetch = 0 : i64, scratch_operands = 0 : i64, tpu.core_type = #tpu.core_type<tc>, window_params = [{transform_indices = @transform_0, window_bounds = array<i64: 64, 16>}, {transform_indices = @transform_1, window_bounds = array<i64: 64, 16>}, {transform_indices = @transform_2, window_bounds = array<i64: 16, 128>}, {transform_indices = @transform_3, window_bounds = array<i64: 16, 128>}, {transform_indices = @transform_4, window_bounds = array<i64: 1, 128>}, {transform_indices = @transform_5, window_bounds = array<i64: 64, 128>}]} {
    %c0 = arith.constant 0 : index
    %c0_0 = arith.constant 0 : index
    %0 = vector.load %arg2[%c0, %c0_0] : memref<64x16xbf16, #tpu.memory_space<vmem>>, vector<64x16xbf16>
    %c0_1 = arith.constant 0 : index
    %c0_2 = arith.constant 0 : index
    %1 = vector.load %arg4[%c0_1, %c0_2] : memref<16x128xbf16, #tpu.memory_space<vmem>>, vector<16x128xbf16>
    %cst = arith.constant dense<0.000000e+00> : vector<64x128xf32>
    %2 = tpu.matmul %0, %1, %cst {dimension_numbers = #tpu.dot_dimension_numbers<[1], [0], [0], [1], [0, 0, 1, 1], [], []>} : vector<64x16xbf16>, vector<16x128xbf16>, vector<64x128xf32> -> vector<64x128xf32>
    %c0_3 = arith.constant 0 : index
    %c0_4 = arith.constant 0 : index
    %3 = vector.load %arg3[%c0_3, %c0_4] : memref<64x16xbf16, #tpu.memory_space<vmem>>, vector<64x16xbf16>
    %c0_5 = arith.constant 0 : index
    %c0_6 = arith.constant 0 : index
    %4 = vector.load %arg5[%c0_5, %c0_6] : memref<16x128xbf16, #tpu.memory_space<vmem>>, vector<16x128xbf16>
    %cst_7 = arith.constant dense<0.000000e+00> : vector<64x128xf32>
    %5 = tpu.matmul %3, %4, %cst_7 {dimension_numbers = #tpu.dot_dimension_numbers<[1], [0], [0], [1], [0, 0, 1, 1], [], []>} : vector<64x16xbf16>, vector<16x128xbf16>, vector<64x128xf32> -> vector<64x128xf32>
    %6 = arith.addf %2, %5 : vector<64x128xf32>
    %c0_8 = arith.constant 0 : index
    %c0_9 = arith.constant 0 : index
    %7 = vector.load %arg6[%c0_8, %c0_9] : memref<1x128xf32, #tpu.memory_space<vmem>>, vector<1x128xf32>
    %8 = vector.broadcast %7 : vector<1x128xf32> to vector<64x128xf32>
    %9 = arith.addf %6, %8 : vector<64x128xf32>
    %cst_10 = arith.constant 0.000000e+00 : f32
    %10 = vector.broadcast %cst_10 : f32 to vector<64x128xf32>
    %11 = arith.subf %10, %9 : vector<64x128xf32>
    %12 = math.exp %11 : vector<64x128xf32>
    %cst_11 = arith.constant 1.000000e+00 : f32
    %13 = vector.broadcast %cst_11 : f32 to vector<64x128xf32>
    %14 = arith.addf %13, %12 : vector<64x128xf32>
    %15 = tpu.reciprocal %14 {approx = true} : vector<64x128xf32> -> vector<64x128xf32>
    %16 = arith.mulf %9, %15 : vector<64x128xf32>
    %c0_12 = arith.constant 0 : index
    %c0_13 = arith.constant 0 : index
    %17 = vector.load %arg7[%c0_12, %c0_13] : memref<64x128xf32, #tpu.memory_space<vmem>>, vector<64x128xf32>
    tpu.vector_store %arg7[%c0_12, %c0_13], %16 {strides = array<i32>} : memref<64x128xf32, #tpu.memory_space<vmem>>, vector<64x128xf32>,
    return
  }
  func.func @transform_0(%arg0: i32, %arg1: i32) -> (i32, i32) {
    %c0_i32 = arith.constant 0 : i32
    %c0_i32_0 = arith.constant 0 : i32
    return %arg0, %c0_i32 : i32, i32
  }
  func.func @transform_1(%arg0: i32, %arg1: i32) -> (i32, i32) {
    %c0_i32 = arith.constant 0 : i32
    %c0_i32_0 = arith.constant 0 : i32
    return %arg0, %c0_i32 : i32, i32
  }
  func.func @transform_2(%arg0: i32, %arg1: i32) -> (i32, i32) {
    %c0_i32 = arith.constant 0 : i32
    %c0_i32_0 = arith.constant 0 : i32
    return %c0_i32, %arg1 : i32, i32
  }
  func.func @transform_3(%arg0: i32, %arg1: i32) -> (i32, i32) {
    %c0_i32 = arith.constant 0 : i32
    %c0_i32_0 = arith.constant 0 : i32
    return %c0_i32, %arg1 : i32, i32
  }
  func.func @transform_4(%arg0: i32, %arg1: i32) -> (i32, i32) {
    %c0_i32 = arith.constant 0 : i32
    %c0_i32_0 = arith.constant 0 : i32
    return %c0_i32, %arg1 : i32, i32
  }
  func.func @transform_5(%arg0: i32, %arg1: i32) -> (i32, i32) {
    %c0_i32 = arith.constant 0 : i32
    return %arg0, %arg1 : i32, i32
  }
}

module attributes {stable_mosaic.version = 11 : i64} {
  func.func @_mm_bias_silu_kernel(%arg0: i32, %arg1: i32, %arg2: i32, %arg3: memref<64x72xbf16, #tpu.memory_space<vmem>>, %arg4: memref<72x128xbf16, #tpu.memory_space<vmem>>, %arg5: memref<1x128xf32, #tpu.memory_space<vmem>>, %arg6: memref<64x128xf32, #tpu.memory_space<vmem>>, %arg7: memref<64x128xf32, #tpu.memory_space<vmem>>) attributes {dimension_semantics = [#tpu.dimension_semantics<parallel>, #tpu.dimension_semantics<parallel>, #tpu.dimension_semantics<arbitrary>], iteration_bounds = array<i64: 2, 1, 1>, scalar_prefetch = 0 : i64, scratch_operands = 1 : i64, tpu.core_type = #tpu.core_type<tc>, window_params = [{transform_indices = @transform_0, window_bounds = array<i64: 64, 72>}, {transform_indices = @transform_1, window_bounds = array<i64: 72, 128>}, {transform_indices = @transform_2, window_bounds = array<i64: 1, 128>}, {transform_indices = @transform_3, window_bounds = array<i64: 64, 128>}]} {
    %c0_i32 = arith.constant 0 : i32
    %0 = arith.cmpi eq, %arg2, %c0_i32 : i32
    %1 = arith.extui %0 : i1 to i32
    %c0_i32_0 = arith.constant 0 : i32
    %2 = arith.cmpi ne, %1, %c0_i32_0 : i32
    scf.if %2 {
      %cst_10 = arith.constant 0.000000e+00 : f32
      %12 = vector.broadcast %cst_10 : f32 to vector<64x128xf32>
      %c0_11 = arith.constant 0 : index
      %c0_12 = arith.constant 0 : index
      %13 = vector.load %arg7[%c0_11, %c0_12] : memref<64x128xf32, #tpu.memory_space<vmem>>, vector<64x128xf32>
      tpu.vector_store %arg7[%c0_11, %c0_12], %12 {strides = array<i32>} : memref<64x128xf32, #tpu.memory_space<vmem>>, vector<64x128xf32>,
    } else {
    }
    %c0 = arith.constant 0 : index
    %c0_1 = arith.constant 0 : index
    %3 = vector.load %arg7[%c0, %c0_1] : memref<64x128xf32, #tpu.memory_space<vmem>>, vector<64x128xf32>
    %c0_2 = arith.constant 0 : index
    %c0_3 = arith.constant 0 : index
    %4 = vector.load %arg3[%c0_2, %c0_3] : memref<64x72xbf16, #tpu.memory_space<vmem>>, vector<64x72xbf16>
    %c0_4 = arith.constant 0 : index
    %c0_5 = arith.constant 0 : index
    %5 = vector.load %arg4[%c0_4, %c0_5] : memref<72x128xbf16, #tpu.memory_space<vmem>>, vector<72x128xbf16>
    %cst = arith.constant dense<0.000000e+00> : vector<64x128xf32>
    %6 = tpu.matmul %4, %5, %cst {dimension_numbers = #tpu.dot_dimension_numbers<[1], [0], [0], [1], [0, 0, 1, 1], [], []>} : vector<64x72xbf16>, vector<72x128xbf16>, vector<64x128xf32> -> vector<64x128xf32>
    %7 = arith.addf %3, %6 : vector<64x128xf32>
    %c0_6 = arith.constant 0 : index
    %c0_7 = arith.constant 0 : index
    %8 = vector.load %arg7[%c0_6, %c0_7] : memref<64x128xf32, #tpu.memory_space<vmem>>, vector<64x128xf32>
    tpu.vector_store %arg7[%c0_6, %c0_7], %7 {strides = array<i32>} : memref<64x128xf32, #tpu.memory_space<vmem>>, vector<64x128xf32>,
    %c0_i32_8 = arith.constant 0 : i32
    %9 = arith.cmpi eq, %arg2, %c0_i32_8 : i32
    %10 = arith.extui %9 : i1 to i32
    %c0_i32_9 = arith.constant 0 : i32
    %11 = arith.cmpi ne, %10, %c0_i32_9 : i32
    scf.if %11 {
      %c0_10 = arith.constant 0 : index
      %c0_11 = arith.constant 0 : index
      %12 = vector.load %arg7[%c0_10, %c0_11] : memref<64x128xf32, #tpu.memory_space<vmem>>, vector<64x128xf32>
      %c0_12 = arith.constant 0 : index
      %c0_13 = arith.constant 0 : index
      %13 = vector.load %arg5[%c0_12, %c0_13] : memref<1x128xf32, #tpu.memory_space<vmem>>, vector<1x128xf32>
      %14 = vector.broadcast %13 : vector<1x128xf32> to vector<64x128xf32>
      %15 = arith.addf %12, %14 : vector<64x128xf32>
      %cst_14 = arith.constant 0.000000e+00 : f32
      %16 = vector.broadcast %cst_14 : f32 to vector<64x128xf32>
      %17 = arith.subf %16, %15 : vector<64x128xf32>
      %18 = math.exp %17 : vector<64x128xf32>
      %cst_15 = arith.constant 1.000000e+00 : f32
      %19 = vector.broadcast %cst_15 : f32 to vector<64x128xf32>
      %20 = arith.addf %19, %18 : vector<64x128xf32>
      %21 = tpu.reciprocal %20 {approx = true} : vector<64x128xf32> -> vector<64x128xf32>
      %22 = arith.mulf %15, %21 : vector<64x128xf32>
      %c0_16 = arith.constant 0 : index
      %c0_17 = arith.constant 0 : index
      %23 = vector.load %arg6[%c0_16, %c0_17] : memref<64x128xf32, #tpu.memory_space<vmem>>, vector<64x128xf32>
      tpu.vector_store %arg6[%c0_16, %c0_17], %22 {strides = array<i32>} : memref<64x128xf32, #tpu.memory_space<vmem>>, vector<64x128xf32>,
    } else {
    }
    return
  }
  func.func @transform_0(%arg0: i32, %arg1: i32, %arg2: i32) -> (i32, i32) {
    %c0_i32 = arith.constant 0 : i32
    return %arg0, %arg2 : i32, i32
  }
  func.func @transform_1(%arg0: i32, %arg1: i32, %arg2: i32) -> (i32, i32) {
    %c0_i32 = arith.constant 0 : i32
    return %arg2, %arg1 : i32, i32
  }
  func.func @transform_2(%arg0: i32, %arg1: i32, %arg2: i32) -> (i32, i32) {
    %c0_i32 = arith.constant 0 : i32
    %c0_i32_0 = arith.constant 0 : i32
    return %c0_i32, %arg1 : i32, i32
  }
  func.func @transform_3(%arg0: i32, %arg1: i32, %arg2: i32) -> (i32, i32) {
    %c0_i32 = arith.constant 0 : i32
    return %arg0, %arg1 : i32, i32
  }
}

module attributes {stable_mosaic.version = 11 : i64} {
  func.func @kernel(%arg0: i32, %arg1: i32, %arg2: memref<64x16xbf16, #tpu.memory_space<vmem>>, %arg3: memref<64x8xbf16, #tpu.memory_space<vmem>>, %arg4: memref<16x128xbf16, #tpu.memory_space<vmem>>, %arg5: memref<8x128xbf16, #tpu.memory_space<vmem>>, %arg6: memref<1x128xf32, #tpu.memory_space<vmem>>, %arg7: memref<64x128xf32, #tpu.memory_space<vmem>>) attributes {dimension_semantics = [#tpu.dimension_semantics<parallel>, #tpu.dimension_semantics<parallel>], iteration_bounds = array<i64: 2, 1>, scalar_prefetch = 0 : i64, scratch_operands = 0 : i64, tpu.core_type = #tpu.core_type<tc>, window_params = [{transform_indices = @transform_0, window_bounds = array<i64: 64, 16>}, {transform_indices = @transform_1, window_bounds = array<i64: 64, 8>}, {transform_indices = @transform_2, window_bounds = array<i64: 16, 128>}, {transform_indices = @transform_3, window_bounds = array<i64: 8, 128>}, {transform_indices = @transform_4, window_bounds = array<i64: 1, 128>}, {transform_indices = @transform_5, window_bounds = array<i64: 64, 128>}]} {
    %c0 = arith.constant 0 : index
    %c0_0 = arith.constant 0 : index
    %0 = vector.load %arg2[%c0, %c0_0] : memref<64x16xbf16, #tpu.memory_space<vmem>>, vector<64x16xbf16>
    %c0_1 = arith.constant 0 : index
    %c0_2 = arith.constant 0 : index
    %1 = vector.load %arg4[%c0_1, %c0_2] : memref<16x128xbf16, #tpu.memory_space<vmem>>, vector<16x128xbf16>
    %cst = arith.constant dense<0.000000e+00> : vector<64x128xf32>
    %2 = tpu.matmul %0, %1, %cst {dimension_numbers = #tpu.dot_dimension_numbers<[1], [0], [0], [1], [0, 0, 1, 1], [], []>} : vector<64x16xbf16>, vector<16x128xbf16>, vector<64x128xf32> -> vector<64x128xf32>
    %c0_3 = arith.constant 0 : index
    %c0_4 = arith.constant 0 : index
    %3 = vector.load %arg3[%c0_3, %c0_4] : memref<64x8xbf16, #tpu.memory_space<vmem>>, vector<64x8xbf16>
    %c0_5 = arith.constant 0 : index
    %c0_6 = arith.constant 0 : index
    %4 = vector.load %arg5[%c0_5, %c0_6] : memref<8x128xbf16, #tpu.memory_space<vmem>>, vector<8x128xbf16>
    %cst_7 = arith.constant dense<0.000000e+00> : vector<64x128xf32>
    %5 = tpu.matmul %3, %4, %cst_7 {dimension_numbers = #tpu.dot_dimension_numbers<[1], [0], [0], [1], [0, 0, 1, 1], [], []>} : vector<64x8xbf16>, vector<8x128xbf16>, vector<64x128xf32> -> vector<64x128xf32>
    %6 = arith.addf %2, %5 : vector<64x128xf32>
    %c0_8 = arith.constant 0 : index
    %c0_9 = arith.constant 0 : index
    %7 = vector.load %arg6[%c0_8, %c0_9] : memref<1x128xf32, #tpu.memory_space<vmem>>, vector<1x128xf32>
    %8 = vector.broadcast %7 : vector<1x128xf32> to vector<64x128xf32>
    %9 = arith.addf %6, %8 : vector<64x128xf32>
    %cst_10 = arith.constant 0.000000e+00 : f32
    %10 = vector.broadcast %cst_10 : f32 to vector<64x128xf32>
    %11 = arith.subf %10, %9 : vector<64x128xf32>
    %12 = math.exp %11 : vector<64x128xf32>
    %cst_11 = arith.constant 1.000000e+00 : f32
    %13 = vector.broadcast %cst_11 : f32 to vector<64x128xf32>
    %14 = arith.addf %13, %12 : vector<64x128xf32>
    %15 = tpu.reciprocal %14 {approx = true} : vector<64x128xf32> -> vector<64x128xf32>
    %16 = arith.mulf %9, %15 : vector<64x128xf32>
    %c0_12 = arith.constant 0 : index
    %c0_13 = arith.constant 0 : index
    %17 = vector.load %arg7[%c0_12, %c0_13] : memref<64x128xf32, #tpu.memory_space<vmem>>, vector<64x128xf32>
    tpu.vector_store %arg7[%c0_12, %c0_13], %16 {strides = array<i32>} : memref<64x128xf32, #tpu.memory_space<vmem>>, vector<64x128xf32>,
    return
  }
  func.func @transform_0(%arg0: i32, %arg1: i32) -> (i32, i32) {
    %c0_i32 = arith.constant 0 : i32
    %c0_i32_0 = arith.constant 0 : i32
    return %arg0, %c0_i32 : i32, i32
  }
  func.func @transform_1(%arg0: i32, %arg1: i32) -> (i32, i32) {
    %c0_i32 = arith.constant 0 : i32
    %c0_i32_0 = arith.constant 0 : i32
    return %arg0, %c0_i32 : i32, i32
  }
  func.func @transform_2(%arg0: i32, %arg1: i32) -> (i32, i32) {
    %c0_i32 = arith.constant 0 : i32
    %c0_i32_0 = arith.constant 0 : i32
    return %c0_i32, %arg1 : i32, i32
  }
  func.func @transform_3(%arg0: i32, %arg1: i32) -> (i32, i32) {
    %c0_i32 = arith.constant 0 : i32
    %c0_i32_0 = arith.constant 0 : i32
    return %c0_i32, %arg1 : i32, i32
  }
  func.func @transform_4(%arg0: i32, %arg1: i32) -> (i32, i32) {
    %c0_i32 = arith.constant 0 : i32
    %c0_i32_0 = arith.constant 0 : i32
    return %c0_i32, %arg1 : i32, i32
  }
  func.func @transform_5(%arg0: i32, %arg1: i32) -> (i32, i32) {
    %c0_i32 = arith.constant 0 : i32
    return %arg0, %arg1 : i32, i32
  }
}

module attributes {stable_mosaic.version = 11 : i64} {
  func.func @_mm_bias_silu_kernel(%arg0: i32, %arg1: i32, %arg2: i32, %arg3: memref<64x16xbf16, #tpu.memory_space<vmem>>, %arg4: memref<16x128xbf16, #tpu.memory_space<vmem>>, %arg5: memref<1x128xf32, #tpu.memory_space<vmem>>, %arg6: memref<64x128xf32, #tpu.memory_space<vmem>>, %arg7: memref<64x128xf32, #tpu.memory_space<vmem>>) attributes {dimension_semantics = [#tpu.dimension_semantics<parallel>, #tpu.dimension_semantics<parallel>, #tpu.dimension_semantics<arbitrary>], iteration_bounds = array<i64: 2, 1, 1>, scalar_prefetch = 0 : i64, scratch_operands = 1 : i64, tpu.core_type = #tpu.core_type<tc>, window_params = [{transform_indices = @transform_0, window_bounds = array<i64: 64, 16>}, {transform_indices = @transform_1, window_bounds = array<i64: 16, 128>}, {transform_indices = @transform_2, window_bounds = array<i64: 1, 128>}, {transform_indices = @transform_3, window_bounds = array<i64: 64, 128>}]} {
    %c0_i32 = arith.constant 0 : i32
    %0 = arith.cmpi eq, %arg2, %c0_i32 : i32
    %1 = arith.extui %0 : i1 to i32
    %c0_i32_0 = arith.constant 0 : i32
    %2 = arith.cmpi ne, %1, %c0_i32_0 : i32
    scf.if %2 {
      %cst_10 = arith.constant 0.000000e+00 : f32
      %12 = vector.broadcast %cst_10 : f32 to vector<64x128xf32>
      %c0_11 = arith.constant 0 : index
      %c0_12 = arith.constant 0 : index
      %13 = vector.load %arg7[%c0_11, %c0_12] : memref<64x128xf32, #tpu.memory_space<vmem>>, vector<64x128xf32>
      tpu.vector_store %arg7[%c0_11, %c0_12], %12 {strides = array<i32>} : memref<64x128xf32, #tpu.memory_space<vmem>>, vector<64x128xf32>,
    } else {
    }
    %c0 = arith.constant 0 : index
    %c0_1 = arith.constant 0 : index
    %3 = vector.load %arg7[%c0, %c0_1] : memref<64x128xf32, #tpu.memory_space<vmem>>, vector<64x128xf32>
    %c0_2 = arith.constant 0 : index
    %c0_3 = arith.constant 0 : index
    %4 = vector.load %arg3[%c0_2, %c0_3] : memref<64x16xbf16, #tpu.memory_space<vmem>>, vector<64x16xbf16>
    %c0_4 = arith.constant 0 : index
    %c0_5 = arith.constant 0 : index
    %5 = vector.load %arg4[%c0_4, %c0_5] : memref<16x128xbf16, #tpu.memory_space<vmem>>, vector<16x128xbf16>
    %cst = arith.constant dense<0.000000e+00> : vector<64x128xf32>
    %6 = tpu.matmul %4, %5, %cst {dimension_numbers = #tpu.dot_dimension_numbers<[1], [0], [0], [1], [0, 0, 1, 1], [], []>} : vector<64x16xbf16>, vector<16x128xbf16>, vector<64x128xf32> -> vector<64x128xf32>
    %7 = arith.addf %3, %6 : vector<64x128xf32>
    %c0_6 = arith.constant 0 : index
    %c0_7 = arith.constant 0 : index
    %8 = vector.load %arg7[%c0_6, %c0_7] : memref<64x128xf32, #tpu.memory_space<vmem>>, vector<64x128xf32>
    tpu.vector_store %arg7[%c0_6, %c0_7], %7 {strides = array<i32>} : memref<64x128xf32, #tpu.memory_space<vmem>>, vector<64x128xf32>,
    %c0_i32_8 = arith.constant 0 : i32
    %9 = arith.cmpi eq, %arg2, %c0_i32_8 : i32
    %10 = arith.extui %9 : i1 to i32
    %c0_i32_9 = arith.constant 0 : i32
    %11 = arith.cmpi ne, %10, %c0_i32_9 : i32
    scf.if %11 {
      %c0_10 = arith.constant 0 : index
      %c0_11 = arith.constant 0 : index
      %12 = vector.load %arg7[%c0_10, %c0_11] : memref<64x128xf32, #tpu.memory_space<vmem>>, vector<64x128xf32>
      %c0_12 = arith.constant 0 : index
      %c0_13 = arith.constant 0 : index
      %13 = vector.load %arg5[%c0_12, %c0_13] : memref<1x128xf32, #tpu.memory_space<vmem>>, vector<1x128xf32>
      %14 = vector.broadcast %13 : vector<1x128xf32> to vector<64x128xf32>
      %15 = arith.addf %12, %14 : vector<64x128xf32>
      %cst_14 = arith.constant 0.000000e+00 : f32
      %16 = vector.broadcast %cst_14 : f32 to vector<64x128xf32>
      %17 = arith.subf %16, %15 : vector<64x128xf32>
      %18 = math.exp %17 : vector<64x128xf32>
      %cst_15 = arith.constant 1.000000e+00 : f32
      %19 = vector.broadcast %cst_15 : f32 to vector<64x128xf32>
      %20 = arith.addf %19, %18 : vector<64x128xf32>
      %21 = tpu.reciprocal %20 {approx = true} : vector<64x128xf32> -> vector<64x128xf32>
      %22 = arith.mulf %15, %21 : vector<64x128xf32>
      %c0_16 = arith.constant 0 : index
      %c0_17 = arith.constant 0 : index
      %23 = vector.load %arg6[%c0_16, %c0_17] : memref<64x128xf32, #tpu.memory_space<vmem>>, vector<64x128xf32>
      tpu.vector_store %arg6[%c0_16, %c0_17], %22 {strides = array<i32>} : memref<64x128xf32, #tpu.memory_space<vmem>>, vector<64x128xf32>,
    } else {
    }
    return
  }
  func.func @transform_0(%arg0: i32, %arg1: i32, %arg2: i32) -> (i32, i32) {
    %c0_i32 = arith.constant 0 : i32
    return %arg0, %arg2 : i32, i32
  }
  func.func @transform_1(%arg0: i32, %arg1: i32, %arg2: i32) -> (i32, i32) {
    %c0_i32 = arith.constant 0 : i32
    return %arg2, %arg1 : i32, i32
  }
  func.func @transform_2(%arg0: i32, %arg1: i32, %arg2: i32) -> (i32, i32) {
    %c0_i32 = arith.constant 0 : i32
    %c0_i32_0 = arith.constant 0 : i32
    return %c0_i32, %arg1 : i32, i32
  }
  func.func @transform_3(%arg0: i32, %arg1: i32, %arg2: i32) -> (i32, i32) {
    %c0_i32 = arith.constant 0 : i32
    return %arg0, %arg1 : i32, i32
  }
}

module attributes {stable_mosaic.version = 11 : i64} {
  func.func @kernel(%arg0: i32, %arg1: i32, %arg2: memref<128x8xbf16, #tpu.memory_space<vmem>>, %arg3: memref<128x8xbf16, #tpu.memory_space<vmem>>, %arg4: memref<8x128xbf16, #tpu.memory_space<vmem>>, %arg5: memref<8x128xbf16, #tpu.memory_space<vmem>>, %arg6: memref<1x128xf32, #tpu.memory_space<vmem>>, %arg7: memref<128x128xf32, #tpu.memory_space<vmem>>) attributes {dimension_semantics = [#tpu.dimension_semantics<parallel>, #tpu.dimension_semantics<parallel>], iteration_bounds = array<i64: 4, 1>, scalar_prefetch = 0 : i64, scratch_operands = 0 : i64, tpu.core_type = #tpu.core_type<tc>, window_params = [{transform_indices = @transform_0, window_bounds = array<i64: 128, 8>}, {transform_indices = @transform_1, window_bounds = array<i64: 128, 8>}, {transform_indices = @transform_2, window_bounds = array<i64: 8, 128>}, {transform_indices = @transform_3, window_bounds = array<i64: 8, 128>}, {transform_indices = @transform_4, window_bounds = array<i64: 1, 128>}, {transform_indices = @transform_5, window_bounds = array<i64: 128, 128>}]} {
    %c0 = arith.constant 0 : index
    %c0_0 = arith.constant 0 : index
    %0 = vector.load %arg2[%c0, %c0_0] : memref<128x8xbf16, #tpu.memory_space<vmem>>, vector<128x8xbf16>
    %c0_1 = arith.constant 0 : index
    %c0_2 = arith.constant 0 : index
    %1 = vector.load %arg4[%c0_1, %c0_2] : memref<8x128xbf16, #tpu.memory_space<vmem>>, vector<8x128xbf16>
    %cst = arith.constant dense<0.000000e+00> : vector<128x128xf32>
    %2 = tpu.matmul %0, %1, %cst {dimension_numbers = #tpu.dot_dimension_numbers<[1], [0], [0], [1], [0, 0, 1, 1], [], []>} : vector<128x8xbf16>, vector<8x128xbf16>, vector<128x128xf32> -> vector<128x128xf32>
    %c0_3 = arith.constant 0 : index
    %c0_4 = arith.constant 0 : index
    %3 = vector.load %arg3[%c0_3, %c0_4] : memref<128x8xbf16, #tpu.memory_space<vmem>>, vector<128x8xbf16>
    %c0_5 = arith.constant 0 : index
    %c0_6 = arith.constant 0 : index
    %4 = vector.load %arg5[%c0_5, %c0_6] : memref<8x128xbf16, #tpu.memory_space<vmem>>, vector<8x128xbf16>
    %cst_7 = arith.constant dense<0.000000e+00> : vector<128x128xf32>
    %5 = tpu.matmul %3, %4, %cst_7 {dimension_numbers = #tpu.dot_dimension_numbers<[1], [0], [0], [1], [0, 0, 1, 1], [], []>} : vector<128x8xbf16>, vector<8x128xbf16>, vector<128x128xf32> -> vector<128x128xf32>
    %6 = arith.addf %2, %5 : vector<128x128xf32>
    %c0_8 = arith.constant 0 : index
    %c0_9 = arith.constant 0 : index
    %7 = vector.load %arg6[%c0_8, %c0_9] : memref<1x128xf32, #tpu.memory_space<vmem>>, vector<1x128xf32>
    %8 = vector.broadcast %7 : vector<1x128xf32> to vector<128x128xf32>
    %9 = arith.addf %6, %8 : vector<128x128xf32>
    %cst_10 = arith.constant 0.000000e+00 : f32
    %10 = vector.broadcast %cst_10 : f32 to vector<128x128xf32>
    %11 = arith.subf %10, %9 : vector<128x128xf32>
    %12 = math.exp %11 : vector<128x128xf32>
    %cst_11 = arith.constant 1.000000e+00 : f32
    %13 = vector.broadcast %cst_11 : f32 to vector<128x128xf32>
    %14 = arith.addf %13, %12 : vector<128x128xf32>
    %15 = tpu.reciprocal %14 {approx = true} : vector<128x128xf32> -> vector<128x128xf32>
    %16 = arith.mulf %9, %15 : vector<128x128xf32>
    %c0_12 = arith.constant 0 : index
    %c0_13 = arith.constant 0 : index
    %17 = vector.load %arg7[%c0_12, %c0_13] : memref<128x128xf32, #tpu.memory_space<vmem>>, vector<128x128xf32>
    tpu.vector_store %arg7[%c0_12, %c0_13], %16 {strides = array<i32>} : memref<128x128xf32, #tpu.memory_space<vmem>>, vector<128x128xf32>,
    return
  }
  func.func @transform_0(%arg0: i32, %arg1: i32) -> (i32, i32) {
    %c0_i32 = arith.constant 0 : i32
    %c0_i32_0 = arith.constant 0 : i32
    return %arg0, %c0_i32 : i32, i32
  }
  func.func @transform_1(%arg0: i32, %arg1: i32) -> (i32, i32) {
    %c0_i32 = arith.constant 0 : i32
    %c0_i32_0 = arith.constant 0 : i32
    return %arg0, %c0_i32 : i32, i32
  }
  func.func @transform_2(%arg0: i32, %arg1: i32) -> (i32, i32) {
    %c0_i32 = arith.constant 0 : i32
    %c0_i32_0 = arith.constant 0 : i32
    return %c0_i32, %arg1 : i32, i32
  }
  func.func @transform_3(%arg0: i32, %arg1: i32) -> (i32, i32) {
    %c0_i32 = arith.constant 0 : i32
    %c0_i32_0 = arith.constant 0 : i32
    return %c0_i32, %arg1 : i32, i32
  }
  func.func @transform_4(%arg0: i32, %arg1: i32) -> (i32, i32) {
    %c0_i32 = arith.constant 0 : i32
    %c0_i32_0 = arith.constant 0 : i32
    return %c0_i32, %arg1 : i32, i32
  }
  func.func @transform_5(%arg0: i32, %arg1: i32) -> (i32, i32) {
    %c0_i32 = arith.constant 0 : i32
    return %arg0, %arg1 : i32, i32
  }
}

module attributes {stable_mosaic.version = 11 : i64} {
  func.func @_mm_bias_silu_kernel(%arg0: i32, %arg1: i32, %arg2: i32, %arg3: memref<128x36xbf16, #tpu.memory_space<vmem>>, %arg4: memref<36x128xbf16, #tpu.memory_space<vmem>>, %arg5: memref<1x128xf32, #tpu.memory_space<vmem>>, %arg6: memref<128x128xf32, #tpu.memory_space<vmem>>, %arg7: memref<128x128xf32, #tpu.memory_space<vmem>>) attributes {dimension_semantics = [#tpu.dimension_semantics<parallel>, #tpu.dimension_semantics<parallel>, #tpu.dimension_semantics<arbitrary>], iteration_bounds = array<i64: 4, 1, 1>, scalar_prefetch = 0 : i64, scratch_operands = 1 : i64, tpu.core_type = #tpu.core_type<tc>, window_params = [{transform_indices = @transform_0, window_bounds = array<i64: 128, 36>}, {transform_indices = @transform_1, window_bounds = array<i64: 36, 128>}, {transform_indices = @transform_2, window_bounds = array<i64: 1, 128>}, {transform_indices = @transform_3, window_bounds = array<i64: 128, 128>}]} {
    %c0_i32 = arith.constant 0 : i32
    %0 = arith.cmpi eq, %arg2, %c0_i32 : i32
    %1 = arith.extui %0 : i1 to i32
    %c0_i32_0 = arith.constant 0 : i32
    %2 = arith.cmpi ne, %1, %c0_i32_0 : i32
    scf.if %2 {
      %cst_10 = arith.constant 0.000000e+00 : f32
      %12 = vector.broadcast %cst_10 : f32 to vector<128x128xf32>
      %c0_11 = arith.constant 0 : index
      %c0_12 = arith.constant 0 : index
      %13 = vector.load %arg7[%c0_11, %c0_12] : memref<128x128xf32, #tpu.memory_space<vmem>>, vector<128x128xf32>
      tpu.vector_store %arg7[%c0_11, %c0_12], %12 {strides = array<i32>} : memref<128x128xf32, #tpu.memory_space<vmem>>, vector<128x128xf32>,
    } else {
    }
    %c0 = arith.constant 0 : index
    %c0_1 = arith.constant 0 : index
    %3 = vector.load %arg7[%c0, %c0_1] : memref<128x128xf32, #tpu.memory_space<vmem>>, vector<128x128xf32>
    %c0_2 = arith.constant 0 : index
    %c0_3 = arith.constant 0 : index
    %4 = vector.load %arg3[%c0_2, %c0_3] : memref<128x36xbf16, #tpu.memory_space<vmem>>, vector<128x36xbf16>
    %c0_4 = arith.constant 0 : index
    %c0_5 = arith.constant 0 : index
    %5 = vector.load %arg4[%c0_4, %c0_5] : memref<36x128xbf16, #tpu.memory_space<vmem>>, vector<36x128xbf16>
    %cst = arith.constant dense<0.000000e+00> : vector<128x128xf32>
    %6 = tpu.matmul %4, %5, %cst {dimension_numbers = #tpu.dot_dimension_numbers<[1], [0], [0], [1], [0, 0, 1, 1], [], []>} : vector<128x36xbf16>, vector<36x128xbf16>, vector<128x128xf32> -> vector<128x128xf32>
    %7 = arith.addf %3, %6 : vector<128x128xf32>
    %c0_6 = arith.constant 0 : index
    %c0_7 = arith.constant 0 : index
    %8 = vector.load %arg7[%c0_6, %c0_7] : memref<128x128xf32, #tpu.memory_space<vmem>>, vector<128x128xf32>
    tpu.vector_store %arg7[%c0_6, %c0_7], %7 {strides = array<i32>} : memref<128x128xf32, #tpu.memory_space<vmem>>, vector<128x128xf32>,
    %c0_i32_8 = arith.constant 0 : i32
    %9 = arith.cmpi eq, %arg2, %c0_i32_8 : i32
    %10 = arith.extui %9 : i1 to i32
    %c0_i32_9 = arith.constant 0 : i32
    %11 = arith.cmpi ne, %10, %c0_i32_9 : i32
    scf.if %11 {
      %c0_10 = arith.constant 0 : index
      %c0_11 = arith.constant 0 : index
      %12 = vector.load %arg7[%c0_10, %c0_11] : memref<128x128xf32, #tpu.memory_space<vmem>>, vector<128x128xf32>
      %c0_12 = arith.constant 0 : index
      %c0_13 = arith.constant 0 : index
      %13 = vector.load %arg5[%c0_12, %c0_13] : memref<1x128xf32, #tpu.memory_space<vmem>>, vector<1x128xf32>
      %14 = vector.broadcast %13 : vector<1x128xf32> to vector<128x128xf32>
      %15 = arith.addf %12, %14 : vector<128x128xf32>
      %cst_14 = arith.constant 0.000000e+00 : f32
      %16 = vector.broadcast %cst_14 : f32 to vector<128x128xf32>
      %17 = arith.subf %16, %15 : vector<128x128xf32>
      %18 = math.exp %17 : vector<128x128xf32>
      %cst_15 = arith.constant 1.000000e+00 : f32
      %19 = vector.broadcast %cst_15 : f32 to vector<128x128xf32>
      %20 = arith.addf %19, %18 : vector<128x128xf32>
      %21 = tpu.reciprocal %20 {approx = true} : vector<128x128xf32> -> vector<128x128xf32>
      %22 = arith.mulf %15, %21 : vector<128x128xf32>
      %c0_16 = arith.constant 0 : index
      %c0_17 = arith.constant 0 : index
      %23 = vector.load %arg6[%c0_16, %c0_17] : memref<128x128xf32, #tpu.memory_space<vmem>>, vector<128x128xf32>
      tpu.vector_store %arg6[%c0_16, %c0_17], %22 {strides = array<i32>} : memref<128x128xf32, #tpu.memory_space<vmem>>, vector<128x128xf32>,
    } else {
    }
    return
  }
  func.func @transform_0(%arg0: i32, %arg1: i32, %arg2: i32) -> (i32, i32) {
    %c0_i32 = arith.constant 0 : i32
    return %arg0, %arg2 : i32, i32
  }
  func.func @transform_1(%arg0: i32, %arg1: i32, %arg2: i32) -> (i32, i32) {
    %c0_i32 = arith.constant 0 : i32
    return %arg2, %arg1 : i32, i32
  }
  func.func @transform_2(%arg0: i32, %arg1: i32, %arg2: i32) -> (i32, i32) {
    %c0_i32 = arith.constant 0 : i32
    %c0_i32_0 = arith.constant 0 : i32
    return %c0_i32, %arg1 : i32, i32
  }
  func.func @transform_3(%arg0: i32, %arg1: i32, %arg2: i32) -> (i32, i32) {
    %c0_i32 = arith.constant 0 : i32
    return %arg0, %arg1 : i32, i32
  }
}

module attributes {stable_mosaic.version = 11 : i64} {
  func.func @kernel(%arg0: i32, %arg1: i32, %arg2: memref<128x8xbf16, #tpu.memory_space<vmem>>, %arg3: memref<128x4xbf16, #tpu.memory_space<vmem>>, %arg4: memref<8x128xbf16, #tpu.memory_space<vmem>>, %arg5: memref<4x128xbf16, #tpu.memory_space<vmem>>, %arg6: memref<1x128xf32, #tpu.memory_space<vmem>>, %arg7: memref<128x128xf32, #tpu.memory_space<vmem>>) attributes {dimension_semantics = [#tpu.dimension_semantics<parallel>, #tpu.dimension_semantics<parallel>], iteration_bounds = array<i64: 4, 1>, scalar_prefetch = 0 : i64, scratch_operands = 0 : i64, tpu.core_type = #tpu.core_type<tc>, window_params = [{transform_indices = @transform_0, window_bounds = array<i64: 128, 8>}, {transform_indices = @transform_1, window_bounds = array<i64: 128, 4>}, {transform_indices = @transform_2, window_bounds = array<i64: 8, 128>}, {transform_indices = @transform_3, window_bounds = array<i64: 4, 128>}, {transform_indices = @transform_4, window_bounds = array<i64: 1, 128>}, {transform_indices = @transform_5, window_bounds = array<i64: 128, 128>}]} {
    %c0 = arith.constant 0 : index
    %c0_0 = arith.constant 0 : index
    %0 = vector.load %arg2[%c0, %c0_0] : memref<128x8xbf16, #tpu.memory_space<vmem>>, vector<128x8xbf16>
    %c0_1 = arith.constant 0 : index
    %c0_2 = arith.constant 0 : index
    %1 = vector.load %arg4[%c0_1, %c0_2] : memref<8x128xbf16, #tpu.memory_space<vmem>>, vector<8x128xbf16>
    %cst = arith.constant dense<0.000000e+00> : vector<128x128xf32>
    %2 = tpu.matmul %0, %1, %cst {dimension_numbers = #tpu.dot_dimension_numbers<[1], [0], [0], [1], [0, 0, 1, 1], [], []>} : vector<128x8xbf16>, vector<8x128xbf16>, vector<128x128xf32> -> vector<128x128xf32>
    %c0_3 = arith.constant 0 : index
    %c0_4 = arith.constant 0 : index
    %3 = vector.load %arg3[%c0_3, %c0_4] : memref<128x4xbf16, #tpu.memory_space<vmem>>, vector<128x4xbf16>
    %c0_5 = arith.constant 0 : index
    %c0_6 = arith.constant 0 : index
    %4 = vector.load %arg5[%c0_5, %c0_6] : memref<4x128xbf16, #tpu.memory_space<vmem>>, vector<4x128xbf16>
    %cst_7 = arith.constant dense<0.000000e+00> : vector<128x128xf32>
    %5 = tpu.matmul %3, %4, %cst_7 {dimension_numbers = #tpu.dot_dimension_numbers<[1], [0], [0], [1], [0, 0, 1, 1], [], []>} : vector<128x4xbf16>, vector<4x128xbf16>, vector<128x128xf32> -> vector<128x128xf32>
    %6 = arith.addf %2, %5 : vector<128x128xf32>
    %c0_8 = arith.constant 0 : index
    %c0_9 = arith.constant 0 : index
    %7 = vector.load %arg6[%c0_8, %c0_9] : memref<1x128xf32, #tpu.memory_space<vmem>>, vector<1x128xf32>
    %8 = vector.broadcast %7 : vector<1x128xf32> to vector<128x128xf32>
    %9 = arith.addf %6, %8 : vector<128x128xf32>
    %cst_10 = arith.constant 0.000000e+00 : f32
    %10 = vector.broadcast %cst_10 : f32 to vector<128x128xf32>
    %11 = arith.subf %10, %9 : vector<128x128xf32>
    %12 = math.exp %11 : vector<128x128xf32>
    %cst_11 = arith.constant 1.000000e+00 : f32
    %13 = vector.broadcast %cst_11 : f32 to vector<128x128xf32>
    %14 = arith.addf %13, %12 : vector<128x128xf32>
    %15 = tpu.reciprocal %14 {approx = true} : vector<128x128xf32> -> vector<128x128xf32>
    %16 = arith.mulf %9, %15 : vector<128x128xf32>
    %c0_12 = arith.constant 0 : index
    %c0_13 = arith.constant 0 : index
    %17 = vector.load %arg7[%c0_12, %c0_13] : memref<128x128xf32, #tpu.memory_space<vmem>>, vector<128x128xf32>
    tpu.vector_store %arg7[%c0_12, %c0_13], %16 {strides = array<i32>} : memref<128x128xf32, #tpu.memory_space<vmem>>, vector<128x128xf32>,
    return
  }
  func.func @transform_0(%arg0: i32, %arg1: i32) -> (i32, i32) {
    %c0_i32 = arith.constant 0 : i32
    %c0_i32_0 = arith.constant 0 : i32
    return %arg0, %c0_i32 : i32, i32
  }
  func.func @transform_1(%arg0: i32, %arg1: i32) -> (i32, i32) {
    %c0_i32 = arith.constant 0 : i32
    %c0_i32_0 = arith.constant 0 : i32
    return %arg0, %c0_i32 : i32, i32
  }
  func.func @transform_2(%arg0: i32, %arg1: i32) -> (i32, i32) {
    %c0_i32 = arith.constant 0 : i32
    %c0_i32_0 = arith.constant 0 : i32
    return %c0_i32, %arg1 : i32, i32
  }
  func.func @transform_3(%arg0: i32, %arg1: i32) -> (i32, i32) {
    %c0_i32 = arith.constant 0 : i32
    %c0_i32_0 = arith.constant 0 : i32
    return %c0_i32, %arg1 : i32, i32
  }
  func.func @transform_4(%arg0: i32, %arg1: i32) -> (i32, i32) {
    %c0_i32 = arith.constant 0 : i32
    %c0_i32_0 = arith.constant 0 : i32
    return %c0_i32, %arg1 : i32, i32
  }
  func.func @transform_5(%arg0: i32, %arg1: i32) -> (i32, i32) {
    %c0_i32 = arith.constant 0 : i32
    return %arg0, %arg1 : i32, i32
  }
}

module attributes {stable_mosaic.version = 11 : i64} {
  func.func @kernel(%arg0: i32, %arg1: i32, %arg2: memref<16x16xbf16, #tpu.memory_space<vmem>>, %arg3: memref<16x32xbf16, #tpu.memory_space<vmem>>, %arg4: memref<16x128xbf16, #tpu.memory_space<vmem>>, %arg5: memref<32x128xbf16, #tpu.memory_space<vmem>>, %arg6: memref<1x128xf32, #tpu.memory_space<vmem>>, %arg7: memref<16x128xf32, #tpu.memory_space<vmem>>) attributes {dimension_semantics = [#tpu.dimension_semantics<parallel>, #tpu.dimension_semantics<parallel>], iteration_bounds = array<i64: 2, 1>, scalar_prefetch = 0 : i64, scratch_operands = 0 : i64, tpu.core_type = #tpu.core_type<tc>, window_params = [{transform_indices = @transform_0, window_bounds = array<i64: 16, 16>}, {transform_indices = @transform_1, window_bounds = array<i64: 16, 32>}, {transform_indices = @transform_2, window_bounds = array<i64: 16, 128>}, {transform_indices = @transform_3, window_bounds = array<i64: 32, 128>}, {transform_indices = @transform_4, window_bounds = array<i64: 1, 128>}, {transform_indices = @transform_5, window_bounds = array<i64: 16, 128>}]} {
    %c0 = arith.constant 0 : index
    %c0_0 = arith.constant 0 : index
    %0 = vector.load %arg2[%c0, %c0_0] : memref<16x16xbf16, #tpu.memory_space<vmem>>, vector<16x16xbf16>
    %c0_1 = arith.constant 0 : index
    %c0_2 = arith.constant 0 : index
    %1 = vector.load %arg4[%c0_1, %c0_2] : memref<16x128xbf16, #tpu.memory_space<vmem>>, vector<16x128xbf16>
    %cst = arith.constant dense<0.000000e+00> : vector<16x128xf32>
    %2 = tpu.matmul %0, %1, %cst {dimension_numbers = #tpu.dot_dimension_numbers<[1], [0], [0], [1], [0, 0, 1, 1], [], []>} : vector<16x16xbf16>, vector<16x128xbf16>, vector<16x128xf32> -> vector<16x128xf32>
    %c0_3 = arith.constant 0 : index
    %c0_4 = arith.constant 0 : index
    %3 = vector.load %arg3[%c0_3, %c0_4] : memref<16x32xbf16, #tpu.memory_space<vmem>>, vector<16x32xbf16>
    %c0_5 = arith.constant 0 : index
    %c0_6 = arith.constant 0 : index
    %4 = vector.load %arg5[%c0_5, %c0_6] : memref<32x128xbf16, #tpu.memory_space<vmem>>, vector<32x128xbf16>
    %cst_7 = arith.constant dense<0.000000e+00> : vector<16x128xf32>
    %5 = tpu.matmul %3, %4, %cst_7 {dimension_numbers = #tpu.dot_dimension_numbers<[1], [0], [0], [1], [0, 0, 1, 1], [], []>} : vector<16x32xbf16>, vector<32x128xbf16>, vector<16x128xf32> -> vector<16x128xf32>
    %6 = arith.addf %2, %5 : vector<16x128xf32>
    %c0_8 = arith.constant 0 : index
    %c0_9 = arith.constant 0 : index
    %7 = vector.load %arg6[%c0_8, %c0_9] : memref<1x128xf32, #tpu.memory_space<vmem>>, vector<1x128xf32>
    %8 = vector.broadcast %7 : vector<1x128xf32> to vector<16x128xf32>
    %9 = arith.addf %6, %8 : vector<16x128xf32>
    %cst_10 = arith.constant 0.000000e+00 : f32
    %10 = vector.broadcast %cst_10 : f32 to vector<16x128xf32>
    %11 = arith.subf %10, %9 : vector<16x128xf32>
    %12 = math.exp %11 : vector<16x128xf32>
    %cst_11 = arith.constant 1.000000e+00 : f32
    %13 = vector.broadcast %cst_11 : f32 to vector<16x128xf32>
    %14 = arith.addf %13, %12 : vector<16x128xf32>
    %15 = tpu.reciprocal %14 {approx = true} : vector<16x128xf32> -> vector<16x128xf32>
    %16 = arith.mulf %9, %15 : vector<16x128xf32>
    %c0_12 = arith.constant 0 : index
    %c0_13 = arith.constant 0 : index
    %17 = vector.load %arg7[%c0_12, %c0_13] : memref<16x128xf32, #tpu.memory_space<vmem>>, vector<16x128xf32>
    tpu.vector_store %arg7[%c0_12, %c0_13], %16 {strides = array<i32>} : memref<16x128xf32, #tpu.memory_space<vmem>>, vector<16x128xf32>,
    return
  }
  func.func @transform_0(%arg0: i32, %arg1: i32) -> (i32, i32) {
    %c0_i32 = arith.constant 0 : i32
    %c0_i32_0 = arith.constant 0 : i32
    return %arg0, %c0_i32 : i32, i32
  }
  func.func @transform_1(%arg0: i32, %arg1: i32) -> (i32, i32) {
    %c0_i32 = arith.constant 0 : i32
    %c0_i32_0 = arith.constant 0 : i32
    return %arg0, %c0_i32 : i32, i32
  }
  func.func @transform_2(%arg0: i32, %arg1: i32) -> (i32, i32) {
    %c0_i32 = arith.constant 0 : i32
    %c0_i32_0 = arith.constant 0 : i32
    return %c0_i32, %arg1 : i32, i32
  }
  func.func @transform_3(%arg0: i32, %arg1: i32) -> (i32, i32) {
    %c0_i32 = arith.constant 0 : i32
    %c0_i32_0 = arith.constant 0 : i32
    return %c0_i32, %arg1 : i32, i32
  }
  func.func @transform_4(%arg0: i32, %arg1: i32) -> (i32, i32) {
    %c0_i32 = arith.constant 0 : i32
    %c0_i32_0 = arith.constant 0 : i32
    return %c0_i32, %arg1 : i32, i32
  }
  func.func @transform_5(%arg0: i32, %arg1: i32) -> (i32, i32) {
    %c0_i32 = arith.constant 0 : i32
    return %arg0, %arg1 : i32, i32
  }
}

module attributes {stable_mosaic.version = 11 : i64} {
  func.func @_mm_bias_silu_kernel(%arg0: i32, %arg1: i32, %arg2: i32, %arg3: memref<16x144xbf16, #tpu.memory_space<vmem>>, %arg4: memref<144x128xbf16, #tpu.memory_space<vmem>>, %arg5: memref<1x128xf32, #tpu.memory_space<vmem>>, %arg6: memref<16x128xf32, #tpu.memory_space<vmem>>, %arg7: memref<16x128xf32, #tpu.memory_space<vmem>>) attributes {dimension_semantics = [#tpu.dimension_semantics<parallel>, #tpu.dimension_semantics<parallel>, #tpu.dimension_semantics<arbitrary>], iteration_bounds = array<i64: 2, 1, 1>, scalar_prefetch = 0 : i64, scratch_operands = 1 : i64, tpu.core_type = #tpu.core_type<tc>, window_params = [{transform_indices = @transform_0, window_bounds = array<i64: 16, 144>}, {transform_indices = @transform_1, window_bounds = array<i64: 144, 128>}, {transform_indices = @transform_2, window_bounds = array<i64: 1, 128>}, {transform_indices = @transform_3, window_bounds = array<i64: 16, 128>}]} {
    %c0_i32 = arith.constant 0 : i32
    %0 = arith.cmpi eq, %arg2, %c0_i32 : i32
    %1 = arith.extui %0 : i1 to i32
    %c0_i32_0 = arith.constant 0 : i32
    %2 = arith.cmpi ne, %1, %c0_i32_0 : i32
    scf.if %2 {
      %cst_10 = arith.constant 0.000000e+00 : f32
      %12 = vector.broadcast %cst_10 : f32 to vector<16x128xf32>
      %c0_11 = arith.constant 0 : index
      %c0_12 = arith.constant 0 : index
      %13 = vector.load %arg7[%c0_11, %c0_12] : memref<16x128xf32, #tpu.memory_space<vmem>>, vector<16x128xf32>
      tpu.vector_store %arg7[%c0_11, %c0_12], %12 {strides = array<i32>} : memref<16x128xf32, #tpu.memory_space<vmem>>, vector<16x128xf32>,
    } else {
    }
    %c0 = arith.constant 0 : index
    %c0_1 = arith.constant 0 : index
    %3 = vector.load %arg7[%c0, %c0_1] : memref<16x128xf32, #tpu.memory_space<vmem>>, vector<16x128xf32>
    %c0_2 = arith.constant 0 : index
    %c0_3 = arith.constant 0 : index
    %4 = vector.load %arg3[%c0_2, %c0_3] : memref<16x144xbf16, #tpu.memory_space<vmem>>, vector<16x144xbf16>
    %c0_4 = arith.constant 0 : index
    %c0_5 = arith.constant 0 : index
    %5 = vector.load %arg4[%c0_4, %c0_5] : memref<144x128xbf16, #tpu.memory_space<vmem>>, vector<144x128xbf16>
    %cst = arith.constant dense<0.000000e+00> : vector<16x128xf32>
    %6 = tpu.matmul %4, %5, %cst {dimension_numbers = #tpu.dot_dimension_numbers<[1], [0], [0], [1], [0, 0, 1, 1], [], []>} : vector<16x144xbf16>, vector<144x128xbf16>, vector<16x128xf32> -> vector<16x128xf32>
    %7 = arith.addf %3, %6 : vector<16x128xf32>
    %c0_6 = arith.constant 0 : index
    %c0_7 = arith.constant 0 : index
    %8 = vector.load %arg7[%c0_6, %c0_7] : memref<16x128xf32, #tpu.memory_space<vmem>>, vector<16x128xf32>
    tpu.vector_store %arg7[%c0_6, %c0_7], %7 {strides = array<i32>} : memref<16x128xf32, #tpu.memory_space<vmem>>, vector<16x128xf32>,
    %c0_i32_8 = arith.constant 0 : i32
    %9 = arith.cmpi eq, %arg2, %c0_i32_8 : i32
    %10 = arith.extui %9 : i1 to i32
    %c0_i32_9 = arith.constant 0 : i32
    %11 = arith.cmpi ne, %10, %c0_i32_9 : i32
    scf.if %11 {
      %c0_10 = arith.constant 0 : index
      %c0_11 = arith.constant 0 : index
      %12 = vector.load %arg7[%c0_10, %c0_11] : memref<16x128xf32, #tpu.memory_space<vmem>>, vector<16x128xf32>
      %c0_12 = arith.constant 0 : index
      %c0_13 = arith.constant 0 : index
      %13 = vector.load %arg5[%c0_12, %c0_13] : memref<1x128xf32, #tpu.memory_space<vmem>>, vector<1x128xf32>
      %14 = vector.broadcast %13 : vector<1x128xf32> to vector<16x128xf32>
      %15 = arith.addf %12, %14 : vector<16x128xf32>
      %cst_14 = arith.constant 0.000000e+00 : f32
      %16 = vector.broadcast %cst_14 : f32 to vector<16x128xf32>
      %17 = arith.subf %16, %15 : vector<16x128xf32>
      %18 = math.exp %17 : vector<16x128xf32>
      %cst_15 = arith.constant 1.000000e+00 : f32
      %19 = vector.broadcast %cst_15 : f32 to vector<16x128xf32>
      %20 = arith.addf %19, %18 : vector<16x128xf32>
      %21 = tpu.reciprocal %20 {approx = true} : vector<16x128xf32> -> vector<16x128xf32>
      %22 = arith.mulf %15, %21 : vector<16x128xf32>
      %c0_16 = arith.constant 0 : index
      %c0_17 = arith.constant 0 : index
      %23 = vector.load %arg6[%c0_16, %c0_17] : memref<16x128xf32, #tpu.memory_space<vmem>>, vector<16x128xf32>
      tpu.vector_store %arg6[%c0_16, %c0_17], %22 {strides = array<i32>} : memref<16x128xf32, #tpu.memory_space<vmem>>, vector<16x128xf32>,
    } else {
    }
    return
  }
  func.func @transform_0(%arg0: i32, %arg1: i32, %arg2: i32) -> (i32, i32) {
    %c0_i32 = arith.constant 0 : i32
    return %arg0, %arg2 : i32, i32
  }
  func.func @transform_1(%arg0: i32, %arg1: i32, %arg2: i32) -> (i32, i32) {
    %c0_i32 = arith.constant 0 : i32
    return %arg2, %arg1 : i32, i32
  }
  func.func @transform_2(%arg0: i32, %arg1: i32, %arg2: i32) -> (i32, i32) {
    %c0_i32 = arith.constant 0 : i32
    %c0_i32_0 = arith.constant 0 : i32
    return %c0_i32, %arg1 : i32, i32
  }
  func.func @transform_3(%arg0: i32, %arg1: i32, %arg2: i32) -> (i32, i32) {
    %c0_i32 = arith.constant 0 : i32
    return %arg0, %arg1 : i32, i32
  }
}

module attributes {stable_mosaic.version = 11 : i64} {
  func.func @kernel(%arg0: i32, %arg1: i32, %arg2: memref<64x8xbf16, #tpu.memory_space<vmem>>, %arg3: memref<64x16xbf16, #tpu.memory_space<vmem>>, %arg4: memref<8x128xbf16, #tpu.memory_space<vmem>>, %arg5: memref<16x128xbf16, #tpu.memory_space<vmem>>, %arg6: memref<1x128xf32, #tpu.memory_space<vmem>>, %arg7: memref<64x128xf32, #tpu.memory_space<vmem>>) attributes {dimension_semantics = [#tpu.dimension_semantics<parallel>, #tpu.dimension_semantics<parallel>], iteration_bounds = array<i64: 2, 1>, scalar_prefetch = 0 : i64, scratch_operands = 0 : i64, tpu.core_type = #tpu.core_type<tc>, window_params = [{transform_indices = @transform_0, window_bounds = array<i64: 64, 8>}, {transform_indices = @transform_1, window_bounds = array<i64: 64, 16>}, {transform_indices = @transform_2, window_bounds = array<i64: 8, 128>}, {transform_indices = @transform_3, window_bounds = array<i64: 16, 128>}, {transform_indices = @transform_4, window_bounds = array<i64: 1, 128>}, {transform_indices = @transform_5, window_bounds = array<i64: 64, 128>}]} {
    %c0 = arith.constant 0 : index
    %c0_0 = arith.constant 0 : index
    %0 = vector.load %arg2[%c0, %c0_0] : memref<64x8xbf16, #tpu.memory_space<vmem>>, vector<64x8xbf16>
    %c0_1 = arith.constant 0 : index
    %c0_2 = arith.constant 0 : index
    %1 = vector.load %arg4[%c0_1, %c0_2] : memref<8x128xbf16, #tpu.memory_space<vmem>>, vector<8x128xbf16>
    %cst = arith.constant dense<0.000000e+00> : vector<64x128xf32>
    %2 = tpu.matmul %0, %1, %cst {dimension_numbers = #tpu.dot_dimension_numbers<[1], [0], [0], [1], [0, 0, 1, 1], [], []>} : vector<64x8xbf16>, vector<8x128xbf16>, vector<64x128xf32> -> vector<64x128xf32>
    %c0_3 = arith.constant 0 : index
    %c0_4 = arith.constant 0 : index
    %3 = vector.load %arg3[%c0_3, %c0_4] : memref<64x16xbf16, #tpu.memory_space<vmem>>, vector<64x16xbf16>
    %c0_5 = arith.constant 0 : index
    %c0_6 = arith.constant 0 : index
    %4 = vector.load %arg5[%c0_5, %c0_6] : memref<16x128xbf16, #tpu.memory_space<vmem>>, vector<16x128xbf16>
    %cst_7 = arith.constant dense<0.000000e+00> : vector<64x128xf32>
    %5 = tpu.matmul %3, %4, %cst_7 {dimension_numbers = #tpu.dot_dimension_numbers<[1], [0], [0], [1], [0, 0, 1, 1], [], []>} : vector<64x16xbf16>, vector<16x128xbf16>, vector<64x128xf32> -> vector<64x128xf32>
    %6 = arith.addf %2, %5 : vector<64x128xf32>
    %c0_8 = arith.constant 0 : index
    %c0_9 = arith.constant 0 : index
    %7 = vector.load %arg6[%c0_8, %c0_9] : memref<1x128xf32, #tpu.memory_space<vmem>>, vector<1x128xf32>
    %8 = vector.broadcast %7 : vector<1x128xf32> to vector<64x128xf32>
    %9 = arith.addf %6, %8 : vector<64x128xf32>
    %cst_10 = arith.constant 0.000000e+00 : f32
    %10 = vector.broadcast %cst_10 : f32 to vector<64x128xf32>
    %11 = arith.subf %10, %9 : vector<64x128xf32>
    %12 = math.exp %11 : vector<64x128xf32>
    %cst_11 = arith.constant 1.000000e+00 : f32
    %13 = vector.broadcast %cst_11 : f32 to vector<64x128xf32>
    %14 = arith.addf %13, %12 : vector<64x128xf32>
    %15 = tpu.reciprocal %14 {approx = true} : vector<64x128xf32> -> vector<64x128xf32>
    %16 = arith.mulf %9, %15 : vector<64x128xf32>
    %c0_12 = arith.constant 0 : index
    %c0_13 = arith.constant 0 : index
    %17 = vector.load %arg7[%c0_12, %c0_13] : memref<64x128xf32, #tpu.memory_space<vmem>>, vector<64x128xf32>
    tpu.vector_store %arg7[%c0_12, %c0_13], %16 {strides = array<i32>} : memref<64x128xf32, #tpu.memory_space<vmem>>, vector<64x128xf32>,
    return
  }
  func.func @transform_0(%arg0: i32, %arg1: i32) -> (i32, i32) {
    %c0_i32 = arith.constant 0 : i32
    %c0_i32_0 = arith.constant 0 : i32
    return %arg0, %c0_i32 : i32, i32
  }
  func.func @transform_1(%arg0: i32, %arg1: i32) -> (i32, i32) {
    %c0_i32 = arith.constant 0 : i32
    %c0_i32_0 = arith.constant 0 : i32
    return %arg0, %c0_i32 : i32, i32
  }
  func.func @transform_2(%arg0: i32, %arg1: i32) -> (i32, i32) {
    %c0_i32 = arith.constant 0 : i32
    %c0_i32_0 = arith.constant 0 : i32
    return %c0_i32, %arg1 : i32, i32
  }
  func.func @transform_3(%arg0: i32, %arg1: i32) -> (i32, i32) {
    %c0_i32 = arith.constant 0 : i32
    %c0_i32_0 = arith.constant 0 : i32
    return %c0_i32, %arg1 : i32, i32
  }
  func.func @transform_4(%arg0: i32, %arg1: i32) -> (i32, i32) {
    %c0_i32 = arith.constant 0 : i32
    %c0_i32_0 = arith.constant 0 : i32
    return %c0_i32, %arg1 : i32, i32
  }
  func.func @transform_5(%arg0: i32, %arg1: i32) -> (i32, i32) {
    %c0_i32 = arith.constant 0 : i32
    return %arg0, %arg1 : i32, i32
  }
}

module attributes {stable_mosaic.version = 11 : i64} {
  func.func @kernel(%arg0: i32, %arg1: i32, %arg2: memref<16x32xbf16, #tpu.memory_space<vmem>>, %arg3: memref<16x16xbf16, #tpu.memory_space<vmem>>, %arg4: memref<32x128xbf16, #tpu.memory_space<vmem>>, %arg5: memref<16x128xbf16, #tpu.memory_space<vmem>>, %arg6: memref<1x128xf32, #tpu.memory_space<vmem>>, %arg7: memref<16x128xf32, #tpu.memory_space<vmem>>) attributes {dimension_semantics = [#tpu.dimension_semantics<parallel>, #tpu.dimension_semantics<parallel>], iteration_bounds = array<i64: 2, 1>, scalar_prefetch = 0 : i64, scratch_operands = 0 : i64, tpu.core_type = #tpu.core_type<tc>, window_params = [{transform_indices = @transform_0, window_bounds = array<i64: 16, 32>}, {transform_indices = @transform_1, window_bounds = array<i64: 16, 16>}, {transform_indices = @transform_2, window_bounds = array<i64: 32, 128>}, {transform_indices = @transform_3, window_bounds = array<i64: 16, 128>}, {transform_indices = @transform_4, window_bounds = array<i64: 1, 128>}, {transform_indices = @transform_5, window_bounds = array<i64: 16, 128>}]} {
    %c0 = arith.constant 0 : index
    %c0_0 = arith.constant 0 : index
    %0 = vector.load %arg2[%c0, %c0_0] : memref<16x32xbf16, #tpu.memory_space<vmem>>, vector<16x32xbf16>
    %c0_1 = arith.constant 0 : index
    %c0_2 = arith.constant 0 : index
    %1 = vector.load %arg4[%c0_1, %c0_2] : memref<32x128xbf16, #tpu.memory_space<vmem>>, vector<32x128xbf16>
    %cst = arith.constant dense<0.000000e+00> : vector<16x128xf32>
    %2 = tpu.matmul %0, %1, %cst {dimension_numbers = #tpu.dot_dimension_numbers<[1], [0], [0], [1], [0, 0, 1, 1], [], []>} : vector<16x32xbf16>, vector<32x128xbf16>, vector<16x128xf32> -> vector<16x128xf32>
    %c0_3 = arith.constant 0 : index
    %c0_4 = arith.constant 0 : index
    %3 = vector.load %arg3[%c0_3, %c0_4] : memref<16x16xbf16, #tpu.memory_space<vmem>>, vector<16x16xbf16>
    %c0_5 = arith.constant 0 : index
    %c0_6 = arith.constant 0 : index
    %4 = vector.load %arg5[%c0_5, %c0_6] : memref<16x128xbf16, #tpu.memory_space<vmem>>, vector<16x128xbf16>
    %cst_7 = arith.constant dense<0.000000e+00> : vector<16x128xf32>
    %5 = tpu.matmul %3, %4, %cst_7 {dimension_numbers = #tpu.dot_dimension_numbers<[1], [0], [0], [1], [0, 0, 1, 1], [], []>} : vector<16x16xbf16>, vector<16x128xbf16>, vector<16x128xf32> -> vector<16x128xf32>
    %6 = arith.addf %2, %5 : vector<16x128xf32>
    %c0_8 = arith.constant 0 : index
    %c0_9 = arith.constant 0 : index
    %7 = vector.load %arg6[%c0_8, %c0_9] : memref<1x128xf32, #tpu.memory_space<vmem>>, vector<1x128xf32>
    %8 = vector.broadcast %7 : vector<1x128xf32> to vector<16x128xf32>
    %9 = arith.addf %6, %8 : vector<16x128xf32>
    %cst_10 = arith.constant 0.000000e+00 : f32
    %10 = vector.broadcast %cst_10 : f32 to vector<16x128xf32>
    %11 = arith.subf %10, %9 : vector<16x128xf32>
    %12 = math.exp %11 : vector<16x128xf32>
    %cst_11 = arith.constant 1.000000e+00 : f32
    %13 = vector.broadcast %cst_11 : f32 to vector<16x128xf32>
    %14 = arith.addf %13, %12 : vector<16x128xf32>
    %15 = tpu.reciprocal %14 {approx = true} : vector<16x128xf32> -> vector<16x128xf32>
    %16 = arith.mulf %9, %15 : vector<16x128xf32>
    %c0_12 = arith.constant 0 : index
    %c0_13 = arith.constant 0 : index
    %17 = vector.load %arg7[%c0_12, %c0_13] : memref<16x128xf32, #tpu.memory_space<vmem>>, vector<16x128xf32>
    tpu.vector_store %arg7[%c0_12, %c0_13], %16 {strides = array<i32>} : memref<16x128xf32, #tpu.memory_space<vmem>>, vector<16x128xf32>,
    return
  }
  func.func @transform_0(%arg0: i32, %arg1: i32) -> (i32, i32) {
    %c0_i32 = arith.constant 0 : i32
    %c0_i32_0 = arith.constant 0 : i32
    return %arg0, %c0_i32 : i32, i32
  }
  func.func @transform_1(%arg0: i32, %arg1: i32) -> (i32, i32) {
    %c0_i32 = arith.constant 0 : i32
    %c0_i32_0 = arith.constant 0 : i32
    return %arg0, %c0_i32 : i32, i32
  }
  func.func @transform_2(%arg0: i32, %arg1: i32) -> (i32, i32) {
    %c0_i32 = arith.constant 0 : i32
    %c0_i32_0 = arith.constant 0 : i32
    return %c0_i32, %arg1 : i32, i32
  }
  func.func @transform_3(%arg0: i32, %arg1: i32) -> (i32, i32) {
    %c0_i32 = arith.constant 0 : i32
    %c0_i32_0 = arith.constant 0 : i32
    return %c0_i32, %arg1 : i32, i32
  }
  func.func @transform_4(%arg0: i32, %arg1: i32) -> (i32, i32) {
    %c0_i32 = arith.constant 0 : i32
    %c0_i32_0 = arith.constant 0 : i32
    return %c0_i32, %arg1 : i32, i32
  }
  func.func @transform_5(%arg0: i32, %arg1: i32) -> (i32, i32) {
    %c0_i32 = arith.constant 0 : i32
    return %arg0, %arg1 : i32, i32
  }
}

</mosaic_0001>

<llo_original>
// kernel: _lambda_.20
$region0: #{_lambda_.20}
  #allocation0 [shape = 'u32[]', space=smem, size = 0x4, offset = 0x4, fixed_abs, tag = 'smem constant byte address 0x4 - core index']
  #allocation1 [shape = 'u32[144,128]{1,0:T(1,128)}', space=vmem, size = 0x12000, scoped, tag = 'internal scratch']
  #allocation2 [shape = 'f32[16,128]{1,0:T(8,128)}', space=vmem, size = 0x2000, scoped, tag = 'scratch operand']
  %s0 = inlined_call_operand.vmem [shape: bf16[32,32], index: 0, kind: input, shape index: {}]
  %s1 = inlined_call_operand.vmem [shape: bf16[32,128], index: 1, kind: input, shape index: {}]
  %s2 = inlined_call_operand.vmem [shape: f32[1,128], index: 2, kind: input, shape index: {}]
  %s3 = inlined_call_operand.vmem [shape: f32[32,128], index: 3, kind: output, shape index: {}]
  %s4 = sld [smem:[#allocation0]]
  $region53: #{_lambda_.20} parent=0
    _
  %s6 = ssub.s32 1, %s4
  %s7 = scalar_select 0, %s6, %s4
  loop: start=0, step=1, limit=4
  $region2: #{_lambda_.20} parent=0 // loop_pre_header
    _
  $region3: #{_lambda_.20} parent=0 // loop_header
    %s9 = sphi 0, %s13
    %p10 = scmp.ge.s32.totalorder %s9, 4
    %s16 = sphi 0, %s35
    %s17 = sphi 0, %s31
    %s18 = sphi 0, %s27
    %s19 = sphi 0, %s16
    %s20 = sphi 0, %s17
    %s21 = sphi 0, %s18
    %s22 = sphi 0, %s19
    %s23 = sphi 0, %s20
    %s24 = sphi 0, %s21
    %s40 = sphi 0, %s42
    %s43 = sphi 0, %s40
    %s44 = sphi 0, %s43
    %s60 = sphi 0, %s44
    %s68 = sphi 0, %s70
    %s71 = sphi 0, %s68
    %s72 = sphi 0, %s71
    %s88 = sphi 0, %s72
    %s94 = sphi 0, %s96
    %s97 = sphi 0, %s94
    %s98 = sphi 0, %s97
    %s114 = sphi 0, %s98
    %s122 = sphi 0, %s124
    %s125 = sphi 0, %s122
    %s126 = sphi 0, %s125
    %s142 = sphi 0, %s126
  $region4: #{_lambda_.20} parent=0 // loop_header_branch
    %12 = sbr.rel (%p10) target = $region8
  $region5: #{_lambda_.20} parent=0 // loop_body
    %s14 = ssub.s32 %s9, 1
    %s15 = ssub.s32 %s9, 2
    %s25 = sadd.s32 1, %s18
    %p26 = scmp.ge.s32.totalorder %s25, 1
    %s27 = scalar_select %p26, 0, %s25
    %s28 = sadd.s32 1, %s17
    %s29 = scalar_select %p26, %s28, %s17
    %p30 = scmp.ge.s32.totalorder %s29, 1
    %s31 = scalar_select %p30, 0, %s29
    %s32 = sadd.s32 1, %s16
    %s33 = scalar_select %p30, %s32, %s16
    %p34 = scmp.ge.s32.totalorder %s33, 2
    %s35 = scalar_select %p34, 0, %s33
    %s36 = ssub.s32 %s16, %s35
    %s37 = ssub.s32 %s18, %s27
    %s38 = sor.u32 %s36, %s37
    %p39 = scmp.eq.s32.totalorder %s38, 0
    %s41 = sadd.s32 %s40, 1
    %s42 = scalar_select %p39, %s40, %s41
    %p45 = pneg %p39
    %p46 = scmp.eq.s32.totalorder %s9, 1
    %p47 = por %p45, %p46
    %p48 = scmp.ne.s32.totalorder %s40, %s43
    %p49 = scmp.eq.s32.totalorder %s9, 0
    %p50 = por %p48, %p49
    %p51 = scmp.ne.s32.totalorder %s40, %s43
    %p52 = scmp.eq.s32.totalorder %s14, 1
    %p53 = por %p51, %p52
    %p54 = scmp.ne.s32.totalorder %s43, %s44
    %p55 = scmp.eq.s32.totalorder %s14, 0
    %p56 = por %p54, %p55
    %p57 = scmp.ne.s32.totalorder %s43, %s44
    %p58 = scmp.eq.s32.totalorder %s15, 1
    %p59 = por %p57, %p58
    %p61 = scmp.ne.s32.totalorder %s44, %s60
    %p62 = scmp.eq.s32.totalorder %s15, 0
    %p63 = por %p61, %p62
    %s64 = ssub.s32 %s18, %s27
    %s65 = ssub.s32 %s17, %s31
    %s66 = sor.u32 %s64, %s65
    %p67 = scmp.eq.s32.totalorder %s66, 0
    %s69 = sadd.s32 %s68, 1
    %s70 = scalar_select %p67, %s68, %s69
    %p73 = pneg %p67
    %p74 = scmp.eq.s32.totalorder %s9, 1
    %p75 = por %p73, %p74
    %p76 = scmp.ne.s32.totalorder %s68, %s71
    %p77 = scmp.eq.s32.totalorder %s9, 0
    %p78 = por %p76, %p77
    %p79 = scmp.ne.s32.totalorder %s68, %s71
    %p80 = scmp.eq.s32.totalorder %s14, 1
    %p81 = por %p79, %p80
    %p82 = scmp.ne.s32.totalorder %s71, %s72
    %p83 = scmp.eq.s32.totalorder %s14, 0
    %p84 = por %p82, %p83
    %p85 = scmp.ne.s32.totalorder %s71, %s72
    %p86 = scmp.eq.s32.totalorder %s15, 1
    %p87 = por %p85, %p86
    %p89 = scmp.ne.s32.totalorder %s72, %s88
    %p90 = scmp.eq.s32.totalorder %s15, 0
    %p91 = por %p89, %p90
    %s92 = ssub.s32 %s17, %s31
    %p93 = scmp.eq.s32.totalorder %s92, 0
    %s95 = sadd.s32 %s94, 1
    %s96 = scalar_select %p93, %s94, %s95
    %p99 = pneg %p93
    %p100 = scmp.eq.s32.totalorder %s9, 1
    %p101 = por %p99, %p100
    %p102 = scmp.ne.s32.totalorder %s94, %s97
    %p103 = scmp.eq.s32.totalorder %s9, 0
    %p104 = por %p102, %p103
    %p105 = scmp.ne.s32.totalorder %s94, %s97
    %p106 = scmp.eq.s32.totalorder %s14, 1
    %p107 = por %p105, %p106
    %p108 = scmp.ne.s32.totalorder %s97, %s98
    %p109 = scmp.eq.s32.totalorder %s14, 0
    %p110 = por %p108, %p109
    %p111 = scmp.ne.s32.totalorder %s97, %s98
    %p112 = scmp.eq.s32.totalorder %s15, 1
    %p113 = por %p111, %p112
    %p115 = scmp.ne.s32.totalorder %s98, %s114
    %p116 = scmp.eq.s32.totalorder %s15, 0
    %p117 = por %p115, %p116
    %s118 = ssub.s32 %s16, %s35
    %s119 = ssub.s32 %s17, %s31
    %s120 = sor.u32 %s118, %s119
    %p121 = scmp.eq.s32.totalorder %s120, 0
    %s123 = sadd.s32 %s122, 1
    %s124 = scalar_select %p121, %s122, %s123
    %p127 = pneg %p121
    %p128 = scmp.eq.s32.totalorder %s9, 1
    %p129 = por %p127, %p128
    %p130 = scmp.ne.s32.totalorder %s122, %s125
    %p131 = scmp.eq.s32.totalorder %s9, 0
    %p132 = por %p130, %p131
    %p133 = scmp.ne.s32.totalorder %s122, %s125
    %p134 = scmp.eq.s32.totalorder %s14, 1
    %p135 = por %p133, %p134
    %p136 = scmp.ne.s32.totalorder %s125, %s126
    %p137 = scmp.eq.s32.totalorder %s14, 0
    %p138 = por %p136, %p137
    %p139 = scmp.ne.s32.totalorder %s125, %s126
    %p140 = scmp.eq.s32.totalorder %s15, 1
    %p141 = por %p139, %p140
    %p143 = scmp.ne.s32.totalorder %s126, %s142
    %p144 = scmp.eq.s32.totalorder %s15, 0
    %p145 = por %p143, %p144
    %p146 = scmp.le.s32.totalorder 1, %s9
    %p147 = scmp.lt.s32.totalorder %s9, 3
    %p148 = pnand %p146, %p147
    %p149 = pneg %p148
    // Predicated region
    $region9: #{_lambda_.20} parent=5 // pred_check
      _
    $region10: #{_lambda_.20} parent=5 // pred_check_branch
      %151 = sbr.rel (%p148) target = $region12
    $region11: #{_lambda_.20} parent=5 // pred_region
      %s152 = ssub.s32 %s9, 1
      // Predicated region
      $region13: #{_lambda_.20} parent=11 // pred_check
        %p153 = pneg %p84
      $region14: #{_lambda_.20} parent=11 // pred_check_branch
        %155 = sbr.rel (%p153) target = $region16
      $region15: #{_lambda_.20} parent=11 // pred_region
        %s156 = smul.u32 4, %s21
        %p157 = scmp.lt.s32.totalorder %s156, 3
        %s158 = scalar_select %p157, %s156, 3
        %p159 = scmp.lt.s32.totalorder %s20, 0
        %s160 = scalar_select %p159, %s20, 0
        %s161 = sadd.s32 %s160, %s158
        %s162 = smul.addr %s161, 4
        %s163 = scalar_lea.vmem %s1, %s162
        %s164 = smul.u32 4, %s21
      $region16: #{_lambda_.20} parent=11 // pred_fallthru
        _
      // Predicated region
      $region17: #{_lambda_.20} parent=11 // pred_check
        %p165 = pneg %p110
      $region18: #{_lambda_.20} parent=11 // pred_check_branch
        %167 = sbr.rel (%p165) target = $region20
      $region19: #{_lambda_.20} parent=11 // pred_region
        %p168 = scmp.lt.s32.totalorder %s20, 0
        %s169 = scalar_select %p168, %s20, 0
        %s170 = scalar_lea.vmem %s2, %s169
      $region20: #{_lambda_.20} parent=11 // pred_fallthru
        _
    $region12: #{_lambda_.20} parent=5 // pred_fallthru
      _
    %p171 = scmp.lt.s32.totalorder %s9, 2
    // Predicated region
    $region21: #{_lambda_.20} parent=5 // pred_check
      %p172 = pneg %p171
    $region22: #{_lambda_.20} parent=5 // pred_check_branch
      %174 = sbr.rel (%p172) target = $region24
    $region23: #{_lambda_.20} parent=5 // pred_region
      // Predicated region
      $region25: #{_lambda_.20} parent=23 // pred_check
        %p175 = pneg %p50
      $region26: #{_lambda_.20} parent=23 // pred_check_branch
        %177 = sbr.rel (%p175) target = $region28
      $region27: #{_lambda_.20} parent=23 // pred_region
        %s178 = smul.u32 2, %s16
        %p179 = scmp.lt.s32.totalorder %s178, 3
        %s180 = scalar_select %p179, %s178, 3
        %p181 = scmp.lt.s32.totalorder %s18, 0
        %s182 = scalar_select %p181, %s18, 0
        %s183 = sadd.s32 %s182, %s180
        %s184 = smul.addr %s183, 4
        %s185 = scalar_lea.vmem %s0, %s184
        %s186 = smul.u32 2, %s16
      $region28: #{_lambda_.20} parent=23 // pred_fallthru
        _
    $region24: #{_lambda_.20} parent=5 // pred_fallthru
      _
    %p187 = scmp.le.s32.totalorder 1, %s9
    %p188 = scmp.lt.s32.totalorder %s9, 3
    %p189 = pnand %p187, %p188
    %p190 = pneg %p189
    // Predicated region
    $region29: #{_lambda_.20} parent=5 // pred_check
      _
    $region30: #{_lambda_.20} parent=5 // pred_check_branch
      %192 = sbr.rel (%p189) target = $region32
    $region31: #{_lambda_.20} parent=5 // pred_region
      %s193 = ssub.s32 %s9, 1
      %s194 = smul.u32 2, %s19
      %p195 = scmp.lt.s32.totalorder %s194, 3
      %s196 = scalar_select %p195, %s194, 3
      %p197 = scmp.lt.s32.totalorder %s21, 0
      %s198 = scalar_select %p197, %s21, 0
      %s199 = sadd.s32 %s198, %s196
      %s200 = smul.addr %s199, 4
      %s201 = scalar_lea.vmem %s0, %s200
      %p202 = pneg %p56
      %p203 = pneg %p53
      %s204 = smul.u32 4, %s21
      %p205 = scmp.lt.s32.totalorder %s204, 3
      %s206 = scalar_select %p205, %s204, 3
      %p207 = scmp.lt.s32.totalorder %s20, 0
      %s208 = scalar_select %p207, %s20, 0
      %s209 = sadd.s32 %s208, %s206
      %s210 = smul.addr %s209, 4
      %s211 = scalar_lea.vmem %s1, %s210
      %p212 = pneg %p84
      %p213 = pneg %p81
      %p214 = scmp.lt.s32.totalorder %s20, 0
      %s215 = scalar_select %p214, %s20, 0
      %s216 = scalar_lea.vmem %s2, %s215
      %p217 = pneg %p110
      %p218 = pneg %p107
      %p219 = pneg %p138
      %p220 = pneg %p135
      %s221 = smul.u32 2, %s19
      %p222 = scmp.lt.s32.totalorder %s221, 3
      %s223 = scalar_select %p222, %s221, 3
      %p224 = scmp.lt.s32.totalorder %s20, 0
      %s225 = scalar_select %p224, %s20, 0
      %s226 = sadd.s32 %s225, %s223
      %s227 = smul.addr %s226, 8
      %s228 = scalar_lea.vmem %s3, %s227
      %s229 = smul.u32 2, %s19
      %p230 = scmp.lt.s32.totalorder %s229, 3
      %s231 = scalar_select %p230, %s229, 3
      %p232 = scmp.lt.s32.totalorder %s21, 0
      %s233 = scalar_select %p232, %s21, 0
      %s234 = sadd.s32 %s233, %s231
      %s235 = smul.addr %s234, 4
      %s236 = scalar_lea.vmem %s0, %s235
      %s237 = smul.u32 2, %s19
      %s238 = smul.u32 4, %s21
      %p239 = scmp.lt.s32.totalorder %s238, 3
      %s240 = scalar_select %p239, %s238, 3
      %p241 = scmp.lt.s32.totalorder %s20, 0
      %s242 = scalar_select %p241, %s20, 0
      %s243 = sadd.s32 %s242, %s240
      %s244 = smul.addr %s243, 4
      %s245 = scalar_lea.vmem %s1, %s244
      %s246 = smul.u32 4, %s21
      %p247 = scmp.lt.s32.totalorder %s20, 0
      %s248 = scalar_select %p247, %s20, 0
      %s249 = scalar_lea.vmem %s2, %s248
      %s250 = smul.u32 2, %s19
      %p251 = scmp.lt.s32.totalorder %s250, 3
      %s252 = scalar_select %p251, %s250, 3
      %p253 = scmp.lt.s32.totalorder %s20, 0
      %s254 = scalar_select %p253, %s20, 0
      %s255 = sadd.s32 %s254, %s252
      %s256 = smul.addr %s255, 8
      %s257 = scalar_lea.vmem %s3, %s256
      %s258 = smul.u32 2, %s19
      %p260 = scmp.eq.s32.totalorder %s21, 0
      // Predicated region
      $region33: #{_lambda_.20} parent=31 // pred_check
        %p261 = pneg %p260
      $region34: #{_lambda_.20} parent=31 // pred_check_branch
        %263 = sbr.rel (%p261) target = $region36
      $region35: #{_lambda_.20} parent=31 // pred_region
        %264 = vst [vmem:[#allocation2] sm:$0xff] 0.0
        %265 = vst [vmem:[#allocation2 + $0x8] sm:$0xff] 0.0
      $region36: #{_lambda_.20} parent=31 // pred_fallthru
        _
      %v266 = vld [vmem:[#allocation2] sm:$0xff]
      %v267 = vld [vmem:[#allocation2 + $0x8] sm:$0xff]
      %v268 = vld [vmem:[%s236] sm:$0xf]
      %v269 = vld [vmem:[%s236 + $0x4] sm:$0xf]
      %v270 = vld [vmem:[%s245] sm:$0xf]
      %v271 = vld [vmem:[%s245 + $0x4] sm:$0xf]
      %v272 = vld [vmem:[%s245 + $0x8] sm:$0xf]
      %v273 = vld [vmem:[%s245 + $0xc] sm:$0xf]
      %v276 = vunpack.c.l.b16 %v268
      %v277 = vunpack.c.l.b16 %v269
      %v278 = vpack.c.b16 %v277, %v276
      %v283 = vunpack.c.l.b16 %v270
      %v284 = vunpack.c.l.b16 %v271
      %v285 = vunpack.c.l.b16 %v272
      %v286 = vunpack.c.l.b16 %v273
      %v287 = vpack.c.b16 %v284, %v283
      %v288 = vpack.c.b16 %v286, %v285
      %vm291 = vcmask 261120
      %v293 = vsel %vm291, %v278, 0
      %295 = vmatprep.subr.bf16.mxu0 0
      %296 = vmatpush1.bf16.msra.mxu0 0
      %297 = vmatprep.subr.bf16.mxu0 0
      %298 = vmatpush1.bf16.msra.mxu0 0
      %299 = vmatprep.subr.bf16.mxu0 0
      %300 = vmatpush1.bf16.msra.mxu0 0
      %301 = vmatprep.subr.bf16.mxu0 0
      %302 = vmatpush1.bf16.msra.mxu0 0
      %303 = vmatprep.subr.bf16.mxu0 0
      %304 = vmatpush1.bf16.msra.mxu0 0
      %305 = vmatprep.subr.bf16.mxu0 0
      %306 = vmatpush1.bf16.msra.mxu0 0
      %307 = vmatprep.subr.bf16.mxu0 0
      %308 = vmatpush1.bf16.msra.mxu0 %v288
      %309 = vmatprep.subr.bf16.mxu0 0
      %310 = vmatpush1.bf16.msra.mxu0 %v287
      %311 = vmatprep.subr.bf16.mxu0 0
      %312 = vmatpush2.bf16.msra.mxu0 0
      %313 = vmatprep.subr.bf16.mxu0 0
      %314 = vmatpush2.bf16.msra.mxu0 0
      %315 = vmatprep.subr.bf16.mxu0 0
      %316 = vmatpush2.bf16.msra.mxu0 0
      %317 = vmatprep.subr.bf16.mxu0 0
      %318 = vmatpush2.bf16.msra.mxu0 0
      %319 = vmatprep.subr.bf16.mxu0 0
      %320 = vmatpush2.bf16.msra.mxu0 0
      %321 = vmatprep.subr.bf16.mxu0 0
      %322 = vmatpush2.bf16.msra.mxu0 0
      %323 = vmatprep.subr.bf16.mxu0 0
      %324 = vmatpush2.bf16.msra.mxu0 0
      %325 = vmatprep.subr.bf16.mxu0 0
      %326 = vmatpush2.bf16.msra.mxu0 0
      %327 = vmatprep.mubr.bf16.mxu0 0
      %328 = vmatmul.mubr.bf16.gmra.mxu0 %v293
      %v329 = vpop.f32.mrf.mxu0
      %v330 = vadd.f32 0.0, %v329
      %v331 = vpop.f32.mrf.mxu0
      %v332 = vpop.f32.mrf.mxu0
      %v333 = vadd.f32 0.0, %v332
      %v334 = vpop.f32.mrf.mxu0
      %335 = vdwg.mxu0
      %v336 = vadd.f32 %v266, %v330
      %v337 = vadd.f32 %v267, %v333
      %338 = vst [vmem:[#allocation2] sm:$0xff] %v336
      %339 = vst [vmem:[#allocation2 + $0x8] sm:$0xff] %v337
      // Predicated region
      $region37: #{_lambda_.20} parent=31 // pred_check
        %p340 = pneg %p260
      $region38: #{_lambda_.20} parent=31 // pred_check_branch
        %342 = sbr.rel (%p340) target = $region40
      $region39: #{_lambda_.20} parent=31 // pred_region
        %v343 = vld [vmem:[#allocation2] sm:$0xff]
        %v344 = vld [vmem:[#allocation2 + $0x8] sm:$0xff]
        %v345 = vld [vmem:[%s249] sm:$0x1]
        %v347 = vlaneseq
        %v348 = vshrl.u32 %v347, 7
        %v349 = vsub.s32 0, %v348
        %v350 = vrot.slane %v345, %v349
        %v352 = vadd.f32 %v343, %v350
        %v353 = vadd.f32 %v344, %v350
        %v354 = vsub.f32 0.0, %v352
        %v355 = vsub.f32 0.0, %v353
        %v356 = vmul.f32 %v354, 1.442695
        %v357 = vpow.pop %v356
        %v358 = vmul.f32 %v355, 1.442695
        %v359 = vpow.pop %v358
        %v360 = vadd.f32 %v357, 1.0
        %v361 = vadd.f32 %v359, 1.0
        %v362 = vrcp.pop %v360
        %v363 = vrcp.pop %v361
        %v364 = vmul.f32 %v352, %v362
        %v365 = vmul.f32 %v353, %v363
        %366 = vst [vmem:[%s257] sm:$0xff] %v364
        %367 = vst [vmem:[%s257 + $0x8] sm:$0xff] %v365
      $region40: #{_lambda_.20} parent=31 // pred_fallthru
        _
      %s368 = smul.u32 2, %s19
      %p369 = scmp.lt.s32.totalorder %s368, 3
      %s370 = scalar_select %p369, %s368, 3
      %p371 = scmp.lt.s32.totalorder %s20, 0
      %s372 = scalar_select %p371, %s20, 0
      %s373 = sadd.s32 %s372, %s370
      %s374 = smul.addr %s373, 8
      %s375 = scalar_lea.vmem %s3, %s374
      // Predicated region
      $region41: #{_lambda_.20} parent=31 // pred_check
        %p376 = pneg %p135
      $region42: #{_lambda_.20} parent=31 // pred_check_branch
        %378 = sbr.rel (%p376) target = $region44
      $region43: #{_lambda_.20} parent=31 // pred_region
        %s379 = smul.u32 2, %s19
      $region44: #{_lambda_.20} parent=31 // pred_fallthru
        _
    $region32: #{_lambda_.20} parent=5 // pred_fallthru
      _
    %p380 = scmp.le.s32.totalorder 2, %s9
    // Predicated region
    $region45: #{_lambda_.20} parent=5 // pred_check
      %p381 = pneg %p380
    $region46: #{_lambda_.20} parent=5 // pred_check_branch
      %383 = sbr.rel (%p381) target = $region48
    $region47: #{_lambda_.20} parent=5 // pred_region
      %s384 = ssub.s32 %s9, 2
      // Predicated region
      $region49: #{_lambda_.20} parent=47 // pred_check
        %p385 = pneg %p141
      $region50: #{_lambda_.20} parent=47 // pred_check_branch
        %387 = sbr.rel (%p385) target = $region52
      $region51: #{_lambda_.20} parent=47 // pred_region
        %s388 = smul.u32 2, %s22
        %p389 = scmp.lt.s32.totalorder %s388, 3
        %s390 = scalar_select %p389, %s388, 3
        %p391 = scmp.lt.s32.totalorder %s23, 0
        %s392 = scalar_select %p391, %s23, 0
        %s393 = sadd.s32 %s392, %s390
        %s394 = smul.addr %s393, 8
        %s395 = scalar_lea.vmem %s3, %s394
      $region52: #{_lambda_.20} parent=47 // pred_fallthru
        _
    $region48: #{_lambda_.20} parent=5 // pred_fallthru
      _
  $region6: #{_lambda_.20} parent=0 // loop_footer
    %s13 = sadd.s32 1, %s9
  $region7: #{_lambda_.20} parent=0 // loop_footer_branch
    %8 = sbr.rel target = $region3
  $region8: #{_lambda_.20} parent=0 // loop_exit
    _

// kernel: _lambda_.21
$region0: #{_lambda_.21}
  #allocation0 [shape = 'u32[]', space=smem, size = 0x4, offset = 0x4, fixed_abs, tag = 'smem constant byte address 0x4 - core index']
  #allocation1 [shape = 'u32[144,128]{1,0:T(1,128)}', space=vmem, size = 0x12000, scoped, tag = 'internal scratch']
  %s0 = inlined_call_operand.vmem [shape: bf16[128,16], index: 0, kind: input, shape index: {}]
  %s1 = inlined_call_operand.vmem [shape: bf16[128,16], index: 1, kind: input, shape index: {}]
  %s2 = inlined_call_operand.vmem [shape: bf16[16,128], index: 2, kind: input, shape index: {}]
  %s3 = inlined_call_operand.vmem [shape: bf16[16,128], index: 3, kind: input, shape index: {}]
  %s4 = inlined_call_operand.vmem [shape: f32[1,128], index: 4, kind: input, shape index: {}]
  %s5 = inlined_call_operand.vmem [shape: f32[128,128], index: 5, kind: output, shape index: {}]
  %s6 = sld [smem:[#allocation0]]
  $region53: #{_lambda_.21} parent=0
    _
  %s8 = ssub.s32 1, %s6
  %s9 = scalar_select 0, %s8, %s6
  loop: start=0, step=1, limit=4
  $region2: #{_lambda_.21} parent=0 // loop_pre_header
    _
  $region3: #{_lambda_.21} parent=0 // loop_header
    %s11 = sphi 0, %s15
    %p12 = scmp.ge.s32.totalorder %s11, 4
    %s18 = sphi 0, %s30
    %s19 = sphi 0, %s26
    %s20 = sphi 0, %s18
    %s21 = sphi 0, %s19
    %s22 = sphi 0, %s20
    %s23 = sphi 0, %s21
    %s33 = sphi 0, %s35
    %s36 = sphi 0, %s33
    %s37 = sphi 0, %s36
    %s53 = sphi 0, %s37
    %s59 = sphi 0, %s61
    %s62 = sphi 0, %s59
    %s63 = sphi 0, %s62
    %s79 = sphi 0, %s63
    %s85 = sphi 0, %s87
    %s88 = sphi 0, %s85
    %s89 = sphi 0, %s88
    %s105 = sphi 0, %s89
    %s111 = sphi 0, %s113
    %s114 = sphi 0, %s111
    %s115 = sphi 0, %s114
    %s131 = sphi 0, %s115
    %s137 = sphi 0, %s139
    %s140 = sphi 0, %s137
    %s141 = sphi 0, %s140
    %s157 = sphi 0, %s141
    %s165 = sphi 0, %s167
    %s168 = sphi 0, %s165
    %s169 = sphi 0, %s168
    %s185 = sphi 0, %s169
  $region4: #{_lambda_.21} parent=0 // loop_header_branch
    %14 = sbr.rel (%p12) target = $region8
  $region5: #{_lambda_.21} parent=0 // loop_body
    %s16 = ssub.s32 %s11, 1
    %s17 = ssub.s32 %s11, 2
    %s24 = sadd.s32 1, %s19
    %p25 = scmp.ge.s32.totalorder %s24, 1
    %s26 = scalar_select %p25, 0, %s24
    %s27 = sadd.s32 1, %s18
    %s28 = scalar_select %p25, %s27, %s18
    %p29 = scmp.ge.s32.totalorder %s28, 2
    %s30 = scalar_select %p29, 0, %s28
    %s31 = ssub.s32 %s18, %s30
    %p32 = scmp.eq.s32.totalorder %s31, 0
    %s34 = sadd.s32 %s33, 1
    %s35 = scalar_select %p32, %s33, %s34
    %p38 = pneg %p32
    %p39 = scmp.eq.s32.totalorder %s11, 1
    %p40 = por %p38, %p39
    %p41 = scmp.ne.s32.totalorder %s33, %s36
    %p42 = scmp.eq.s32.totalorder %s11, 0
    %p43 = por %p41, %p42
    %p44 = scmp.ne.s32.totalorder %s33, %s36
    %p45 = scmp.eq.s32.totalorder %s16, 1
    %p46 = por %p44, %p45
    %p47 = scmp.ne.s32.totalorder %s36, %s37
    %p48 = scmp.eq.s32.totalorder %s16, 0
    %p49 = por %p47, %p48
    %p50 = scmp.ne.s32.totalorder %s36, %s37
    %p51 = scmp.eq.s32.totalorder %s17, 1
    %p52 = por %p50, %p51
    %p54 = scmp.ne.s32.totalorder %s37, %s53
    %p55 = scmp.eq.s32.totalorder %s17, 0
    %p56 = por %p54, %p55
    %s57 = ssub.s32 %s18, %s30
    %p58 = scmp.eq.s32.totalorder %s57, 0
    %s60 = sadd.s32 %s59, 1
    %s61 = scalar_select %p58, %s59, %s60
    %p64 = pneg %p58
    %p65 = scmp.eq.s32.totalorder %s11, 1
    %p66 = por %p64, %p65
    %p67 = scmp.ne.s32.totalorder %s59, %s62
    %p68 = scmp.eq.s32.totalorder %s11, 0
    %p69 = por %p67, %p68
    %p70 = scmp.ne.s32.totalorder %s59, %s62
    %p71 = scmp.eq.s32.totalorder %s16, 1
    %p72 = por %p70, %p71
    %p73 = scmp.ne.s32.totalorder %s62, %s63
    %p74 = scmp.eq.s32.totalorder %s16, 0
    %p75 = por %p73, %p74
    %p76 = scmp.ne.s32.totalorder %s62, %s63
    %p77 = scmp.eq.s32.totalorder %s17, 1
    %p78 = por %p76, %p77
    %p80 = scmp.ne.s32.totalorder %s63, %s79
    %p81 = scmp.eq.s32.totalorder %s17, 0
    %p82 = por %p80, %p81
    %s83 = ssub.s32 %s19, %s26
    %p84 = scmp.eq.s32.totalorder %s83, 0
    %s86 = sadd.s32 %s85, 1
    %s87 = scalar_select %p84, %s85, %s86
    %p90 = pneg %p84
    %p91 = scmp.eq.s32.totalorder %s11, 1
    %p92 = por %p90, %p91
    %p93 = scmp.ne.s32.totalorder %s85, %s88
    %p94 = scmp.eq.s32.totalorder %s11, 0
    %p95 = por %p93, %p94
    %p96 = scmp.ne.s32.totalorder %s85, %s88
    %p97 = scmp.eq.s32.totalorder %s16, 1
    %p98 = por %p96, %p97
    %p99 = scmp.ne.s32.totalorder %s88, %s89
    %p100 = scmp.eq.s32.totalorder %s16, 0
    %p101 = por %p99, %p100
    %p102 = scmp.ne.s32.totalorder %s88, %s89
    %p103 = scmp.eq.s32.totalorder %s17, 1
    %p104 = por %p102, %p103
    %p106 = scmp.ne.s32.totalorder %s89, %s105
    %p107 = scmp.eq.s32.totalorder %s17, 0
    %p108 = por %p106, %p107
    %s109 = ssub.s32 %s19, %s26
    %p110 = scmp.eq.s32.totalorder %s109, 0
    %s112 = sadd.s32 %s111, 1
    %s113 = scalar_select %p110, %s111, %s112
    %p116 = pneg %p110
    %p117 = scmp.eq.s32.totalorder %s11, 1
    %p118 = por %p116, %p117
    %p119 = scmp.ne.s32.totalorder %s111, %s114
    %p120 = scmp.eq.s32.totalorder %s11, 0
    %p121 = por %p119, %p120
    %p122 = scmp.ne.s32.totalorder %s111, %s114
    %p123 = scmp.eq.s32.totalorder %s16, 1
    %p124 = por %p122, %p123
    %p125 = scmp.ne.s32.totalorder %s114, %s115
    %p126 = scmp.eq.s32.totalorder %s16, 0
    %p127 = por %p125, %p126
    %p128 = scmp.ne.s32.totalorder %s114, %s115
    %p129 = scmp.eq.s32.totalorder %s17, 1
    %p130 = por %p128, %p129
    %p132 = scmp.ne.s32.totalorder %s115, %s131
    %p133 = scmp.eq.s32.totalorder %s17, 0
    %p134 = por %p132, %p133
    %s135 = ssub.s32 %s19, %s26
    %p136 = scmp.eq.s32.totalorder %s135, 0
    %s138 = sadd.s32 %s137, 1
    %s139 = scalar_select %p136, %s137, %s138
    %p142 = pneg %p136
    %p143 = scmp.eq.s32.totalorder %s11, 1
    %p144 = por %p142, %p143
    %p145 = scmp.ne.s32.totalorder %s137, %s140
    %p146 = scmp.eq.s32.totalorder %s11, 0
    %p147 = por %p145, %p146
    %p148 = scmp.ne.s32.totalorder %s137, %s140
    %p149 = scmp.eq.s32.totalorder %s16, 1
    %p150 = por %p148, %p149
    %p151 = scmp.ne.s32.totalorder %s140, %s141
    %p152 = scmp.eq.s32.totalorder %s16, 0
    %p153 = por %p151, %p152
    %p154 = scmp.ne.s32.totalorder %s140, %s141
    %p155 = scmp.eq.s32.totalorder %s17, 1
    %p156 = por %p154, %p155
    %p158 = scmp.ne.s32.totalorder %s141, %s157
    %p159 = scmp.eq.s32.totalorder %s17, 0
    %p160 = por %p158, %p159
    %s161 = ssub.s32 %s18, %s30
    %s162 = ssub.s32 %s19, %s26
    %s163 = sor.u32 %s161, %s162
    %p164 = scmp.eq.s32.totalorder %s163, 0
    %s166 = sadd.s32 %s165, 1
    %s167 = scalar_select %p164, %s165, %s166
    %p170 = pneg %p164
    %p171 = scmp.eq.s32.totalorder %s11, 1
    %p172 = por %p170, %p171
    %p173 = scmp.ne.s32.totalorder %s165, %s168
    %p174 = scmp.eq.s32.totalorder %s11, 0
    %p175 = por %p173, %p174
    %p176 = scmp.ne.s32.totalorder %s165, %s168
    %p177 = scmp.eq.s32.totalorder %s16, 1
    %p178 = por %p176, %p177
    %p179 = scmp.ne.s32.totalorder %s168, %s169
    %p180 = scmp.eq.s32.totalorder %s16, 0
    %p181 = por %p179, %p180
    %p182 = scmp.ne.s32.totalorder %s168, %s169
    %p183 = scmp.eq.s32.totalorder %s17, 1
    %p184 = por %p182, %p183
    %p186 = scmp.ne.s32.totalorder %s169, %s185
    %p187 = scmp.eq.s32.totalorder %s17, 0
    %p188 = por %p186, %p187
    %p189 = scmp.le.s32.totalorder 1, %s11
    %p190 = scmp.lt.s32.totalorder %s11, 3
    %p191 = pnand %p189, %p190
    %p192 = pneg %p191
    // Predicated region
    $region9: #{_lambda_.21} parent=5 // pred_check
      _
    $region10: #{_lambda_.21} parent=5 // pred_check_branch
      %194 = sbr.rel (%p191) target = $region12
    $region11: #{_lambda_.21} parent=5 // pred_region
      %s195 = ssub.s32 %s11, 1
      // Predicated region
      $region13: #{_lambda_.21} parent=11 // pred_check
        %p196 = pneg %p101
      $region14: #{_lambda_.21} parent=11 // pred_check_branch
        %198 = sbr.rel (%p196) target = $region16
      $region15: #{_lambda_.21} parent=11 // pred_region
        %p199 = scmp.lt.s32.totalorder %s21, 0
        %s200 = scalar_select %p199, %s21, 0
        %s201 = smul.addr %s200, 4
        %s202 = scalar_lea.vmem %s2, %s201
      $region16: #{_lambda_.21} parent=11 // pred_fallthru
        _
      // Predicated region
      $region17: #{_lambda_.21} parent=11 // pred_check
        %p203 = pneg %p127
      $region18: #{_lambda_.21} parent=11 // pred_check_branch
        %205 = sbr.rel (%p203) target = $region20
      $region19: #{_lambda_.21} parent=11 // pred_region
        %p206 = scmp.lt.s32.totalorder %s21, 0
        %s207 = scalar_select %p206, %s21, 0
        %s208 = smul.addr %s207, 4
        %s209 = scalar_lea.vmem %s3, %s208
      $region20: #{_lambda_.21} parent=11 // pred_fallthru
        _
      // Predicated region
      $region21: #{_lambda_.21} parent=11 // pred_check
        %p210 = pneg %p153
      $region22: #{_lambda_.21} parent=11 // pred_check_branch
        %212 = sbr.rel (%p210) target = $region24
      $region23: #{_lambda_.21} parent=11 // pred_region
        %p213 = scmp.lt.s32.totalorder %s21, 0
        %s214 = scalar_select %p213, %s21, 0
        %s215 = scalar_lea.vmem %s4, %s214
      $region24: #{_lambda_.21} parent=11 // pred_fallthru
        _
    $region12: #{_lambda_.21} parent=5 // pred_fallthru
      _
    %p216 = scmp.lt.s32.totalorder %s11, 2
    // Predicated region
    $region25: #{_lambda_.21} parent=5 // pred_check
      %p217 = pneg %p216
    $region26: #{_lambda_.21} parent=5 // pred_check_branch
      %219 = sbr.rel (%p217) target = $region28
    $region27: #{_lambda_.21} parent=5 // pred_region
      // Predicated region
      $region29: #{_lambda_.21} parent=27 // pred_check
        %p220 = pneg %p43
      $region30: #{_lambda_.21} parent=27 // pred_check_branch
        %222 = sbr.rel (%p220) target = $region32
      $region31: #{_lambda_.21} parent=27 // pred_region
        %s223 = smul.u32 8, %s18
        %p224 = scmp.lt.s32.totalorder %s223, 15
        %s225 = scalar_select %p224, %s223, 15
        %s226 = smul.addr %s225, 4
        %s227 = scalar_lea.vmem %s0, %s226
        %s228 = smul.u32 8, %s18
      $region32: #{_lambda_.21} parent=27 // pred_fallthru
        _
      // Predicated region
      $region33: #{_lambda_.21} parent=27 // pred_check
        %p229 = pneg %p69
      $region34: #{_lambda_.21} parent=27 // pred_check_branch
        %231 = sbr.rel (%p229) target = $region36
      $region35: #{_lambda_.21} parent=27 // pred_region
        %s232 = smul.u32 8, %s18
        %p233 = scmp.lt.s32.totalorder %s232, 15
        %s234 = scalar_select %p233, %s232, 15
        %s235 = smul.addr %s234, 4
        %s236 = scalar_lea.vmem %s1, %s235
        %s237 = smul.u32 8, %s18
      $region36: #{_lambda_.21} parent=27 // pred_fallthru
        _
    $region28: #{_lambda_.21} parent=5 // pred_fallthru
      _
    %p238 = scmp.le.s32.totalorder 1, %s11
    %p239 = scmp.lt.s32.totalorder %s11, 3
    %p240 = pnand %p238, %p239
    %p241 = pneg %p240
    // Predicated region
    $region37: #{_lambda_.21} parent=5 // pred_check
      _
    $region38: #{_lambda_.21} parent=5 // pred_check_branch
      %243 = sbr.rel (%p240) target = $region40
    $region39: #{_lambda_.21} parent=5 // pred_region
      %s244 = ssub.s32 %s11, 1
      %s245 = smul.u32 8, %s20
      %p246 = scmp.lt.s32.totalorder %s245, 15
      %s247 = scalar_select %p246, %s245, 15
      %s248 = smul.addr %s247, 4
      %s249 = scalar_lea.vmem %s0, %s248
      %p250 = pneg %p49
      %p251 = pneg %p46
      %s252 = smul.u32 8, %s20
      %p253 = scmp.lt.s32.totalorder %s252, 15
      %s254 = scalar_select %p253, %s252, 15
      %s255 = smul.addr %s254, 4
      %s256 = scalar_lea.vmem %s1, %s255
      %p257 = pneg %p75
      %p258 = pneg %p72
      %p259 = scmp.lt.s32.totalorder %s21, 0
      %s260 = scalar_select %p259, %s21, 0
      %s261 = smul.addr %s260, 4
      %s262 = scalar_lea.vmem %s2, %s261
      %p263 = pneg %p101
      %p264 = pneg %p98
      %p265 = scmp.lt.s32.totalorder %s21, 0
      %s266 = scalar_select %p265, %s21, 0
      %s267 = smul.addr %s266, 4
      %s268 = scalar_lea.vmem %s3, %s267
      %p269 = pneg %p127
      %p270 = pneg %p124
      %p271 = scmp.lt.s32.totalorder %s21, 0
      %s272 = scalar_select %p271, %s21, 0
      %s273 = scalar_lea.vmem %s4, %s272
      %p274 = pneg %p153
      %p275 = pneg %p150
      %p276 = pneg %p181
      %p277 = pneg %p178
      %s278 = smul.u32 8, %s20
      %p279 = scmp.lt.s32.totalorder %s278, 15
      %s280 = scalar_select %p279, %s278, 15
      %p281 = scmp.lt.s32.totalorder %s21, 0
      %s282 = scalar_select %p281, %s21, 0
      %s283 = sadd.s32 %s282, %s280
      %s284 = smul.addr %s283, 8
      %s285 = scalar_lea.vmem %s5, %s284
      %s286 = smul.u32 8, %s20
      %p287 = scmp.lt.s32.totalorder %s286, 15
      %s288 = scalar_select %p287, %s286, 15
      %s289 = smul.addr %s288, 4
      %s290 = scalar_lea.vmem %s0, %s289
      %s291 = smul.u32 8, %s20
      %s292 = smul.u32 8, %s20
      %p293 = scmp.lt.s32.totalorder %s292, 15
      %s294 = scalar_select %p293, %s292, 15
      %s295 = smul.addr %s294, 4
      %s296 = scalar_lea.vmem %s1, %s295
      %s297 = smul.u32 8, %s20
      %p298 = scmp.lt.s32.totalorder %s21, 0
      %s299 = scalar_select %p298, %s21, 0
      %s300 = smul.addr %s299, 4
      %s301 = scalar_lea.vmem %s2, %s300
      %p302 = scmp.lt.s32.totalorder %s21, 0
      %s303 = scalar_select %p302, %s21, 0
      %s304 = smul.addr %s303, 4
      %s305 = scalar_lea.vmem %s3, %s304
      %p306 = scmp.lt.s32.totalorder %s21, 0
      %s307 = scalar_select %p306, %s21, 0
      %s308 = scalar_lea.vmem %s4, %s307
      %s309 = smul.u32 8, %s20
      %p310 = scmp.lt.s32.totalorder %s309, 15
      %s311 = scalar_select %p310, %s309, 15
      %p312 = scmp.lt.s32.totalorder %s21, 0
      %s313 = scalar_select %p312, %s21, 0
      %s314 = sadd.s32 %s313, %s311
      %s315 = smul.addr %s314, 8
      %s316 = scalar_lea.vmem %s5, %s315
      %s317 = smul.u32 8, %s20
      %v319 = vld [vmem:[%s290] sm:$0xf]
      %v320 = vld [vmem:[%s290 + $0x4] sm:$0xf]
      %v321 = vld [vmem:[%s290 + $0x8] sm:$0xf]
      %v322 = vld [vmem:[%s290 + $0xc] sm:$0xf]
      %v323 = vld [vmem:[%s290 + $0x10] sm:$0xf]
      %v324 = vld [vmem:[%s290 + $0x14] sm:$0xf]
      %v325 = vld [vmem:[%s290 + $0x18] sm:$0xf]
      %v326 = vld [vmem:[%s290 + $0x1c] sm:$0xf]
      %v327 = vld [vmem:[%s301] sm:$0xf]
      %v328 = vld [vmem:[%s301 + $0x4] sm:$0xf]
      %v329 = vld [vmem:[%s296] sm:$0xf]
      %v330 = vld [vmem:[%s296 + $0x4] sm:$0xf]
      %v331 = vld [vmem:[%s296 + $0x8] sm:$0xf]
      %v332 = vld [vmem:[%s296 + $0xc] sm:$0xf]
      %v333 = vld [vmem:[%s296 + $0x10] sm:$0xf]
      %v334 = vld [vmem:[%s296 + $0x14] sm:$0xf]
      %v335 = vld [vmem:[%s296 + $0x18] sm:$0xf]
      %v336 = vld [vmem:[%s296 + $0x1c] sm:$0xf]
      %v337 = vld [vmem:[%s305] sm:$0xf]
      %v338 = vld [vmem:[%s305 + $0x4] sm:$0xf]
      %v347 = vunpack.c.l.b16 %v329
      %v348 = vunpack.c.l.b16 %v330
      %v349 = vunpack.c.l.b16 %v331
      %v350 = vunpack.c.l.b16 %v332
      %v351 = vunpack.c.l.b16 %v333
      %v352 = vunpack.c.l.b16 %v334
      %v353 = vunpack.c.l.b16 %v335
      %v354 = vunpack.c.l.b16 %v336
      %v355 = vpack.c.b16 %v348, %v347
      %v356 = vpack.c.b16 %v350, %v349
      %v357 = vpack.c.b16 %v352, %v351
      %v358 = vpack.c.b16 %v354, %v353
      %v361 = vunpack.c.l.b16 %v337
      %v362 = vunpack.c.l.b16 %v338
      %v363 = vpack.c.b16 %v362, %v361
      %vm365 = vcmask 130048
      %v367 = vsel %vm365, %v355, 0
      %v370 = vsel %vm365, %v356, 0
      %v373 = vsel %vm365, %v357, 0
      %v376 = vsel %vm365, %v358, 0
      %378 = vmatprep.subr.bf16.mxu0 0
      %379 = vmatpush1.bf16.msra.mxu0 0
      %380 = vmatprep.subr.bf16.mxu0 0
      %381 = vmatpush1.bf16.msra.mxu0 0
      %382 = vmatprep.subr.bf16.mxu0 0
      %383 = vmatpush1.bf16.msra.mxu0 0
      %384 = vmatprep.subr.bf16.mxu0 0
      %385 = vmatpush1.bf16.msra.mxu0 0
      %386 = vmatprep.subr.bf16.mxu0 0
      %387 = vmatpush1.bf16.msra.mxu0 0
      %388 = vmatprep.subr.bf16.mxu0 0
      %389 = vmatpush1.bf16.msra.mxu0 0
      %390 = vmatprep.subr.bf16.mxu0 0
      %391 = vmatpush1.bf16.msra.mxu0 0
      %392 = vmatprep.subr.bf16.mxu0 0
      %393 = vmatpush1.bf16.msra.mxu0 %v363
      %394 = vmatprep.subr.bf16.mxu0 0
      %395 = vmatpush2.bf16.msra.mxu0 0
      %396 = vmatprep.subr.bf16.mxu0 0
      %397 = vmatpush2.bf16.msra.mxu0 0
      %398 = vmatprep.subr.bf16.mxu0 0
      %399 = vmatpush2.bf16.msra.mxu0 0
      %400 = vmatprep.subr.bf16.mxu0 0
      %401 = vmatpush2.bf16.msra.mxu0 0
      %402 = vmatprep.subr.bf16.mxu0 0
      %403 = vmatpush2.bf16.msra.mxu0 0
      %404 = vmatprep.subr.bf16.mxu0 0
      %405 = vmatpush2.bf16.msra.mxu0 0
      %406 = vmatprep.subr.bf16.mxu0 0
      %407 = vmatpush2.bf16.msra.mxu0 0
      %408 = vmatprep.subr.bf16.mxu0 0
      %409 = vmatpush2.bf16.msra.mxu0 0
      %410 = vmatprep.mubr.bf16.mxu0 0
      %411 = vmatmul.mubr.bf16.gmra.mxu0 %v367
      %v412 = vpop.f32.mrf.mxu0
      %v413 = vadd.f32 0.0, %v412
      %v414 = vpop.f32.mrf.mxu0
      %v415 = vpop.f32.mrf.mxu0
      %v416 = vadd.f32 0.0, %v415
      %v417 = vpop.f32.mrf.mxu0
      %418 = vmatprep.mubr.bf16.mxu0 0
      %419 = vmatmul.mubr.bf16.gmra.mxu0 %v370
      %v420 = vpop.f32.mrf.mxu0
      %v421 = vadd.f32 0.0, %v420
      %v422 = vpop.f32.mrf.mxu0
      %v423 = vpop.f32.mrf.mxu0
      %v424 = vadd.f32 0.0, %v423
      %v425 = vpop.f32.mrf.mxu0
      %426 = vmatprep.mubr.bf16.mxu0 0
      %427 = vmatmul.mubr.bf16.gmra.mxu0 %v373
      %v428 = vpop.f32.mrf.mxu0
      %v429 = vadd.f32 0.0, %v428
      %v430 = vpop.f32.mrf.mxu0
      %v431 = vpop.f32.mrf.mxu0
      %v432 = vadd.f32 0.0, %v431
      %v433 = vpop.f32.mrf.mxu0
      %434 = vmatprep.mubr.bf16.mxu0 0
      %435 = vmatmul.mubr.bf16.gmra.mxu0 %v376
      %v436 = vpop.f32.mrf.mxu0
      %v437 = vadd.f32 0.0, %v436
      %v438 = vpop.f32.mrf.mxu0
      %v439 = vpop.f32.mrf.mxu0
      %v440 = vadd.f32 0.0, %v439
      %v441 = vpop.f32.mrf.mxu0
      %442 = vdwg.mxu0
      %v451 = vunpack.c.l.b16 %v319
      %v452 = vunpack.c.l.b16 %v320
      %v453 = vunpack.c.l.b16 %v321
      %v454 = vunpack.c.l.b16 %v322
      %v455 = vunpack.c.l.b16 %v323
      %v456 = vunpack.c.l.b16 %v324
      %v457 = vunpack.c.l.b16 %v325
      %v458 = vunpack.c.l.b16 %v326
      %v459 = vpack.c.b16 %v452, %v451
      %v460 = vpack.c.b16 %v454, %v453
      %v461 = vpack.c.b16 %v456, %v455
      %v462 = vpack.c.b16 %v458, %v457
      %v465 = vunpack.c.l.b16 %v327
      %v466 = vunpack.c.l.b16 %v328
      %v467 = vpack.c.b16 %v466, %v465
      %v470 = vsel %vm365, %v459, 0
      %v473 = vsel %vm365, %v460, 0
      %v476 = vsel %vm365, %v461, 0
      %v479 = vsel %vm365, %v462, 0
      %481 = vmatprep.subr.bf16.mxu0 0
      %482 = vmatpush1.bf16.msra.mxu0 0
      %483 = vmatprep.subr.bf16.mxu0 0
      %484 = vmatpush1.bf16.msra.mxu0 0
      %485 = vmatprep.subr.bf16.mxu0 0
      %486 = vmatpush1.bf16.msra.mxu0 0
      %487 = vmatprep.subr.bf16.mxu0 0
      %488 = vmatpush1.bf16.msra.mxu0 0
      %489 = vmatprep.subr.bf16.mxu0 0
      %490 = vmatpush1.bf16.msra.mxu0 0
      %491 = vmatprep.subr.bf16.mxu0 0
      %492 = vmatpush1.bf16.msra.mxu0 0
      %493 = vmatprep.subr.bf16.mxu0 0
      %494 = vmatpush1.bf16.msra.mxu0 0
      %495 = vmatprep.subr.bf16.mxu0 0
      %496 = vmatpush1.bf16.msra.mxu0 %v467
      %497 = vmatprep.subr.bf16.mxu0 0
      %498 = vmatpush2.bf16.msra.mxu0 0
      %499 = vmatprep.subr.bf16.mxu0 0
      %500 = vmatpush2.bf16.msra.mxu0 0
      %501 = vmatprep.subr.bf16.mxu0 0
      %502 = vmatpush2.bf16.msra.mxu0 0
      %503 = vmatprep.subr.bf16.mxu0 0
      %504 = vmatpush2.bf16.msra.mxu0 0
      %505 = vmatprep.subr.bf16.mxu0 0
      %506 = vmatpush2.bf16.msra.mxu0 0
      %507 = vmatprep.subr.bf16.mxu0 0
      %508 = vmatpush2.bf16.msra.mxu0 0
      %509 = vmatprep.subr.bf16.mxu0 0
      %510 = vmatpush2.bf16.msra.mxu0 0
      %511 = vmatprep.subr.bf16.mxu0 0
      %512 = vmatpush2.bf16.msra.mxu0 0
      %513 = vmatprep.mubr.bf16.mxu0 0
      %514 = vmatmul.mubr.bf16.gmra.mxu0 %v470
      %v515 = vpop.f32.mrf.mxu0
      %v516 = vadd.f32 %v413, %v515
      %v517 = vpop.f32.mrf.mxu0
      %v518 = vpop.f32.mrf.mxu0
      %v519 = vadd.f32 %v416, %v518
      %v520 = vpop.f32.mrf.mxu0
      %521 = vmatprep.mubr.bf16.mxu0 0
      %522 = vmatmul.mubr.bf16.gmra.mxu0 %v473
      %v523 = vpop.f32.mrf.mxu0
      %v524 = vadd.f32 %v421, %v523
      %v525 = vpop.f32.mrf.mxu0
      %v526 = vpop.f32.mrf.mxu0
      %v527 = vadd.f32 %v424, %v526
      %v528 = vpop.f32.mrf.mxu0
      %529 = vmatprep.mubr.bf16.mxu0 0
      %530 = vmatmul.mubr.bf16.gmra.mxu0 %v476
      %v531 = vpop.f32.mrf.mxu0
      %v532 = vadd.f32 %v429, %v531
      %v533 = vpop.f32.mrf.mxu0
      %v534 = vpop.f32.mrf.mxu0
      %v535 = vadd.f32 %v432, %v534
      %v536 = vpop.f32.mrf.mxu0
      %537 = vmatprep.mubr.bf16.mxu0 0
      %538 = vmatmul.mubr.bf16.gmra.mxu0 %v479
      %v539 = vpop.f32.mrf.mxu0
      %v540 = vadd.f32 %v437, %v539
      %v541 = vpop.f32.mrf.mxu0
      %v542 = vpop.f32.mrf.mxu0
      %v543 = vadd.f32 %v440, %v542
      %v544 = vpop.f32.mrf.mxu0
      %545 = vdwg.mxu0
      %v546 = vld [vmem:[%s308] sm:$0x1]
      %v548 = vlaneseq
      %v549 = vshrl.u32 %v548, 7
      %v550 = vsub.s32 0, %v549
      %v551 = vrot.slane %v546, %v550
      %v553 = vadd.f32 %v516, %v551
      %v554 = vadd.f32 %v519, %v551
      %v555 = vadd.f32 %v524, %v551
      %v556 = vadd.f32 %v527, %v551
      %v557 = vadd.f32 %v532, %v551
      %v558 = vadd.f32 %v535, %v551
      %v559 = vadd.f32 %v540, %v551
      %v560 = vadd.f32 %v543, %v551
      %v561 = vsub.f32 0.0, %v553
      %v562 = vsub.f32 0.0, %v554
      %v563 = vsub.f32 0.0, %v555
      %v564 = vsub.f32 0.0, %v556
      %v565 = vsub.f32 0.0, %v557
      %v566 = vsub.f32 0.0, %v558
      %v567 = vsub.f32 0.0, %v559
      %v568 = vsub.f32 0.0, %v560
      %v569 = vmul.f32 %v561, 1.442695
      %v570 = vpow.pop %v569
      %v571 = vmul.f32 %v562, 1.442695
      %v572 = vpow.pop %v571
      %v573 = vmul.f32 %v563, 1.442695
      %v574 = vpow.pop %v573
      %v575 = vmul.f32 %v564, 1.442695
      %v576 = vpow.pop %v575
      %v577 = vmul.f32 %v565, 1.442695
      %v578 = vpow.pop %v577
      %v579 = vmul.f32 %v566, 1.442695
      %v580 = vpow.pop %v579
      %v581 = vmul.f32 %v567, 1.442695
      %v582 = vpow.pop %v581
      %v583 = vmul.f32 %v568, 1.442695
      %v584 = vpow.pop %v583
      %v585 = vadd.f32 %v570, 1.0
      %v586 = vadd.f32 %v572, 1.0
      %v587 = vadd.f32 %v574, 1.0
      %v588 = vadd.f32 %v576, 1.0
      %v589 = vadd.f32 %v578, 1.0
      %v590 = vadd.f32 %v580, 1.0
      %v591 = vadd.f32 %v582, 1.0
      %v592 = vadd.f32 %v584, 1.0
      %v593 = vrcp.pop %v585
      %v594 = vrcp.pop %v586
      %v595 = vrcp.pop %v587
      %v596 = vrcp.pop %v588
      %v597 = vrcp.pop %v589
      %v598 = vrcp.pop %v590
      %v599 = vrcp.pop %v591
      %v600 = vrcp.pop %v592
      %v601 = vmul.f32 %v553, %v593
      %v602 = vmul.f32 %v554, %v594
      %v603 = vmul.f32 %v555, %v595
      %v604 = vmul.f32 %v556, %v596
      %v605 = vmul.f32 %v557, %v597
      %v606 = vmul.f32 %v558, %v598
      %v607 = vmul.f32 %v559, %v599
      %v608 = vmul.f32 %v560, %v600
      %609 = vst [vmem:[%s316] sm:$0xff] %v601
      %610 = vst [vmem:[%s316 + $0x8] sm:$0xff] %v602
      %611 = vst [vmem:[%s316 + $0x10] sm:$0xff] %v603
      %612 = vst [vmem:[%s316 + $0x18] sm:$0xff] %v604
      %613 = vst [vmem:[%s316 + $0x20] sm:$0xff] %v605
      %614 = vst [vmem:[%s316 + $0x28] sm:$0xff] %v606
      %615 = vst [vmem:[%s316 + $0x30] sm:$0xff] %v607
      %616 = vst [vmem:[%s316 + $0x38] sm:$0xff] %v608
      %s617 = smul.u32 8, %s20
      %p618 = scmp.lt.s32.totalorder %s617, 15
      %s619 = scalar_select %p618, %s617, 15
      %p620 = scmp.lt.s32.totalorder %s21, 0
      %s621 = scalar_select %p620, %s21, 0
      %s622 = sadd.s32 %s621, %s619
      %s623 = smul.addr %s622, 8
      %s624 = scalar_lea.vmem %s5, %s623
      // Predicated region
      $region41: #{_lambda_.21} parent=39 // pred_check
        %p625 = pneg %p178
      $region42: #{_lambda_.21} parent=39 // pred_check_branch
        %627 = sbr.rel (%p625) target = $region44
      $region43: #{_lambda_.21} parent=39 // pred_region
        %s628 = smul.u32 8, %s20
      $region44: #{_lambda_.21} parent=39 // pred_fallthru
        _
    $region40: #{_lambda_.21} parent=5 // pred_fallthru
      _
    %p629 = scmp.le.s32.totalorder 2, %s11
    // Predicated region
    $region45: #{_lambda_.21} parent=5 // pred_check
      %p630 = pneg %p629
    $region46: #{_lambda_.21} parent=5 // pred_check_branch
      %632 = sbr.rel (%p630) target = $region48
    $region47: #{_lambda_.21} parent=5 // pred_region
      %s633 = ssub.s32 %s11, 2
      // Predicated region
      $region49: #{_lambda_.21} parent=47 // pred_check
        %p634 = pneg %p184
      $region50: #{_lambda_.21} parent=47 // pred_check_branch
        %636 = sbr.rel (%p634) target = $region52
      $region51: #{_lambda_.21} parent=47 // pred_region
        %s637 = smul.u32 8, %s22
        %p638 = scmp.lt.s32.totalorder %s637, 15
        %s639 = scalar_select %p638, %s637, 15
        %p640 = scmp.lt.s32.totalorder %s23, 0
        %s641 = scalar_select %p640, %s23, 0
        %s642 = sadd.s32 %s641, %s639
        %s643 = smul.addr %s642, 8
        %s644 = scalar_lea.vmem %s5, %s643
      $region52: #{_lambda_.21} parent=47 // pred_fallthru
        _
    $region48: #{_lambda_.21} parent=5 // pred_fallthru
      _
  $region6: #{_lambda_.21} parent=0 // loop_footer
    %s15 = sadd.s32 1, %s11
  $region7: #{_lambda_.21} parent=0 // loop_footer_branch
    %10 = sbr.rel target = $region3
  $region8: #{_lambda_.21} parent=0 // loop_exit
    _

// kernel: _lambda_.22
$region0: #{_lambda_.22}
  #allocation0 [shape = 'u32[]', space=smem, size = 0x4, offset = 0x4, fixed_abs, tag = 'smem constant byte address 0x4 - core index']
  #allocation1 [shape = 'u32[144,128]{1,0:T(1,128)}', space=vmem, size = 0x12000, scoped, tag = 'internal scratch']
  #allocation2 [shape = 'f32[64,128]{1,0:T(8,128)}', space=vmem, size = 0x8000, scoped, tag = 'scratch operand']
  %s0 = inlined_call_operand.vmem [shape: bf16[128,72], index: 0, kind: input, shape index: {}]
  %s1 = inlined_call_operand.vmem [shape: bf16[72,128], index: 1, kind: input, shape index: {}]
  %s2 = inlined_call_operand.vmem [shape: f32[1,128], index: 2, kind: input, shape index: {}]
  %s3 = inlined_call_operand.vmem [shape: f32[128,128], index: 3, kind: output, shape index: {}]
  %s4 = sld [smem:[#allocation0]]
  $region53: #{_lambda_.22} parent=0
    _
  %s6 = ssub.s32 1, %s4
  %s7 = scalar_select 0, %s6, %s4
  loop: start=0, step=1, limit=4
  $region2: #{_lambda_.22} parent=0 // loop_pre_header
    _
  $region3: #{_lambda_.22} parent=0 // loop_header
    %s9 = sphi 0, %s13
    %p10 = scmp.ge.s32.totalorder %s9, 4
    %s16 = sphi 0, %s35
    %s17 = sphi 0, %s31
    %s18 = sphi 0, %s27
    %s19 = sphi 0, %s16
    %s20 = sphi 0, %s17
    %s21 = sphi 0, %s18
    %s22 = sphi 0, %s19
    %s23 = sphi 0, %s20
    %s24 = sphi 0, %s21
    %s40 = sphi 0, %s42
    %s43 = sphi 0, %s40
    %s44 = sphi 0, %s43
    %s60 = sphi 0, %s44
    %s68 = sphi 0, %s70
    %s71 = sphi 0, %s68
    %s72 = sphi 0, %s71
    %s88 = sphi 0, %s72
    %s94 = sphi 0, %s96
    %s97 = sphi 0, %s94
    %s98 = sphi 0, %s97
    %s114 = sphi 0, %s98
    %s122 = sphi 0, %s124
    %s125 = sphi 0, %s122
    %s126 = sphi 0, %s125
    %s142 = sphi 0, %s126
  $region4: #{_lambda_.22} parent=0 // loop_header_branch
    %12 = sbr.rel (%p10) target = $region8
  $region5: #{_lambda_.22} parent=0 // loop_body
    %s14 = ssub.s32 %s9, 1
    %s15 = ssub.s32 %s9, 2
    %s25 = sadd.s32 1, %s18
    %p26 = scmp.ge.s32.totalorder %s25, 1
    %s27 = scalar_select %p26, 0, %s25
    %s28 = sadd.s32 1, %s17
    %s29 = scalar_select %p26, %s28, %s17
    %p30 = scmp.ge.s32.totalorder %s29, 1
    %s31 = scalar_select %p30, 0, %s29
    %s32 = sadd.s32 1, %s16
    %s33 = scalar_select %p30, %s32, %s16
    %p34 = scmp.ge.s32.totalorder %s33, 2
    %s35 = scalar_select %p34, 0, %s33
    %s36 = ssub.s32 %s16, %s35
    %s37 = ssub.s32 %s18, %s27
    %s38 = sor.u32 %s36, %s37
    %p39 = scmp.eq.s32.totalorder %s38, 0
    %s41 = sadd.s32 %s40, 1
    %s42 = scalar_select %p39, %s40, %s41
    %p45 = pneg %p39
    %p46 = scmp.eq.s32.totalorder %s9, 1
    %p47 = por %p45, %p46
    %p48 = scmp.ne.s32.totalorder %s40, %s43
    %p49 = scmp.eq.s32.totalorder %s9, 0
    %p50 = por %p48, %p49
    %p51 = scmp.ne.s32.totalorder %s40, %s43
    %p52 = scmp.eq.s32.totalorder %s14, 1
    %p53 = por %p51, %p52
    %p54 = scmp.ne.s32.totalorder %s43, %s44
    %p55 = scmp.eq.s32.totalorder %s14, 0
    %p56 = por %p54, %p55
    %p57 = scmp.ne.s32.totalorder %s43, %s44
    %p58 = scmp.eq.s32.totalorder %s15, 1
    %p59 = por %p57, %p58
    %p61 = scmp.ne.s32.totalorder %s44, %s60
    %p62 = scmp.eq.s32.totalorder %s15, 0
    %p63 = por %p61, %p62
    %s64 = ssub.s32 %s18, %s27
    %s65 = ssub.s32 %s17, %s31
    %s66 = sor.u32 %s64, %s65
    %p67 = scmp.eq.s32.totalorder %s66, 0
    %s69 = sadd.s32 %s68, 1
    %s70 = scalar_select %p67, %s68, %s69
    %p73 = pneg %p67
    %p74 = scmp.eq.s32.totalorder %s9, 1
    %p75 = por %p73, %p74
    %p76 = scmp.ne.s32.totalorder %s68, %s71
    %p77 = scmp.eq.s32.totalorder %s9, 0
    %p78 = por %p76, %p77
    %p79 = scmp.ne.s32.totalorder %s68, %s71
    %p80 = scmp.eq.s32.totalorder %s14, 1
    %p81 = por %p79, %p80
    %p82 = scmp.ne.s32.totalorder %s71, %s72
    %p83 = scmp.eq.s32.totalorder %s14, 0
    %p84 = por %p82, %p83
    %p85 = scmp.ne.s32.totalorder %s71, %s72
    %p86 = scmp.eq.s32.totalorder %s15, 1
    %p87 = por %p85, %p86
    %p89 = scmp.ne.s32.totalorder %s72, %s88
    %p90 = scmp.eq.s32.totalorder %s15, 0
    %p91 = por %p89, %p90
    %s92 = ssub.s32 %s17, %s31
    %p93 = scmp.eq.s32.totalorder %s92, 0
    %s95 = sadd.s32 %s94, 1
    %s96 = scalar_select %p93, %s94, %s95
    %p99 = pneg %p93
    %p100 = scmp.eq.s32.totalorder %s9, 1
    %p101 = por %p99, %p100
    %p102 = scmp.ne.s32.totalorder %s94, %s97
    %p103 = scmp.eq.s32.totalorder %s9, 0
    %p104 = por %p102, %p103
    %p105 = scmp.ne.s32.totalorder %s94, %s97
    %p106 = scmp.eq.s32.totalorder %s14, 1
    %p107 = por %p105, %p106
    %p108 = scmp.ne.s32.totalorder %s97, %s98
    %p109 = scmp.eq.s32.totalorder %s14, 0
    %p110 = por %p108, %p109
    %p111 = scmp.ne.s32.totalorder %s97, %s98
    %p112 = scmp.eq.s32.totalorder %s15, 1
    %p113 = por %p111, %p112
    %p115 = scmp.ne.s32.totalorder %s98, %s114
    %p116 = scmp.eq.s32.totalorder %s15, 0
    %p117 = por %p115, %p116
    %s118 = ssub.s32 %s16, %s35
    %s119 = ssub.s32 %s17, %s31
    %s120 = sor.u32 %s118, %s119
    %p121 = scmp.eq.s32.totalorder %s120, 0
    %s123 = sadd.s32 %s122, 1
    %s124 = scalar_select %p121, %s122, %s123
    %p127 = pneg %p121
    %p128 = scmp.eq.s32.totalorder %s9, 1
    %p129 = por %p127, %p128
    %p130 = scmp.ne.s32.totalorder %s122, %s125
    %p131 = scmp.eq.s32.totalorder %s9, 0
    %p132 = por %p130, %p131
    %p133 = scmp.ne.s32.totalorder %s122, %s125
    %p134 = scmp.eq.s32.totalorder %s14, 1
    %p135 = por %p133, %p134
    %p136 = scmp.ne.s32.totalorder %s125, %s126
    %p137 = scmp.eq.s32.totalorder %s14, 0
    %p138 = por %p136, %p137
    %p139 = scmp.ne.s32.totalorder %s125, %s126
    %p140 = scmp.eq.s32.totalorder %s15, 1
    %p141 = por %p139, %p140
    %p143 = scmp.ne.s32.totalorder %s126, %s142
    %p144 = scmp.eq.s32.totalorder %s15, 0
    %p145 = por %p143, %p144
    %p146 = scmp.le.s32.totalorder 1, %s9
    %p147 = scmp.lt.s32.totalorder %s9, 3
    %p148 = pnand %p146, %p147
    %p149 = pneg %p148
    // Predicated region
    $region9: #{_lambda_.22} parent=5 // pred_check
      _
    $region10: #{_lambda_.22} parent=5 // pred_check_branch
      %151 = sbr.rel (%p148) target = $region12
    $region11: #{_lambda_.22} parent=5 // pred_region
      %s152 = ssub.s32 %s9, 1
      // Predicated region
      $region13: #{_lambda_.22} parent=11 // pred_check
        %p153 = pneg %p84
      $region14: #{_lambda_.22} parent=11 // pred_check_branch
        %155 = sbr.rel (%p153) target = $region16
      $region15: #{_lambda_.22} parent=11 // pred_region
        %s156 = smul.u32 9, %s21
        %p157 = scmp.lt.s32.totalorder %s156, 8
        %s158 = scalar_select %p157, %s156, 8
        %p159 = scmp.lt.s32.totalorder %s20, 0
        %s160 = scalar_select %p159, %s20, 0
        %s161 = sadd.s32 %s160, %s158
        %s162 = smul.addr %s161, 4
        %s163 = scalar_lea.vmem %s1, %s162
        %s164 = smul.u32 9, %s21
      $region16: #{_lambda_.22} parent=11 // pred_fallthru
        _
      // Predicated region
      $region17: #{_lambda_.22} parent=11 // pred_check
        %p165 = pneg %p110
      $region18: #{_lambda_.22} parent=11 // pred_check_branch
        %167 = sbr.rel (%p165) target = $region20
      $region19: #{_lambda_.22} parent=11 // pred_region
        %p168 = scmp.lt.s32.totalorder %s20, 0
        %s169 = scalar_select %p168, %s20, 0
        %s170 = scalar_lea.vmem %s2, %s169
      $region20: #{_lambda_.22} parent=11 // pred_fallthru
        _
    $region12: #{_lambda_.22} parent=5 // pred_fallthru
      _
    %p171 = scmp.lt.s32.totalorder %s9, 2
    // Predicated region
    $region21: #{_lambda_.22} parent=5 // pred_check
      %p172 = pneg %p171
    $region22: #{_lambda_.22} parent=5 // pred_check_branch
      %174 = sbr.rel (%p172) target = $region24
    $region23: #{_lambda_.22} parent=5 // pred_region
      // Predicated region
      $region25: #{_lambda_.22} parent=23 // pred_check
        %p175 = pneg %p50
      $region26: #{_lambda_.22} parent=23 // pred_check_branch
        %177 = sbr.rel (%p175) target = $region28
      $region27: #{_lambda_.22} parent=23 // pred_region
        %s178 = smul.u32 8, %s16
        %p179 = scmp.lt.s32.totalorder %s178, 15
        %s180 = scalar_select %p179, %s178, 15
        %p181 = scmp.lt.s32.totalorder %s18, 0
        %s182 = scalar_select %p181, %s18, 0
        %s183 = sadd.s32 %s182, %s180
        %s184 = smul.addr %s183, 4
        %s185 = scalar_lea.vmem %s0, %s184
        %s186 = smul.u32 8, %s16
      $region28: #{_lambda_.22} parent=23 // pred_fallthru
        _
    $region24: #{_lambda_.22} parent=5 // pred_fallthru
      _
    %p187 = scmp.le.s32.totalorder 1, %s9
    %p188 = scmp.lt.s32.totalorder %s9, 3
    %p189 = pnand %p187, %p188
    %p190 = pneg %p189
    // Predicated region
    $region29: #{_lambda_.22} parent=5 // pred_check
      _
    $region30: #{_lambda_.22} parent=5 // pred_check_branch
      %192 = sbr.rel (%p189) target = $region32
    $region31: #{_lambda_.22} parent=5 // pred_region
      %s193 = ssub.s32 %s9, 1
      %s194 = smul.u32 8, %s19
      %p195 = scmp.lt.s32.totalorder %s194, 15
      %s196 = scalar_select %p195, %s194, 15
      %p197 = scmp.lt.s32.totalorder %s21, 0
      %s198 = scalar_select %p197, %s21, 0
      %s199 = sadd.s32 %s198, %s196
      %s200 = smul.addr %s199, 4
      %s201 = scalar_lea.vmem %s0, %s200
      %p202 = pneg %p56
      %p203 = pneg %p53
      %s204 = smul.u32 9, %s21
      %p205 = scmp.lt.s32.totalorder %s204, 8
      %s206 = scalar_select %p205, %s204, 8
      %p207 = scmp.lt.s32.totalorder %s20, 0
      %s208 = scalar_select %p207, %s20, 0
      %s209 = sadd.s32 %s208, %s206
      %s210 = smul.addr %s209, 4
      %s211 = scalar_lea.vmem %s1, %s210
      %p212 = pneg %p84
      %p213 = pneg %p81
      %p214 = scmp.lt.s32.totalorder %s20, 0
      %s215 = scalar_select %p214, %s20, 0
      %s216 = scalar_lea.vmem %s2, %s215
      %p217 = pneg %p110
      %p218 = pneg %p107
      %p219 = pneg %p138
      %p220 = pneg %p135
      %s221 = smul.u32 8, %s19
      %p222 = scmp.lt.s32.totalorder %s221, 15
      %s223 = scalar_select %p222, %s221, 15
      %p224 = scmp.lt.s32.totalorder %s20, 0
      %s225 = scalar_select %p224, %s20, 0
      %s226 = sadd.s32 %s225, %s223
      %s227 = smul.addr %s226, 8
      %s228 = scalar_lea.vmem %s3, %s227
      %s229 = smul.u32 8, %s19
      %p230 = scmp.lt.s32.totalorder %s229, 15
      %s231 = scalar_select %p230, %s229, 15
      %p232 = scmp.lt.s32.totalorder %s21, 0
      %s233 = scalar_select %p232, %s21, 0
      %s234 = sadd.s32 %s233, %s231
      %s235 = smul.addr %s234, 4
      %s236 = scalar_lea.vmem %s0, %s235
      %s237 = smul.u32 8, %s19
      %s238 = smul.u32 9, %s21
      %p239 = scmp.lt.s32.totalorder %s238, 8
      %s240 = scalar_select %p239, %s238, 8
      %p241 = scmp.lt.s32.totalorder %s20, 0
      %s242 = scalar_select %p241, %s20, 0
      %s243 = sadd.s32 %s242, %s240
      %s244 = smul.addr %s243, 4
      %s245 = scalar_lea.vmem %s1, %s244
      %s246 = smul.u32 9, %s21
      %p247 = scmp.lt.s32.totalorder %s20, 0
      %s248 = scalar_select %p247, %s20, 0
      %s249 = scalar_lea.vmem %s2, %s248
      %s250 = smul.u32 8, %s19
      %p251 = scmp.lt.s32.totalorder %s250, 15
      %s252 = scalar_select %p251, %s250, 15
      %p253 = scmp.lt.s32.totalorder %s20, 0
      %s254 = scalar_select %p253, %s20, 0
      %s255 = sadd.s32 %s254, %s252
      %s256 = smul.addr %s255, 8
      %s257 = scalar_lea.vmem %s3, %s256
      %s258 = smul.u32 8, %s19
      %p260 = scmp.eq.s32.totalorder %s21, 0
      // Predicated region
      $region33: #{_lambda_.22} parent=31 // pred_check
        %p261 = pneg %p260
      $region34: #{_lambda_.22} parent=31 // pred_check_branch
        %263 = sbr.rel (%p261) target = $region36
      $region35: #{_lambda_.22} parent=31 // pred_region
        %264 = vst [vmem:[#allocation2] sm:$0xff] 0.0
        %265 = vst [vmem:[#allocation2 + $0x8] sm:$0xff] 0.0
        %266 = vst [vmem:[#allocation2 + $0x10] sm:$0xff] 0.0
        %267 = vst [vmem:[#allocation2 + $0x18] sm:$0xff] 0.0
        %268 = vst [vmem:[#allocation2 + $0x20] sm:$0xff] 0.0
        %269 = vst [vmem:[#allocation2 + $0x28] sm:$0xff] 0.0
        %270 = vst [vmem:[#allocation2 + $0x30] sm:$0xff] 0.0
        %271 = vst [vmem:[#allocation2 + $0x38] sm:$0xff] 0.0
      $region36: #{_lambda_.22} parent=31 // pred_fallthru
        _
      %v272 = vld [vmem:[#allocation2] sm:$0xff]
      %v273 = vld [vmem:[#allocation2 + $0x8] sm:$0xff]
      %v274 = vld [vmem:[#allocation2 + $0x10] sm:$0xff]
      %v275 = vld [vmem:[#allocation2 + $0x18] sm:$0xff]
      %v276 = vld [vmem:[#allocation2 + $0x20] sm:$0xff]
      %v277 = vld [vmem:[#allocation2 + $0x28] sm:$0xff]
      %v278 = vld [vmem:[#allocation2 + $0x30] sm:$0xff]
      %v279 = vld [vmem:[#allocation2 + $0x38] sm:$0xff]
      %v280 = vld [vmem:[%s236] sm:$0xf]
      %v281 = vld [vmem:[%s236 + $0x4] sm:$0xf]
      %v282 = vld [vmem:[%s236 + $0x8] sm:$0xf]
      %v283 = vld [vmem:[%s236 + $0xc] sm:$0xf]
      %v284 = vld [vmem:[%s236 + $0x10] sm:$0xf]
      %v285 = vld [vmem:[%s236 + $0x14] sm:$0xf]
      %v286 = vld [vmem:[%s236 + $0x18] sm:$0xf]
      %v287 = vld [vmem:[%s236 + $0x1c] sm:$0xf]
      %v288 = vld [vmem:[%s245] sm:$0xf]
      %v289 = vld [vmem:[%s245 + $0x4] sm:$0xf]
      %v290 = vld [vmem:[%s245 + $0x8] sm:$0xf]
      %v291 = vld [vmem:[%s245 + $0xc] sm:$0xf]
      %v292 = vld [vmem:[%s245 + $0x10] sm:$0xf]
      %v293 = vld [vmem:[%s245 + $0x14] sm:$0xf]
      %v294 = vld [vmem:[%s245 + $0x18] sm:$0xf]
      %v295 = vld [vmem:[%s245 + $0x1c] sm:$0xf]
      %v296 = vld [vmem:[%s245 + $0x20] sm:$0xf]
      %v305 = vunpack.c.l.b16 %v280
      %v306 = vunpack.c.l.b16 %v281
      %v307 = vunpack.c.l.b16 %v282
      %v308 = vunpack.c.l.b16 %v283
      %v309 = vunpack.c.l.b16 %v284
      %v310 = vunpack.c.l.b16 %v285
      %v311 = vunpack.c.l.b16 %v286
      %v312 = vunpack.c.l.b16 %v287
      %v313 = vpack.c.b16 %v306, %v305
      %v314 = vpack.c.b16 %v308, %v307
      %v315 = vpack.c.b16 %v310, %v309
      %v316 = vpack.c.b16 %v312, %v311
      %v326 = vunpack.c.l.b16 %v288
      %v327 = vunpack.c.l.b16 %v289
      %v328 = vunpack.c.l.b16 %v290
      %v329 = vunpack.c.l.b16 %v291
      %v330 = vunpack.c.l.b16 %v292
      %v331 = vunpack.c.l.b16 %v293
      %v332 = vunpack.c.l.b16 %v294
      %v333 = vunpack.c.l.b16 %v295
      %v334 = vunpack.c.l.b16 %v296
      %v335 = vpack.c.b16 %v327, %v326
      %v336 = vpack.c.b16 %v329, %v328
      %v337 = vpack.c.b16 %v331, %v330
      %v338 = vpack.c.b16 %v333, %v332
      %v339 = vpack.c.b16 %v334, %v334
      %vm344 = vcmask 588800
      %v346 = vsel %vm344, %v313, 0
      %v349 = vsel %vm344, %v314, 0
      %v352 = vsel %vm344, %v315, 0
      %v355 = vsel %vm344, %v316, 0
      %vm357 = vcmask 1043456
      %v359 = vsel %vm357, %v339, 0
      %361 = vmatprep.subr.bf16.mxu0 0
      %362 = vmatpush1.bf16.msra.mxu0 0
      %363 = vmatprep.subr.bf16.mxu0 0
      %364 = vmatpush1.bf16.msra.mxu0 0
      %365 = vmatprep.subr.bf16.mxu0 0
      %366 = vmatpush1.bf16.msra.mxu0 0
      %367 = vmatprep.subr.bf16.mxu0 0
      %368 = vmatpush1.bf16.msra.mxu0 %v359
      %369 = vmatprep.subr.bf16.mxu0 0
      %370 = vmatpush1.bf16.msra.mxu0 %v338
      %371 = vmatprep.subr.bf16.mxu0 0
      %372 = vmatpush1.bf16.msra.mxu0 %v337
      %373 = vmatprep.subr.bf16.mxu0 0
      %374 = vmatpush1.bf16.msra.mxu0 %v336
      %375 = vmatprep.subr.bf16.mxu0 0
      %376 = vmatpush1.bf16.msra.mxu0 %v335
      %377 = vmatprep.subr.bf16.mxu0 0
      %378 = vmatpush2.bf16.msra.mxu0 0
      %379 = vmatprep.subr.bf16.mxu0 0
      %380 = vmatpush2.bf16.msra.mxu0 0
      %381 = vmatprep.subr.bf16.mxu0 0
      %382 = vmatpush2.bf16.msra.mxu0 0
      %383 = vmatprep.subr.bf16.mxu0 0
      %384 = vmatpush2.bf16.msra.mxu0 0
      %385 = vmatprep.subr.bf16.mxu0 0
      %386 = vmatpush2.bf16.msra.mxu0 0
      %387 = vmatprep.subr.bf16.mxu0 0
      %388 = vmatpush2.bf16.msra.mxu0 0
      %389 = vmatprep.subr.bf16.mxu0 0
      %390 = vmatpush2.bf16.msra.mxu0 0
      %391 = vmatprep.subr.bf16.mxu0 0
      %392 = vmatpush2.bf16.msra.mxu0 0
      %393 = vmatprep.mubr.bf16.mxu0 0
      %394 = vmatmul.mubr.bf16.gmra.mxu0 %v346
      %v395 = vpop.f32.mrf.mxu0
      %v396 = vadd.f32 0.0, %v395
      %v397 = vpop.f32.mrf.mxu0
      %v398 = vpop.f32.mrf.mxu0
      %v399 = vadd.f32 0.0, %v398
      %v400 = vpop.f32.mrf.mxu0
      %401 = vmatprep.mubr.bf16.mxu0 0
      %402 = vmatmul.mubr.bf16.gmra.mxu0 %v349
      %v403 = vpop.f32.mrf.mxu0
      %v404 = vadd.f32 0.0, %v403
      %v405 = vpop.f32.mrf.mxu0
      %v406 = vpop.f32.mrf.mxu0
      %v407 = vadd.f32 0.0, %v406
      %v408 = vpop.f32.mrf.mxu0
      %409 = vmatprep.mubr.bf16.mxu0 0
      %410 = vmatmul.mubr.bf16.gmra.mxu0 %v352
      %v411 = vpop.f32.mrf.mxu0
      %v412 = vadd.f32 0.0, %v411
      %v413 = vpop.f32.mrf.mxu0
      %v414 = vpop.f32.mrf.mxu0
      %v415 = vadd.f32 0.0, %v414
      %v416 = vpop.f32.mrf.mxu0
      %417 = vmatprep.mubr.bf16.mxu0 0
      %418 = vmatmul.mubr.bf16.gmra.mxu0 %v355
      %v419 = vpop.f32.mrf.mxu0
      %v420 = vadd.f32 0.0, %v419
      %v421 = vpop.f32.mrf.mxu0
      %v422 = vpop.f32.mrf.mxu0
      %v423 = vadd.f32 0.0, %v422
      %v424 = vpop.f32.mrf.mxu0
      %425 = vdwg.mxu0
      %v426 = vadd.f32 %v272, %v396
      %v427 = vadd.f32 %v273, %v399
      %v428 = vadd.f32 %v274, %v404
      %v429 = vadd.f32 %v275, %v407
      %v430 = vadd.f32 %v276, %v412
      %v431 = vadd.f32 %v277, %v415
      %v432 = vadd.f32 %v278, %v420
      %v433 = vadd.f32 %v279, %v423
      %434 = vst [vmem:[#allocation2] sm:$0xff] %v426
      %435 = vst [vmem:[#allocation2 + $0x8] sm:$0xff] %v427
      %436 = vst [vmem:[#allocation2 + $0x10] sm:$0xff] %v428
      %437 = vst [vmem:[#allocation2 + $0x18] sm:$0xff] %v429
      %438 = vst [vmem:[#allocation2 + $0x20] sm:$0xff] %v430
      %439 = vst [vmem:[#allocation2 + $0x28] sm:$0xff] %v431
      %440 = vst [vmem:[#allocation2 + $0x30] sm:$0xff] %v432
      %441 = vst [vmem:[#allocation2 + $0x38] sm:$0xff] %v433
      // Predicated region
      $region37: #{_lambda_.22} parent=31 // pred_check
        %p442 = pneg %p260
      $region38: #{_lambda_.22} parent=31 // pred_check_branch
        %444 = sbr.rel (%p442) target = $region40
      $region39: #{_lambda_.22} parent=31 // pred_region
        %v445 = vld [vmem:[#allocation2] sm:$0xff]
        %v446 = vld [vmem:[#allocation2 + $0x8] sm:$0xff]
        %v447 = vld [vmem:[#allocation2 + $0x10] sm:$0xff]
        %v448 = vld [vmem:[#allocation2 + $0x18] sm:$0xff]
        %v449 = vld [vmem:[#allocation2 + $0x20] sm:$0xff]
        %v450 = vld [vmem:[#allocation2 + $0x28] sm:$0xff]
        %v451 = vld [vmem:[#allocation2 + $0x30] sm:$0xff]
        %v452 = vld [vmem:[#allocation2 + $0x38] sm:$0xff]
        %v453 = vld [vmem:[%s249] sm:$0x1]
        %v455 = vlaneseq
        %v456 = vshrl.u32 %v455, 7
        %v457 = vsub.s32 0, %v456
        %v458 = vrot.slane %v453, %v457
        %v460 = vadd.f32 %v445, %v458
        %v461 = vadd.f32 %v446, %v458
        %v462 = vadd.f32 %v447, %v458
        %v463 = vadd.f32 %v448, %v458
        %v464 = vadd.f32 %v449, %v458
        %v465 = vadd.f32 %v450, %v458
        %v466 = vadd.f32 %v451, %v458
        %v467 = vadd.f32 %v452, %v458
        %v468 = vsub.f32 0.0, %v460
        %v469 = vsub.f32 0.0, %v461
        %v470 = vsub.f32 0.0, %v462
        %v471 = vsub.f32 0.0, %v463
        %v472 = vsub.f32 0.0, %v464
        %v473 = vsub.f32 0.0, %v465
        %v474 = vsub.f32 0.0, %v466
        %v475 = vsub.f32 0.0, %v467
        %v476 = vmul.f32 %v468, 1.442695
        %v477 = vpow.pop %v476
        %v478 = vmul.f32 %v469, 1.442695
        %v479 = vpow.pop %v478
        %v480 = vmul.f32 %v470, 1.442695
        %v481 = vpow.pop %v480
        %v482 = vmul.f32 %v471, 1.442695
        %v483 = vpow.pop %v482
        %v484 = vmul.f32 %v472, 1.442695
        %v485 = vpow.pop %v484
        %v486 = vmul.f32 %v473, 1.442695
        %v487 = vpow.pop %v486
        %v488 = vmul.f32 %v474, 1.442695
        %v489 = vpow.pop %v488
        %v490 = vmul.f32 %v475, 1.442695
        %v491 = vpow.pop %v490
        %v492 = vadd.f32 %v477, 1.0
        %v493 = vadd.f32 %v479, 1.0
        %v494 = vadd.f32 %v481, 1.0
        %v495 = vadd.f32 %v483, 1.0
        %v496 = vadd.f32 %v485, 1.0
        %v497 = vadd.f32 %v487, 1.0
        %v498 = vadd.f32 %v489, 1.0
        %v499 = vadd.f32 %v491, 1.0
        %v500 = vrcp.pop %v492
        %v501 = vrcp.pop %v493
        %v502 = vrcp.pop %v494
        %v503 = vrcp.pop %v495
        %v504 = vrcp.pop %v496
        %v505 = vrcp.pop %v497
        %v506 = vrcp.pop %v498
        %v507 = vrcp.pop %v499
        %v508 = vmul.f32 %v460, %v500
        %v509 = vmul.f32 %v461, %v501
        %v510 = vmul.f32 %v462, %v502
        %v511 = vmul.f32 %v463, %v503
        %v512 = vmul.f32 %v464, %v504
        %v513 = vmul.f32 %v465, %v505
        %v514 = vmul.f32 %v466, %v506
        %v515 = vmul.f32 %v467, %v507
        %516 = vst [vmem:[%s257] sm:$0xff] %v508
        %517 = vst [vmem:[%s257 + $0x8] sm:$0xff] %v509
        %518 = vst [vmem:[%s257 + $0x10] sm:$0xff] %v510
        %519 = vst [vmem:[%s257 + $0x18] sm:$0xff] %v511
        %520 = vst [vmem:[%s257 + $0x20] sm:$0xff] %v512
        %521 = vst [vmem:[%s257 + $0x28] sm:$0xff] %v513
        %522 = vst [vmem:[%s257 + $0x30] sm:$0xff] %v514
        %523 = vst [vmem:[%s257 + $0x38] sm:$0xff] %v515
      $region40: #{_lambda_.22} parent=31 // pred_fallthru
        _
      %s524 = smul.u32 8, %s19
      %p525 = scmp.lt.s32.totalorder %s524, 15
      %s526 = scalar_select %p525, %s524, 15
      %p527 = scmp.lt.s32.totalorder %s20, 0
      %s528 = scalar_select %p527, %s20, 0
      %s529 = sadd.s32 %s528, %s526
      %s530 = smul.addr %s529, 8
      %s531 = scalar_lea.vmem %s3, %s530
      // Predicated region
      $region41: #{_lambda_.22} parent=31 // pred_check
        %p532 = pneg %p135
      $region42: #{_lambda_.22} parent=31 // pred_check_branch
        %534 = sbr.rel (%p532) target = $region44
      $region43: #{_lambda_.22} parent=31 // pred_region
        %s535 = smul.u32 8, %s19
      $region44: #{_lambda_.22} parent=31 // pred_fallthru
        _
    $region32: #{_lambda_.22} parent=5 // pred_fallthru
      _
    %p536 = scmp.le.s32.totalorder 2, %s9
    // Predicated region
    $region45: #{_lambda_.22} parent=5 // pred_check
      %p537 = pneg %p536
    $region46: #{_lambda_.22} parent=5 // pred_check_branch
      %539 = sbr.rel (%p537) target = $region48
    $region47: #{_lambda_.22} parent=5 // pred_region
      %s540 = ssub.s32 %s9, 2
      // Predicated region
      $region49: #{_lambda_.22} parent=47 // pred_check
        %p541 = pneg %p141
      $region50: #{_lambda_.22} parent=47 // pred_check_branch
        %543 = sbr.rel (%p541) target = $region52
      $region51: #{_lambda_.22} parent=47 // pred_region
        %s544 = smul.u32 8, %s22
        %p545 = scmp.lt.s32.totalorder %s544, 15
        %s546 = scalar_select %p545, %s544, 15
        %p547 = scmp.lt.s32.totalorder %s23, 0
        %s548 = scalar_select %p547, %s23, 0
        %s549 = sadd.s32 %s548, %s546
        %s550 = smul.addr %s549, 8
        %s551 = scalar_lea.vmem %s3, %s550
      $region52: #{_lambda_.22} parent=47 // pred_fallthru
        _
    $region48: #{_lambda_.22} parent=5 // pred_fallthru
      _
  $region6: #{_lambda_.22} parent=0 // loop_footer
    %s13 = sadd.s32 1, %s9
  $region7: #{_lambda_.22} parent=0 // loop_footer_branch
    %8 = sbr.rel target = $region3
  $region8: #{_lambda_.22} parent=0 // loop_exit
    _

// kernel: _lambda_.24
$region0: #{_lambda_.24}
  #allocation0 [shape = 'u32[]', space=smem, size = 0x4, offset = 0x4, fixed_abs, tag = 'smem constant byte address 0x4 - core index']
  #allocation1 [shape = 'u32[144,128]{1,0:T(1,128)}', space=vmem, size = 0x12000, scoped, tag = 'internal scratch']
  %s0 = inlined_call_operand.vmem [shape: bf16[128,16], index: 0, kind: input, shape index: {}]
  %s1 = inlined_call_operand.vmem [shape: bf16[128,8], index: 1, kind: input, shape index: {}]
  %s2 = inlined_call_operand.vmem [shape: bf16[16,128], index: 2, kind: input, shape index: {}]
  %s3 = inlined_call_operand.vmem [shape: bf16[8,128], index: 3, kind: input, shape index: {}]
  %s4 = inlined_call_operand.vmem [shape: f32[1,128], index: 4, kind: input, shape index: {}]
  %s5 = inlined_call_operand.vmem [shape: f32[128,128], index: 5, kind: output, shape index: {}]
  %s6 = sld [smem:[#allocation0]]
  $region53: #{_lambda_.24} parent=0
    _
  %s8 = ssub.s32 1, %s6
  %s9 = scalar_select 0, %s8, %s6
  loop: start=0, step=1, limit=4
  $region2: #{_lambda_.24} parent=0 // loop_pre_header
    _
  $region3: #{_lambda_.24} parent=0 // loop_header
    %s11 = sphi 0, %s15
    %p12 = scmp.ge.s32.totalorder %s11, 4
    %s18 = sphi 0, %s30
    %s19 = sphi 0, %s26
    %s20 = sphi 0, %s18
    %s21 = sphi 0, %s19
    %s22 = sphi 0, %s20
    %s23 = sphi 0, %s21
    %s33 = sphi 0, %s35
    %s36 = sphi 0, %s33
    %s37 = sphi 0, %s36
    %s53 = sphi 0, %s37
    %s59 = sphi 0, %s61
    %s62 = sphi 0, %s59
    %s63 = sphi 0, %s62
    %s79 = sphi 0, %s63
    %s85 = sphi 0, %s87
    %s88 = sphi 0, %s85
    %s89 = sphi 0, %s88
    %s105 = sphi 0, %s89
    %s111 = sphi 0, %s113
    %s114 = sphi 0, %s111
    %s115 = sphi 0, %s114
    %s131 = sphi 0, %s115
    %s137 = sphi 0, %s139
    %s140 = sphi 0, %s137
    %s141 = sphi 0, %s140
    %s157 = sphi 0, %s141
    %s165 = sphi 0, %s167
    %s168 = sphi 0, %s165
    %s169 = sphi 0, %s168
    %s185 = sphi 0, %s169
  $region4: #{_lambda_.24} parent=0 // loop_header_branch
    %14 = sbr.rel (%p12) target = $region8
  $region5: #{_lambda_.24} parent=0 // loop_body
    %s16 = ssub.s32 %s11, 1
    %s17 = ssub.s32 %s11, 2
    %s24 = sadd.s32 1, %s19
    %p25 = scmp.ge.s32.totalorder %s24, 1
    %s26 = scalar_select %p25, 0, %s24
    %s27 = sadd.s32 1, %s18
    %s28 = scalar_select %p25, %s27, %s18
    %p29 = scmp.ge.s32.totalorder %s28, 2
    %s30 = scalar_select %p29, 0, %s28
    %s31 = ssub.s32 %s18, %s30
    %p32 = scmp.eq.s32.totalorder %s31, 0
    %s34 = sadd.s32 %s33, 1
    %s35 = scalar_select %p32, %s33, %s34
    %p38 = pneg %p32
    %p39 = scmp.eq.s32.totalorder %s11, 1
    %p40 = por %p38, %p39
    %p41 = scmp.ne.s32.totalorder %s33, %s36
    %p42 = scmp.eq.s32.totalorder %s11, 0
    %p43 = por %p41, %p42
    %p44 = scmp.ne.s32.totalorder %s33, %s36
    %p45 = scmp.eq.s32.totalorder %s16, 1
    %p46 = por %p44, %p45
    %p47 = scmp.ne.s32.totalorder %s36, %s37
    %p48 = scmp.eq.s32.totalorder %s16, 0
    %p49 = por %p47, %p48
    %p50 = scmp.ne.s32.totalorder %s36, %s37
    %p51 = scmp.eq.s32.totalorder %s17, 1
    %p52 = por %p50, %p51
    %p54 = scmp.ne.s32.totalorder %s37, %s53
    %p55 = scmp.eq.s32.totalorder %s17, 0
    %p56 = por %p54, %p55
    %s57 = ssub.s32 %s18, %s30
    %p58 = scmp.eq.s32.totalorder %s57, 0
    %s60 = sadd.s32 %s59, 1
    %s61 = scalar_select %p58, %s59, %s60
    %p64 = pneg %p58
    %p65 = scmp.eq.s32.totalorder %s11, 1
    %p66 = por %p64, %p65
    %p67 = scmp.ne.s32.totalorder %s59, %s62
    %p68 = scmp.eq.s32.totalorder %s11, 0
    %p69 = por %p67, %p68
    %p70 = scmp.ne.s32.totalorder %s59, %s62
    %p71 = scmp.eq.s32.totalorder %s16, 1
    %p72 = por %p70, %p71
    %p73 = scmp.ne.s32.totalorder %s62, %s63
    %p74 = scmp.eq.s32.totalorder %s16, 0
    %p75 = por %p73, %p74
    %p76 = scmp.ne.s32.totalorder %s62, %s63
    %p77 = scmp.eq.s32.totalorder %s17, 1
    %p78 = por %p76, %p77
    %p80 = scmp.ne.s32.totalorder %s63, %s79
    %p81 = scmp.eq.s32.totalorder %s17, 0
    %p82 = por %p80, %p81
    %s83 = ssub.s32 %s19, %s26
    %p84 = scmp.eq.s32.totalorder %s83, 0
    %s86 = sadd.s32 %s85, 1
    %s87 = scalar_select %p84, %s85, %s86
    %p90 = pneg %p84
    %p91 = scmp.eq.s32.totalorder %s11, 1
    %p92 = por %p90, %p91
    %p93 = scmp.ne.s32.totalorder %s85, %s88
    %p94 = scmp.eq.s32.totalorder %s11, 0
    %p95 = por %p93, %p94
    %p96 = scmp.ne.s32.totalorder %s85, %s88
    %p97 = scmp.eq.s32.totalorder %s16, 1
    %p98 = por %p96, %p97
    %p99 = scmp.ne.s32.totalorder %s88, %s89
    %p100 = scmp.eq.s32.totalorder %s16, 0
    %p101 = por %p99, %p100
    %p102 = scmp.ne.s32.totalorder %s88, %s89
    %p103 = scmp.eq.s32.totalorder %s17, 1
    %p104 = por %p102, %p103
    %p106 = scmp.ne.s32.totalorder %s89, %s105
    %p107 = scmp.eq.s32.totalorder %s17, 0
    %p108 = por %p106, %p107
    %s109 = ssub.s32 %s19, %s26
    %p110 = scmp.eq.s32.totalorder %s109, 0
    %s112 = sadd.s32 %s111, 1
    %s113 = scalar_select %p110, %s111, %s112
    %p116 = pneg %p110
    %p117 = scmp.eq.s32.totalorder %s11, 1
    %p118 = por %p116, %p117
    %p119 = scmp.ne.s32.totalorder %s111, %s114
    %p120 = scmp.eq.s32.totalorder %s11, 0
    %p121 = por %p119, %p120
    %p122 = scmp.ne.s32.totalorder %s111, %s114
    %p123 = scmp.eq.s32.totalorder %s16, 1
    %p124 = por %p122, %p123
    %p125 = scmp.ne.s32.totalorder %s114, %s115
    %p126 = scmp.eq.s32.totalorder %s16, 0
    %p127 = por %p125, %p126
    %p128 = scmp.ne.s32.totalorder %s114, %s115
    %p129 = scmp.eq.s32.totalorder %s17, 1
    %p130 = por %p128, %p129
    %p132 = scmp.ne.s32.totalorder %s115, %s131
    %p133 = scmp.eq.s32.totalorder %s17, 0
    %p134 = por %p132, %p133
    %s135 = ssub.s32 %s19, %s26
    %p136 = scmp.eq.s32.totalorder %s135, 0
    %s138 = sadd.s32 %s137, 1
    %s139 = scalar_select %p136, %s137, %s138
    %p142 = pneg %p136
    %p143 = scmp.eq.s32.totalorder %s11, 1
    %p144 = por %p142, %p143
    %p145 = scmp.ne.s32.totalorder %s137, %s140
    %p146 = scmp.eq.s32.totalorder %s11, 0
    %p147 = por %p145, %p146
    %p148 = scmp.ne.s32.totalorder %s137, %s140
    %p149 = scmp.eq.s32.totalorder %s16, 1
    %p150 = por %p148, %p149
    %p151 = scmp.ne.s32.totalorder %s140, %s141
    %p152 = scmp.eq.s32.totalorder %s16, 0
    %p153 = por %p151, %p152
    %p154 = scmp.ne.s32.totalorder %s140, %s141
    %p155 = scmp.eq.s32.totalorder %s17, 1
    %p156 = por %p154, %p155
    %p158 = scmp.ne.s32.totalorder %s141, %s157
    %p159 = scmp.eq.s32.totalorder %s17, 0
    %p160 = por %p158, %p159
    %s161 = ssub.s32 %s18, %s30
    %s162 = ssub.s32 %s19, %s26
    %s163 = sor.u32 %s161, %s162
    %p164 = scmp.eq.s32.totalorder %s163, 0
    %s166 = sadd.s32 %s165, 1
    %s167 = scalar_select %p164, %s165, %s166
    %p170 = pneg %p164
    %p171 = scmp.eq.s32.totalorder %s11, 1
    %p172 = por %p170, %p171
    %p173 = scmp.ne.s32.totalorder %s165, %s168
    %p174 = scmp.eq.s32.totalorder %s11, 0
    %p175 = por %p173, %p174
    %p176 = scmp.ne.s32.totalorder %s165, %s168
    %p177 = scmp.eq.s32.totalorder %s16, 1
    %p178 = por %p176, %p177
    %p179 = scmp.ne.s32.totalorder %s168, %s169
    %p180 = scmp.eq.s32.totalorder %s16, 0
    %p181 = por %p179, %p180
    %p182 = scmp.ne.s32.totalorder %s168, %s169
    %p183 = scmp.eq.s32.totalorder %s17, 1
    %p184 = por %p182, %p183
    %p186 = scmp.ne.s32.totalorder %s169, %s185
    %p187 = scmp.eq.s32.totalorder %s17, 0
    %p188 = por %p186, %p187
    %p189 = scmp.le.s32.totalorder 1, %s11
    %p190 = scmp.lt.s32.totalorder %s11, 3
    %p191 = pnand %p189, %p190
    %p192 = pneg %p191
    // Predicated region
    $region9: #{_lambda_.24} parent=5 // pred_check
      _
    $region10: #{_lambda_.24} parent=5 // pred_check_branch
      %194 = sbr.rel (%p191) target = $region12
    $region11: #{_lambda_.24} parent=5 // pred_region
      %s195 = ssub.s32 %s11, 1
      // Predicated region
      $region13: #{_lambda_.24} parent=11 // pred_check
        %p196 = pneg %p101
      $region14: #{_lambda_.24} parent=11 // pred_check_branch
        %198 = sbr.rel (%p196) target = $region16
      $region15: #{_lambda_.24} parent=11 // pred_region
        %p199 = scmp.lt.s32.totalorder %s21, 0
        %s200 = scalar_select %p199, %s21, 0
        %s201 = smul.addr %s200, 4
        %s202 = scalar_lea.vmem %s2, %s201
      $region16: #{_lambda_.24} parent=11 // pred_fallthru
        _
      // Predicated region
      $region17: #{_lambda_.24} parent=11 // pred_check
        %p203 = pneg %p127
      $region18: #{_lambda_.24} parent=11 // pred_check_branch
        %205 = sbr.rel (%p203) target = $region20
      $region19: #{_lambda_.24} parent=11 // pred_region
        %p206 = scmp.lt.s32.totalorder %s21, 0
        %s207 = scalar_select %p206, %s21, 0
        %s208 = smul.addr %s207, 4
        %s209 = scalar_lea.vmem %s3, %s208
      $region20: #{_lambda_.24} parent=11 // pred_fallthru
        _
      // Predicated region
      $region21: #{_lambda_.24} parent=11 // pred_check
        %p210 = pneg %p153
      $region22: #{_lambda_.24} parent=11 // pred_check_branch
        %212 = sbr.rel (%p210) target = $region24
      $region23: #{_lambda_.24} parent=11 // pred_region
        %p213 = scmp.lt.s32.totalorder %s21, 0
        %s214 = scalar_select %p213, %s21, 0
        %s215 = scalar_lea.vmem %s4, %s214
      $region24: #{_lambda_.24} parent=11 // pred_fallthru
        _
    $region12: #{_lambda_.24} parent=5 // pred_fallthru
      _
    %p216 = scmp.lt.s32.totalorder %s11, 2
    // Predicated region
    $region25: #{_lambda_.24} parent=5 // pred_check
      %p217 = pneg %p216
    $region26: #{_lambda_.24} parent=5 // pred_check_branch
      %219 = sbr.rel (%p217) target = $region28
    $region27: #{_lambda_.24} parent=5 // pred_region
      // Predicated region
      $region29: #{_lambda_.24} parent=27 // pred_check
        %p220 = pneg %p43
      $region30: #{_lambda_.24} parent=27 // pred_check_branch
        %222 = sbr.rel (%p220) target = $region32
      $region31: #{_lambda_.24} parent=27 // pred_region
        %s223 = smul.u32 8, %s18
        %p224 = scmp.lt.s32.totalorder %s223, 15
        %s225 = scalar_select %p224, %s223, 15
        %s226 = smul.addr %s225, 4
        %s227 = scalar_lea.vmem %s0, %s226
        %s228 = smul.u32 8, %s18
      $region32: #{_lambda_.24} parent=27 // pred_fallthru
        _
      // Predicated region
      $region33: #{_lambda_.24} parent=27 // pred_check
        %p229 = pneg %p69
      $region34: #{_lambda_.24} parent=27 // pred_check_branch
        %231 = sbr.rel (%p229) target = $region36
      $region35: #{_lambda_.24} parent=27 // pred_region
        %s232 = smul.u32 8, %s18
        %p233 = scmp.lt.s32.totalorder %s232, 15
        %s234 = scalar_select %p233, %s232, 15
        %s235 = smul.addr %s234, 4
        %s236 = scalar_lea.vmem %s1, %s235
        %s237 = smul.u32 8, %s18
      $region36: #{_lambda_.24} parent=27 // pred_fallthru
        _
    $region28: #{_lambda_.24} parent=5 // pred_fallthru
      _
    %p238 = scmp.le.s32.totalorder 1, %s11
    %p239 = scmp.lt.s32.totalorder %s11, 3
    %p240 = pnand %p238, %p239
    %p241 = pneg %p240
    // Predicated region
    $region37: #{_lambda_.24} parent=5 // pred_check
      _
    $region38: #{_lambda_.24} parent=5 // pred_check_branch
      %243 = sbr.rel (%p240) target = $region40
    $region39: #{_lambda_.24} parent=5 // pred_region
      %s244 = ssub.s32 %s11, 1
      %s245 = smul.u32 8, %s20
      %p246 = scmp.lt.s32.totalorder %s245, 15
      %s247 = scalar_select %p246, %s245, 15
      %s248 = smul.addr %s247, 4
      %s249 = scalar_lea.vmem %s0, %s248
      %p250 = pneg %p49
      %p251 = pneg %p46
      %s252 = smul.u32 8, %s20
      %p253 = scmp.lt.s32.totalorder %s252, 15
      %s254 = scalar_select %p253, %s252, 15
      %s255 = smul.addr %s254, 4
      %s256 = scalar_lea.vmem %s1, %s255
      %p257 = pneg %p75
      %p258 = pneg %p72
      %p259 = scmp.lt.s32.totalorder %s21, 0
      %s260 = scalar_select %p259, %s21, 0
      %s261 = smul.addr %s260, 4
      %s262 = scalar_lea.vmem %s2, %s261
      %p263 = pneg %p101
      %p264 = pneg %p98
      %p265 = scmp.lt.s32.totalorder %s21, 0
      %s266 = scalar_select %p265, %s21, 0
      %s267 = smul.addr %s266, 4
      %s268 = scalar_lea.vmem %s3, %s267
      %p269 = pneg %p127
      %p270 = pneg %p124
      %p271 = scmp.lt.s32.totalorder %s21, 0
      %s272 = scalar_select %p271, %s21, 0
      %s273 = scalar_lea.vmem %s4, %s272
      %p274 = pneg %p153
      %p275 = pneg %p150
      %p276 = pneg %p181
      %p277 = pneg %p178
      %s278 = smul.u32 8, %s20
      %p279 = scmp.lt.s32.totalorder %s278, 15
      %s280 = scalar_select %p279, %s278, 15
      %p281 = scmp.lt.s32.totalorder %s21, 0
      %s282 = scalar_select %p281, %s21, 0
      %s283 = sadd.s32 %s282, %s280
      %s284 = smul.addr %s283, 8
      %s285 = scalar_lea.vmem %s5, %s284
      %s286 = smul.u32 8, %s20
      %p287 = scmp.lt.s32.totalorder %s286, 15
      %s288 = scalar_select %p287, %s286, 15
      %s289 = smul.addr %s288, 4
      %s290 = scalar_lea.vmem %s0, %s289
      %s291 = smul.u32 8, %s20
      %s292 = smul.u32 8, %s20
      %p293 = scmp.lt.s32.totalorder %s292, 15
      %s294 = scalar_select %p293, %s292, 15
      %s295 = smul.addr %s294, 4
      %s296 = scalar_lea.vmem %s1, %s295
      %s297 = smul.u32 8, %s20
      %p298 = scmp.lt.s32.totalorder %s21, 0
      %s299 = scalar_select %p298, %s21, 0
      %s300 = smul.addr %s299, 4
      %s301 = scalar_lea.vmem %s2, %s300
      %p302 = scmp.lt.s32.totalorder %s21, 0
      %s303 = scalar_select %p302, %s21, 0
      %s304 = smul.addr %s303, 4
      %s305 = scalar_lea.vmem %s3, %s304
      %p306 = scmp.lt.s32.totalorder %s21, 0
      %s307 = scalar_select %p306, %s21, 0
      %s308 = scalar_lea.vmem %s4, %s307
      %s309 = smul.u32 8, %s20
      %p310 = scmp.lt.s32.totalorder %s309, 15
      %s311 = scalar_select %p310, %s309, 15
      %p312 = scmp.lt.s32.totalorder %s21, 0
      %s313 = scalar_select %p312, %s21, 0
      %s314 = sadd.s32 %s313, %s311
      %s315 = smul.addr %s314, 8
      %s316 = scalar_lea.vmem %s5, %s315
      %s317 = smul.u32 8, %s20
      %v319 = vld [vmem:[%s290] sm:$0xf]
      %v320 = vld [vmem:[%s290 + $0x4] sm:$0xf]
      %v321 = vld [vmem:[%s290 + $0x8] sm:$0xf]
      %v322 = vld [vmem:[%s290 + $0xc] sm:$0xf]
      %v323 = vld [vmem:[%s290 + $0x10] sm:$0xf]
      %v324 = vld [vmem:[%s290 + $0x14] sm:$0xf]
      %v325 = vld [vmem:[%s290 + $0x18] sm:$0xf]
      %v326 = vld [vmem:[%s290 + $0x1c] sm:$0xf]
      %v327 = vld [vmem:[%s301] sm:$0xf]
      %v328 = vld [vmem:[%s301 + $0x4] sm:$0xf]
      %v329 = vld [vmem:[%s296] sm:$0xf]
      %v330 = vld [vmem:[%s296 + $0x4] sm:$0xf]
      %v331 = vld [vmem:[%s296 + $0x8] sm:$0xf]
      %v332 = vld [vmem:[%s296 + $0xc] sm:$0xf]
      %v333 = vld [vmem:[%s296 + $0x10] sm:$0xf]
      %v334 = vld [vmem:[%s296 + $0x14] sm:$0xf]
      %v335 = vld [vmem:[%s296 + $0x18] sm:$0xf]
      %v336 = vld [vmem:[%s296 + $0x1c] sm:$0xf]
      %v337 = vld [vmem:[%s305] sm:$0xf]
      %v346 = vunpack.c.l.b16 %v329
      %v347 = vunpack.c.l.b16 %v330
      %v348 = vunpack.c.l.b16 %v331
      %v349 = vunpack.c.l.b16 %v332
      %v350 = vunpack.c.l.b16 %v333
      %v351 = vunpack.c.l.b16 %v334
      %v352 = vunpack.c.l.b16 %v335
      %v353 = vunpack.c.l.b16 %v336
      %v354 = vpack.c.b16 %v347, %v346
      %v355 = vpack.c.b16 %v349, %v348
      %v356 = vpack.c.b16 %v351, %v350
      %v357 = vpack.c.b16 %v353, %v352
      %vm358 = vcmask 64512
      %v360 = vsel %vm358, %v354, 0
      %v363 = vsel %vm358, %v355, 0
      %v366 = vsel %vm358, %v356, 0
      %v369 = vsel %vm358, %v357, 0
      %vm371 = vcmask 1043456
      %v373 = vsel %vm371, %v337, 0
      %375 = vmatprep.subr.bf16.mxu0 0
      %376 = vmatpush1.bf16.msra.mxu0 0
      %377 = vmatprep.subr.bf16.mxu0 0
      %378 = vmatpush1.bf16.msra.mxu0 0
      %379 = vmatprep.subr.bf16.mxu0 0
      %380 = vmatpush1.bf16.msra.mxu0 0
      %381 = vmatprep.subr.bf16.mxu0 0
      %382 = vmatpush1.bf16.msra.mxu0 0
      %383 = vmatprep.subr.bf16.mxu0 0
      %384 = vmatpush1.bf16.msra.mxu0 0
      %385 = vmatprep.subr.bf16.mxu0 0
      %386 = vmatpush1.bf16.msra.mxu0 0
      %387 = vmatprep.subr.bf16.mxu0 0
      %388 = vmatpush1.bf16.msra.mxu0 0
      %389 = vmatprep.subr.bf16.mxu0 0
      %390 = vmatpush1.bf16.msra.mxu0 %v373
      %391 = vmatprep.subr.bf16.mxu0 0
      %392 = vmatpush2.bf16.msra.mxu0 0
      %393 = vmatprep.subr.bf16.mxu0 0
      %394 = vmatpush2.bf16.msra.mxu0 0
      %395 = vmatprep.subr.bf16.mxu0 0
      %396 = vmatpush2.bf16.msra.mxu0 0
      %397 = vmatprep.subr.bf16.mxu0 0
      %398 = vmatpush2.bf16.msra.mxu0 0
      %399 = vmatprep.subr.bf16.mxu0 0
      %400 = vmatpush2.bf16.msra.mxu0 0
      %401 = vmatprep.subr.bf16.mxu0 0
      %402 = vmatpush2.bf16.msra.mxu0 0
      %403 = vmatprep.subr.bf16.mxu0 0
      %404 = vmatpush2.bf16.msra.mxu0 0
      %405 = vmatprep.subr.bf16.mxu0 0
      %406 = vmatpush2.bf16.msra.mxu0 0
      %407 = vmatprep.mubr.bf16.mxu0 0
      %408 = vmatmul.mubr.bf16.gmra.mxu0 %v360
      %v409 = vpop.f32.mrf.mxu0
      %v410 = vadd.f32 0.0, %v409
      %v411 = vpop.f32.mrf.mxu0
      %v412 = vpop.f32.mrf.mxu0
      %v413 = vadd.f32 0.0, %v412
      %v414 = vpop.f32.mrf.mxu0
      %415 = vmatprep.mubr.bf16.mxu0 0
      %416 = vmatmul.mubr.bf16.gmra.mxu0 %v363
      %v417 = vpop.f32.mrf.mxu0
      %v418 = vadd.f32 0.0, %v417
      %v419 = vpop.f32.mrf.mxu0
      %v420 = vpop.f32.mrf.mxu0
      %v421 = vadd.f32 0.0, %v420
      %v422 = vpop.f32.mrf.mxu0
      %423 = vmatprep.mubr.bf16.mxu0 0
      %424 = vmatmul.mubr.bf16.gmra.mxu0 %v366
      %v425 = vpop.f32.mrf.mxu0
      %v426 = vadd.f32 0.0, %v425
      %v427 = vpop.f32.mrf.mxu0
      %v428 = vpop.f32.mrf.mxu0
      %v429 = vadd.f32 0.0, %v428
      %v430 = vpop.f32.mrf.mxu0
      %431 = vmatprep.mubr.bf16.mxu0 0
      %432 = vmatmul.mubr.bf16.gmra.mxu0 %v369
      %v433 = vpop.f32.mrf.mxu0
      %v434 = vadd.f32 0.0, %v433
      %v435 = vpop.f32.mrf.mxu0
      %v436 = vpop.f32.mrf.mxu0
      %v437 = vadd.f32 0.0, %v436
      %v438 = vpop.f32.mrf.mxu0
      %439 = vdwg.mxu0
      %v448 = vunpack.c.l.b16 %v319
      %v449 = vunpack.c.l.b16 %v320
      %v450 = vunpack.c.l.b16 %v321
      %v451 = vunpack.c.l.b16 %v322
      %v452 = vunpack.c.l.b16 %v323
      %v453 = vunpack.c.l.b16 %v324
      %v454 = vunpack.c.l.b16 %v325
      %v455 = vunpack.c.l.b16 %v326
      %v456 = vpack.c.b16 %v449, %v448
      %v457 = vpack.c.b16 %v451, %v450
      %v458 = vpack.c.b16 %v453, %v452
      %v459 = vpack.c.b16 %v455, %v454
      %v462 = vunpack.c.l.b16 %v327
      %v463 = vunpack.c.l.b16 %v328
      %v464 = vpack.c.b16 %v463, %v462
      %vm466 = vcmask 130048
      %v468 = vsel %vm466, %v456, 0
      %v471 = vsel %vm466, %v457, 0
      %v474 = vsel %vm466, %v458, 0
      %v477 = vsel %vm466, %v459, 0
      %479 = vmatprep.subr.bf16.mxu0 0
      %480 = vmatpush1.bf16.msra.mxu0 0
      %481 = vmatprep.subr.bf16.mxu0 0
      %482 = vmatpush1.bf16.msra.mxu0 0
      %483 = vmatprep.subr.bf16.mxu0 0
      %484 = vmatpush1.bf16.msra.mxu0 0
      %485 = vmatprep.subr.bf16.mxu0 0
      %486 = vmatpush1.bf16.msra.mxu0 0
      %487 = vmatprep.subr.bf16.mxu0 0
      %488 = vmatpush1.bf16.msra.mxu0 0
      %489 = vmatprep.subr.bf16.mxu0 0
      %490 = vmatpush1.bf16.msra.mxu0 0
      %491 = vmatprep.subr.bf16.mxu0 0
      %492 = vmatpush1.bf16.msra.mxu0 0
      %493 = vmatprep.subr.bf16.mxu0 0
      %494 = vmatpush1.bf16.msra.mxu0 %v464
      %495 = vmatprep.subr.bf16.mxu0 0
      %496 = vmatpush2.bf16.msra.mxu0 0
      %497 = vmatprep.subr.bf16.mxu0 0
      %498 = vmatpush2.bf16.msra.mxu0 0
      %499 = vmatprep.subr.bf16.mxu0 0
      %500 = vmatpush2.bf16.msra.mxu0 0
      %501 = vmatprep.subr.bf16.mxu0 0
      %502 = vmatpush2.bf16.msra.mxu0 0
      %503 = vmatprep.subr.bf16.mxu0 0
      %504 = vmatpush2.bf16.msra.mxu0 0
      %505 = vmatprep.subr.bf16.mxu0 0
      %506 = vmatpush2.bf16.msra.mxu0 0
      %507 = vmatprep.subr.bf16.mxu0 0
      %508 = vmatpush2.bf16.msra.mxu0 0
      %509 = vmatprep.subr.bf16.mxu0 0
      %510 = vmatpush2.bf16.msra.mxu0 0
      %511 = vmatprep.mubr.bf16.mxu0 0
      %512 = vmatmul.mubr.bf16.gmra.mxu0 %v468
      %v513 = vpop.f32.mrf.mxu0
      %v514 = vadd.f32 %v410, %v513
      %v515 = vpop.f32.mrf.mxu0
      %v516 = vpop.f32.mrf.mxu0
      %v517 = vadd.f32 %v413, %v516
      %v518 = vpop.f32.mrf.mxu0
      %519 = vmatprep.mubr.bf16.mxu0 0
      %520 = vmatmul.mubr.bf16.gmra.mxu0 %v471
      %v521 = vpop.f32.mrf.mxu0
      %v522 = vadd.f32 %v418, %v521
      %v523 = vpop.f32.mrf.mxu0
      %v524 = vpop.f32.mrf.mxu0
      %v525 = vadd.f32 %v421, %v524
      %v526 = vpop.f32.mrf.mxu0
      %527 = vmatprep.mubr.bf16.mxu0 0
      %528 = vmatmul.mubr.bf16.gmra.mxu0 %v474
      %v529 = vpop.f32.mrf.mxu0
      %v530 = vadd.f32 %v426, %v529
      %v531 = vpop.f32.mrf.mxu0
      %v532 = vpop.f32.mrf.mxu0
      %v533 = vadd.f32 %v429, %v532
      %v534 = vpop.f32.mrf.mxu0
      %535 = vmatprep.mubr.bf16.mxu0 0
      %536 = vmatmul.mubr.bf16.gmra.mxu0 %v477
      %v537 = vpop.f32.mrf.mxu0
      %v538 = vadd.f32 %v434, %v537
      %v539 = vpop.f32.mrf.mxu0
      %v540 = vpop.f32.mrf.mxu0
      %v541 = vadd.f32 %v437, %v540
      %v542 = vpop.f32.mrf.mxu0
      %543 = vdwg.mxu0
      %v544 = vld [vmem:[%s308] sm:$0x1]
      %v546 = vlaneseq
      %v547 = vshrl.u32 %v546, 7
      %v548 = vsub.s32 0, %v547
      %v549 = vrot.slane %v544, %v548
      %v551 = vadd.f32 %v514, %v549
      %v552 = vadd.f32 %v517, %v549
      %v553 = vadd.f32 %v522, %v549
      %v554 = vadd.f32 %v525, %v549
      %v555 = vadd.f32 %v530, %v549
      %v556 = vadd.f32 %v533, %v549
      %v557 = vadd.f32 %v538, %v549
      %v558 = vadd.f32 %v541, %v549
      %v559 = vsub.f32 0.0, %v551
      %v560 = vsub.f32 0.0, %v552
      %v561 = vsub.f32 0.0, %v553
      %v562 = vsub.f32 0.0, %v554
      %v563 = vsub.f32 0.0, %v555
      %v564 = vsub.f32 0.0, %v556
      %v565 = vsub.f32 0.0, %v557
      %v566 = vsub.f32 0.0, %v558
      %v567 = vmul.f32 %v559, 1.442695
      %v568 = vpow.pop %v567
      %v569 = vmul.f32 %v560, 1.442695
      %v570 = vpow.pop %v569
      %v571 = vmul.f32 %v561, 1.442695
      %v572 = vpow.pop %v571
      %v573 = vmul.f32 %v562, 1.442695
      %v574 = vpow.pop %v573
      %v575 = vmul.f32 %v563, 1.442695
      %v576 = vpow.pop %v575
      %v577 = vmul.f32 %v564, 1.442695
      %v578 = vpow.pop %v577
      %v579 = vmul.f32 %v565, 1.442695
      %v580 = vpow.pop %v579
      %v581 = vmul.f32 %v566, 1.442695
      %v582 = vpow.pop %v581
      %v583 = vadd.f32 %v568, 1.0
      %v584 = vadd.f32 %v570, 1.0
      %v585 = vadd.f32 %v572, 1.0
      %v586 = vadd.f32 %v574, 1.0
      %v587 = vadd.f32 %v576, 1.0
      %v588 = vadd.f32 %v578, 1.0
      %v589 = vadd.f32 %v580, 1.0
      %v590 = vadd.f32 %v582, 1.0
      %v591 = vrcp.pop %v583
      %v592 = vrcp.pop %v584
      %v593 = vrcp.pop %v585
      %v594 = vrcp.pop %v586
      %v595 = vrcp.pop %v587
      %v596 = vrcp.pop %v588
      %v597 = vrcp.pop %v589
      %v598 = vrcp.pop %v590
      %v599 = vmul.f32 %v551, %v591
      %v600 = vmul.f32 %v552, %v592
      %v601 = vmul.f32 %v553, %v593
      %v602 = vmul.f32 %v554, %v594
      %v603 = vmul.f32 %v555, %v595
      %v604 = vmul.f32 %v556, %v596
      %v605 = vmul.f32 %v557, %v597
      %v606 = vmul.f32 %v558, %v598
      %607 = vst [vmem:[%s316] sm:$0xff] %v599
      %608 = vst [vmem:[%s316 + $0x8] sm:$0xff] %v600
      %609 = vst [vmem:[%s316 + $0x10] sm:$0xff] %v601
      %610 = vst [vmem:[%s316 + $0x18] sm:$0xff] %v602
      %611 = vst [vmem:[%s316 + $0x20] sm:$0xff] %v603
      %612 = vst [vmem:[%s316 + $0x28] sm:$0xff] %v604
      %613 = vst [vmem:[%s316 + $0x30] sm:$0xff] %v605
      %614 = vst [vmem:[%s316 + $0x38] sm:$0xff] %v606
      %s615 = smul.u32 8, %s20
      %p616 = scmp.lt.s32.totalorder %s615, 15
      %s617 = scalar_select %p616, %s615, 15
      %p618 = scmp.lt.s32.totalorder %s21, 0
      %s619 = scalar_select %p618, %s21, 0
      %s620 = sadd.s32 %s619, %s617
      %s621 = smul.addr %s620, 8
      %s622 = scalar_lea.vmem %s5, %s621
      // Predicated region
      $region41: #{_lambda_.24} parent=39 // pred_check
        %p623 = pneg %p178
      $region42: #{_lambda_.24} parent=39 // pred_check_branch
        %625 = sbr.rel (%p623) target = $region44
      $region43: #{_lambda_.24} parent=39 // pred_region
        %s626 = smul.u32 8, %s20
      $region44: #{_lambda_.24} parent=39 // pred_fallthru
        _
    $region40: #{_lambda_.24} parent=5 // pred_fallthru
      _
    %p627 = scmp.le.s32.totalorder 2, %s11
    // Predicated region
    $region45: #{_lambda_.24} parent=5 // pred_check
      %p628 = pneg %p627
    $region46: #{_lambda_.24} parent=5 // pred_check_branch
      %630 = sbr.rel (%p628) target = $region48
    $region47: #{_lambda_.24} parent=5 // pred_region
      %s631 = ssub.s32 %s11, 2
      // Predicated region
      $region49: #{_lambda_.24} parent=47 // pred_check
        %p632 = pneg %p184
      $region50: #{_lambda_.24} parent=47 // pred_check_branch
        %634 = sbr.rel (%p632) target = $region52
      $region51: #{_lambda_.24} parent=47 // pred_region
        %s635 = smul.u32 8, %s22
        %p636 = scmp.lt.s32.totalorder %s635, 15
        %s637 = scalar_select %p636, %s635, 15
        %p638 = scmp.lt.s32.totalorder %s23, 0
        %s639 = scalar_select %p638, %s23, 0
        %s640 = sadd.s32 %s639, %s637
        %s641 = smul.addr %s640, 8
        %s642 = scalar_lea.vmem %s5, %s641
      $region52: #{_lambda_.24} parent=47 // pred_fallthru
        _
    $region48: #{_lambda_.24} parent=5 // pred_fallthru
      _
  $region6: #{_lambda_.24} parent=0 // loop_footer
    %s15 = sadd.s32 1, %s11
  $region7: #{_lambda_.24} parent=0 // loop_footer_branch
    %10 = sbr.rel target = $region3
  $region8: #{_lambda_.24} parent=0 // loop_exit
    _

// kernel: _lambda_.25
$region0: #{_lambda_.25}
  #allocation0 [shape = 'u32[]', space=smem, size = 0x4, offset = 0x4, fixed_abs, tag = 'smem constant byte address 0x4 - core index']
  #allocation1 [shape = 'u32[144,128]{1,0:T(1,128)}', space=vmem, size = 0x12000, scoped, tag = 'internal scratch']
  #allocation2 [shape = 'f32[64,128]{1,0:T(8,128)}', space=vmem, size = 0x8000, scoped, tag = 'scratch operand']
  %s0 = inlined_call_operand.vmem [shape: bf16[128,16], index: 0, kind: input, shape index: {}]
  %s1 = inlined_call_operand.vmem [shape: bf16[16,128], index: 1, kind: input, shape index: {}]
  %s2 = inlined_call_operand.vmem [shape: f32[1,128], index: 2, kind: input, shape index: {}]
  %s3 = inlined_call_operand.vmem [shape: f32[128,128], index: 3, kind: output, shape index: {}]
  %s4 = sld [smem:[#allocation0]]
  $region53: #{_lambda_.25} parent=0
    _
  %s6 = ssub.s32 1, %s4
  %s7 = scalar_select 0, %s6, %s4
  loop: start=0, step=1, limit=4
  $region2: #{_lambda_.25} parent=0 // loop_pre_header
    _
  $region3: #{_lambda_.25} parent=0 // loop_header
    %s9 = sphi 0, %s13
    %p10 = scmp.ge.s32.totalorder %s9, 4
    %s16 = sphi 0, %s35
    %s17 = sphi 0, %s31
    %s18 = sphi 0, %s27
    %s19 = sphi 0, %s16
    %s20 = sphi 0, %s17
    %s21 = sphi 0, %s18
    %s22 = sphi 0, %s19
    %s23 = sphi 0, %s20
    %s24 = sphi 0, %s21
    %s40 = sphi 0, %s42
    %s43 = sphi 0, %s40
    %s44 = sphi 0, %s43
    %s60 = sphi 0, %s44
    %s68 = sphi 0, %s70
    %s71 = sphi 0, %s68
    %s72 = sphi 0, %s71
    %s88 = sphi 0, %s72
    %s94 = sphi 0, %s96
    %s97 = sphi 0, %s94
    %s98 = sphi 0, %s97
    %s114 = sphi 0, %s98
    %s122 = sphi 0, %s124
    %s125 = sphi 0, %s122
    %s126 = sphi 0, %s125
    %s142 = sphi 0, %s126
  $region4: #{_lambda_.25} parent=0 // loop_header_branch
    %12 = sbr.rel (%p10) target = $region8
  $region5: #{_lambda_.25} parent=0 // loop_body
    %s14 = ssub.s32 %s9, 1
    %s15 = ssub.s32 %s9, 2
    %s25 = sadd.s32 1, %s18
    %p26 = scmp.ge.s32.totalorder %s25, 1
    %s27 = scalar_select %p26, 0, %s25
    %s28 = sadd.s32 1, %s17
    %s29 = scalar_select %p26, %s28, %s17
    %p30 = scmp.ge.s32.totalorder %s29, 1
    %s31 = scalar_select %p30, 0, %s29
    %s32 = sadd.s32 1, %s16
    %s33 = scalar_select %p30, %s32, %s16
    %p34 = scmp.ge.s32.totalorder %s33, 2
    %s35 = scalar_select %p34, 0, %s33
    %s36 = ssub.s32 %s16, %s35
    %s37 = ssub.s32 %s18, %s27
    %s38 = sor.u32 %s36, %s37
    %p39 = scmp.eq.s32.totalorder %s38, 0
    %s41 = sadd.s32 %s40, 1
    %s42 = scalar_select %p39, %s40, %s41
    %p45 = pneg %p39
    %p46 = scmp.eq.s32.totalorder %s9, 1
    %p47 = por %p45, %p46
    %p48 = scmp.ne.s32.totalorder %s40, %s43
    %p49 = scmp.eq.s32.totalorder %s9, 0
    %p50 = por %p48, %p49
    %p51 = scmp.ne.s32.totalorder %s40, %s43
    %p52 = scmp.eq.s32.totalorder %s14, 1
    %p53 = por %p51, %p52
    %p54 = scmp.ne.s32.totalorder %s43, %s44
    %p55 = scmp.eq.s32.totalorder %s14, 0
    %p56 = por %p54, %p55
    %p57 = scmp.ne.s32.totalorder %s43, %s44
    %p58 = scmp.eq.s32.totalorder %s15, 1
    %p59 = por %p57, %p58
    %p61 = scmp.ne.s32.totalorder %s44, %s60
    %p62 = scmp.eq.s32.totalorder %s15, 0
    %p63 = por %p61, %p62
    %s64 = ssub.s32 %s18, %s27
    %s65 = ssub.s32 %s17, %s31
    %s66 = sor.u32 %s64, %s65
    %p67 = scmp.eq.s32.totalorder %s66, 0
    %s69 = sadd.s32 %s68, 1
    %s70 = scalar_select %p67, %s68, %s69
    %p73 = pneg %p67
    %p74 = scmp.eq.s32.totalorder %s9, 1
    %p75 = por %p73, %p74
    %p76 = scmp.ne.s32.totalorder %s68, %s71
    %p77 = scmp.eq.s32.totalorder %s9, 0
    %p78 = por %p76, %p77
    %p79 = scmp.ne.s32.totalorder %s68, %s71
    %p80 = scmp.eq.s32.totalorder %s14, 1
    %p81 = por %p79, %p80
    %p82 = scmp.ne.s32.totalorder %s71, %s72
    %p83 = scmp.eq.s32.totalorder %s14, 0
    %p84 = por %p82, %p83
    %p85 = scmp.ne.s32.totalorder %s71, %s72
    %p86 = scmp.eq.s32.totalorder %s15, 1
    %p87 = por %p85, %p86
    %p89 = scmp.ne.s32.totalorder %s72, %s88
    %p90 = scmp.eq.s32.totalorder %s15, 0
    %p91 = por %p89, %p90
    %s92 = ssub.s32 %s17, %s31
    %p93 = scmp.eq.s32.totalorder %s92, 0
    %s95 = sadd.s32 %s94, 1
    %s96 = scalar_select %p93, %s94, %s95
    %p99 = pneg %p93
    %p100 = scmp.eq.s32.totalorder %s9, 1
    %p101 = por %p99, %p100
    %p102 = scmp.ne.s32.totalorder %s94, %s97
    %p103 = scmp.eq.s32.totalorder %s9, 0
    %p104 = por %p102, %p103
    %p105 = scmp.ne.s32.totalorder %s94, %s97
    %p106 = scmp.eq.s32.totalorder %s14, 1
    %p107 = por %p105, %p106
    %p108 = scmp.ne.s32.totalorder %s97, %s98
    %p109 = scmp.eq.s32.totalorder %s14, 0
    %p110 = por %p108, %p109
    %p111 = scmp.ne.s32.totalorder %s97, %s98
    %p112 = scmp.eq.s32.totalorder %s15, 1
    %p113 = por %p111, %p112
    %p115 = scmp.ne.s32.totalorder %s98, %s114
    %p116 = scmp.eq.s32.totalorder %s15, 0
    %p117 = por %p115, %p116
    %s118 = ssub.s32 %s16, %s35
    %s119 = ssub.s32 %s17, %s31
    %s120 = sor.u32 %s118, %s119
    %p121 = scmp.eq.s32.totalorder %s120, 0
    %s123 = sadd.s32 %s122, 1
    %s124 = scalar_select %p121, %s122, %s123
    %p127 = pneg %p121
    %p128 = scmp.eq.s32.totalorder %s9, 1
    %p129 = por %p127, %p128
    %p130 = scmp.ne.s32.totalorder %s122, %s125
    %p131 = scmp.eq.s32.totalorder %s9, 0
    %p132 = por %p130, %p131
    %p133 = scmp.ne.s32.totalorder %s122, %s125
    %p134 = scmp.eq.s32.totalorder %s14, 1
    %p135 = por %p133, %p134
    %p136 = scmp.ne.s32.totalorder %s125, %s126
    %p137 = scmp.eq.s32.totalorder %s14, 0
    %p138 = por %p136, %p137
    %p139 = scmp.ne.s32.totalorder %s125, %s126
    %p140 = scmp.eq.s32.totalorder %s15, 1
    %p141 = por %p139, %p140
    %p143 = scmp.ne.s32.totalorder %s126, %s142
    %p144 = scmp.eq.s32.totalorder %s15, 0
    %p145 = por %p143, %p144
    %p146 = scmp.le.s32.totalorder 1, %s9
    %p147 = scmp.lt.s32.totalorder %s9, 3
    %p148 = pnand %p146, %p147
    %p149 = pneg %p148
    // Predicated region
    $region9: #{_lambda_.25} parent=5 // pred_check
      _
    $region10: #{_lambda_.25} parent=5 // pred_check_branch
      %151 = sbr.rel (%p148) target = $region12
    $region11: #{_lambda_.25} parent=5 // pred_region
      %s152 = ssub.s32 %s9, 1
      // Predicated region
      $region13: #{_lambda_.25} parent=11 // pred_check
        %p153 = pneg %p84
      $region14: #{_lambda_.25} parent=11 // pred_check_branch
        %155 = sbr.rel (%p153) target = $region16
      $region15: #{_lambda_.25} parent=11 // pred_region
        %s156 = smul.u32 2, %s21
        %p157 = scmp.lt.s32.totalorder %s156, 1
        %s158 = scalar_select %p157, %s156, 1
        %p159 = scmp.lt.s32.totalorder %s20, 0
        %s160 = scalar_select %p159, %s20, 0
        %s161 = sadd.s32 %s160, %s158
        %s162 = smul.addr %s161, 4
        %s163 = scalar_lea.vmem %s1, %s162
        %s164 = smul.u32 2, %s21
      $region16: #{_lambda_.25} parent=11 // pred_fallthru
        _
      // Predicated region
      $region17: #{_lambda_.25} parent=11 // pred_check
        %p165 = pneg %p110
      $region18: #{_lambda_.25} parent=11 // pred_check_branch
        %167 = sbr.rel (%p165) target = $region20
      $region19: #{_lambda_.25} parent=11 // pred_region
        %p168 = scmp.lt.s32.totalorder %s20, 0
        %s169 = scalar_select %p168, %s20, 0
        %s170 = scalar_lea.vmem %s2, %s169
      $region20: #{_lambda_.25} parent=11 // pred_fallthru
        _
    $region12: #{_lambda_.25} parent=5 // pred_fallthru
      _
    %p171 = scmp.lt.s32.totalorder %s9, 2
    // Predicated region
    $region21: #{_lambda_.25} parent=5 // pred_check
      %p172 = pneg %p171
    $region22: #{_lambda_.25} parent=5 // pred_check_branch
      %174 = sbr.rel (%p172) target = $region24
    $region23: #{_lambda_.25} parent=5 // pred_region
      // Predicated region
      $region25: #{_lambda_.25} parent=23 // pred_check
        %p175 = pneg %p50
      $region26: #{_lambda_.25} parent=23 // pred_check_branch
        %177 = sbr.rel (%p175) target = $region28
      $region27: #{_lambda_.25} parent=23 // pred_region
        %s178 = smul.u32 8, %s16
        %p179 = scmp.lt.s32.totalorder %s178, 15
        %s180 = scalar_select %p179, %s178, 15
        %p181 = scmp.lt.s32.totalorder %s18, 0
        %s182 = scalar_select %p181, %s18, 0
        %s183 = sadd.s32 %s182, %s180
        %s184 = smul.addr %s183, 4
        %s185 = scalar_lea.vmem %s0, %s184
        %s186 = smul.u32 8, %s16
      $region28: #{_lambda_.25} parent=23 // pred_fallthru
        _
    $region24: #{_lambda_.25} parent=5 // pred_fallthru
      _
    %p187 = scmp.le.s32.totalorder 1, %s9
    %p188 = scmp.lt.s32.totalorder %s9, 3
    %p189 = pnand %p187, %p188
    %p190 = pneg %p189
    // Predicated region
    $region29: #{_lambda_.25} parent=5 // pred_check
      _
    $region30: #{_lambda_.25} parent=5 // pred_check_branch
      %192 = sbr.rel (%p189) target = $region32
    $region31: #{_lambda_.25} parent=5 // pred_region
      %s193 = ssub.s32 %s9, 1
      %s194 = smul.u32 8, %s19
      %p195 = scmp.lt.s32.totalorder %s194, 15
      %s196 = scalar_select %p195, %s194, 15
      %p197 = scmp.lt.s32.totalorder %s21, 0
      %s198 = scalar_select %p197, %s21, 0
      %s199 = sadd.s32 %s198, %s196
      %s200 = smul.addr %s199, 4
      %s201 = scalar_lea.vmem %s0, %s200
      %p202 = pneg %p56
      %p203 = pneg %p53
      %s204 = smul.u32 2, %s21
      %p205 = scmp.lt.s32.totalorder %s204, 1
      %s206 = scalar_select %p205, %s204, 1
      %p207 = scmp.lt.s32.totalorder %s20, 0
      %s208 = scalar_select %p207, %s20, 0
      %s209 = sadd.s32 %s208, %s206
      %s210 = smul.addr %s209, 4
      %s211 = scalar_lea.vmem %s1, %s210
      %p212 = pneg %p84
      %p213 = pneg %p81
      %p214 = scmp.lt.s32.totalorder %s20, 0
      %s215 = scalar_select %p214, %s20, 0
      %s216 = scalar_lea.vmem %s2, %s215
      %p217 = pneg %p110
      %p218 = pneg %p107
      %p219 = pneg %p138
      %p220 = pneg %p135
      %s221 = smul.u32 8, %s19
      %p222 = scmp.lt.s32.totalorder %s221, 15
      %s223 = scalar_select %p222, %s221, 15
      %p224 = scmp.lt.s32.totalorder %s20, 0
      %s225 = scalar_select %p224, %s20, 0
      %s226 = sadd.s32 %s225, %s223
      %s227 = smul.addr %s226, 8
      %s228 = scalar_lea.vmem %s3, %s227
      %s229 = smul.u32 8, %s19
      %p230 = scmp.lt.s32.totalorder %s229, 15
      %s231 = scalar_select %p230, %s229, 15
      %p232 = scmp.lt.s32.totalorder %s21, 0
      %s233 = scalar_select %p232, %s21, 0
      %s234 = sadd.s32 %s233, %s231
      %s235 = smul.addr %s234, 4
      %s236 = scalar_lea.vmem %s0, %s235
      %s237 = smul.u32 8, %s19
      %s238 = smul.u32 2, %s21
      %p239 = scmp.lt.s32.totalorder %s238, 1
      %s240 = scalar_select %p239, %s238, 1
      %p241 = scmp.lt.s32.totalorder %s20, 0
      %s242 = scalar_select %p241, %s20, 0
      %s243 = sadd.s32 %s242, %s240
      %s244 = smul.addr %s243, 4
      %s245 = scalar_lea.vmem %s1, %s244
      %s246 = smul.u32 2, %s21
      %p247 = scmp.lt.s32.totalorder %s20, 0
      %s248 = scalar_select %p247, %s20, 0
      %s249 = scalar_lea.vmem %s2, %s248
      %s250 = smul.u32 8, %s19
      %p251 = scmp.lt.s32.totalorder %s250, 15
      %s252 = scalar_select %p251, %s250, 15
      %p253 = scmp.lt.s32.totalorder %s20, 0
      %s254 = scalar_select %p253, %s20, 0
      %s255 = sadd.s32 %s254, %s252
      %s256 = smul.addr %s255, 8
      %s257 = scalar_lea.vmem %s3, %s256
      %s258 = smul.u32 8, %s19
      %p260 = scmp.eq.s32.totalorder %s21, 0
      // Predicated region
      $region33: #{_lambda_.25} parent=31 // pred_check
        %p261 = pneg %p260
      $region34: #{_lambda_.25} parent=31 // pred_check_branch
        %263 = sbr.rel (%p261) target = $region36
      $region35: #{_lambda_.25} parent=31 // pred_region
        %264 = vst [vmem:[#allocation2] sm:$0xff] 0.0
        %265 = vst [vmem:[#allocation2 + $0x8] sm:$0xff] 0.0
        %266 = vst [vmem:[#allocation2 + $0x10] sm:$0xff] 0.0
        %267 = vst [vmem:[#allocation2 + $0x18] sm:$0xff] 0.0
        %268 = vst [vmem:[#allocation2 + $0x20] sm:$0xff] 0.0
        %269 = vst [vmem:[#allocation2 + $0x28] sm:$0xff] 0.0
        %270 = vst [vmem:[#allocation2 + $0x30] sm:$0xff] 0.0
        %271 = vst [vmem:[#allocation2 + $0x38] sm:$0xff] 0.0
      $region36: #{_lambda_.25} parent=31 // pred_fallthru
        _
      %v272 = vld [vmem:[#allocation2] sm:$0xff]
      %v273 = vld [vmem:[#allocation2 + $0x8] sm:$0xff]
      %v274 = vld [vmem:[#allocation2 + $0x10] sm:$0xff]
      %v275 = vld [vmem:[#allocation2 + $0x18] sm:$0xff]
      %v276 = vld [vmem:[#allocation2 + $0x20] sm:$0xff]
      %v277 = vld [vmem:[#allocation2 + $0x28] sm:$0xff]
      %v278 = vld [vmem:[#allocation2 + $0x30] sm:$0xff]
      %v279 = vld [vmem:[#allocation2 + $0x38] sm:$0xff]
      %v280 = vld [vmem:[%s236] sm:$0xf]
      %v281 = vld [vmem:[%s236 + $0x4] sm:$0xf]
      %v282 = vld [vmem:[%s236 + $0x8] sm:$0xf]
      %v283 = vld [vmem:[%s236 + $0xc] sm:$0xf]
      %v284 = vld [vmem:[%s236 + $0x10] sm:$0xf]
      %v285 = vld [vmem:[%s236 + $0x14] sm:$0xf]
      %v286 = vld [vmem:[%s236 + $0x18] sm:$0xf]
      %v287 = vld [vmem:[%s236 + $0x1c] sm:$0xf]
      %v288 = vld [vmem:[%s245] sm:$0xf]
      %v289 = vld [vmem:[%s245 + $0x4] sm:$0xf]
      %v298 = vunpack.c.l.b16 %v280
      %v299 = vunpack.c.l.b16 %v281
      %v300 = vunpack.c.l.b16 %v282
      %v301 = vunpack.c.l.b16 %v283
      %v302 = vunpack.c.l.b16 %v284
      %v303 = vunpack.c.l.b16 %v285
      %v304 = vunpack.c.l.b16 %v286
      %v305 = vunpack.c.l.b16 %v287
      %v306 = vpack.c.b16 %v299, %v298
      %v307 = vpack.c.b16 %v301, %v300
      %v308 = vpack.c.b16 %v303, %v302
      %v309 = vpack.c.b16 %v305, %v304
      %v312 = vunpack.c.l.b16 %v288
      %v313 = vunpack.c.l.b16 %v289
      %v314 = vpack.c.b16 %v313, %v312
      %vm316 = vcmask 130048
      %v318 = vsel %vm316, %v306, 0
      %v321 = vsel %vm316, %v307, 0
      %v324 = vsel %vm316, %v308, 0
      %v327 = vsel %vm316, %v309, 0
      %329 = vmatprep.subr.bf16.mxu0 0
      %330 = vmatpush1.bf16.msra.mxu0 0
      %331 = vmatprep.subr.bf16.mxu0 0
      %332 = vmatpush1.bf16.msra.mxu0 0
      %333 = vmatprep.subr.bf16.mxu0 0
      %334 = vmatpush1.bf16.msra.mxu0 0
      %335 = vmatprep.subr.bf16.mxu0 0
      %336 = vmatpush1.bf16.msra.mxu0 0
      %337 = vmatprep.subr.bf16.mxu0 0
      %338 = vmatpush1.bf16.msra.mxu0 0
      %339 = vmatprep.subr.bf16.mxu0 0
      %340 = vmatpush1.bf16.msra.mxu0 0
      %341 = vmatprep.subr.bf16.mxu0 0
      %342 = vmatpush1.bf16.msra.mxu0 0
      %343 = vmatprep.subr.bf16.mxu0 0
      %344 = vmatpush1.bf16.msra.mxu0 %v314
      %345 = vmatprep.subr.bf16.mxu0 0
      %346 = vmatpush2.bf16.msra.mxu0 0
      %347 = vmatprep.subr.bf16.mxu0 0
      %348 = vmatpush2.bf16.msra.mxu0 0
      %349 = vmatprep.subr.bf16.mxu0 0
      %350 = vmatpush2.bf16.msra.mxu0 0
      %351 = vmatprep.subr.bf16.mxu0 0
      %352 = vmatpush2.bf16.msra.mxu0 0
      %353 = vmatprep.subr.bf16.mxu0 0
      %354 = vmatpush2.bf16.msra.mxu0 0
      %355 = vmatprep.subr.bf16.mxu0 0
      %356 = vmatpush2.bf16.msra.mxu0 0
      %357 = vmatprep.subr.bf16.mxu0 0
      %358 = vmatpush2.bf16.msra.mxu0 0
      %359 = vmatprep.subr.bf16.mxu0 0
      %360 = vmatpush2.bf16.msra.mxu0 0
      %361 = vmatprep.mubr.bf16.mxu0 0
      %362 = vmatmul.mubr.bf16.gmra.mxu0 %v318
      %v363 = vpop.f32.mrf.mxu0
      %v364 = vadd.f32 0.0, %v363
      %v365 = vpop.f32.mrf.mxu0
      %v366 = vpop.f32.mrf.mxu0
      %v367 = vadd.f32 0.0, %v366
      %v368 = vpop.f32.mrf.mxu0
      %369 = vmatprep.mubr.bf16.mxu0 0
      %370 = vmatmul.mubr.bf16.gmra.mxu0 %v321
      %v371 = vpop.f32.mrf.mxu0
      %v372 = vadd.f32 0.0, %v371
      %v373 = vpop.f32.mrf.mxu0
      %v374 = vpop.f32.mrf.mxu0
      %v375 = vadd.f32 0.0, %v374
      %v376 = vpop.f32.mrf.mxu0
      %377 = vmatprep.mubr.bf16.mxu0 0
      %378 = vmatmul.mubr.bf16.gmra.mxu0 %v324
      %v379 = vpop.f32.mrf.mxu0
      %v380 = vadd.f32 0.0, %v379
      %v381 = vpop.f32.mrf.mxu0
      %v382 = vpop.f32.mrf.mxu0
      %v383 = vadd.f32 0.0, %v382
      %v384 = vpop.f32.mrf.mxu0
      %385 = vmatprep.mubr.bf16.mxu0 0
      %386 = vmatmul.mubr.bf16.gmra.mxu0 %v327
      %v387 = vpop.f32.mrf.mxu0
      %v388 = vadd.f32 0.0, %v387
      %v389 = vpop.f32.mrf.mxu0
      %v390 = vpop.f32.mrf.mxu0
      %v391 = vadd.f32 0.0, %v390
      %v392 = vpop.f32.mrf.mxu0
      %393 = vdwg.mxu0
      %v394 = vadd.f32 %v272, %v364
      %v395 = vadd.f32 %v273, %v367
      %v396 = vadd.f32 %v274, %v372
      %v397 = vadd.f32 %v275, %v375
      %v398 = vadd.f32 %v276, %v380
      %v399 = vadd.f32 %v277, %v383
      %v400 = vadd.f32 %v278, %v388
      %v401 = vadd.f32 %v279, %v391
      %402 = vst [vmem:[#allocation2] sm:$0xff] %v394
      %403 = vst [vmem:[#allocation2 + $0x8] sm:$0xff] %v395
      %404 = vst [vmem:[#allocation2 + $0x10] sm:$0xff] %v396
      %405 = vst [vmem:[#allocation2 + $0x18] sm:$0xff] %v397
      %406 = vst [vmem:[#allocation2 + $0x20] sm:$0xff] %v398
      %407 = vst [vmem:[#allocation2 + $0x28] sm:$0xff] %v399
      %408 = vst [vmem:[#allocation2 + $0x30] sm:$0xff] %v400
      %409 = vst [vmem:[#allocation2 + $0x38] sm:$0xff] %v401
      // Predicated region
      $region37: #{_lambda_.25} parent=31 // pred_check
        %p410 = pneg %p260
      $region38: #{_lambda_.25} parent=31 // pred_check_branch
        %412 = sbr.rel (%p410) target = $region40
      $region39: #{_lambda_.25} parent=31 // pred_region
        %v413 = vld [vmem:[#allocation2] sm:$0xff]
        %v414 = vld [vmem:[#allocation2 + $0x8] sm:$0xff]
        %v415 = vld [vmem:[#allocation2 + $0x10] sm:$0xff]
        %v416 = vld [vmem:[#allocation2 + $0x18] sm:$0xff]
        %v417 = vld [vmem:[#allocation2 + $0x20] sm:$0xff]
        %v418 = vld [vmem:[#allocation2 + $0x28] sm:$0xff]
        %v419 = vld [vmem:[#allocation2 + $0x30] sm:$0xff]
        %v420 = vld [vmem:[#allocation2 + $0x38] sm:$0xff]
        %v421 = vld [vmem:[%s249] sm:$0x1]
        %v423 = vlaneseq
        %v424 = vshrl.u32 %v423, 7
        %v425 = vsub.s32 0, %v424
        %v426 = vrot.slane %v421, %v425
        %v428 = vadd.f32 %v413, %v426
        %v429 = vadd.f32 %v414, %v426
        %v430 = vadd.f32 %v415, %v426
        %v431 = vadd.f32 %v416, %v426
        %v432 = vadd.f32 %v417, %v426
        %v433 = vadd.f32 %v418, %v426
        %v434 = vadd.f32 %v419, %v426
        %v435 = vadd.f32 %v420, %v426
        %v436 = vsub.f32 0.0, %v428
        %v437 = vsub.f32 0.0, %v429
        %v438 = vsub.f32 0.0, %v430
        %v439 = vsub.f32 0.0, %v431
        %v440 = vsub.f32 0.0, %v432
        %v441 = vsub.f32 0.0, %v433
        %v442 = vsub.f32 0.0, %v434
        %v443 = vsub.f32 0.0, %v435
        %v444 = vmul.f32 %v436, 1.442695
        %v445 = vpow.pop %v444
        %v446 = vmul.f32 %v437, 1.442695
        %v447 = vpow.pop %v446
        %v448 = vmul.f32 %v438, 1.442695
        %v449 = vpow.pop %v448
        %v450 = vmul.f32 %v439, 1.442695
        %v451 = vpow.pop %v450
        %v452 = vmul.f32 %v440, 1.442695
        %v453 = vpow.pop %v452
        %v454 = vmul.f32 %v441, 1.442695
        %v455 = vpow.pop %v454
        %v456 = vmul.f32 %v442, 1.442695
        %v457 = vpow.pop %v456
        %v458 = vmul.f32 %v443, 1.442695
        %v459 = vpow.pop %v458
        %v460 = vadd.f32 %v445, 1.0
        %v461 = vadd.f32 %v447, 1.0
        %v462 = vadd.f32 %v449, 1.0
        %v463 = vadd.f32 %v451, 1.0
        %v464 = vadd.f32 %v453, 1.0
        %v465 = vadd.f32 %v455, 1.0
        %v466 = vadd.f32 %v457, 1.0
        %v467 = vadd.f32 %v459, 1.0
        %v468 = vrcp.pop %v460
        %v469 = vrcp.pop %v461
        %v470 = vrcp.pop %v462
        %v471 = vrcp.pop %v463
        %v472 = vrcp.pop %v464
        %v473 = vrcp.pop %v465
        %v474 = vrcp.pop %v466
        %v475 = vrcp.pop %v467
        %v476 = vmul.f32 %v428, %v468
        %v477 = vmul.f32 %v429, %v469
        %v478 = vmul.f32 %v430, %v470
        %v479 = vmul.f32 %v431, %v471
        %v480 = vmul.f32 %v432, %v472
        %v481 = vmul.f32 %v433, %v473
        %v482 = vmul.f32 %v434, %v474
        %v483 = vmul.f32 %v435, %v475
        %484 = vst [vmem:[%s257] sm:$0xff] %v476
        %485 = vst [vmem:[%s257 + $0x8] sm:$0xff] %v477
        %486 = vst [vmem:[%s257 + $0x10] sm:$0xff] %v478
        %487 = vst [vmem:[%s257 + $0x18] sm:$0xff] %v479
        %488 = vst [vmem:[%s257 + $0x20] sm:$0xff] %v480
        %489 = vst [vmem:[%s257 + $0x28] sm:$0xff] %v481
        %490 = vst [vmem:[%s257 + $0x30] sm:$0xff] %v482
        %491 = vst [vmem:[%s257 + $0x38] sm:$0xff] %v483
      $region40: #{_lambda_.25} parent=31 // pred_fallthru
        _
      %s492 = smul.u32 8, %s19
      %p493 = scmp.lt.s32.totalorder %s492, 15
      %s494 = scalar_select %p493, %s492, 15
      %p495 = scmp.lt.s32.totalorder %s20, 0
      %s496 = scalar_select %p495, %s20, 0
      %s497 = sadd.s32 %s496, %s494
      %s498 = smul.addr %s497, 8
      %s499 = scalar_lea.vmem %s3, %s498
      // Predicated region
      $region41: #{_lambda_.25} parent=31 // pred_check
        %p500 = pneg %p135
      $region42: #{_lambda_.25} parent=31 // pred_check_branch
        %502 = sbr.rel (%p500) target = $region44
      $region43: #{_lambda_.25} parent=31 // pred_region
        %s503 = smul.u32 8, %s19
      $region44: #{_lambda_.25} parent=31 // pred_fallthru
        _
    $region32: #{_lambda_.25} parent=5 // pred_fallthru
      _
    %p504 = scmp.le.s32.totalorder 2, %s9
    // Predicated region
    $region45: #{_lambda_.25} parent=5 // pred_check
      %p505 = pneg %p504
    $region46: #{_lambda_.25} parent=5 // pred_check_branch
      %507 = sbr.rel (%p505) target = $region48
    $region47: #{_lambda_.25} parent=5 // pred_region
      %s508 = ssub.s32 %s9, 2
      // Predicated region
      $region49: #{_lambda_.25} parent=47 // pred_check
        %p509 = pneg %p141
      $region50: #{_lambda_.25} parent=47 // pred_check_branch
        %511 = sbr.rel (%p509) target = $region52
      $region51: #{_lambda_.25} parent=47 // pred_region
        %s512 = smul.u32 8, %s22
        %p513 = scmp.lt.s32.totalorder %s512, 15
        %s514 = scalar_select %p513, %s512, 15
        %p515 = scmp.lt.s32.totalorder %s23, 0
        %s516 = scalar_select %p515, %s23, 0
        %s517 = sadd.s32 %s516, %s514
        %s518 = smul.addr %s517, 8
        %s519 = scalar_lea.vmem %s3, %s518
      $region52: #{_lambda_.25} parent=47 // pred_fallthru
        _
    $region48: #{_lambda_.25} parent=5 // pred_fallthru
      _
  $region6: #{_lambda_.25} parent=0 // loop_footer
    %s13 = sadd.s32 1, %s9
  $region7: #{_lambda_.25} parent=0 // loop_footer_branch
    %8 = sbr.rel target = $region3
  $region8: #{_lambda_.25} parent=0 // loop_exit
    _

// kernel: _lambda_.26
$region0: #{_lambda_.26}
  #allocation0 [shape = 'u32[]', space=smem, size = 0x4, offset = 0x4, fixed_abs, tag = 'smem constant byte address 0x4 - core index']
  #allocation1 [shape = 'u32[144,128]{1,0:T(1,128)}', space=vmem, size = 0x12000, scoped, tag = 'internal scratch']
  %s0 = inlined_call_operand.vmem [shape: bf16[512,8], index: 0, kind: input, shape index: {}]
  %s1 = inlined_call_operand.vmem [shape: bf16[512,8], index: 1, kind: input, shape index: {}]
  %s2 = inlined_call_operand.vmem [shape: bf16[8,128], index: 2, kind: input, shape index: {}]
  %s3 = inlined_call_operand.vmem [shape: bf16[8,128], index: 3, kind: input, shape index: {}]
  %s4 = inlined_call_operand.vmem [shape: f32[1,128], index: 4, kind: input, shape index: {}]
  %s5 = inlined_call_operand.vmem [shape: f32[512,128], index: 5, kind: output, shape index: {}]
  %s6 = sld [smem:[#allocation0]]
  $region53: #{_lambda_.26} parent=0
    _
  %s8 = ssub.s32 1, %s6
  %s9 = scalar_select 0, %s8, %s6
  loop: start=0, step=1, limit=6
  $region2: #{_lambda_.26} parent=0 // loop_pre_header
    _
  $region3: #{_lambda_.26} parent=0 // loop_header
    %s11 = sphi 0, %s15
    %p12 = scmp.ge.s32.totalorder %s11, 6
    %s18 = sphi 0, %s30
    %s19 = sphi 0, %s26
    %s20 = sphi 0, %s18
    %s21 = sphi 0, %s19
    %s22 = sphi 0, %s20
    %s23 = sphi 0, %s21
    %s33 = sphi 0, %s35
    %s36 = sphi 0, %s33
    %s37 = sphi 0, %s36
    %s53 = sphi 0, %s37
    %s59 = sphi 0, %s61
    %s62 = sphi 0, %s59
    %s63 = sphi 0, %s62
    %s79 = sphi 0, %s63
    %s85 = sphi 0, %s87
    %s88 = sphi 0, %s85
    %s89 = sphi 0, %s88
    %s105 = sphi 0, %s89
    %s111 = sphi 0, %s113
    %s114 = sphi 0, %s111
    %s115 = sphi 0, %s114
    %s131 = sphi 0, %s115
    %s137 = sphi 0, %s139
    %s140 = sphi 0, %s137
    %s141 = sphi 0, %s140
    %s157 = sphi 0, %s141
    %s165 = sphi 0, %s167
    %s168 = sphi 0, %s165
    %s169 = sphi 0, %s168
    %s185 = sphi 0, %s169
  $region4: #{_lambda_.26} parent=0 // loop_header_branch
    %14 = sbr.rel (%p12) target = $region8
  $region5: #{_lambda_.26} parent=0 // loop_body
    %s16 = ssub.s32 %s11, 1
    %s17 = ssub.s32 %s11, 2
    %s24 = sadd.s32 1, %s19
    %p25 = scmp.ge.s32.totalorder %s24, 1
    %s26 = scalar_select %p25, 0, %s24
    %s27 = sadd.s32 1, %s18
    %s28 = scalar_select %p25, %s27, %s18
    %p29 = scmp.ge.s32.totalorder %s28, 4
    %s30 = scalar_select %p29, 0, %s28
    %s31 = ssub.s32 %s18, %s30
    %p32 = scmp.eq.s32.totalorder %s31, 0
    %s34 = sadd.s32 %s33, 1
    %s35 = scalar_select %p32, %s33, %s34
    %p38 = pneg %p32
    %p39 = scmp.eq.s32.totalorder %s11, 3
    %p40 = por %p38, %p39
    %p41 = scmp.ne.s32.totalorder %s33, %s36
    %p42 = scmp.eq.s32.totalorder %s11, 0
    %p43 = por %p41, %p42
    %p44 = scmp.ne.s32.totalorder %s33, %s36
    %p45 = scmp.eq.s32.totalorder %s16, 3
    %p46 = por %p44, %p45
    %p47 = scmp.ne.s32.totalorder %s36, %s37
    %p48 = scmp.eq.s32.totalorder %s16, 0
    %p49 = por %p47, %p48
    %p50 = scmp.ne.s32.totalorder %s36, %s37
    %p51 = scmp.eq.s32.totalorder %s17, 3
    %p52 = por %p50, %p51
    %p54 = scmp.ne.s32.totalorder %s37, %s53
    %p55 = scmp.eq.s32.totalorder %s17, 0
    %p56 = por %p54, %p55
    %s57 = ssub.s32 %s18, %s30
    %p58 = scmp.eq.s32.totalorder %s57, 0
    %s60 = sadd.s32 %s59, 1
    %s61 = scalar_select %p58, %s59, %s60
    %p64 = pneg %p58
    %p65 = scmp.eq.s32.totalorder %s11, 3
    %p66 = por %p64, %p65
    %p67 = scmp.ne.s32.totalorder %s59, %s62
    %p68 = scmp.eq.s32.totalorder %s11, 0
    %p69 = por %p67, %p68
    %p70 = scmp.ne.s32.totalorder %s59, %s62
    %p71 = scmp.eq.s32.totalorder %s16, 3
    %p72 = por %p70, %p71
    %p73 = scmp.ne.s32.totalorder %s62, %s63
    %p74 = scmp.eq.s32.totalorder %s16, 0
    %p75 = por %p73, %p74
    %p76 = scmp.ne.s32.totalorder %s62, %s63
    %p77 = scmp.eq.s32.totalorder %s17, 3
    %p78 = por %p76, %p77
    %p80 = scmp.ne.s32.totalorder %s63, %s79
    %p81 = scmp.eq.s32.totalorder %s17, 0
    %p82 = por %p80, %p81
    %s83 = ssub.s32 %s19, %s26
    %p84 = scmp.eq.s32.totalorder %s83, 0
    %s86 = sadd.s32 %s85, 1
    %s87 = scalar_select %p84, %s85, %s86
    %p90 = pneg %p84
    %p91 = scmp.eq.s32.totalorder %s11, 3
    %p92 = por %p90, %p91
    %p93 = scmp.ne.s32.totalorder %s85, %s88
    %p94 = scmp.eq.s32.totalorder %s11, 0
    %p95 = por %p93, %p94
    %p96 = scmp.ne.s32.totalorder %s85, %s88
    %p97 = scmp.eq.s32.totalorder %s16, 3
    %p98 = por %p96, %p97
    %p99 = scmp.ne.s32.totalorder %s88, %s89
    %p100 = scmp.eq.s32.totalorder %s16, 0
    %p101 = por %p99, %p100
    %p102 = scmp.ne.s32.totalorder %s88, %s89
    %p103 = scmp.eq.s32.totalorder %s17, 3
    %p104 = por %p102, %p103
    %p106 = scmp.ne.s32.totalorder %s89, %s105
    %p107 = scmp.eq.s32.totalorder %s17, 0
    %p108 = por %p106, %p107
    %s109 = ssub.s32 %s19, %s26
    %p110 = scmp.eq.s32.totalorder %s109, 0
    %s112 = sadd.s32 %s111, 1
    %s113 = scalar_select %p110, %s111, %s112
    %p116 = pneg %p110
    %p117 = scmp.eq.s32.totalorder %s11, 3
    %p118 = por %p116, %p117
    %p119 = scmp.ne.s32.totalorder %s111, %s114
    %p120 = scmp.eq.s32.totalorder %s11, 0
    %p121 = por %p119, %p120
    %p122 = scmp.ne.s32.totalorder %s111, %s114
    %p123 = scmp.eq.s32.totalorder %s16, 3
    %p124 = por %p122, %p123
    %p125 = scmp.ne.s32.totalorder %s114, %s115
    %p126 = scmp.eq.s32.totalorder %s16, 0
    %p127 = por %p125, %p126
    %p128 = scmp.ne.s32.totalorder %s114, %s115
    %p129 = scmp.eq.s32.totalorder %s17, 3
    %p130 = por %p128, %p129
    %p132 = scmp.ne.s32.totalorder %s115, %s131
    %p133 = scmp.eq.s32.totalorder %s17, 0
    %p134 = por %p132, %p133
    %s135 = ssub.s32 %s19, %s26
    %p136 = scmp.eq.s32.totalorder %s135, 0
    %s138 = sadd.s32 %s137, 1
    %s139 = scalar_select %p136, %s137, %s138
    %p142 = pneg %p136
    %p143 = scmp.eq.s32.totalorder %s11, 3
    %p144 = por %p142, %p143
    %p145 = scmp.ne.s32.totalorder %s137, %s140
    %p146 = scmp.eq.s32.totalorder %s11, 0
    %p147 = por %p145, %p146
    %p148 = scmp.ne.s32.totalorder %s137, %s140
    %p149 = scmp.eq.s32.totalorder %s16, 3
    %p150 = por %p148, %p149
    %p151 = scmp.ne.s32.totalorder %s140, %s141
    %p152 = scmp.eq.s32.totalorder %s16, 0
    %p153 = por %p151, %p152
    %p154 = scmp.ne.s32.totalorder %s140, %s141
    %p155 = scmp.eq.s32.totalorder %s17, 3
    %p156 = por %p154, %p155
    %p158 = scmp.ne.s32.totalorder %s141, %s157
    %p159 = scmp.eq.s32.totalorder %s17, 0
    %p160 = por %p158, %p159
    %s161 = ssub.s32 %s18, %s30
    %s162 = ssub.s32 %s19, %s26
    %s163 = sor.u32 %s161, %s162
    %p164 = scmp.eq.s32.totalorder %s163, 0
    %s166 = sadd.s32 %s165, 1
    %s167 = scalar_select %p164, %s165, %s166
    %p170 = pneg %p164
    %p171 = scmp.eq.s32.totalorder %s11, 3
    %p172 = por %p170, %p171
    %p173 = scmp.ne.s32.totalorder %s165, %s168
    %p174 = scmp.eq.s32.totalorder %s11, 0
    %p175 = por %p173, %p174
    %p176 = scmp.ne.s32.totalorder %s165, %s168
    %p177 = scmp.eq.s32.totalorder %s16, 3
    %p178 = por %p176, %p177
    %p179 = scmp.ne.s32.totalorder %s168, %s169
    %p180 = scmp.eq.s32.totalorder %s16, 0
    %p181 = por %p179, %p180
    %p182 = scmp.ne.s32.totalorder %s168, %s169
    %p183 = scmp.eq.s32.totalorder %s17, 3
    %p184 = por %p182, %p183
    %p186 = scmp.ne.s32.totalorder %s169, %s185
    %p187 = scmp.eq.s32.totalorder %s17, 0
    %p188 = por %p186, %p187
    %p189 = scmp.le.s32.totalorder 1, %s11
    %p190 = scmp.lt.s32.totalorder %s11, 5
    %p191 = pnand %p189, %p190
    %p192 = pneg %p191
    // Predicated region
    $region9: #{_lambda_.26} parent=5 // pred_check
      _
    $region10: #{_lambda_.26} parent=5 // pred_check_branch
      %194 = sbr.rel (%p191) target = $region12
    $region11: #{_lambda_.26} parent=5 // pred_region
      %s195 = ssub.s32 %s11, 1
      // Predicated region
      $region13: #{_lambda_.26} parent=11 // pred_check
        %p196 = pneg %p101
      $region14: #{_lambda_.26} parent=11 // pred_check_branch
        %198 = sbr.rel (%p196) target = $region16
      $region15: #{_lambda_.26} parent=11 // pred_region
        %p199 = scmp.lt.s32.totalorder %s21, 0
        %s200 = scalar_select %p199, %s21, 0
        %s201 = smul.addr %s200, 4
        %s202 = scalar_lea.vmem %s2, %s201
      $region16: #{_lambda_.26} parent=11 // pred_fallthru
        _
      // Predicated region
      $region17: #{_lambda_.26} parent=11 // pred_check
        %p203 = pneg %p127
      $region18: #{_lambda_.26} parent=11 // pred_check_branch
        %205 = sbr.rel (%p203) target = $region20
      $region19: #{_lambda_.26} parent=11 // pred_region
        %p206 = scmp.lt.s32.totalorder %s21, 0
        %s207 = scalar_select %p206, %s21, 0
        %s208 = smul.addr %s207, 4
        %s209 = scalar_lea.vmem %s3, %s208
      $region20: #{_lambda_.26} parent=11 // pred_fallthru
        _
      // Predicated region
      $region21: #{_lambda_.26} parent=11 // pred_check
        %p210 = pneg %p153
      $region22: #{_lambda_.26} parent=11 // pred_check_branch
        %212 = sbr.rel (%p210) target = $region24
      $region23: #{_lambda_.26} parent=11 // pred_region
        %p213 = scmp.lt.s32.totalorder %s21, 0
        %s214 = scalar_select %p213, %s21, 0
        %s215 = scalar_lea.vmem %s4, %s214
      $region24: #{_lambda_.26} parent=11 // pred_fallthru
        _
    $region12: #{_lambda_.26} parent=5 // pred_fallthru
      _
    %p216 = scmp.lt.s32.totalorder %s11, 4
    // Predicated region
    $region25: #{_lambda_.26} parent=5 // pred_check
      %p217 = pneg %p216
    $region26: #{_lambda_.26} parent=5 // pred_check_branch
      %219 = sbr.rel (%p217) target = $region28
    $region27: #{_lambda_.26} parent=5 // pred_region
      // Predicated region
      $region29: #{_lambda_.26} parent=27 // pred_check
        %p220 = pneg %p43
      $region30: #{_lambda_.26} parent=27 // pred_check_branch
        %222 = sbr.rel (%p220) target = $region32
      $region31: #{_lambda_.26} parent=27 // pred_region
        %s223 = smul.u32 16, %s18
        %p224 = scmp.lt.s32.totalorder %s223, 63
        %s225 = scalar_select %p224, %s223, 63
        %s226 = smul.addr %s225, 4
        %s227 = scalar_lea.vmem %s0, %s226
        %s228 = smul.u32 16, %s18
      $region32: #{_lambda_.26} parent=27 // pred_fallthru
        _
      // Predicated region
      $region33: #{_lambda_.26} parent=27 // pred_check
        %p229 = pneg %p69
      $region34: #{_lambda_.26} parent=27 // pred_check_branch
        %231 = sbr.rel (%p229) target = $region36
      $region35: #{_lambda_.26} parent=27 // pred_region
        %s232 = smul.u32 16, %s18
        %p233 = scmp.lt.s32.totalorder %s232, 63
        %s234 = scalar_select %p233, %s232, 63
        %s235 = smul.addr %s234, 4
        %s236 = scalar_lea.vmem %s1, %s235
        %s237 = smul.u32 16, %s18
      $region36: #{_lambda_.26} parent=27 // pred_fallthru
        _
    $region28: #{_lambda_.26} parent=5 // pred_fallthru
      _
    %p238 = scmp.le.s32.totalorder 1, %s11
    %p239 = scmp.lt.s32.totalorder %s11, 5
    %p240 = pnand %p238, %p239
    %p241 = pneg %p240
    // Predicated region
    $region37: #{_lambda_.26} parent=5 // pred_check
      _
    $region38: #{_lambda_.26} parent=5 // pred_check_branch
      %243 = sbr.rel (%p240) target = $region40
    $region39: #{_lambda_.26} parent=5 // pred_region
      %s244 = ssub.s32 %s11, 1
      %s245 = smul.u32 16, %s20
      %p246 = scmp.lt.s32.totalorder %s245, 63
      %s247 = scalar_select %p246, %s245, 63
      %s248 = smul.addr %s247, 4
      %s249 = scalar_lea.vmem %s0, %s248
      %p250 = pneg %p49
      %p251 = pneg %p46
      %s252 = smul.u32 16, %s20
      %p253 = scmp.lt.s32.totalorder %s252, 63
      %s254 = scalar_select %p253, %s252, 63
      %s255 = smul.addr %s254, 4
      %s256 = scalar_lea.vmem %s1, %s255
      %p257 = pneg %p75
      %p258 = pneg %p72
      %p259 = scmp.lt.s32.totalorder %s21, 0
      %s260 = scalar_select %p259, %s21, 0
      %s261 = smul.addr %s260, 4
      %s262 = scalar_lea.vmem %s2, %s261
      %p263 = pneg %p101
      %p264 = pneg %p98
      %p265 = scmp.lt.s32.totalorder %s21, 0
      %s266 = scalar_select %p265, %s21, 0
      %s267 = smul.addr %s266, 4
      %s268 = scalar_lea.vmem %s3, %s267
      %p269 = pneg %p127
      %p270 = pneg %p124
      %p271 = scmp.lt.s32.totalorder %s21, 0
      %s272 = scalar_select %p271, %s21, 0
      %s273 = scalar_lea.vmem %s4, %s272
      %p274 = pneg %p153
      %p275 = pneg %p150
      %p276 = pneg %p181
      %p277 = pneg %p178
      %s278 = smul.u32 16, %s20
      %p279 = scmp.lt.s32.totalorder %s278, 63
      %s280 = scalar_select %p279, %s278, 63
      %p281 = scmp.lt.s32.totalorder %s21, 0
      %s282 = scalar_select %p281, %s21, 0
      %s283 = sadd.s32 %s282, %s280
      %s284 = smul.addr %s283, 8
      %s285 = scalar_lea.vmem %s5, %s284
      %s286 = smul.u32 16, %s20
      %p287 = scmp.lt.s32.totalorder %s286, 63
      %s288 = scalar_select %p287, %s286, 63
      %s289 = smul.addr %s288, 4
      %s290 = scalar_lea.vmem %s0, %s289
      %s291 = smul.u32 16, %s20
      %s292 = smul.u32 16, %s20
      %p293 = scmp.lt.s32.totalorder %s292, 63
      %s294 = scalar_select %p293, %s292, 63
      %s295 = smul.addr %s294, 4
      %s296 = scalar_lea.vmem %s1, %s295
      %s297 = smul.u32 16, %s20
      %p298 = scmp.lt.s32.totalorder %s21, 0
      %s299 = scalar_select %p298, %s21, 0
      %s300 = smul.addr %s299, 4
      %s301 = scalar_lea.vmem %s2, %s300
      %p302 = scmp.lt.s32.totalorder %s21, 0
      %s303 = scalar_select %p302, %s21, 0
      %s304 = smul.addr %s303, 4
      %s305 = scalar_lea.vmem %s3, %s304
      %p306 = scmp.lt.s32.totalorder %s21, 0
      %s307 = scalar_select %p306, %s21, 0
      %s308 = scalar_lea.vmem %s4, %s307
      %s309 = smul.u32 16, %s20
      %p310 = scmp.lt.s32.totalorder %s309, 63
      %s311 = scalar_select %p310, %s309, 63
      %p312 = scmp.lt.s32.totalorder %s21, 0
      %s313 = scalar_select %p312, %s21, 0
      %s314 = sadd.s32 %s313, %s311
      %s315 = smul.addr %s314, 8
      %s316 = scalar_lea.vmem %s5, %s315
      %s317 = smul.u32 16, %s20
      %v319 = vld [vmem:[%s290] sm:$0xf]
      %v320 = vld [vmem:[%s290 + $0x4] sm:$0xf]
      %v321 = vld [vmem:[%s290 + $0x8] sm:$0xf]
      %v322 = vld [vmem:[%s290 + $0xc] sm:$0xf]
      %v323 = vld [vmem:[%s290 + $0x10] sm:$0xf]
      %v324 = vld [vmem:[%s290 + $0x14] sm:$0xf]
      %v325 = vld [vmem:[%s290 + $0x18] sm:$0xf]
      %v326 = vld [vmem:[%s290 + $0x1c] sm:$0xf]
      %v327 = vld [vmem:[%s290 + $0x20] sm:$0xf]
      %v328 = vld [vmem:[%s290 + $0x24] sm:$0xf]
      %v329 = vld [vmem:[%s290 + $0x28] sm:$0xf]
      %v330 = vld [vmem:[%s290 + $0x2c] sm:$0xf]
      %v331 = vld [vmem:[%s290 + $0x30] sm:$0xf]
      %v332 = vld [vmem:[%s290 + $0x34] sm:$0xf]
      %v333 = vld [vmem:[%s290 + $0x38] sm:$0xf]
      %v334 = vld [vmem:[%s290 + $0x3c] sm:$0xf]
      %v335 = vld [vmem:[%s301] sm:$0xf]
      %v336 = vld [vmem:[%s296] sm:$0xf]
      %v337 = vld [vmem:[%s296 + $0x4] sm:$0xf]
      %v338 = vld [vmem:[%s296 + $0x8] sm:$0xf]
      %v339 = vld [vmem:[%s296 + $0xc] sm:$0xf]
      %v340 = vld [vmem:[%s296 + $0x10] sm:$0xf]
      %v341 = vld [vmem:[%s296 + $0x14] sm:$0xf]
      %v342 = vld [vmem:[%s296 + $0x18] sm:$0xf]
      %v343 = vld [vmem:[%s296 + $0x1c] sm:$0xf]
      %v344 = vld [vmem:[%s296 + $0x20] sm:$0xf]
      %v345 = vld [vmem:[%s296 + $0x24] sm:$0xf]
      %v346 = vld [vmem:[%s296 + $0x28] sm:$0xf]
      %v347 = vld [vmem:[%s296 + $0x2c] sm:$0xf]
      %v348 = vld [vmem:[%s296 + $0x30] sm:$0xf]
      %v349 = vld [vmem:[%s296 + $0x34] sm:$0xf]
      %v350 = vld [vmem:[%s296 + $0x38] sm:$0xf]
      %v351 = vld [vmem:[%s296 + $0x3c] sm:$0xf]
      %v352 = vld [vmem:[%s305] sm:$0xf]
      %v369 = vunpack.c.l.b16 %v336
      %v370 = vunpack.c.l.b16 %v337
      %v371 = vunpack.c.l.b16 %v338
      %v372 = vunpack.c.l.b16 %v339
      %v373 = vunpack.c.l.b16 %v340
      %v374 = vunpack.c.l.b16 %v341
      %v375 = vunpack.c.l.b16 %v342
      %v376 = vunpack.c.l.b16 %v343
      %v377 = vunpack.c.l.b16 %v344
      %v378 = vunpack.c.l.b16 %v345
      %v379 = vunpack.c.l.b16 %v346
      %v380 = vunpack.c.l.b16 %v347
      %v381 = vunpack.c.l.b16 %v348
      %v382 = vunpack.c.l.b16 %v349
      %v383 = vunpack.c.l.b16 %v350
      %v384 = vunpack.c.l.b16 %v351
      %v385 = vpack.c.b16 %v370, %v369
      %v386 = vpack.c.b16 %v372, %v371
      %v387 = vpack.c.b16 %v374, %v373
      %v388 = vpack.c.b16 %v376, %v375
      %v389 = vpack.c.b16 %v378, %v377
      %v390 = vpack.c.b16 %v380, %v379
      %v391 = vpack.c.b16 %v382, %v381
      %v392 = vpack.c.b16 %v384, %v383
      %vm393 = vcmask 64512
      %v395 = vsel %vm393, %v385, 0
      %v398 = vsel %vm393, %v386, 0
      %v401 = vsel %vm393, %v387, 0
      %v404 = vsel %vm393, %v388, 0
      %v407 = vsel %vm393, %v389, 0
      %v410 = vsel %vm393, %v390, 0
      %v413 = vsel %vm393, %v391, 0
      %v416 = vsel %vm393, %v392, 0
      %vm418 = vcmask 1043456
      %v420 = vsel %vm418, %v352, 0
      %422 = vmatprep.subr.bf16.mxu0 0
      %423 = vmatpush1.bf16.msra.mxu0 0
      %424 = vmatprep.subr.bf16.mxu0 0
      %425 = vmatpush1.bf16.msra.mxu0 0
      %426 = vmatprep.subr.bf16.mxu0 0
      %427 = vmatpush1.bf16.msra.mxu0 0
      %428 = vmatprep.subr.bf16.mxu0 0
      %429 = vmatpush1.bf16.msra.mxu0 0
      %430 = vmatprep.subr.bf16.mxu0 0
      %431 = vmatpush1.bf16.msra.mxu0 0
      %432 = vmatprep.subr.bf16.mxu0 0
      %433 = vmatpush1.bf16.msra.mxu0 0
      %434 = vmatprep.subr.bf16.mxu0 0
      %435 = vmatpush1.bf16.msra.mxu0 0
      %436 = vmatprep.subr.bf16.mxu0 0
      %437 = vmatpush1.bf16.msra.mxu0 %v420
      %438 = vmatprep.subr.bf16.mxu0 0
      %439 = vmatpush2.bf16.msra.mxu0 0
      %440 = vmatprep.subr.bf16.mxu0 0
      %441 = vmatpush2.bf16.msra.mxu0 0
      %442 = vmatprep.subr.bf16.mxu0 0
      %443 = vmatpush2.bf16.msra.mxu0 0
      %444 = vmatprep.subr.bf16.mxu0 0
      %445 = vmatpush2.bf16.msra.mxu0 0
      %446 = vmatprep.subr.bf16.mxu0 0
      %447 = vmatpush2.bf16.msra.mxu0 0
      %448 = vmatprep.subr.bf16.mxu0 0
      %449 = vmatpush2.bf16.msra.mxu0 0
      %450 = vmatprep.subr.bf16.mxu0 0
      %451 = vmatpush2.bf16.msra.mxu0 0
      %452 = vmatprep.subr.bf16.mxu0 0
      %453 = vmatpush2.bf16.msra.mxu0 0
      %454 = vmatprep.mubr.bf16.mxu0 0
      %455 = vmatmul.mubr.bf16.gmra.mxu0 %v395
      %v456 = vpop.f32.mrf.mxu0
      %v457 = vadd.f32 0.0, %v456
      %v458 = vpop.f32.mrf.mxu0
      %v459 = vpop.f32.mrf.mxu0
      %v460 = vadd.f32 0.0, %v459
      %v461 = vpop.f32.mrf.mxu0
      %462 = vmatprep.mubr.bf16.mxu0 0
      %463 = vmatmul.mubr.bf16.gmra.mxu0 %v398
      %v464 = vpop.f32.mrf.mxu0
      %v465 = vadd.f32 0.0, %v464
      %v466 = vpop.f32.mrf.mxu0
      %v467 = vpop.f32.mrf.mxu0
      %v468 = vadd.f32 0.0, %v467
      %v469 = vpop.f32.mrf.mxu0
      %470 = vmatprep.mubr.bf16.mxu0 0
      %471 = vmatmul.mubr.bf16.gmra.mxu0 %v401
      %v472 = vpop.f32.mrf.mxu0
      %v473 = vadd.f32 0.0, %v472
      %v474 = vpop.f32.mrf.mxu0
      %v475 = vpop.f32.mrf.mxu0
      %v476 = vadd.f32 0.0, %v475
      %v477 = vpop.f32.mrf.mxu0
      %478 = vmatprep.mubr.bf16.mxu0 0
      %479 = vmatmul.mubr.bf16.gmra.mxu0 %v404
      %v480 = vpop.f32.mrf.mxu0
      %v481 = vadd.f32 0.0, %v480
      %v482 = vpop.f32.mrf.mxu0
      %v483 = vpop.f32.mrf.mxu0
      %v484 = vadd.f32 0.0, %v483
      %v485 = vpop.f32.mrf.mxu0
      %486 = vmatprep.mubr.bf16.mxu0 0
      %487 = vmatmul.mubr.bf16.gmra.mxu0 %v407
      %v488 = vpop.f32.mrf.mxu0
      %v489 = vadd.f32 0.0, %v488
      %v490 = vpop.f32.mrf.mxu0
      %v491 = vpop.f32.mrf.mxu0
      %v492 = vadd.f32 0.0, %v491
      %v493 = vpop.f32.mrf.mxu0
      %494 = vmatprep.mubr.bf16.mxu0 0
      %495 = vmatmul.mubr.bf16.gmra.mxu0 %v410
      %v496 = vpop.f32.mrf.mxu0
      %v497 = vadd.f32 0.0, %v496
      %v498 = vpop.f32.mrf.mxu0
      %v499 = vpop.f32.mrf.mxu0
      %v500 = vadd.f32 0.0, %v499
      %v501 = vpop.f32.mrf.mxu0
      %502 = vmatprep.mubr.bf16.mxu0 0
      %503 = vmatmul.mubr.bf16.gmra.mxu0 %v413
      %v504 = vpop.f32.mrf.mxu0
      %v505 = vadd.f32 0.0, %v504
      %v506 = vpop.f32.mrf.mxu0
      %v507 = vpop.f32.mrf.mxu0
      %v508 = vadd.f32 0.0, %v507
      %v509 = vpop.f32.mrf.mxu0
      %510 = vmatprep.mubr.bf16.mxu0 0
      %511 = vmatmul.mubr.bf16.gmra.mxu0 %v416
      %v512 = vpop.f32.mrf.mxu0
      %v513 = vadd.f32 0.0, %v512
      %v514 = vpop.f32.mrf.mxu0
      %v515 = vpop.f32.mrf.mxu0
      %v516 = vadd.f32 0.0, %v515
      %v517 = vpop.f32.mrf.mxu0
      %518 = vdwg.mxu0
      %v535 = vunpack.c.l.b16 %v319
      %v536 = vunpack.c.l.b16 %v320
      %v537 = vunpack.c.l.b16 %v321
      %v538 = vunpack.c.l.b16 %v322
      %v539 = vunpack.c.l.b16 %v323
      %v540 = vunpack.c.l.b16 %v324
      %v541 = vunpack.c.l.b16 %v325
      %v542 = vunpack.c.l.b16 %v326
      %v543 = vunpack.c.l.b16 %v327
      %v544 = vunpack.c.l.b16 %v328
      %v545 = vunpack.c.l.b16 %v329
      %v546 = vunpack.c.l.b16 %v330
      %v547 = vunpack.c.l.b16 %v331
      %v548 = vunpack.c.l.b16 %v332
      %v549 = vunpack.c.l.b16 %v333
      %v550 = vunpack.c.l.b16 %v334
      %v551 = vpack.c.b16 %v536, %v535
      %v552 = vpack.c.b16 %v538, %v537
      %v553 = vpack.c.b16 %v540, %v539
      %v554 = vpack.c.b16 %v542, %v541
      %v555 = vpack.c.b16 %v544, %v543
      %v556 = vpack.c.b16 %v546, %v545
      %v557 = vpack.c.b16 %v548, %v547
      %v558 = vpack.c.b16 %v550, %v549
      %v560 = vsel %vm393, %v551, 0
      %v563 = vsel %vm393, %v552, 0
      %v566 = vsel %vm393, %v553, 0
      %v569 = vsel %vm393, %v554, 0
      %v572 = vsel %vm393, %v555, 0
      %v575 = vsel %vm393, %v556, 0
      %v578 = vsel %vm393, %v557, 0
      %v581 = vsel %vm393, %v558, 0
      %v584 = vsel %vm418, %v335, 0
      %586 = vmatprep.subr.bf16.mxu0 0
      %587 = vmatpush1.bf16.msra.mxu0 0
      %588 = vmatprep.subr.bf16.mxu0 0
      %589 = vmatpush1.bf16.msra.mxu0 0
      %590 = vmatprep.subr.bf16.mxu0 0
      %591 = vmatpush1.bf16.msra.mxu0 0
      %592 = vmatprep.subr.bf16.mxu0 0
      %593 = vmatpush1.bf16.msra.mxu0 0
      %594 = vmatprep.subr.bf16.mxu0 0
      %595 = vmatpush1.bf16.msra.mxu0 0
      %596 = vmatprep.subr.bf16.mxu0 0
      %597 = vmatpush1.bf16.msra.mxu0 0
      %598 = vmatprep.subr.bf16.mxu0 0
      %599 = vmatpush1.bf16.msra.mxu0 0
      %600 = vmatprep.subr.bf16.mxu0 0
      %601 = vmatpush1.bf16.msra.mxu0 %v584
      %602 = vmatprep.subr.bf16.mxu0 0
      %603 = vmatpush2.bf16.msra.mxu0 0
      %604 = vmatprep.subr.bf16.mxu0 0
      %605 = vmatpush2.bf16.msra.mxu0 0
      %606 = vmatprep.subr.bf16.mxu0 0
      %607 = vmatpush2.bf16.msra.mxu0 0
      %608 = vmatprep.subr.bf16.mxu0 0
      %609 = vmatpush2.bf16.msra.mxu0 0
      %610 = vmatprep.subr.bf16.mxu0 0
      %611 = vmatpush2.bf16.msra.mxu0 0
      %612 = vmatprep.subr.bf16.mxu0 0
      %613 = vmatpush2.bf16.msra.mxu0 0
      %614 = vmatprep.subr.bf16.mxu0 0
      %615 = vmatpush2.bf16.msra.mxu0 0
      %616 = vmatprep.subr.bf16.mxu0 0
      %617 = vmatpush2.bf16.msra.mxu0 0
      %618 = vmatprep.mubr.bf16.mxu0 0
      %619 = vmatmul.mubr.bf16.gmra.mxu0 %v560
      %v620 = vpop.f32.mrf.mxu0
      %v621 = vadd.f32 %v457, %v620
      %v622 = vpop.f32.mrf.mxu0
      %v623 = vpop.f32.mrf.mxu0
      %v624 = vadd.f32 %v460, %v623
      %v625 = vpop.f32.mrf.mxu0
      %626 = vmatprep.mubr.bf16.mxu0 0
      %627 = vmatmul.mubr.bf16.gmra.mxu0 %v563
      %v628 = vpop.f32.mrf.mxu0
      %v629 = vadd.f32 %v465, %v628
      %v630 = vpop.f32.mrf.mxu0
      %v631 = vpop.f32.mrf.mxu0
      %v632 = vadd.f32 %v468, %v631
      %v633 = vpop.f32.mrf.mxu0
      %634 = vmatprep.mubr.bf16.mxu0 0
      %635 = vmatmul.mubr.bf16.gmra.mxu0 %v566
      %v636 = vpop.f32.mrf.mxu0
      %v637 = vadd.f32 %v473, %v636
      %v638 = vpop.f32.mrf.mxu0
      %v639 = vpop.f32.mrf.mxu0
      %v640 = vadd.f32 %v476, %v639
      %v641 = vpop.f32.mrf.mxu0
      %642 = vmatprep.mubr.bf16.mxu0 0
      %643 = vmatmul.mubr.bf16.gmra.mxu0 %v569
      %v644 = vpop.f32.mrf.mxu0
      %v645 = vadd.f32 %v481, %v644
      %v646 = vpop.f32.mrf.mxu0
      %v647 = vpop.f32.mrf.mxu0
      %v648 = vadd.f32 %v484, %v647
      %v649 = vpop.f32.mrf.mxu0
      %650 = vmatprep.mubr.bf16.mxu0 0
      %651 = vmatmul.mubr.bf16.gmra.mxu0 %v572
      %v652 = vpop.f32.mrf.mxu0
      %v653 = vadd.f32 %v489, %v652
      %v654 = vpop.f32.mrf.mxu0
      %v655 = vpop.f32.mrf.mxu0
      %v656 = vadd.f32 %v492, %v655
      %v657 = vpop.f32.mrf.mxu0
      %658 = vmatprep.mubr.bf16.mxu0 0
      %659 = vmatmul.mubr.bf16.gmra.mxu0 %v575
      %v660 = vpop.f32.mrf.mxu0
      %v661 = vadd.f32 %v497, %v660
      %v662 = vpop.f32.mrf.mxu0
      %v663 = vpop.f32.mrf.mxu0
      %v664 = vadd.f32 %v500, %v663
      %v665 = vpop.f32.mrf.mxu0
      %666 = vmatprep.mubr.bf16.mxu0 0
      %667 = vmatmul.mubr.bf16.gmra.mxu0 %v578
      %v668 = vpop.f32.mrf.mxu0
      %v669 = vadd.f32 %v505, %v668
      %v670 = vpop.f32.mrf.mxu0
      %v671 = vpop.f32.mrf.mxu0
      %v672 = vadd.f32 %v508, %v671
      %v673 = vpop.f32.mrf.mxu0
      %674 = vmatprep.mubr.bf16.mxu0 0
      %675 = vmatmul.mubr.bf16.gmra.mxu0 %v581
      %v676 = vpop.f32.mrf.mxu0
      %v677 = vadd.f32 %v513, %v676
      %v678 = vpop.f32.mrf.mxu0
      %v679 = vpop.f32.mrf.mxu0
      %v680 = vadd.f32 %v516, %v679
      %v681 = vpop.f32.mrf.mxu0
      %682 = vdwg.mxu0
      %v683 = vld [vmem:[%s308] sm:$0x1]
      %v685 = vlaneseq
      %v686 = vshrl.u32 %v685, 7
      %v687 = vsub.s32 0, %v686
      %v688 = vrot.slane %v683, %v687
      %v690 = vadd.f32 %v621, %v688
      %v691 = vadd.f32 %v624, %v688
      %v692 = vadd.f32 %v629, %v688
      %v693 = vadd.f32 %v632, %v688
      %v694 = vadd.f32 %v637, %v688
      %v695 = vadd.f32 %v640, %v688
      %v696 = vadd.f32 %v645, %v688
      %v697 = vadd.f32 %v648, %v688
      %v698 = vadd.f32 %v653, %v688
      %v699 = vadd.f32 %v656, %v688
      %v700 = vadd.f32 %v661, %v688
      %v701 = vadd.f32 %v664, %v688
      %v702 = vadd.f32 %v669, %v688
      %v703 = vadd.f32 %v672, %v688
      %v704 = vadd.f32 %v677, %v688
      %v705 = vadd.f32 %v680, %v688
      %v706 = vsub.f32 0.0, %v690
      %v707 = vsub.f32 0.0, %v691
      %v708 = vsub.f32 0.0, %v692
      %v709 = vsub.f32 0.0, %v693
      %v710 = vsub.f32 0.0, %v694
      %v711 = vsub.f32 0.0, %v695
      %v712 = vsub.f32 0.0, %v696
      %v713 = vsub.f32 0.0, %v697
      %v714 = vsub.f32 0.0, %v698
      %v715 = vsub.f32 0.0, %v699
      %v716 = vsub.f32 0.0, %v700
      %v717 = vsub.f32 0.0, %v701
      %v718 = vsub.f32 0.0, %v702
      %v719 = vsub.f32 0.0, %v703
      %v720 = vsub.f32 0.0, %v704
      %v721 = vsub.f32 0.0, %v705
      %v722 = vmul.f32 %v706, 1.442695
      %v723 = vpow.pop %v722
      %v724 = vmul.f32 %v707, 1.442695
      %v725 = vpow.pop %v724
      %v726 = vmul.f32 %v708, 1.442695
      %v727 = vpow.pop %v726
      %v728 = vmul.f32 %v709, 1.442695
      %v729 = vpow.pop %v728
      %v730 = vmul.f32 %v710, 1.442695
      %v731 = vpow.pop %v730
      %v732 = vmul.f32 %v711, 1.442695
      %v733 = vpow.pop %v732
      %v734 = vmul.f32 %v712, 1.442695
      %v735 = vpow.pop %v734
      %v736 = vmul.f32 %v713, 1.442695
      %v737 = vpow.pop %v736
      %v738 = vmul.f32 %v714, 1.442695
      %v739 = vpow.pop %v738
      %v740 = vmul.f32 %v715, 1.442695
      %v741 = vpow.pop %v740
      %v742 = vmul.f32 %v716, 1.442695
      %v743 = vpow.pop %v742
      %v744 = vmul.f32 %v717, 1.442695
      %v745 = vpow.pop %v744
      %v746 = vmul.f32 %v718, 1.442695
      %v747 = vpow.pop %v746
      %v748 = vmul.f32 %v719, 1.442695
      %v749 = vpow.pop %v748
      %v750 = vmul.f32 %v720, 1.442695
      %v751 = vpow.pop %v750
      %v752 = vmul.f32 %v721, 1.442695
      %v753 = vpow.pop %v752
      %v754 = vadd.f32 %v723, 1.0
      %v755 = vadd.f32 %v725, 1.0
      %v756 = vadd.f32 %v727, 1.0
      %v757 = vadd.f32 %v729, 1.0
      %v758 = vadd.f32 %v731, 1.0
      %v759 = vadd.f32 %v733, 1.0
      %v760 = vadd.f32 %v735, 1.0
      %v761 = vadd.f32 %v737, 1.0
      %v762 = vadd.f32 %v739, 1.0
      %v763 = vadd.f32 %v741, 1.0
      %v764 = vadd.f32 %v743, 1.0
      %v765 = vadd.f32 %v745, 1.0
      %v766 = vadd.f32 %v747, 1.0
      %v767 = vadd.f32 %v749, 1.0
      %v768 = vadd.f32 %v751, 1.0
      %v769 = vadd.f32 %v753, 1.0
      %v770 = vrcp.pop %v754
      %v771 = vrcp.pop %v755
      %v772 = vrcp.pop %v756
      %v773 = vrcp.pop %v757
      %v774 = vrcp.pop %v758
      %v775 = vrcp.pop %v759
      %v776 = vrcp.pop %v760
      %v777 = vrcp.pop %v761
      %v778 = vrcp.pop %v762
      %v779 = vrcp.pop %v763
      %v780 = vrcp.pop %v764
      %v781 = vrcp.pop %v765
      %v782 = vrcp.pop %v766
      %v783 = vrcp.pop %v767
      %v784 = vrcp.pop %v768
      %v785 = vrcp.pop %v769
      %v786 = vmul.f32 %v690, %v770
      %v787 = vmul.f32 %v691, %v771
      %v788 = vmul.f32 %v692, %v772
      %v789 = vmul.f32 %v693, %v773
      %v790 = vmul.f32 %v694, %v774
      %v791 = vmul.f32 %v695, %v775
      %v792 = vmul.f32 %v696, %v776
      %v793 = vmul.f32 %v697, %v777
      %v794 = vmul.f32 %v698, %v778
      %v795 = vmul.f32 %v699, %v779
      %v796 = vmul.f32 %v700, %v780
      %v797 = vmul.f32 %v701, %v781
      %v798 = vmul.f32 %v702, %v782
      %v799 = vmul.f32 %v703, %v783
      %v800 = vmul.f32 %v704, %v784
      %v801 = vmul.f32 %v705, %v785
      %802 = vst [vmem:[%s316] sm:$0xff] %v786
      %803 = vst [vmem:[%s316 + $0x8] sm:$0xff] %v787
      %804 = vst [vmem:[%s316 + $0x10] sm:$0xff] %v788
      %805 = vst [vmem:[%s316 + $0x18] sm:$0xff] %v789
      %806 = vst [vmem:[%s316 + $0x20] sm:$0xff] %v790
      %807 = vst [vmem:[%s316 + $0x28] sm:$0xff] %v791
      %808 = vst [vmem:[%s316 + $0x30] sm:$0xff] %v792
      %809 = vst [vmem:[%s316 + $0x38] sm:$0xff] %v793
      %810 = vst [vmem:[%s316 + $0x40] sm:$0xff] %v794
      %811 = vst [vmem:[%s316 + $0x48] sm:$0xff] %v795
      %812 = vst [vmem:[%s316 + $0x50] sm:$0xff] %v796
      %813 = vst [vmem:[%s316 + $0x58] sm:$0xff] %v797
      %814 = vst [vmem:[%s316 + $0x60] sm:$0xff] %v798
      %815 = vst [vmem:[%s316 + $0x68] sm:$0xff] %v799
      %816 = vst [vmem:[%s316 + $0x70] sm:$0xff] %v800
      %817 = vst [vmem:[%s316 + $0x78] sm:$0xff] %v801
      %s818 = smul.u32 16, %s20
      %p819 = scmp.lt.s32.totalorder %s818, 63
      %s820 = scalar_select %p819, %s818, 63
      %p821 = scmp.lt.s32.totalorder %s21, 0
      %s822 = scalar_select %p821, %s21, 0
      %s823 = sadd.s32 %s822, %s820
      %s824 = smul.addr %s823, 8
      %s825 = scalar_lea.vmem %s5, %s824
      // Predicated region
      $region41: #{_lambda_.26} parent=39 // pred_check
        %p826 = pneg %p178
      $region42: #{_lambda_.26} parent=39 // pred_check_branch
        %828 = sbr.rel (%p826) target = $region44
      $region43: #{_lambda_.26} parent=39 // pred_region
        %s829 = smul.u32 16, %s20
      $region44: #{_lambda_.26} parent=39 // pred_fallthru
        _
    $region40: #{_lambda_.26} parent=5 // pred_fallthru
      _
    %p830 = scmp.le.s32.totalorder 2, %s11
    // Predicated region
    $region45: #{_lambda_.26} parent=5 // pred_check
      %p831 = pneg %p830
    $region46: #{_lambda_.26} parent=5 // pred_check_branch
      %833 = sbr.rel (%p831) target = $region48
    $region47: #{_lambda_.26} parent=5 // pred_region
      %s834 = ssub.s32 %s11, 2
      // Predicated region
      $region49: #{_lambda_.26} parent=47 // pred_check
        %p835 = pneg %p184
      $region50: #{_lambda_.26} parent=47 // pred_check_branch
        %837 = sbr.rel (%p835) target = $region52
      $region51: #{_lambda_.26} parent=47 // pred_region
        %s838 = smul.u32 16, %s22
        %p839 = scmp.lt.s32.totalorder %s838, 63
        %s840 = scalar_select %p839, %s838, 63
        %p841 = scmp.lt.s32.totalorder %s23, 0
        %s842 = scalar_select %p841, %s23, 0
        %s843 = sadd.s32 %s842, %s840
        %s844 = smul.addr %s843, 8
        %s845 = scalar_lea.vmem %s5, %s844
      $region52: #{_lambda_.26} parent=47 // pred_fallthru
        _
    $region48: #{_lambda_.26} parent=5 // pred_fallthru
      _
  $region6: #{_lambda_.26} parent=0 // loop_footer
    %s15 = sadd.s32 1, %s11
  $region7: #{_lambda_.26} parent=0 // loop_footer_branch
    %10 = sbr.rel target = $region3
  $region8: #{_lambda_.26} parent=0 // loop_exit
    _

// kernel: _lambda_.27
$region0: #{_lambda_.27}
  #allocation0 [shape = 'u32[]', space=smem, size = 0x4, offset = 0x4, fixed_abs, tag = 'smem constant byte address 0x4 - core index']
  #allocation1 [shape = 'u32[144,128]{1,0:T(1,128)}', space=vmem, size = 0x12000, scoped, tag = 'internal scratch']
  #allocation2 [shape = 'f32[128,128]{1,0:T(8,128)}', space=vmem, size = 0x10000, scoped, tag = 'scratch operand']
  %s0 = inlined_call_operand.vmem [shape: bf16[512,36], index: 0, kind: input, shape index: {}]
  %s1 = inlined_call_operand.vmem [shape: bf16[36,128], index: 1, kind: input, shape index: {}]
  %s2 = inlined_call_operand.vmem [shape: f32[1,128], index: 2, kind: input, shape index: {}]
  %s3 = inlined_call_operand.vmem [shape: f32[512,128], index: 3, kind: output, shape index: {}]
  %s4 = sld [smem:[#allocation0]]
  $region53: #{_lambda_.27} parent=0
    _
  %s6 = ssub.s32 1, %s4
  %s7 = scalar_select 0, %s6, %s4
  loop: start=0, step=1, limit=6
  $region2: #{_lambda_.27} parent=0 // loop_pre_header
    _
  $region3: #{_lambda_.27} parent=0 // loop_header
    %s9 = sphi 0, %s13
    %p10 = scmp.ge.s32.totalorder %s9, 6
    %s16 = sphi 0, %s35
    %s17 = sphi 0, %s31
    %s18 = sphi 0, %s27
    %s19 = sphi 0, %s16
    %s20 = sphi 0, %s17
    %s21 = sphi 0, %s18
    %s22 = sphi 0, %s19
    %s23 = sphi 0, %s20
    %s24 = sphi 0, %s21
    %s40 = sphi 0, %s42
    %s43 = sphi 0, %s40
    %s44 = sphi 0, %s43
    %s60 = sphi 0, %s44
    %s68 = sphi 0, %s70
    %s71 = sphi 0, %s68
    %s72 = sphi 0, %s71
    %s88 = sphi 0, %s72
    %s94 = sphi 0, %s96
    %s97 = sphi 0, %s94
    %s98 = sphi 0, %s97
    %s114 = sphi 0, %s98
    %s122 = sphi 0, %s124
    %s125 = sphi 0, %s122
    %s126 = sphi 0, %s125
    %s142 = sphi 0, %s126
  $region4: #{_lambda_.27} parent=0 // loop_header_branch
    %12 = sbr.rel (%p10) target = $region8
  $region5: #{_lambda_.27} parent=0 // loop_body
    %s14 = ssub.s32 %s9, 1
    %s15 = ssub.s32 %s9, 2
    %s25 = sadd.s32 1, %s18
    %p26 = scmp.ge.s32.totalorder %s25, 1
    %s27 = scalar_select %p26, 0, %s25
    %s28 = sadd.s32 1, %s17
    %s29 = scalar_select %p26, %s28, %s17
    %p30 = scmp.ge.s32.totalorder %s29, 1
    %s31 = scalar_select %p30, 0, %s29
    %s32 = sadd.s32 1, %s16
    %s33 = scalar_select %p30, %s32, %s16
    %p34 = scmp.ge.s32.totalorder %s33, 4
    %s35 = scalar_select %p34, 0, %s33
    %s36 = ssub.s32 %s16, %s35
    %s37 = ssub.s32 %s18, %s27
    %s38 = sor.u32 %s36, %s37
    %p39 = scmp.eq.s32.totalorder %s38, 0
    %s41 = sadd.s32 %s40, 1
    %s42 = scalar_select %p39, %s40, %s41
    %p45 = pneg %p39
    %p46 = scmp.eq.s32.totalorder %s9, 3
    %p47 = por %p45, %p46
    %p48 = scmp.ne.s32.totalorder %s40, %s43
    %p49 = scmp.eq.s32.totalorder %s9, 0
    %p50 = por %p48, %p49
    %p51 = scmp.ne.s32.totalorder %s40, %s43
    %p52 = scmp.eq.s32.totalorder %s14, 3
    %p53 = por %p51, %p52
    %p54 = scmp.ne.s32.totalorder %s43, %s44
    %p55 = scmp.eq.s32.totalorder %s14, 0
    %p56 = por %p54, %p55
    %p57 = scmp.ne.s32.totalorder %s43, %s44
    %p58 = scmp.eq.s32.totalorder %s15, 3
    %p59 = por %p57, %p58
    %p61 = scmp.ne.s32.totalorder %s44, %s60
    %p62 = scmp.eq.s32.totalorder %s15, 0
    %p63 = por %p61, %p62
    %s64 = ssub.s32 %s18, %s27
    %s65 = ssub.s32 %s17, %s31
    %s66 = sor.u32 %s64, %s65
    %p67 = scmp.eq.s32.totalorder %s66, 0
    %s69 = sadd.s32 %s68, 1
    %s70 = scalar_select %p67, %s68, %s69
    %p73 = pneg %p67
    %p74 = scmp.eq.s32.totalorder %s9, 3
    %p75 = por %p73, %p74
    %p76 = scmp.ne.s32.totalorder %s68, %s71
    %p77 = scmp.eq.s32.totalorder %s9, 0
    %p78 = por %p76, %p77
    %p79 = scmp.ne.s32.totalorder %s68, %s71
    %p80 = scmp.eq.s32.totalorder %s14, 3
    %p81 = por %p79, %p80
    %p82 = scmp.ne.s32.totalorder %s71, %s72
    %p83 = scmp.eq.s32.totalorder %s14, 0
    %p84 = por %p82, %p83
    %p85 = scmp.ne.s32.totalorder %s71, %s72
    %p86 = scmp.eq.s32.totalorder %s15, 3
    %p87 = por %p85, %p86
    %p89 = scmp.ne.s32.totalorder %s72, %s88
    %p90 = scmp.eq.s32.totalorder %s15, 0
    %p91 = por %p89, %p90
    %s92 = ssub.s32 %s17, %s31
    %p93 = scmp.eq.s32.totalorder %s92, 0
    %s95 = sadd.s32 %s94, 1
    %s96 = scalar_select %p93, %s94, %s95
    %p99 = pneg %p93
    %p100 = scmp.eq.s32.totalorder %s9, 3
    %p101 = por %p99, %p100
    %p102 = scmp.ne.s32.totalorder %s94, %s97
    %p103 = scmp.eq.s32.totalorder %s9, 0
    %p104 = por %p102, %p103
    %p105 = scmp.ne.s32.totalorder %s94, %s97
    %p106 = scmp.eq.s32.totalorder %s14, 3
    %p107 = por %p105, %p106
    %p108 = scmp.ne.s32.totalorder %s97, %s98
    %p109 = scmp.eq.s32.totalorder %s14, 0
    %p110 = por %p108, %p109
    %p111 = scmp.ne.s32.totalorder %s97, %s98
    %p112 = scmp.eq.s32.totalorder %s15, 3
    %p113 = por %p111, %p112
    %p115 = scmp.ne.s32.totalorder %s98, %s114
    %p116 = scmp.eq.s32.totalorder %s15, 0
    %p117 = por %p115, %p116
    %s118 = ssub.s32 %s16, %s35
    %s119 = ssub.s32 %s17, %s31
    %s120 = sor.u32 %s118, %s119
    %p121 = scmp.eq.s32.totalorder %s120, 0
    %s123 = sadd.s32 %s122, 1
    %s124 = scalar_select %p121, %s122, %s123
    %p127 = pneg %p121
    %p128 = scmp.eq.s32.totalorder %s9, 3
    %p129 = por %p127, %p128
    %p130 = scmp.ne.s32.totalorder %s122, %s125
    %p131 = scmp.eq.s32.totalorder %s9, 0
    %p132 = por %p130, %p131
    %p133 = scmp.ne.s32.totalorder %s122, %s125
    %p134 = scmp.eq.s32.totalorder %s14, 3
    %p135 = por %p133, %p134
    %p136 = scmp.ne.s32.totalorder %s125, %s126
    %p137 = scmp.eq.s32.totalorder %s14, 0
    %p138 = por %p136, %p137
    %p139 = scmp.ne.s32.totalorder %s125, %s126
    %p140 = scmp.eq.s32.totalorder %s15, 3
    %p141 = por %p139, %p140
    %p143 = scmp.ne.s32.totalorder %s126, %s142
    %p144 = scmp.eq.s32.totalorder %s15, 0
    %p145 = por %p143, %p144
    %p146 = scmp.le.s32.totalorder 1, %s9
    %p147 = scmp.lt.s32.totalorder %s9, 5
    %p148 = pnand %p146, %p147
    %p149 = pneg %p148
    // Predicated region
    $region9: #{_lambda_.27} parent=5 // pred_check
      _
    $region10: #{_lambda_.27} parent=5 // pred_check_branch
      %151 = sbr.rel (%p148) target = $region12
    $region11: #{_lambda_.27} parent=5 // pred_region
      %s152 = ssub.s32 %s9, 1
      // Predicated region
      $region13: #{_lambda_.27} parent=11 // pred_check
        %p153 = pneg %p84
      $region14: #{_lambda_.27} parent=11 // pred_check_branch
        %155 = sbr.rel (%p153) target = $region16
      $region15: #{_lambda_.27} parent=11 // pred_region
        %s156 = smul.u32 5, %s21
        %p157 = scmp.lt.s32.totalorder %s156, 4
        %s158 = scalar_select %p157, %s156, 4
        %p159 = scmp.lt.s32.totalorder %s20, 0
        %s160 = scalar_select %p159, %s20, 0
        %s161 = sadd.s32 %s160, %s158
        %s162 = smul.addr %s161, 4
        %s163 = scalar_lea.vmem %s1, %s162
        %s164 = smul.u32 5, %s21
      $region16: #{_lambda_.27} parent=11 // pred_fallthru
        _
      // Predicated region
      $region17: #{_lambda_.27} parent=11 // pred_check
        %p165 = pneg %p110
      $region18: #{_lambda_.27} parent=11 // pred_check_branch
        %167 = sbr.rel (%p165) target = $region20
      $region19: #{_lambda_.27} parent=11 // pred_region
        %p168 = scmp.lt.s32.totalorder %s20, 0
        %s169 = scalar_select %p168, %s20, 0
        %s170 = scalar_lea.vmem %s2, %s169
      $region20: #{_lambda_.27} parent=11 // pred_fallthru
        _
    $region12: #{_lambda_.27} parent=5 // pred_fallthru
      _
    %p171 = scmp.lt.s32.totalorder %s9, 4
    // Predicated region
    $region21: #{_lambda_.27} parent=5 // pred_check
      %p172 = pneg %p171
    $region22: #{_lambda_.27} parent=5 // pred_check_branch
      %174 = sbr.rel (%p172) target = $region24
    $region23: #{_lambda_.27} parent=5 // pred_region
      // Predicated region
      $region25: #{_lambda_.27} parent=23 // pred_check
        %p175 = pneg %p50
      $region26: #{_lambda_.27} parent=23 // pred_check_branch
        %177 = sbr.rel (%p175) target = $region28
      $region27: #{_lambda_.27} parent=23 // pred_region
        %s178 = smul.u32 16, %s16
        %p179 = scmp.lt.s32.totalorder %s178, 63
        %s180 = scalar_select %p179, %s178, 63
        %p181 = scmp.lt.s32.totalorder %s18, 0
        %s182 = scalar_select %p181, %s18, 0
        %s183 = sadd.s32 %s182, %s180
        %s184 = smul.addr %s183, 4
        %s185 = scalar_lea.vmem %s0, %s184
        %s186 = smul.u32 16, %s16
      $region28: #{_lambda_.27} parent=23 // pred_fallthru
        _
    $region24: #{_lambda_.27} parent=5 // pred_fallthru
      _
    %p187 = scmp.le.s32.totalorder 1, %s9
    %p188 = scmp.lt.s32.totalorder %s9, 5
    %p189 = pnand %p187, %p188
    %p190 = pneg %p189
    // Predicated region
    $region29: #{_lambda_.27} parent=5 // pred_check
      _
    $region30: #{_lambda_.27} parent=5 // pred_check_branch
      %192 = sbr.rel (%p189) target = $region32
    $region31: #{_lambda_.27} parent=5 // pred_region
      %s193 = ssub.s32 %s9, 1
      %s194 = smul.u32 16, %s19
      %p195 = scmp.lt.s32.totalorder %s194, 63
      %s196 = scalar_select %p195, %s194, 63
      %p197 = scmp.lt.s32.totalorder %s21, 0
      %s198 = scalar_select %p197, %s21, 0
      %s199 = sadd.s32 %s198, %s196
      %s200 = smul.addr %s199, 4
      %s201 = scalar_lea.vmem %s0, %s200
      %p202 = pneg %p56
      %p203 = pneg %p53
      %s204 = smul.u32 5, %s21
      %p205 = scmp.lt.s32.totalorder %s204, 4
      %s206 = scalar_select %p205, %s204, 4
      %p207 = scmp.lt.s32.totalorder %s20, 0
      %s208 = scalar_select %p207, %s20, 0
      %s209 = sadd.s32 %s208, %s206
      %s210 = smul.addr %s209, 4
      %s211 = scalar_lea.vmem %s1, %s210
      %p212 = pneg %p84
      %p213 = pneg %p81
      %p214 = scmp.lt.s32.totalorder %s20, 0
      %s215 = scalar_select %p214, %s20, 0
      %s216 = scalar_lea.vmem %s2, %s215
      %p217 = pneg %p110
      %p218 = pneg %p107
      %p219 = pneg %p138
      %p220 = pneg %p135
      %s221 = smul.u32 16, %s19
      %p222 = scmp.lt.s32.totalorder %s221, 63
      %s223 = scalar_select %p222, %s221, 63
      %p224 = scmp.lt.s32.totalorder %s20, 0
      %s225 = scalar_select %p224, %s20, 0
      %s226 = sadd.s32 %s225, %s223
      %s227 = smul.addr %s226, 8
      %s228 = scalar_lea.vmem %s3, %s227
      %s229 = smul.u32 16, %s19
      %p230 = scmp.lt.s32.totalorder %s229, 63
      %s231 = scalar_select %p230, %s229, 63
      %p232 = scmp.lt.s32.totalorder %s21, 0
      %s233 = scalar_select %p232, %s21, 0
      %s234 = sadd.s32 %s233, %s231
      %s235 = smul.addr %s234, 4
      %s236 = scalar_lea.vmem %s0, %s235
      %s237 = smul.u32 16, %s19
      %s238 = smul.u32 5, %s21
      %p239 = scmp.lt.s32.totalorder %s238, 4
      %s240 = scalar_select %p239, %s238, 4
      %p241 = scmp.lt.s32.totalorder %s20, 0
      %s242 = scalar_select %p241, %s20, 0
      %s243 = sadd.s32 %s242, %s240
      %s244 = smul.addr %s243, 4
      %s245 = scalar_lea.vmem %s1, %s244
      %s246 = smul.u32 5, %s21
      %p247 = scmp.lt.s32.totalorder %s20, 0
      %s248 = scalar_select %p247, %s20, 0
      %s249 = scalar_lea.vmem %s2, %s248
      %s250 = smul.u32 16, %s19
      %p251 = scmp.lt.s32.totalorder %s250, 63
      %s252 = scalar_select %p251, %s250, 63
      %p253 = scmp.lt.s32.totalorder %s20, 0
      %s254 = scalar_select %p253, %s20, 0
      %s255 = sadd.s32 %s254, %s252
      %s256 = smul.addr %s255, 8
      %s257 = scalar_lea.vmem %s3, %s256
      %s258 = smul.u32 16, %s19
      %p260 = scmp.eq.s32.totalorder %s21, 0
      // Predicated region
      $region33: #{_lambda_.27} parent=31 // pred_check
        %p261 = pneg %p260
      $region34: #{_lambda_.27} parent=31 // pred_check_branch
        %263 = sbr.rel (%p261) target = $region36
      $region35: #{_lambda_.27} parent=31 // pred_region
        %264 = vst [vmem:[#allocation2] sm:$0xff] 0.0
        %265 = vst [vmem:[#allocation2 + $0x8] sm:$0xff] 0.0
        %266 = vst [vmem:[#allocation2 + $0x10] sm:$0xff] 0.0
        %267 = vst [vmem:[#allocation2 + $0x18] sm:$0xff] 0.0
        %268 = vst [vmem:[#allocation2 + $0x20] sm:$0xff] 0.0
        %269 = vst [vmem:[#allocation2 + $0x28] sm:$0xff] 0.0
        %270 = vst [vmem:[#allocation2 + $0x30] sm:$0xff] 0.0
        %271 = vst [vmem:[#allocation2 + $0x38] sm:$0xff] 0.0
        %272 = vst [vmem:[#allocation2 + $0x40] sm:$0xff] 0.0
        %273 = vst [vmem:[#allocation2 + $0x48] sm:$0xff] 0.0
        %274 = vst [vmem:[#allocation2 + $0x50] sm:$0xff] 0.0
        %275 = vst [vmem:[#allocation2 + $0x58] sm:$0xff] 0.0
        %276 = vst [vmem:[#allocation2 + $0x60] sm:$0xff] 0.0
        %277 = vst [vmem:[#allocation2 + $0x68] sm:$0xff] 0.0
        %278 = vst [vmem:[#allocation2 + $0x70] sm:$0xff] 0.0
        %279 = vst [vmem:[#allocation2 + $0x78] sm:$0xff] 0.0
      $region36: #{_lambda_.27} parent=31 // pred_fallthru
        _
      %v280 = vld [vmem:[#allocation2] sm:$0xff]
      %v281 = vld [vmem:[#allocation2 + $0x8] sm:$0xff]
      %v282 = vld [vmem:[#allocation2 + $0x10] sm:$0xff]
      %v283 = vld [vmem:[#allocation2 + $0x18] sm:$0xff]
      %v284 = vld [vmem:[#allocation2 + $0x20] sm:$0xff]
      %v285 = vld [vmem:[#allocation2 + $0x28] sm:$0xff]
      %v286 = vld [vmem:[#allocation2 + $0x30] sm:$0xff]
      %v287 = vld [vmem:[#allocation2 + $0x38] sm:$0xff]
      %v288 = vld [vmem:[#allocation2 + $0x40] sm:$0xff]
      %v289 = vld [vmem:[#allocation2 + $0x48] sm:$0xff]
      %v290 = vld [vmem:[#allocation2 + $0x50] sm:$0xff]
      %v291 = vld [vmem:[#allocation2 + $0x58] sm:$0xff]
      %v292 = vld [vmem:[#allocation2 + $0x60] sm:$0xff]
      %v293 = vld [vmem:[#allocation2 + $0x68] sm:$0xff]
      %v294 = vld [vmem:[#allocation2 + $0x70] sm:$0xff]
      %v295 = vld [vmem:[#allocation2 + $0x78] sm:$0xff]
      %v296 = vld [vmem:[%s236] sm:$0xf]
      %v297 = vld [vmem:[%s236 + $0x4] sm:$0xf]
      %v298 = vld [vmem:[%s236 + $0x8] sm:$0xf]
      %v299 = vld [vmem:[%s236 + $0xc] sm:$0xf]
      %v300 = vld [vmem:[%s236 + $0x10] sm:$0xf]
      %v301 = vld [vmem:[%s236 + $0x14] sm:$0xf]
      %v302 = vld [vmem:[%s236 + $0x18] sm:$0xf]
      %v303 = vld [vmem:[%s236 + $0x1c] sm:$0xf]
      %v304 = vld [vmem:[%s236 + $0x20] sm:$0xf]
      %v305 = vld [vmem:[%s236 + $0x24] sm:$0xf]
      %v306 = vld [vmem:[%s236 + $0x28] sm:$0xf]
      %v307 = vld [vmem:[%s236 + $0x2c] sm:$0xf]
      %v308 = vld [vmem:[%s236 + $0x30] sm:$0xf]
      %v309 = vld [vmem:[%s236 + $0x34] sm:$0xf]
      %v310 = vld [vmem:[%s236 + $0x38] sm:$0xf]
      %v311 = vld [vmem:[%s236 + $0x3c] sm:$0xf]
      %v312 = vld [vmem:[%s245] sm:$0xf]
      %v313 = vld [vmem:[%s245 + $0x4] sm:$0xf]
      %v314 = vld [vmem:[%s245 + $0x8] sm:$0xf]
      %v315 = vld [vmem:[%s245 + $0xc] sm:$0xf]
      %v316 = vld [vmem:[%s245 + $0x10] sm:$0x3]
      %v333 = vunpack.c.l.b16 %v296
      %v334 = vunpack.c.l.b16 %v297
      %v335 = vunpack.c.l.b16 %v298
      %v336 = vunpack.c.l.b16 %v299
      %v337 = vunpack.c.l.b16 %v300
      %v338 = vunpack.c.l.b16 %v301
      %v339 = vunpack.c.l.b16 %v302
      %v340 = vunpack.c.l.b16 %v303
      %v341 = vunpack.c.l.b16 %v304
      %v342 = vunpack.c.l.b16 %v305
      %v343 = vunpack.c.l.b16 %v306
      %v344 = vunpack.c.l.b16 %v307
      %v345 = vunpack.c.l.b16 %v308
      %v346 = vunpack.c.l.b16 %v309
      %v347 = vunpack.c.l.b16 %v310
      %v348 = vunpack.c.l.b16 %v311
      %v349 = vpack.c.b16 %v334, %v333
      %v350 = vpack.c.b16 %v336, %v335
      %v351 = vpack.c.b16 %v338, %v337
      %v352 = vpack.c.b16 %v340, %v339
      %v353 = vpack.c.b16 %v342, %v341
      %v354 = vpack.c.b16 %v344, %v343
      %v355 = vpack.c.b16 %v346, %v345
      %v356 = vpack.c.b16 %v348, %v347
      %v362 = vunpack.c.l.b16 %v312
      %v363 = vunpack.c.l.b16 %v313
      %v364 = vunpack.c.l.b16 %v314
      %v365 = vunpack.c.l.b16 %v315
      %v366 = vunpack.c.l.b16 %v316
      %v367 = vpack.c.b16 %v363, %v362
      %v368 = vpack.c.b16 %v365, %v364
      %v369 = vpack.c.b16 %v366, %v366
      %vm372 = vcmask 293888
      %v374 = vsel %vm372, %v349, 0
      %v377 = vsel %vm372, %v350, 0
      %v380 = vsel %vm372, %v351, 0
      %v383 = vsel %vm372, %v352, 0
      %v386 = vsel %vm372, %v353, 0
      %v389 = vsel %vm372, %v354, 0
      %v392 = vsel %vm372, %v355, 0
      %v395 = vsel %vm372, %v356, 0
      %vm397 = vcmask 1041408
      %v399 = vsel %vm397, %v369, 0
      %401 = vmatprep.subr.bf16.mxu0 0
      %402 = vmatpush1.bf16.msra.mxu0 0
      %403 = vmatprep.subr.bf16.mxu0 0
      %404 = vmatpush1.bf16.msra.mxu0 0
      %405 = vmatprep.subr.bf16.mxu0 0
      %406 = vmatpush1.bf16.msra.mxu0 0
      %407 = vmatprep.subr.bf16.mxu0 0
      %408 = vmatpush1.bf16.msra.mxu0 0
      %409 = vmatprep.subr.bf16.mxu0 0
      %410 = vmatpush1.bf16.msra.mxu0 0
      %411 = vmatprep.subr.bf16.mxu0 0
      %412 = vmatpush1.bf16.msra.mxu0 %v399
      %413 = vmatprep.subr.bf16.mxu0 0
      %414 = vmatpush1.bf16.msra.mxu0 %v368
      %415 = vmatprep.subr.bf16.mxu0 0
      %416 = vmatpush1.bf16.msra.mxu0 %v367
      %417 = vmatprep.subr.bf16.mxu0 0
      %418 = vmatpush2.bf16.msra.mxu0 0
      %419 = vmatprep.subr.bf16.mxu0 0
      %420 = vmatpush2.bf16.msra.mxu0 0
      %421 = vmatprep.subr.bf16.mxu0 0
      %422 = vmatpush2.bf16.msra.mxu0 0
      %423 = vmatprep.subr.bf16.mxu0 0
      %424 = vmatpush2.bf16.msra.mxu0 0
      %425 = vmatprep.subr.bf16.mxu0 0
      %426 = vmatpush2.bf16.msra.mxu0 0
      %427 = vmatprep.subr.bf16.mxu0 0
      %428 = vmatpush2.bf16.msra.mxu0 0
      %429 = vmatprep.subr.bf16.mxu0 0
      %430 = vmatpush2.bf16.msra.mxu0 0
      %431 = vmatprep.subr.bf16.mxu0 0
      %432 = vmatpush2.bf16.msra.mxu0 0
      %433 = vmatprep.mubr.bf16.mxu0 0
      %434 = vmatmul.mubr.bf16.gmra.mxu0 %v374
      %v435 = vpop.f32.mrf.mxu0
      %v436 = vadd.f32 0.0, %v435
      %v437 = vpop.f32.mrf.mxu0
      %v438 = vpop.f32.mrf.mxu0
      %v439 = vadd.f32 0.0, %v438
      %v440 = vpop.f32.mrf.mxu0
      %441 = vmatprep.mubr.bf16.mxu0 0
      %442 = vmatmul.mubr.bf16.gmra.mxu0 %v377
      %v443 = vpop.f32.mrf.mxu0
      %v444 = vadd.f32 0.0, %v443
      %v445 = vpop.f32.mrf.mxu0
      %v446 = vpop.f32.mrf.mxu0
      %v447 = vadd.f32 0.0, %v446
      %v448 = vpop.f32.mrf.mxu0
      %449 = vmatprep.mubr.bf16.mxu0 0
      %450 = vmatmul.mubr.bf16.gmra.mxu0 %v380
      %v451 = vpop.f32.mrf.mxu0
      %v452 = vadd.f32 0.0, %v451
      %v453 = vpop.f32.mrf.mxu0
      %v454 = vpop.f32.mrf.mxu0
      %v455 = vadd.f32 0.0, %v454
      %v456 = vpop.f32.mrf.mxu0
      %457 = vmatprep.mubr.bf16.mxu0 0
      %458 = vmatmul.mubr.bf16.gmra.mxu0 %v383
      %v459 = vpop.f32.mrf.mxu0
      %v460 = vadd.f32 0.0, %v459
      %v461 = vpop.f32.mrf.mxu0
      %v462 = vpop.f32.mrf.mxu0
      %v463 = vadd.f32 0.0, %v462
      %v464 = vpop.f32.mrf.mxu0
      %465 = vmatprep.mubr.bf16.mxu0 0
      %466 = vmatmul.mubr.bf16.gmra.mxu0 %v386
      %v467 = vpop.f32.mrf.mxu0
      %v468 = vadd.f32 0.0, %v467
      %v469 = vpop.f32.mrf.mxu0
      %v470 = vpop.f32.mrf.mxu0
      %v471 = vadd.f32 0.0, %v470
      %v472 = vpop.f32.mrf.mxu0
      %473 = vmatprep.mubr.bf16.mxu0 0
      %474 = vmatmul.mubr.bf16.gmra.mxu0 %v389
      %v475 = vpop.f32.mrf.mxu0
      %v476 = vadd.f32 0.0, %v475
      %v477 = vpop.f32.mrf.mxu0
      %v478 = vpop.f32.mrf.mxu0
      %v479 = vadd.f32 0.0, %v478
      %v480 = vpop.f32.mrf.mxu0
      %481 = vmatprep.mubr.bf16.mxu0 0
      %482 = vmatmul.mubr.bf16.gmra.mxu0 %v392
      %v483 = vpop.f32.mrf.mxu0
      %v484 = vadd.f32 0.0, %v483
      %v485 = vpop.f32.mrf.mxu0
      %v486 = vpop.f32.mrf.mxu0
      %v487 = vadd.f32 0.0, %v486
      %v488 = vpop.f32.mrf.mxu0
      %489 = vmatprep.mubr.bf16.mxu0 0
      %490 = vmatmul.mubr.bf16.gmra.mxu0 %v395
      %v491 = vpop.f32.mrf.mxu0
      %v492 = vadd.f32 0.0, %v491
      %v493 = vpop.f32.mrf.mxu0
      %v494 = vpop.f32.mrf.mxu0
      %v495 = vadd.f32 0.0, %v494
      %v496 = vpop.f32.mrf.mxu0
      %497 = vdwg.mxu0
      %v498 = vadd.f32 %v280, %v436
      %v499 = vadd.f32 %v281, %v439
      %v500 = vadd.f32 %v282, %v444
      %v501 = vadd.f32 %v283, %v447
      %v502 = vadd.f32 %v284, %v452
      %v503 = vadd.f32 %v285, %v455
      %v504 = vadd.f32 %v286, %v460
      %v505 = vadd.f32 %v287, %v463
      %v506 = vadd.f32 %v288, %v468
      %v507 = vadd.f32 %v289, %v471
      %v508 = vadd.f32 %v290, %v476
      %v509 = vadd.f32 %v291, %v479
      %v510 = vadd.f32 %v292, %v484
      %v511 = vadd.f32 %v293, %v487
      %v512 = vadd.f32 %v294, %v492
      %v513 = vadd.f32 %v295, %v495
      %514 = vst [vmem:[#allocation2] sm:$0xff] %v498
      %515 = vst [vmem:[#allocation2 + $0x8] sm:$0xff] %v499
      %516 = vst [vmem:[#allocation2 + $0x10] sm:$0xff] %v500
      %517 = vst [vmem:[#allocation2 + $0x18] sm:$0xff] %v501
      %518 = vst [vmem:[#allocation2 + $0x20] sm:$0xff] %v502
      %519 = vst [vmem:[#allocation2 + $0x28] sm:$0xff] %v503
      %520 = vst [vmem:[#allocation2 + $0x30] sm:$0xff] %v504
      %521 = vst [vmem:[#allocation2 + $0x38] sm:$0xff] %v505
      %522 = vst [vmem:[#allocation2 + $0x40] sm:$0xff] %v506
      %523 = vst [vmem:[#allocation2 + $0x48] sm:$0xff] %v507
      %524 = vst [vmem:[#allocation2 + $0x50] sm:$0xff] %v508
      %525 = vst [vmem:[#allocation2 + $0x58] sm:$0xff] %v509
      %526 = vst [vmem:[#allocation2 + $0x60] sm:$0xff] %v510
      %527 = vst [vmem:[#allocation2 + $0x68] sm:$0xff] %v511
      %528 = vst [vmem:[#allocation2 + $0x70] sm:$0xff] %v512
      %529 = vst [vmem:[#allocation2 + $0x78] sm:$0xff] %v513
      // Predicated region
      $region37: #{_lambda_.27} parent=31 // pred_check
        %p530 = pneg %p260
      $region38: #{_lambda_.27} parent=31 // pred_check_branch
        %532 = sbr.rel (%p530) target = $region40
      $region39: #{_lambda_.27} parent=31 // pred_region
        %v533 = vld [vmem:[#allocation2] sm:$0xff]
        %v534 = vld [vmem:[#allocation2 + $0x8] sm:$0xff]
        %v535 = vld [vmem:[#allocation2 + $0x10] sm:$0xff]
        %v536 = vld [vmem:[#allocation2 + $0x18] sm:$0xff]
        %v537 = vld [vmem:[#allocation2 + $0x20] sm:$0xff]
        %v538 = vld [vmem:[#allocation2 + $0x28] sm:$0xff]
        %v539 = vld [vmem:[#allocation2 + $0x30] sm:$0xff]
        %v540 = vld [vmem:[#allocation2 + $0x38] sm:$0xff]
        %v541 = vld [vmem:[#allocation2 + $0x40] sm:$0xff]
        %v542 = vld [vmem:[#allocation2 + $0x48] sm:$0xff]
        %v543 = vld [vmem:[#allocation2 + $0x50] sm:$0xff]
        %v544 = vld [vmem:[#allocation2 + $0x58] sm:$0xff]
        %v545 = vld [vmem:[#allocation2 + $0x60] sm:$0xff]
        %v546 = vld [vmem:[#allocation2 + $0x68] sm:$0xff]
        %v547 = vld [vmem:[#allocation2 + $0x70] sm:$0xff]
        %v548 = vld [vmem:[#allocation2 + $0x78] sm:$0xff]
        %v549 = vld [vmem:[%s249] sm:$0x1]
        %v551 = vlaneseq
        %v552 = vshrl.u32 %v551, 7
        %v553 = vsub.s32 0, %v552
        %v554 = vrot.slane %v549, %v553
        %v556 = vadd.f32 %v533, %v554
        %v557 = vadd.f32 %v534, %v554
        %v558 = vadd.f32 %v535, %v554
        %v559 = vadd.f32 %v536, %v554
        %v560 = vadd.f32 %v537, %v554
        %v561 = vadd.f32 %v538, %v554
        %v562 = vadd.f32 %v539, %v554
        %v563 = vadd.f32 %v540, %v554
        %v564 = vadd.f32 %v541, %v554
        %v565 = vadd.f32 %v542, %v554
        %v566 = vadd.f32 %v543, %v554
        %v567 = vadd.f32 %v544, %v554
        %v568 = vadd.f32 %v545, %v554
        %v569 = vadd.f32 %v546, %v554
        %v570 = vadd.f32 %v547, %v554
        %v571 = vadd.f32 %v548, %v554
        %v572 = vsub.f32 0.0, %v556
        %v573 = vsub.f32 0.0, %v557
        %v574 = vsub.f32 0.0, %v558
        %v575 = vsub.f32 0.0, %v559
        %v576 = vsub.f32 0.0, %v560
        %v577 = vsub.f32 0.0, %v561
        %v578 = vsub.f32 0.0, %v562
        %v579 = vsub.f32 0.0, %v563
        %v580 = vsub.f32 0.0, %v564
        %v581 = vsub.f32 0.0, %v565
        %v582 = vsub.f32 0.0, %v566
        %v583 = vsub.f32 0.0, %v567
        %v584 = vsub.f32 0.0, %v568
        %v585 = vsub.f32 0.0, %v569
        %v586 = vsub.f32 0.0, %v570
        %v587 = vsub.f32 0.0, %v571
        %v588 = vmul.f32 %v572, 1.442695
        %v589 = vpow.pop %v588
        %v590 = vmul.f32 %v573, 1.442695
        %v591 = vpow.pop %v590
        %v592 = vmul.f32 %v574, 1.442695
        %v593 = vpow.pop %v592
        %v594 = vmul.f32 %v575, 1.442695
        %v595 = vpow.pop %v594
        %v596 = vmul.f32 %v576, 1.442695
        %v597 = vpow.pop %v596
        %v598 = vmul.f32 %v577, 1.442695
        %v599 = vpow.pop %v598
        %v600 = vmul.f32 %v578, 1.442695
        %v601 = vpow.pop %v600
        %v602 = vmul.f32 %v579, 1.442695
        %v603 = vpow.pop %v602
        %v604 = vmul.f32 %v580, 1.442695
        %v605 = vpow.pop %v604
        %v606 = vmul.f32 %v581, 1.442695
        %v607 = vpow.pop %v606
        %v608 = vmul.f32 %v582, 1.442695
        %v609 = vpow.pop %v608
        %v610 = vmul.f32 %v583, 1.442695
        %v611 = vpow.pop %v610
        %v612 = vmul.f32 %v584, 1.442695
        %v613 = vpow.pop %v612
        %v614 = vmul.f32 %v585, 1.442695
        %v615 = vpow.pop %v614
        %v616 = vmul.f32 %v586, 1.442695
        %v617 = vpow.pop %v616
        %v618 = vmul.f32 %v587, 1.442695
        %v619 = vpow.pop %v618
        %v620 = vadd.f32 %v589, 1.0
        %v621 = vadd.f32 %v591, 1.0
        %v622 = vadd.f32 %v593, 1.0
        %v623 = vadd.f32 %v595, 1.0
        %v624 = vadd.f32 %v597, 1.0
        %v625 = vadd.f32 %v599, 1.0
        %v626 = vadd.f32 %v601, 1.0
        %v627 = vadd.f32 %v603, 1.0
        %v628 = vadd.f32 %v605, 1.0
        %v629 = vadd.f32 %v607, 1.0
        %v630 = vadd.f32 %v609, 1.0
        %v631 = vadd.f32 %v611, 1.0
        %v632 = vadd.f32 %v613, 1.0
        %v633 = vadd.f32 %v615, 1.0
        %v634 = vadd.f32 %v617, 1.0
        %v635 = vadd.f32 %v619, 1.0
        %v636 = vrcp.pop %v620
        %v637 = vrcp.pop %v621
        %v638 = vrcp.pop %v622
        %v639 = vrcp.pop %v623
        %v640 = vrcp.pop %v624
        %v641 = vrcp.pop %v625
        %v642 = vrcp.pop %v626
        %v643 = vrcp.pop %v627
        %v644 = vrcp.pop %v628
        %v645 = vrcp.pop %v629
        %v646 = vrcp.pop %v630
        %v647 = vrcp.pop %v631
        %v648 = vrcp.pop %v632
        %v649 = vrcp.pop %v633
        %v650 = vrcp.pop %v634
        %v651 = vrcp.pop %v635
        %v652 = vmul.f32 %v556, %v636
        %v653 = vmul.f32 %v557, %v637
        %v654 = vmul.f32 %v558, %v638
        %v655 = vmul.f32 %v559, %v639
        %v656 = vmul.f32 %v560, %v640
        %v657 = vmul.f32 %v561, %v641
        %v658 = vmul.f32 %v562, %v642
        %v659 = vmul.f32 %v563, %v643
        %v660 = vmul.f32 %v564, %v644
        %v661 = vmul.f32 %v565, %v645
        %v662 = vmul.f32 %v566, %v646
        %v663 = vmul.f32 %v567, %v647
        %v664 = vmul.f32 %v568, %v648
        %v665 = vmul.f32 %v569, %v649
        %v666 = vmul.f32 %v570, %v650
        %v667 = vmul.f32 %v571, %v651
        %668 = vst [vmem:[%s257] sm:$0xff] %v652
        %669 = vst [vmem:[%s257 + $0x8] sm:$0xff] %v653
        %670 = vst [vmem:[%s257 + $0x10] sm:$0xff] %v654
        %671 = vst [vmem:[%s257 + $0x18] sm:$0xff] %v655
        %672 = vst [vmem:[%s257 + $0x20] sm:$0xff] %v656
        %673 = vst [vmem:[%s257 + $0x28] sm:$0xff] %v657
        %674 = vst [vmem:[%s257 + $0x30] sm:$0xff] %v658
        %675 = vst [vmem:[%s257 + $0x38] sm:$0xff] %v659
        %676 = vst [vmem:[%s257 + $0x40] sm:$0xff] %v660
        %677 = vst [vmem:[%s257 + $0x48] sm:$0xff] %v661
        %678 = vst [vmem:[%s257 + $0x50] sm:$0xff] %v662
        %679 = vst [vmem:[%s257 + $0x58] sm:$0xff] %v663
        %680 = vst [vmem:[%s257 + $0x60] sm:$0xff] %v664
        %681 = vst [vmem:[%s257 + $0x68] sm:$0xff] %v665
        %682 = vst [vmem:[%s257 + $0x70] sm:$0xff] %v666
        %683 = vst [vmem:[%s257 + $0x78] sm:$0xff] %v667
      $region40: #{_lambda_.27} parent=31 // pred_fallthru
        _
      %s684 = smul.u32 16, %s19
      %p685 = scmp.lt.s32.totalorder %s684, 63
      %s686 = scalar_select %p685, %s684, 63
      %p687 = scmp.lt.s32.totalorder %s20, 0
      %s688 = scalar_select %p687, %s20, 0
      %s689 = sadd.s32 %s688, %s686
      %s690 = smul.addr %s689, 8
      %s691 = scalar_lea.vmem %s3, %s690
      // Predicated region
      $region41: #{_lambda_.27} parent=31 // pred_check
        %p692 = pneg %p135
      $region42: #{_lambda_.27} parent=31 // pred_check_branch
        %694 = sbr.rel (%p692) target = $region44
      $region43: #{_lambda_.27} parent=31 // pred_region
        %s695 = smul.u32 16, %s19
      $region44: #{_lambda_.27} parent=31 // pred_fallthru
        _
    $region32: #{_lambda_.27} parent=5 // pred_fallthru
      _
    %p696 = scmp.le.s32.totalorder 2, %s9
    // Predicated region
    $region45: #{_lambda_.27} parent=5 // pred_check
      %p697 = pneg %p696
    $region46: #{_lambda_.27} parent=5 // pred_check_branch
      %699 = sbr.rel (%p697) target = $region48
    $region47: #{_lambda_.27} parent=5 // pred_region
      %s700 = ssub.s32 %s9, 2
      // Predicated region
      $region49: #{_lambda_.27} parent=47 // pred_check
        %p701 = pneg %p141
      $region50: #{_lambda_.27} parent=47 // pred_check_branch
        %703 = sbr.rel (%p701) target = $region52
      $region51: #{_lambda_.27} parent=47 // pred_region
        %s704 = smul.u32 16, %s22
        %p705 = scmp.lt.s32.totalorder %s704, 63
        %s706 = scalar_select %p705, %s704, 63
        %p707 = scmp.lt.s32.totalorder %s23, 0
        %s708 = scalar_select %p707, %s23, 0
        %s709 = sadd.s32 %s708, %s706
        %s710 = smul.addr %s709, 8
        %s711 = scalar_lea.vmem %s3, %s710
      $region52: #{_lambda_.27} parent=47 // pred_fallthru
        _
    $region48: #{_lambda_.27} parent=5 // pred_fallthru
      _
  $region6: #{_lambda_.27} parent=0 // loop_footer
    %s13 = sadd.s32 1, %s9
  $region7: #{_lambda_.27} parent=0 // loop_footer_branch
    %8 = sbr.rel target = $region3
  $region8: #{_lambda_.27} parent=0 // loop_exit
    _

// kernel: _lambda_.29
$region0: #{_lambda_.29}
  #allocation0 [shape = 'u32[]', space=smem, size = 0x4, offset = 0x4, fixed_abs, tag = 'smem constant byte address 0x4 - core index']
  #allocation1 [shape = 'u32[144,128]{1,0:T(1,128)}', space=vmem, size = 0x12000, scoped, tag = 'internal scratch']
  %s0 = inlined_call_operand.vmem [shape: bf16[512,8], index: 0, kind: input, shape index: {}]
  %s1 = inlined_call_operand.vmem [shape: bf16[512,4], index: 1, kind: input, shape index: {}]
  %s2 = inlined_call_operand.vmem [shape: bf16[8,128], index: 2, kind: input, shape index: {}]
  %s3 = inlined_call_operand.vmem [shape: bf16[4,128], index: 3, kind: input, shape index: {}]
  %s4 = inlined_call_operand.vmem [shape: f32[1,128], index: 4, kind: input, shape index: {}]
  %s5 = inlined_call_operand.vmem [shape: f32[512,128], index: 5, kind: output, shape index: {}]
  %s6 = sld [smem:[#allocation0]]
  $region53: #{_lambda_.29} parent=0
    _
  %s8 = ssub.s32 1, %s6
  %s9 = scalar_select 0, %s8, %s6
  loop: start=0, step=1, limit=6
  $region2: #{_lambda_.29} parent=0 // loop_pre_header
    _
  $region3: #{_lambda_.29} parent=0 // loop_header
    %s11 = sphi 0, %s15
    %p12 = scmp.ge.s32.totalorder %s11, 6
    %s18 = sphi 0, %s30
    %s19 = sphi 0, %s26
    %s20 = sphi 0, %s18
    %s21 = sphi 0, %s19
    %s22 = sphi 0, %s20
    %s23 = sphi 0, %s21
    %s33 = sphi 0, %s35
    %s36 = sphi 0, %s33
    %s37 = sphi 0, %s36
    %s53 = sphi 0, %s37
    %s59 = sphi 0, %s61
    %s62 = sphi 0, %s59
    %s63 = sphi 0, %s62
    %s79 = sphi 0, %s63
    %s85 = sphi 0, %s87
    %s88 = sphi 0, %s85
    %s89 = sphi 0, %s88
    %s105 = sphi 0, %s89
    %s111 = sphi 0, %s113
    %s114 = sphi 0, %s111
    %s115 = sphi 0, %s114
    %s131 = sphi 0, %s115
    %s137 = sphi 0, %s139
    %s140 = sphi 0, %s137
    %s141 = sphi 0, %s140
    %s157 = sphi 0, %s141
    %s165 = sphi 0, %s167
    %s168 = sphi 0, %s165
    %s169 = sphi 0, %s168
    %s185 = sphi 0, %s169
  $region4: #{_lambda_.29} parent=0 // loop_header_branch
    %14 = sbr.rel (%p12) target = $region8
  $region5: #{_lambda_.29} parent=0 // loop_body
    %s16 = ssub.s32 %s11, 1
    %s17 = ssub.s32 %s11, 2
    %s24 = sadd.s32 1, %s19
    %p25 = scmp.ge.s32.totalorder %s24, 1
    %s26 = scalar_select %p25, 0, %s24
    %s27 = sadd.s32 1, %s18
    %s28 = scalar_select %p25, %s27, %s18
    %p29 = scmp.ge.s32.totalorder %s28, 4
    %s30 = scalar_select %p29, 0, %s28
    %s31 = ssub.s32 %s18, %s30
    %p32 = scmp.eq.s32.totalorder %s31, 0
    %s34 = sadd.s32 %s33, 1
    %s35 = scalar_select %p32, %s33, %s34
    %p38 = pneg %p32
    %p39 = scmp.eq.s32.totalorder %s11, 3
    %p40 = por %p38, %p39
    %p41 = scmp.ne.s32.totalorder %s33, %s36
    %p42 = scmp.eq.s32.totalorder %s11, 0
    %p43 = por %p41, %p42
    %p44 = scmp.ne.s32.totalorder %s33, %s36
    %p45 = scmp.eq.s32.totalorder %s16, 3
    %p46 = por %p44, %p45
    %p47 = scmp.ne.s32.totalorder %s36, %s37
    %p48 = scmp.eq.s32.totalorder %s16, 0
    %p49 = por %p47, %p48
    %p50 = scmp.ne.s32.totalorder %s36, %s37
    %p51 = scmp.eq.s32.totalorder %s17, 3
    %p52 = por %p50, %p51
    %p54 = scmp.ne.s32.totalorder %s37, %s53
    %p55 = scmp.eq.s32.totalorder %s17, 0
    %p56 = por %p54, %p55
    %s57 = ssub.s32 %s18, %s30
    %p58 = scmp.eq.s32.totalorder %s57, 0
    %s60 = sadd.s32 %s59, 1
    %s61 = scalar_select %p58, %s59, %s60
    %p64 = pneg %p58
    %p65 = scmp.eq.s32.totalorder %s11, 3
    %p66 = por %p64, %p65
    %p67 = scmp.ne.s32.totalorder %s59, %s62
    %p68 = scmp.eq.s32.totalorder %s11, 0
    %p69 = por %p67, %p68
    %p70 = scmp.ne.s32.totalorder %s59, %s62
    %p71 = scmp.eq.s32.totalorder %s16, 3
    %p72 = por %p70, %p71
    %p73 = scmp.ne.s32.totalorder %s62, %s63
    %p74 = scmp.eq.s32.totalorder %s16, 0
    %p75 = por %p73, %p74
    %p76 = scmp.ne.s32.totalorder %s62, %s63
    %p77 = scmp.eq.s32.totalorder %s17, 3
    %p78 = por %p76, %p77
    %p80 = scmp.ne.s32.totalorder %s63, %s79
    %p81 = scmp.eq.s32.totalorder %s17, 0
    %p82 = por %p80, %p81
    %s83 = ssub.s32 %s19, %s26
    %p84 = scmp.eq.s32.totalorder %s83, 0
    %s86 = sadd.s32 %s85, 1
    %s87 = scalar_select %p84, %s85, %s86
    %p90 = pneg %p84
    %p91 = scmp.eq.s32.totalorder %s11, 3
    %p92 = por %p90, %p91
    %p93 = scmp.ne.s32.totalorder %s85, %s88
    %p94 = scmp.eq.s32.totalorder %s11, 0
    %p95 = por %p93, %p94
    %p96 = scmp.ne.s32.totalorder %s85, %s88
    %p97 = scmp.eq.s32.totalorder %s16, 3
    %p98 = por %p96, %p97
    %p99 = scmp.ne.s32.totalorder %s88, %s89
    %p100 = scmp.eq.s32.totalorder %s16, 0
    %p101 = por %p99, %p100
    %p102 = scmp.ne.s32.totalorder %s88, %s89
    %p103 = scmp.eq.s32.totalorder %s17, 3
    %p104 = por %p102, %p103
    %p106 = scmp.ne.s32.totalorder %s89, %s105
    %p107 = scmp.eq.s32.totalorder %s17, 0
    %p108 = por %p106, %p107
    %s109 = ssub.s32 %s19, %s26
    %p110 = scmp.eq.s32.totalorder %s109, 0
    %s112 = sadd.s32 %s111, 1
    %s113 = scalar_select %p110, %s111, %s112
    %p116 = pneg %p110
    %p117 = scmp.eq.s32.totalorder %s11, 3
    %p118 = por %p116, %p117
    %p119 = scmp.ne.s32.totalorder %s111, %s114
    %p120 = scmp.eq.s32.totalorder %s11, 0
    %p121 = por %p119, %p120
    %p122 = scmp.ne.s32.totalorder %s111, %s114
    %p123 = scmp.eq.s32.totalorder %s16, 3
    %p124 = por %p122, %p123
    %p125 = scmp.ne.s32.totalorder %s114, %s115
    %p126 = scmp.eq.s32.totalorder %s16, 0
    %p127 = por %p125, %p126
    %p128 = scmp.ne.s32.totalorder %s114, %s115
    %p129 = scmp.eq.s32.totalorder %s17, 3
    %p130 = por %p128, %p129
    %p132 = scmp.ne.s32.totalorder %s115, %s131
    %p133 = scmp.eq.s32.totalorder %s17, 0
    %p134 = por %p132, %p133
    %s135 = ssub.s32 %s19, %s26
    %p136 = scmp.eq.s32.totalorder %s135, 0
    %s138 = sadd.s32 %s137, 1
    %s139 = scalar_select %p136, %s137, %s138
    %p142 = pneg %p136
    %p143 = scmp.eq.s32.totalorder %s11, 3
    %p144 = por %p142, %p143
    %p145 = scmp.ne.s32.totalorder %s137, %s140
    %p146 = scmp.eq.s32.totalorder %s11, 0
    %p147 = por %p145, %p146
    %p148 = scmp.ne.s32.totalorder %s137, %s140
    %p149 = scmp.eq.s32.totalorder %s16, 3
    %p150 = por %p148, %p149
    %p151 = scmp.ne.s32.totalorder %s140, %s141
    %p152 = scmp.eq.s32.totalorder %s16, 0
    %p153 = por %p151, %p152
    %p154 = scmp.ne.s32.totalorder %s140, %s141
    %p155 = scmp.eq.s32.totalorder %s17, 3
    %p156 = por %p154, %p155
    %p158 = scmp.ne.s32.totalorder %s141, %s157
    %p159 = scmp.eq.s32.totalorder %s17, 0
    %p160 = por %p158, %p159
    %s161 = ssub.s32 %s18, %s30
    %s162 = ssub.s32 %s19, %s26
    %s163 = sor.u32 %s161, %s162
    %p164 = scmp.eq.s32.totalorder %s163, 0
    %s166 = sadd.s32 %s165, 1
    %s167 = scalar_select %p164, %s165, %s166
    %p170 = pneg %p164
    %p171 = scmp.eq.s32.totalorder %s11, 3
    %p172 = por %p170, %p171
    %p173 = scmp.ne.s32.totalorder %s165, %s168
    %p174 = scmp.eq.s32.totalorder %s11, 0
    %p175 = por %p173, %p174
    %p176 = scmp.ne.s32.totalorder %s165, %s168
    %p177 = scmp.eq.s32.totalorder %s16, 3
    %p178 = por %p176, %p177
    %p179 = scmp.ne.s32.totalorder %s168, %s169
    %p180 = scmp.eq.s32.totalorder %s16, 0
    %p181 = por %p179, %p180
    %p182 = scmp.ne.s32.totalorder %s168, %s169
    %p183 = scmp.eq.s32.totalorder %s17, 3
    %p184 = por %p182, %p183
    %p186 = scmp.ne.s32.totalorder %s169, %s185
    %p187 = scmp.eq.s32.totalorder %s17, 0
    %p188 = por %p186, %p187
    %p189 = scmp.le.s32.totalorder 1, %s11
    %p190 = scmp.lt.s32.totalorder %s11, 5
    %p191 = pnand %p189, %p190
    %p192 = pneg %p191
    // Predicated region
    $region9: #{_lambda_.29} parent=5 // pred_check
      _
    $region10: #{_lambda_.29} parent=5 // pred_check_branch
      %194 = sbr.rel (%p191) target = $region12
    $region11: #{_lambda_.29} parent=5 // pred_region
      %s195 = ssub.s32 %s11, 1
      // Predicated region
      $region13: #{_lambda_.29} parent=11 // pred_check
        %p196 = pneg %p101
      $region14: #{_lambda_.29} parent=11 // pred_check_branch
        %198 = sbr.rel (%p196) target = $region16
      $region15: #{_lambda_.29} parent=11 // pred_region
        %p199 = scmp.lt.s32.totalorder %s21, 0
        %s200 = scalar_select %p199, %s21, 0
        %s201 = smul.addr %s200, 4
        %s202 = scalar_lea.vmem %s2, %s201
      $region16: #{_lambda_.29} parent=11 // pred_fallthru
        _
      // Predicated region
      $region17: #{_lambda_.29} parent=11 // pred_check
        %p203 = pneg %p127
      $region18: #{_lambda_.29} parent=11 // pred_check_branch
        %205 = sbr.rel (%p203) target = $region20
      $region19: #{_lambda_.29} parent=11 // pred_region
        %p206 = scmp.lt.s32.totalorder %s21, 0
        %s207 = scalar_select %p206, %s21, 0
        %s208 = smul.addr %s207, 2
        %s209 = scalar_lea.vmem %s3, %s208
      $region20: #{_lambda_.29} parent=11 // pred_fallthru
        _
      // Predicated region
      $region21: #{_lambda_.29} parent=11 // pred_check
        %p210 = pneg %p153
      $region22: #{_lambda_.29} parent=11 // pred_check_branch
        %212 = sbr.rel (%p210) target = $region24
      $region23: #{_lambda_.29} parent=11 // pred_region
        %p213 = scmp.lt.s32.totalorder %s21, 0
        %s214 = scalar_select %p213, %s21, 0
        %s215 = scalar_lea.vmem %s4, %s214
      $region24: #{_lambda_.29} parent=11 // pred_fallthru
        _
    $region12: #{_lambda_.29} parent=5 // pred_fallthru
      _
    %p216 = scmp.lt.s32.totalorder %s11, 4
    // Predicated region
    $region25: #{_lambda_.29} parent=5 // pred_check
      %p217 = pneg %p216
    $region26: #{_lambda_.29} parent=5 // pred_check_branch
      %219 = sbr.rel (%p217) target = $region28
    $region27: #{_lambda_.29} parent=5 // pred_region
      // Predicated region
      $region29: #{_lambda_.29} parent=27 // pred_check
        %p220 = pneg %p43
      $region30: #{_lambda_.29} parent=27 // pred_check_branch
        %222 = sbr.rel (%p220) target = $region32
      $region31: #{_lambda_.29} parent=27 // pred_region
        %s223 = smul.u32 16, %s18
        %p224 = scmp.lt.s32.totalorder %s223, 63
        %s225 = scalar_select %p224, %s223, 63
        %s226 = smul.addr %s225, 4
        %s227 = scalar_lea.vmem %s0, %s226
        %s228 = smul.u32 16, %s18
      $region32: #{_lambda_.29} parent=27 // pred_fallthru
        _
      // Predicated region
      $region33: #{_lambda_.29} parent=27 // pred_check
        %p229 = pneg %p69
      $region34: #{_lambda_.29} parent=27 // pred_check_branch
        %231 = sbr.rel (%p229) target = $region36
      $region35: #{_lambda_.29} parent=27 // pred_region
        %s232 = smul.u32 16, %s18
        %p233 = scmp.lt.s32.totalorder %s232, 63
        %s234 = scalar_select %p233, %s232, 63
        %s235 = smul.addr %s234, 4
        %s236 = scalar_lea.vmem %s1, %s235
        %s237 = smul.u32 16, %s18
      $region36: #{_lambda_.29} parent=27 // pred_fallthru
        _
    $region28: #{_lambda_.29} parent=5 // pred_fallthru
      _
    %p238 = scmp.le.s32.totalorder 1, %s11
    %p239 = scmp.lt.s32.totalorder %s11, 5
    %p240 = pnand %p238, %p239
    %p241 = pneg %p240
    // Predicated region
    $region37: #{_lambda_.29} parent=5 // pred_check
      _
    $region38: #{_lambda_.29} parent=5 // pred_check_branch
      %243 = sbr.rel (%p240) target = $region40
    $region39: #{_lambda_.29} parent=5 // pred_region
      %s244 = ssub.s32 %s11, 1
      %s245 = smul.u32 16, %s20
      %p246 = scmp.lt.s32.totalorder %s245, 63
      %s247 = scalar_select %p246, %s245, 63
      %s248 = smul.addr %s247, 4
      %s249 = scalar_lea.vmem %s0, %s248
      %p250 = pneg %p49
      %p251 = pneg %p46
      %s252 = smul.u32 16, %s20
      %p253 = scmp.lt.s32.totalorder %s252, 63
      %s254 = scalar_select %p253, %s252, 63
      %s255 = smul.addr %s254, 4
      %s256 = scalar_lea.vmem %s1, %s255
      %p257 = pneg %p75
      %p258 = pneg %p72
      %p259 = scmp.lt.s32.totalorder %s21, 0
      %s260 = scalar_select %p259, %s21, 0
      %s261 = smul.addr %s260, 4
      %s262 = scalar_lea.vmem %s2, %s261
      %p263 = pneg %p101
      %p264 = pneg %p98
      %p265 = scmp.lt.s32.totalorder %s21, 0
      %s266 = scalar_select %p265, %s21, 0
      %s267 = smul.addr %s266, 2
      %s268 = scalar_lea.vmem %s3, %s267
      %p269 = pneg %p127
      %p270 = pneg %p124
      %p271 = scmp.lt.s32.totalorder %s21, 0
      %s272 = scalar_select %p271, %s21, 0
      %s273 = scalar_lea.vmem %s4, %s272
      %p274 = pneg %p153
      %p275 = pneg %p150
      %p276 = pneg %p181
      %p277 = pneg %p178
      %s278 = smul.u32 16, %s20
      %p279 = scmp.lt.s32.totalorder %s278, 63
      %s280 = scalar_select %p279, %s278, 63
      %p281 = scmp.lt.s32.totalorder %s21, 0
      %s282 = scalar_select %p281, %s21, 0
      %s283 = sadd.s32 %s282, %s280
      %s284 = smul.addr %s283, 8
      %s285 = scalar_lea.vmem %s5, %s284
      %s286 = smul.u32 16, %s20
      %p287 = scmp.lt.s32.totalorder %s286, 63
      %s288 = scalar_select %p287, %s286, 63
      %s289 = smul.addr %s288, 4
      %s290 = scalar_lea.vmem %s0, %s289
      %s291 = smul.u32 16, %s20
      %s292 = smul.u32 16, %s20
      %p293 = scmp.lt.s32.totalorder %s292, 63
      %s294 = scalar_select %p293, %s292, 63
      %s295 = smul.addr %s294, 4
      %s296 = scalar_lea.vmem %s1, %s295
      %s297 = smul.u32 16, %s20
      %p298 = scmp.lt.s32.totalorder %s21, 0
      %s299 = scalar_select %p298, %s21, 0
      %s300 = smul.addr %s299, 4
      %s301 = scalar_lea.vmem %s2, %s300
      %p302 = scmp.lt.s32.totalorder %s21, 0
      %s303 = scalar_select %p302, %s21, 0
      %s304 = smul.addr %s303, 2
      %s305 = scalar_lea.vmem %s3, %s304
      %p306 = scmp.lt.s32.totalorder %s21, 0
      %s307 = scalar_select %p306, %s21, 0
      %s308 = scalar_lea.vmem %s4, %s307
      %s309 = smul.u32 16, %s20
      %p310 = scmp.lt.s32.totalorder %s309, 63
      %s311 = scalar_select %p310, %s309, 63
      %p312 = scmp.lt.s32.totalorder %s21, 0
      %s313 = scalar_select %p312, %s21, 0
      %s314 = sadd.s32 %s313, %s311
      %s315 = smul.addr %s314, 8
      %s316 = scalar_lea.vmem %s5, %s315
      %s317 = smul.u32 16, %s20
      %v319 = vld [vmem:[%s290] sm:$0xf]
      %v320 = vld [vmem:[%s290 + $0x4] sm:$0xf]
      %v321 = vld [vmem:[%s290 + $0x8] sm:$0xf]
      %v322 = vld [vmem:[%s290 + $0xc] sm:$0xf]
      %v323 = vld [vmem:[%s290 + $0x10] sm:$0xf]
      %v324 = vld [vmem:[%s290 + $0x14] sm:$0xf]
      %v325 = vld [vmem:[%s290 + $0x18] sm:$0xf]
      %v326 = vld [vmem:[%s290 + $0x1c] sm:$0xf]
      %v327 = vld [vmem:[%s290 + $0x20] sm:$0xf]
      %v328 = vld [vmem:[%s290 + $0x24] sm:$0xf]
      %v329 = vld [vmem:[%s290 + $0x28] sm:$0xf]
      %v330 = vld [vmem:[%s290 + $0x2c] sm:$0xf]
      %v331 = vld [vmem:[%s290 + $0x30] sm:$0xf]
      %v332 = vld [vmem:[%s290 + $0x34] sm:$0xf]
      %v333 = vld [vmem:[%s290 + $0x38] sm:$0xf]
      %v334 = vld [vmem:[%s290 + $0x3c] sm:$0xf]
      %v335 = vld [vmem:[%s301] sm:$0xf]
      %v336 = vld [vmem:[%s296] sm:$0xf]
      %v337 = vld [vmem:[%s296 + $0x4] sm:$0xf]
      %v338 = vld [vmem:[%s296 + $0x8] sm:$0xf]
      %v339 = vld [vmem:[%s296 + $0xc] sm:$0xf]
      %v340 = vld [vmem:[%s296 + $0x10] sm:$0xf]
      %v341 = vld [vmem:[%s296 + $0x14] sm:$0xf]
      %v342 = vld [vmem:[%s296 + $0x18] sm:$0xf]
      %v343 = vld [vmem:[%s296 + $0x1c] sm:$0xf]
      %v344 = vld [vmem:[%s296 + $0x20] sm:$0xf]
      %v345 = vld [vmem:[%s296 + $0x24] sm:$0xf]
      %v346 = vld [vmem:[%s296 + $0x28] sm:$0xf]
      %v347 = vld [vmem:[%s296 + $0x2c] sm:$0xf]
      %v348 = vld [vmem:[%s296 + $0x30] sm:$0xf]
      %v349 = vld [vmem:[%s296 + $0x34] sm:$0xf]
      %v350 = vld [vmem:[%s296 + $0x38] sm:$0xf]
      %v351 = vld [vmem:[%s296 + $0x3c] sm:$0xf]
      %v352 = vld [vmem:[%s305] sm:$0x3]
      %v369 = vunpack.c.l.b16 %v336
      %v370 = vunpack.c.l.b16 %v337
      %v371 = vunpack.c.l.b16 %v338
      %v372 = vunpack.c.l.b16 %v339
      %v373 = vunpack.c.l.b16 %v340
      %v374 = vunpack.c.l.b16 %v341
      %v375 = vunpack.c.l.b16 %v342
      %v376 = vunpack.c.l.b16 %v343
      %v377 = vunpack.c.l.b16 %v344
      %v378 = vunpack.c.l.b16 %v345
      %v379 = vunpack.c.l.b16 %v346
      %v380 = vunpack.c.l.b16 %v347
      %v381 = vunpack.c.l.b16 %v348
      %v382 = vunpack.c.l.b16 %v349
      %v383 = vunpack.c.l.b16 %v350
      %v384 = vunpack.c.l.b16 %v351
      %v385 = vpack.c.b16 %v370, %v369
      %v386 = vpack.c.b16 %v372, %v371
      %v387 = vpack.c.b16 %v374, %v373
      %v388 = vpack.c.b16 %v376, %v375
      %v389 = vpack.c.b16 %v378, %v377
      %v390 = vpack.c.b16 %v380, %v379
      %v391 = vpack.c.b16 %v382, %v381
      %v392 = vpack.c.b16 %v384, %v383
      %vm393 = vcmask 31744
      %v395 = vsel %vm393, %v385, 0
      %v398 = vsel %vm393, %v386, 0
      %v401 = vsel %vm393, %v387, 0
      %v404 = vsel %vm393, %v388, 0
      %v407 = vsel %vm393, %v389, 0
      %v410 = vsel %vm393, %v390, 0
      %v413 = vsel %vm393, %v391, 0
      %v416 = vsel %vm393, %v392, 0
      %vm418 = vcmask 1041408
      %v420 = vsel %vm418, %v352, 0
      %422 = vmatprep.subr.bf16.mxu0 0
      %423 = vmatpush1.bf16.msra.mxu0 0
      %424 = vmatprep.subr.bf16.mxu0 0
      %425 = vmatpush1.bf16.msra.mxu0 0
      %426 = vmatprep.subr.bf16.mxu0 0
      %427 = vmatpush1.bf16.msra.mxu0 0
      %428 = vmatprep.subr.bf16.mxu0 0
      %429 = vmatpush1.bf16.msra.mxu0 0
      %430 = vmatprep.subr.bf16.mxu0 0
      %431 = vmatpush1.bf16.msra.mxu0 0
      %432 = vmatprep.subr.bf16.mxu0 0
      %433 = vmatpush1.bf16.msra.mxu0 0
      %434 = vmatprep.subr.bf16.mxu0 0
      %435 = vmatpush1.bf16.msra.mxu0 0
      %436 = vmatprep.subr.bf16.mxu0 0
      %437 = vmatpush1.bf16.msra.mxu0 %v420
      %438 = vmatprep.subr.bf16.mxu0 0
      %439 = vmatpush2.bf16.msra.mxu0 0
      %440 = vmatprep.subr.bf16.mxu0 0
      %441 = vmatpush2.bf16.msra.mxu0 0
      %442 = vmatprep.subr.bf16.mxu0 0
      %443 = vmatpush2.bf16.msra.mxu0 0
      %444 = vmatprep.subr.bf16.mxu0 0
      %445 = vmatpush2.bf16.msra.mxu0 0
      %446 = vmatprep.subr.bf16.mxu0 0
      %447 = vmatpush2.bf16.msra.mxu0 0
      %448 = vmatprep.subr.bf16.mxu0 0
      %449 = vmatpush2.bf16.msra.mxu0 0
      %450 = vmatprep.subr.bf16.mxu0 0
      %451 = vmatpush2.bf16.msra.mxu0 0
      %452 = vmatprep.subr.bf16.mxu0 0
      %453 = vmatpush2.bf16.msra.mxu0 0
      %454 = vmatprep.mubr.bf16.mxu0 0
      %455 = vmatmul.mubr.bf16.gmra.mxu0 %v395
      %v456 = vpop.f32.mrf.mxu0
      %v457 = vadd.f32 0.0, %v456
      %v458 = vpop.f32.mrf.mxu0
      %v459 = vpop.f32.mrf.mxu0
      %v460 = vadd.f32 0.0, %v459
      %v461 = vpop.f32.mrf.mxu0
      %462 = vmatprep.mubr.bf16.mxu0 0
      %463 = vmatmul.mubr.bf16.gmra.mxu0 %v398
      %v464 = vpop.f32.mrf.mxu0
      %v465 = vadd.f32 0.0, %v464
      %v466 = vpop.f32.mrf.mxu0
      %v467 = vpop.f32.mrf.mxu0
      %v468 = vadd.f32 0.0, %v467
      %v469 = vpop.f32.mrf.mxu0
      %470 = vmatprep.mubr.bf16.mxu0 0
      %471 = vmatmul.mubr.bf16.gmra.mxu0 %v401
      %v472 = vpop.f32.mrf.mxu0
      %v473 = vadd.f32 0.0, %v472
      %v474 = vpop.f32.mrf.mxu0
      %v475 = vpop.f32.mrf.mxu0
      %v476 = vadd.f32 0.0, %v475
      %v477 = vpop.f32.mrf.mxu0
      %478 = vmatprep.mubr.bf16.mxu0 0
      %479 = vmatmul.mubr.bf16.gmra.mxu0 %v404
      %v480 = vpop.f32.mrf.mxu0
      %v481 = vadd.f32 0.0, %v480
      %v482 = vpop.f32.mrf.mxu0
      %v483 = vpop.f32.mrf.mxu0
      %v484 = vadd.f32 0.0, %v483
      %v485 = vpop.f32.mrf.mxu0
      %486 = vmatprep.mubr.bf16.mxu0 0
      %487 = vmatmul.mubr.bf16.gmra.mxu0 %v407
      %v488 = vpop.f32.mrf.mxu0
      %v489 = vadd.f32 0.0, %v488
      %v490 = vpop.f32.mrf.mxu0
      %v491 = vpop.f32.mrf.mxu0
      %v492 = vadd.f32 0.0, %v491
      %v493 = vpop.f32.mrf.mxu0
      %494 = vmatprep.mubr.bf16.mxu0 0
      %495 = vmatmul.mubr.bf16.gmra.mxu0 %v410
      %v496 = vpop.f32.mrf.mxu0
      %v497 = vadd.f32 0.0, %v496
      %v498 = vpop.f32.mrf.mxu0
      %v499 = vpop.f32.mrf.mxu0
      %v500 = vadd.f32 0.0, %v499
      %v501 = vpop.f32.mrf.mxu0
      %502 = vmatprep.mubr.bf16.mxu0 0
      %503 = vmatmul.mubr.bf16.gmra.mxu0 %v413
      %v504 = vpop.f32.mrf.mxu0
      %v505 = vadd.f32 0.0, %v504
      %v506 = vpop.f32.mrf.mxu0
      %v507 = vpop.f32.mrf.mxu0
      %v508 = vadd.f32 0.0, %v507
      %v509 = vpop.f32.mrf.mxu0
      %510 = vmatprep.mubr.bf16.mxu0 0
      %511 = vmatmul.mubr.bf16.gmra.mxu0 %v416
      %v512 = vpop.f32.mrf.mxu0
      %v513 = vadd.f32 0.0, %v512
      %v514 = vpop.f32.mrf.mxu0
      %v515 = vpop.f32.mrf.mxu0
      %v516 = vadd.f32 0.0, %v515
      %v517 = vpop.f32.mrf.mxu0
      %518 = vdwg.mxu0
      %v535 = vunpack.c.l.b16 %v319
      %v536 = vunpack.c.l.b16 %v320
      %v537 = vunpack.c.l.b16 %v321
      %v538 = vunpack.c.l.b16 %v322
      %v539 = vunpack.c.l.b16 %v323
      %v540 = vunpack.c.l.b16 %v324
      %v541 = vunpack.c.l.b16 %v325
      %v542 = vunpack.c.l.b16 %v326
      %v543 = vunpack.c.l.b16 %v327
      %v544 = vunpack.c.l.b16 %v328
      %v545 = vunpack.c.l.b16 %v329
      %v546 = vunpack.c.l.b16 %v330
      %v547 = vunpack.c.l.b16 %v331
      %v548 = vunpack.c.l.b16 %v332
      %v549 = vunpack.c.l.b16 %v333
      %v550 = vunpack.c.l.b16 %v334
      %v551 = vpack.c.b16 %v536, %v535
      %v552 = vpack.c.b16 %v538, %v537
      %v553 = vpack.c.b16 %v540, %v539
      %v554 = vpack.c.b16 %v542, %v541
      %v555 = vpack.c.b16 %v544, %v543
      %v556 = vpack.c.b16 %v546, %v545
      %v557 = vpack.c.b16 %v548, %v547
      %v558 = vpack.c.b16 %v550, %v549
      %vm559 = vcmask 64512
      %v561 = vsel %vm559, %v551, 0
      %v564 = vsel %vm559, %v552, 0
      %v567 = vsel %vm559, %v553, 0
      %v570 = vsel %vm559, %v554, 0
      %v573 = vsel %vm559, %v555, 0
      %v576 = vsel %vm559, %v556, 0
      %v579 = vsel %vm559, %v557, 0
      %v582 = vsel %vm559, %v558, 0
      %vm584 = vcmask 1043456
      %v586 = vsel %vm584, %v335, 0
      %588 = vmatprep.subr.bf16.mxu0 0
      %589 = vmatpush1.bf16.msra.mxu0 0
      %590 = vmatprep.subr.bf16.mxu0 0
      %591 = vmatpush1.bf16.msra.mxu0 0
      %592 = vmatprep.subr.bf16.mxu0 0
      %593 = vmatpush1.bf16.msra.mxu0 0
      %594 = vmatprep.subr.bf16.mxu0 0
      %595 = vmatpush1.bf16.msra.mxu0 0
      %596 = vmatprep.subr.bf16.mxu0 0
      %597 = vmatpush1.bf16.msra.mxu0 0
      %598 = vmatprep.subr.bf16.mxu0 0
      %599 = vmatpush1.bf16.msra.mxu0 0
      %600 = vmatprep.subr.bf16.mxu0 0
      %601 = vmatpush1.bf16.msra.mxu0 0
      %602 = vmatprep.subr.bf16.mxu0 0
      %603 = vmatpush1.bf16.msra.mxu0 %v586
      %604 = vmatprep.subr.bf16.mxu0 0
      %605 = vmatpush2.bf16.msra.mxu0 0
      %606 = vmatprep.subr.bf16.mxu0 0
      %607 = vmatpush2.bf16.msra.mxu0 0
      %608 = vmatprep.subr.bf16.mxu0 0
      %609 = vmatpush2.bf16.msra.mxu0 0
      %610 = vmatprep.subr.bf16.mxu0 0
      %611 = vmatpush2.bf16.msra.mxu0 0
      %612 = vmatprep.subr.bf16.mxu0 0
      %613 = vmatpush2.bf16.msra.mxu0 0
      %614 = vmatprep.subr.bf16.mxu0 0
      %615 = vmatpush2.bf16.msra.mxu0 0
      %616 = vmatprep.subr.bf16.mxu0 0
      %617 = vmatpush2.bf16.msra.mxu0 0
      %618 = vmatprep.subr.bf16.mxu0 0
      %619 = vmatpush2.bf16.msra.mxu0 0
      %620 = vmatprep.mubr.bf16.mxu0 0
      %621 = vmatmul.mubr.bf16.gmra.mxu0 %v561
      %v622 = vpop.f32.mrf.mxu0
      %v623 = vadd.f32 %v457, %v622
      %v624 = vpop.f32.mrf.mxu0
      %v625 = vpop.f32.mrf.mxu0
      %v626 = vadd.f32 %v460, %v625
      %v627 = vpop.f32.mrf.mxu0
      %628 = vmatprep.mubr.bf16.mxu0 0
      %629 = vmatmul.mubr.bf16.gmra.mxu0 %v564
      %v630 = vpop.f32.mrf.mxu0
      %v631 = vadd.f32 %v465, %v630
      %v632 = vpop.f32.mrf.mxu0
      %v633 = vpop.f32.mrf.mxu0
      %v634 = vadd.f32 %v468, %v633
      %v635 = vpop.f32.mrf.mxu0
      %636 = vmatprep.mubr.bf16.mxu0 0
      %637 = vmatmul.mubr.bf16.gmra.mxu0 %v567
      %v638 = vpop.f32.mrf.mxu0
      %v639 = vadd.f32 %v473, %v638
      %v640 = vpop.f32.mrf.mxu0
      %v641 = vpop.f32.mrf.mxu0
      %v642 = vadd.f32 %v476, %v641
      %v643 = vpop.f32.mrf.mxu0
      %644 = vmatprep.mubr.bf16.mxu0 0
      %645 = vmatmul.mubr.bf16.gmra.mxu0 %v570
      %v646 = vpop.f32.mrf.mxu0
      %v647 = vadd.f32 %v481, %v646
      %v648 = vpop.f32.mrf.mxu0
      %v649 = vpop.f32.mrf.mxu0
      %v650 = vadd.f32 %v484, %v649
      %v651 = vpop.f32.mrf.mxu0
      %652 = vmatprep.mubr.bf16.mxu0 0
      %653 = vmatmul.mubr.bf16.gmra.mxu0 %v573
      %v654 = vpop.f32.mrf.mxu0
      %v655 = vadd.f32 %v489, %v654
      %v656 = vpop.f32.mrf.mxu0
      %v657 = vpop.f32.mrf.mxu0
      %v658 = vadd.f32 %v492, %v657
      %v659 = vpop.f32.mrf.mxu0
      %660 = vmatprep.mubr.bf16.mxu0 0
      %661 = vmatmul.mubr.bf16.gmra.mxu0 %v576
      %v662 = vpop.f32.mrf.mxu0
      %v663 = vadd.f32 %v497, %v662
      %v664 = vpop.f32.mrf.mxu0
      %v665 = vpop.f32.mrf.mxu0
      %v666 = vadd.f32 %v500, %v665
      %v667 = vpop.f32.mrf.mxu0
      %668 = vmatprep.mubr.bf16.mxu0 0
      %669 = vmatmul.mubr.bf16.gmra.mxu0 %v579
      %v670 = vpop.f32.mrf.mxu0
      %v671 = vadd.f32 %v505, %v670
      %v672 = vpop.f32.mrf.mxu0
      %v673 = vpop.f32.mrf.mxu0
      %v674 = vadd.f32 %v508, %v673
      %v675 = vpop.f32.mrf.mxu0
      %676 = vmatprep.mubr.bf16.mxu0 0
      %677 = vmatmul.mubr.bf16.gmra.mxu0 %v582
      %v678 = vpop.f32.mrf.mxu0
      %v679 = vadd.f32 %v513, %v678
      %v680 = vpop.f32.mrf.mxu0
      %v681 = vpop.f32.mrf.mxu0
      %v682 = vadd.f32 %v516, %v681
      %v683 = vpop.f32.mrf.mxu0
      %684 = vdwg.mxu0
      %v685 = vld [vmem:[%s308] sm:$0x1]
      %v687 = vlaneseq
      %v688 = vshrl.u32 %v687, 7
      %v689 = vsub.s32 0, %v688
      %v690 = vrot.slane %v685, %v689
      %v692 = vadd.f32 %v623, %v690
      %v693 = vadd.f32 %v626, %v690
      %v694 = vadd.f32 %v631, %v690
      %v695 = vadd.f32 %v634, %v690
      %v696 = vadd.f32 %v639, %v690
      %v697 = vadd.f32 %v642, %v690
      %v698 = vadd.f32 %v647, %v690
      %v699 = vadd.f32 %v650, %v690
      %v700 = vadd.f32 %v655, %v690
      %v701 = vadd.f32 %v658, %v690
      %v702 = vadd.f32 %v663, %v690
      %v703 = vadd.f32 %v666, %v690
      %v704 = vadd.f32 %v671, %v690
      %v705 = vadd.f32 %v674, %v690
      %v706 = vadd.f32 %v679, %v690
      %v707 = vadd.f32 %v682, %v690
      %v708 = vsub.f32 0.0, %v692
      %v709 = vsub.f32 0.0, %v693
      %v710 = vsub.f32 0.0, %v694
      %v711 = vsub.f32 0.0, %v695
      %v712 = vsub.f32 0.0, %v696
      %v713 = vsub.f32 0.0, %v697
      %v714 = vsub.f32 0.0, %v698
      %v715 = vsub.f32 0.0, %v699
      %v716 = vsub.f32 0.0, %v700
      %v717 = vsub.f32 0.0, %v701
      %v718 = vsub.f32 0.0, %v702
      %v719 = vsub.f32 0.0, %v703
      %v720 = vsub.f32 0.0, %v704
      %v721 = vsub.f32 0.0, %v705
      %v722 = vsub.f32 0.0, %v706
      %v723 = vsub.f32 0.0, %v707
      %v724 = vmul.f32 %v708, 1.442695
      %v725 = vpow.pop %v724
      %v726 = vmul.f32 %v709, 1.442695
      %v727 = vpow.pop %v726
      %v728 = vmul.f32 %v710, 1.442695
      %v729 = vpow.pop %v728
      %v730 = vmul.f32 %v711, 1.442695
      %v731 = vpow.pop %v730
      %v732 = vmul.f32 %v712, 1.442695
      %v733 = vpow.pop %v732
      %v734 = vmul.f32 %v713, 1.442695
      %v735 = vpow.pop %v734
      %v736 = vmul.f32 %v714, 1.442695
      %v737 = vpow.pop %v736
      %v738 = vmul.f32 %v715, 1.442695
      %v739 = vpow.pop %v738
      %v740 = vmul.f32 %v716, 1.442695
      %v741 = vpow.pop %v740
      %v742 = vmul.f32 %v717, 1.442695
      %v743 = vpow.pop %v742
      %v744 = vmul.f32 %v718, 1.442695
      %v745 = vpow.pop %v744
      %v746 = vmul.f32 %v719, 1.442695
      %v747 = vpow.pop %v746
      %v748 = vmul.f32 %v720, 1.442695
      %v749 = vpow.pop %v748
      %v750 = vmul.f32 %v721, 1.442695
      %v751 = vpow.pop %v750
      %v752 = vmul.f32 %v722, 1.442695
      %v753 = vpow.pop %v752
      %v754 = vmul.f32 %v723, 1.442695
      %v755 = vpow.pop %v754
      %v756 = vadd.f32 %v725, 1.0
      %v757 = vadd.f32 %v727, 1.0
      %v758 = vadd.f32 %v729, 1.0
      %v759 = vadd.f32 %v731, 1.0
      %v760 = vadd.f32 %v733, 1.0
      %v761 = vadd.f32 %v735, 1.0
      %v762 = vadd.f32 %v737, 1.0
      %v763 = vadd.f32 %v739, 1.0
      %v764 = vadd.f32 %v741, 1.0
      %v765 = vadd.f32 %v743, 1.0
      %v766 = vadd.f32 %v745, 1.0
      %v767 = vadd.f32 %v747, 1.0
      %v768 = vadd.f32 %v749, 1.0
      %v769 = vadd.f32 %v751, 1.0
      %v770 = vadd.f32 %v753, 1.0
      %v771 = vadd.f32 %v755, 1.0
      %v772 = vrcp.pop %v756
      %v773 = vrcp.pop %v757
      %v774 = vrcp.pop %v758
      %v775 = vrcp.pop %v759
      %v776 = vrcp.pop %v760
      %v777 = vrcp.pop %v761
      %v778 = vrcp.pop %v762
      %v779 = vrcp.pop %v763
      %v780 = vrcp.pop %v764
      %v781 = vrcp.pop %v765
      %v782 = vrcp.pop %v766
      %v783 = vrcp.pop %v767
      %v784 = vrcp.pop %v768
      %v785 = vrcp.pop %v769
      %v786 = vrcp.pop %v770
      %v787 = vrcp.pop %v771
      %v788 = vmul.f32 %v692, %v772
      %v789 = vmul.f32 %v693, %v773
      %v790 = vmul.f32 %v694, %v774
      %v791 = vmul.f32 %v695, %v775
      %v792 = vmul.f32 %v696, %v776
      %v793 = vmul.f32 %v697, %v777
      %v794 = vmul.f32 %v698, %v778
      %v795 = vmul.f32 %v699, %v779
      %v796 = vmul.f32 %v700, %v780
      %v797 = vmul.f32 %v701, %v781
      %v798 = vmul.f32 %v702, %v782
      %v799 = vmul.f32 %v703, %v783
      %v800 = vmul.f32 %v704, %v784
      %v801 = vmul.f32 %v705, %v785
      %v802 = vmul.f32 %v706, %v786
      %v803 = vmul.f32 %v707, %v787
      %804 = vst [vmem:[%s316] sm:$0xff] %v788
      %805 = vst [vmem:[%s316 + $0x8] sm:$0xff] %v789
      %806 = vst [vmem:[%s316 + $0x10] sm:$0xff] %v790
      %807 = vst [vmem:[%s316 + $0x18] sm:$0xff] %v791
      %808 = vst [vmem:[%s316 + $0x20] sm:$0xff] %v792
      %809 = vst [vmem:[%s316 + $0x28] sm:$0xff] %v793
      %810 = vst [vmem:[%s316 + $0x30] sm:$0xff] %v794
      %811 = vst [vmem:[%s316 + $0x38] sm:$0xff] %v795
      %812 = vst [vmem:[%s316 + $0x40] sm:$0xff] %v796
      %813 = vst [vmem:[%s316 + $0x48] sm:$0xff] %v797
      %814 = vst [vmem:[%s316 + $0x50] sm:$0xff] %v798
      %815 = vst [vmem:[%s316 + $0x58] sm:$0xff] %v799
      %816 = vst [vmem:[%s316 + $0x60] sm:$0xff] %v800
      %817 = vst [vmem:[%s316 + $0x68] sm:$0xff] %v801
      %818 = vst [vmem:[%s316 + $0x70] sm:$0xff] %v802
      %819 = vst [vmem:[%s316 + $0x78] sm:$0xff] %v803
      %s820 = smul.u32 16, %s20
      %p821 = scmp.lt.s32.totalorder %s820, 63
      %s822 = scalar_select %p821, %s820, 63
      %p823 = scmp.lt.s32.totalorder %s21, 0
      %s824 = scalar_select %p823, %s21, 0
      %s825 = sadd.s32 %s824, %s822
      %s826 = smul.addr %s825, 8
      %s827 = scalar_lea.vmem %s5, %s826
      // Predicated region
      $region41: #{_lambda_.29} parent=39 // pred_check
        %p828 = pneg %p178
      $region42: #{_lambda_.29} parent=39 // pred_check_branch
        %830 = sbr.rel (%p828) target = $region44
      $region43: #{_lambda_.29} parent=39 // pred_region
        %s831 = smul.u32 16, %s20
      $region44: #{_lambda_.29} parent=39 // pred_fallthru
        _
    $region40: #{_lambda_.29} parent=5 // pred_fallthru
      _
    %p832 = scmp.le.s32.totalorder 2, %s11
    // Predicated region
    $region45: #{_lambda_.29} parent=5 // pred_check
      %p833 = pneg %p832
    $region46: #{_lambda_.29} parent=5 // pred_check_branch
      %835 = sbr.rel (%p833) target = $region48
    $region47: #{_lambda_.29} parent=5 // pred_region
      %s836 = ssub.s32 %s11, 2
      // Predicated region
      $region49: #{_lambda_.29} parent=47 // pred_check
        %p837 = pneg %p184
      $region50: #{_lambda_.29} parent=47 // pred_check_branch
        %839 = sbr.rel (%p837) target = $region52
      $region51: #{_lambda_.29} parent=47 // pred_region
        %s840 = smul.u32 16, %s22
        %p841 = scmp.lt.s32.totalorder %s840, 63
        %s842 = scalar_select %p841, %s840, 63
        %p843 = scmp.lt.s32.totalorder %s23, 0
        %s844 = scalar_select %p843, %s23, 0
        %s845 = sadd.s32 %s844, %s842
        %s846 = smul.addr %s845, 8
        %s847 = scalar_lea.vmem %s5, %s846
      $region52: #{_lambda_.29} parent=47 // pred_fallthru
        _
    $region48: #{_lambda_.29} parent=5 // pred_fallthru
      _
  $region6: #{_lambda_.29} parent=0 // loop_footer
    %s15 = sadd.s32 1, %s11
  $region7: #{_lambda_.29} parent=0 // loop_footer_branch
    %10 = sbr.rel target = $region3
  $region8: #{_lambda_.29} parent=0 // loop_exit
    _

// kernel: _lambda_.36
$region0: #{_lambda_.36}
  #allocation0 [shape = 'u32[]', space=smem, size = 0x4, offset = 0x4, fixed_abs, tag = 'smem constant byte address 0x4 - core index']
  #allocation1 [shape = 'u32[144,128]{1,0:T(1,128)}', space=vmem, size = 0x12000, scoped, tag = 'internal scratch']
  %s0 = inlined_call_operand.vmem [shape: bf16[32,16], index: 0, kind: input, shape index: {}]
  %s1 = inlined_call_operand.vmem [shape: bf16[32,32], index: 1, kind: input, shape index: {}]
  %s2 = inlined_call_operand.vmem [shape: bf16[16,128], index: 2, kind: input, shape index: {}]
  %s3 = inlined_call_operand.vmem [shape: bf16[32,128], index: 3, kind: input, shape index: {}]
  %s4 = inlined_call_operand.vmem [shape: f32[1,128], index: 4, kind: input, shape index: {}]
  %s5 = inlined_call_operand.vmem [shape: f32[32,128], index: 5, kind: output, shape index: {}]
  %s6 = sld [smem:[#allocation0]]
  $region53: #{_lambda_.36} parent=0
    _
  %s8 = ssub.s32 1, %s6
  %s9 = scalar_select 0, %s8, %s6
  loop: start=0, step=1, limit=4
  $region2: #{_lambda_.36} parent=0 // loop_pre_header
    _
  $region3: #{_lambda_.36} parent=0 // loop_header
    %s11 = sphi 0, %s15
    %p12 = scmp.ge.s32.totalorder %s11, 4
    %s18 = sphi 0, %s30
    %s19 = sphi 0, %s26
    %s20 = sphi 0, %s18
    %s21 = sphi 0, %s19
    %s22 = sphi 0, %s20
    %s23 = sphi 0, %s21
    %s33 = sphi 0, %s35
    %s36 = sphi 0, %s33
    %s37 = sphi 0, %s36
    %s53 = sphi 0, %s37
    %s59 = sphi 0, %s61
    %s62 = sphi 0, %s59
    %s63 = sphi 0, %s62
    %s79 = sphi 0, %s63
    %s85 = sphi 0, %s87
    %s88 = sphi 0, %s85
    %s89 = sphi 0, %s88
    %s105 = sphi 0, %s89
    %s111 = sphi 0, %s113
    %s114 = sphi 0, %s111
    %s115 = sphi 0, %s114
    %s131 = sphi 0, %s115
    %s137 = sphi 0, %s139
    %s140 = sphi 0, %s137
    %s141 = sphi 0, %s140
    %s157 = sphi 0, %s141
    %s165 = sphi 0, %s167
    %s168 = sphi 0, %s165
    %s169 = sphi 0, %s168
    %s185 = sphi 0, %s169
  $region4: #{_lambda_.36} parent=0 // loop_header_branch
    %14 = sbr.rel (%p12) target = $region8
  $region5: #{_lambda_.36} parent=0 // loop_body
    %s16 = ssub.s32 %s11, 1
    %s17 = ssub.s32 %s11, 2
    %s24 = sadd.s32 1, %s19
    %p25 = scmp.ge.s32.totalorder %s24, 1
    %s26 = scalar_select %p25, 0, %s24
    %s27 = sadd.s32 1, %s18
    %s28 = scalar_select %p25, %s27, %s18
    %p29 = scmp.ge.s32.totalorder %s28, 2
    %s30 = scalar_select %p29, 0, %s28
    %s31 = ssub.s32 %s18, %s30
    %p32 = scmp.eq.s32.totalorder %s31, 0
    %s34 = sadd.s32 %s33, 1
    %s35 = scalar_select %p32, %s33, %s34
    %p38 = pneg %p32
    %p39 = scmp.eq.s32.totalorder %s11, 1
    %p40 = por %p38, %p39
    %p41 = scmp.ne.s32.totalorder %s33, %s36
    %p42 = scmp.eq.s32.totalorder %s11, 0
    %p43 = por %p41, %p42
    %p44 = scmp.ne.s32.totalorder %s33, %s36
    %p45 = scmp.eq.s32.totalorder %s16, 1
    %p46 = por %p44, %p45
    %p47 = scmp.ne.s32.totalorder %s36, %s37
    %p48 = scmp.eq.s32.totalorder %s16, 0
    %p49 = por %p47, %p48
    %p50 = scmp.ne.s32.totalorder %s36, %s37
    %p51 = scmp.eq.s32.totalorder %s17, 1
    %p52 = por %p50, %p51
    %p54 = scmp.ne.s32.totalorder %s37, %s53
    %p55 = scmp.eq.s32.totalorder %s17, 0
    %p56 = por %p54, %p55
    %s57 = ssub.s32 %s18, %s30
    %p58 = scmp.eq.s32.totalorder %s57, 0
    %s60 = sadd.s32 %s59, 1
    %s61 = scalar_select %p58, %s59, %s60
    %p64 = pneg %p58
    %p65 = scmp.eq.s32.totalorder %s11, 1
    %p66 = por %p64, %p65
    %p67 = scmp.ne.s32.totalorder %s59, %s62
    %p68 = scmp.eq.s32.totalorder %s11, 0
    %p69 = por %p67, %p68
    %p70 = scmp.ne.s32.totalorder %s59, %s62
    %p71 = scmp.eq.s32.totalorder %s16, 1
    %p72 = por %p70, %p71
    %p73 = scmp.ne.s32.totalorder %s62, %s63
    %p74 = scmp.eq.s32.totalorder %s16, 0
    %p75 = por %p73, %p74
    %p76 = scmp.ne.s32.totalorder %s62, %s63
    %p77 = scmp.eq.s32.totalorder %s17, 1
    %p78 = por %p76, %p77
    %p80 = scmp.ne.s32.totalorder %s63, %s79
    %p81 = scmp.eq.s32.totalorder %s17, 0
    %p82 = por %p80, %p81
    %s83 = ssub.s32 %s19, %s26
    %p84 = scmp.eq.s32.totalorder %s83, 0
    %s86 = sadd.s32 %s85, 1
    %s87 = scalar_select %p84, %s85, %s86
    %p90 = pneg %p84
    %p91 = scmp.eq.s32.totalorder %s11, 1
    %p92 = por %p90, %p91
    %p93 = scmp.ne.s32.totalorder %s85, %s88
    %p94 = scmp.eq.s32.totalorder %s11, 0
    %p95 = por %p93, %p94
    %p96 = scmp.ne.s32.totalorder %s85, %s88
    %p97 = scmp.eq.s32.totalorder %s16, 1
    %p98 = por %p96, %p97
    %p99 = scmp.ne.s32.totalorder %s88, %s89
    %p100 = scmp.eq.s32.totalorder %s16, 0
    %p101 = por %p99, %p100
    %p102 = scmp.ne.s32.totalorder %s88, %s89
    %p103 = scmp.eq.s32.totalorder %s17, 1
    %p104 = por %p102, %p103
    %p106 = scmp.ne.s32.totalorder %s89, %s105
    %p107 = scmp.eq.s32.totalorder %s17, 0
    %p108 = por %p106, %p107
    %s109 = ssub.s32 %s19, %s26
    %p110 = scmp.eq.s32.totalorder %s109, 0
    %s112 = sadd.s32 %s111, 1
    %s113 = scalar_select %p110, %s111, %s112
    %p116 = pneg %p110
    %p117 = scmp.eq.s32.totalorder %s11, 1
    %p118 = por %p116, %p117
    %p119 = scmp.ne.s32.totalorder %s111, %s114
    %p120 = scmp.eq.s32.totalorder %s11, 0
    %p121 = por %p119, %p120
    %p122 = scmp.ne.s32.totalorder %s111, %s114
    %p123 = scmp.eq.s32.totalorder %s16, 1
    %p124 = por %p122, %p123
    %p125 = scmp.ne.s32.totalorder %s114, %s115
    %p126 = scmp.eq.s32.totalorder %s16, 0
    %p127 = por %p125, %p126
    %p128 = scmp.ne.s32.totalorder %s114, %s115
    %p129 = scmp.eq.s32.totalorder %s17, 1
    %p130 = por %p128, %p129
    %p132 = scmp.ne.s32.totalorder %s115, %s131
    %p133 = scmp.eq.s32.totalorder %s17, 0
    %p134 = por %p132, %p133
    %s135 = ssub.s32 %s19, %s26
    %p136 = scmp.eq.s32.totalorder %s135, 0
    %s138 = sadd.s32 %s137, 1
    %s139 = scalar_select %p136, %s137, %s138
    %p142 = pneg %p136
    %p143 = scmp.eq.s32.totalorder %s11, 1
    %p144 = por %p142, %p143
    %p145 = scmp.ne.s32.totalorder %s137, %s140
    %p146 = scmp.eq.s32.totalorder %s11, 0
    %p147 = por %p145, %p146
    %p148 = scmp.ne.s32.totalorder %s137, %s140
    %p149 = scmp.eq.s32.totalorder %s16, 1
    %p150 = por %p148, %p149
    %p151 = scmp.ne.s32.totalorder %s140, %s141
    %p152 = scmp.eq.s32.totalorder %s16, 0
    %p153 = por %p151, %p152
    %p154 = scmp.ne.s32.totalorder %s140, %s141
    %p155 = scmp.eq.s32.totalorder %s17, 1
    %p156 = por %p154, %p155
    %p158 = scmp.ne.s32.totalorder %s141, %s157
    %p159 = scmp.eq.s32.totalorder %s17, 0
    %p160 = por %p158, %p159
    %s161 = ssub.s32 %s18, %s30
    %s162 = ssub.s32 %s19, %s26
    %s163 = sor.u32 %s161, %s162
    %p164 = scmp.eq.s32.totalorder %s163, 0
    %s166 = sadd.s32 %s165, 1
    %s167 = scalar_select %p164, %s165, %s166
    %p170 = pneg %p164
    %p171 = scmp.eq.s32.totalorder %s11, 1
    %p172 = por %p170, %p171
    %p173 = scmp.ne.s32.totalorder %s165, %s168
    %p174 = scmp.eq.s32.totalorder %s11, 0
    %p175 = por %p173, %p174
    %p176 = scmp.ne.s32.totalorder %s165, %s168
    %p177 = scmp.eq.s32.totalorder %s16, 1
    %p178 = por %p176, %p177
    %p179 = scmp.ne.s32.totalorder %s168, %s169
    %p180 = scmp.eq.s32.totalorder %s16, 0
    %p181 = por %p179, %p180
    %p182 = scmp.ne.s32.totalorder %s168, %s169
    %p183 = scmp.eq.s32.totalorder %s17, 1
    %p184 = por %p182, %p183
    %p186 = scmp.ne.s32.totalorder %s169, %s185
    %p187 = scmp.eq.s32.totalorder %s17, 0
    %p188 = por %p186, %p187
    %p189 = scmp.le.s32.totalorder 1, %s11
    %p190 = scmp.lt.s32.totalorder %s11, 3
    %p191 = pnand %p189, %p190
    %p192 = pneg %p191
    // Predicated region
    $region9: #{_lambda_.36} parent=5 // pred_check
      _
    $region10: #{_lambda_.36} parent=5 // pred_check_branch
      %194 = sbr.rel (%p191) target = $region12
    $region11: #{_lambda_.36} parent=5 // pred_region
      %s195 = ssub.s32 %s11, 1
      // Predicated region
      $region13: #{_lambda_.36} parent=11 // pred_check
        %p196 = pneg %p101
      $region14: #{_lambda_.36} parent=11 // pred_check_branch
        %198 = sbr.rel (%p196) target = $region16
      $region15: #{_lambda_.36} parent=11 // pred_region
        %p199 = scmp.lt.s32.totalorder %s21, 0
        %s200 = scalar_select %p199, %s21, 0
        %s201 = smul.addr %s200, 4
        %s202 = scalar_lea.vmem %s2, %s201
      $region16: #{_lambda_.36} parent=11 // pred_fallthru
        _
      // Predicated region
      $region17: #{_lambda_.36} parent=11 // pred_check
        %p203 = pneg %p127
      $region18: #{_lambda_.36} parent=11 // pred_check_branch
        %205 = sbr.rel (%p203) target = $region20
      $region19: #{_lambda_.36} parent=11 // pred_region
        %p206 = scmp.lt.s32.totalorder %s21, 0
        %s207 = scalar_select %p206, %s21, 0
        %s208 = smul.addr %s207, 4
        %s209 = scalar_lea.vmem %s3, %s208
      $region20: #{_lambda_.36} parent=11 // pred_fallthru
        _
      // Predicated region
      $region21: #{_lambda_.36} parent=11 // pred_check
        %p210 = pneg %p153
      $region22: #{_lambda_.36} parent=11 // pred_check_branch
        %212 = sbr.rel (%p210) target = $region24
      $region23: #{_lambda_.36} parent=11 // pred_region
        %p213 = scmp.lt.s32.totalorder %s21, 0
        %s214 = scalar_select %p213, %s21, 0
        %s215 = scalar_lea.vmem %s4, %s214
      $region24: #{_lambda_.36} parent=11 // pred_fallthru
        _
    $region12: #{_lambda_.36} parent=5 // pred_fallthru
      _
    %p216 = scmp.lt.s32.totalorder %s11, 2
    // Predicated region
    $region25: #{_lambda_.36} parent=5 // pred_check
      %p217 = pneg %p216
    $region26: #{_lambda_.36} parent=5 // pred_check_branch
      %219 = sbr.rel (%p217) target = $region28
    $region27: #{_lambda_.36} parent=5 // pred_region
      // Predicated region
      $region29: #{_lambda_.36} parent=27 // pred_check
        %p220 = pneg %p43
      $region30: #{_lambda_.36} parent=27 // pred_check_branch
        %222 = sbr.rel (%p220) target = $region32
      $region31: #{_lambda_.36} parent=27 // pred_region
        %s223 = smul.u32 2, %s18
        %p224 = scmp.lt.s32.totalorder %s223, 3
        %s225 = scalar_select %p224, %s223, 3
        %s226 = smul.addr %s225, 4
        %s227 = scalar_lea.vmem %s0, %s226
        %s228 = smul.u32 2, %s18
      $region32: #{_lambda_.36} parent=27 // pred_fallthru
        _
      // Predicated region
      $region33: #{_lambda_.36} parent=27 // pred_check
        %p229 = pneg %p69
      $region34: #{_lambda_.36} parent=27 // pred_check_branch
        %231 = sbr.rel (%p229) target = $region36
      $region35: #{_lambda_.36} parent=27 // pred_region
        %s232 = smul.u32 2, %s18
        %p233 = scmp.lt.s32.totalorder %s232, 3
        %s234 = scalar_select %p233, %s232, 3
        %s235 = smul.addr %s234, 4
        %s236 = scalar_lea.vmem %s1, %s235
        %s237 = smul.u32 2, %s18
      $region36: #{_lambda_.36} parent=27 // pred_fallthru
        _
    $region28: #{_lambda_.36} parent=5 // pred_fallthru
      _
    %p238 = scmp.le.s32.totalorder 1, %s11
    %p239 = scmp.lt.s32.totalorder %s11, 3
    %p240 = pnand %p238, %p239
    %p241 = pneg %p240
    // Predicated region
    $region37: #{_lambda_.36} parent=5 // pred_check
      _
    $region38: #{_lambda_.36} parent=5 // pred_check_branch
      %243 = sbr.rel (%p240) target = $region40
    $region39: #{_lambda_.36} parent=5 // pred_region
      %s244 = ssub.s32 %s11, 1
      %s245 = smul.u32 2, %s20
      %p246 = scmp.lt.s32.totalorder %s245, 3
      %s247 = scalar_select %p246, %s245, 3
      %s248 = smul.addr %s247, 4
      %s249 = scalar_lea.vmem %s0, %s248
      %p250 = pneg %p49
      %p251 = pneg %p46
      %s252 = smul.u32 2, %s20
      %p253 = scmp.lt.s32.totalorder %s252, 3
      %s254 = scalar_select %p253, %s252, 3
      %s255 = smul.addr %s254, 4
      %s256 = scalar_lea.vmem %s1, %s255
      %p257 = pneg %p75
      %p258 = pneg %p72
      %p259 = scmp.lt.s32.totalorder %s21, 0
      %s260 = scalar_select %p259, %s21, 0
      %s261 = smul.addr %s260, 4
      %s262 = scalar_lea.vmem %s2, %s261
      %p263 = pneg %p101
      %p264 = pneg %p98
      %p265 = scmp.lt.s32.totalorder %s21, 0
      %s266 = scalar_select %p265, %s21, 0
      %s267 = smul.addr %s266, 4
      %s268 = scalar_lea.vmem %s3, %s267
      %p269 = pneg %p127
      %p270 = pneg %p124
      %p271 = scmp.lt.s32.totalorder %s21, 0
      %s272 = scalar_select %p271, %s21, 0
      %s273 = scalar_lea.vmem %s4, %s272
      %p274 = pneg %p153
      %p275 = pneg %p150
      %p276 = pneg %p181
      %p277 = pneg %p178
      %s278 = smul.u32 2, %s20
      %p279 = scmp.lt.s32.totalorder %s278, 3
      %s280 = scalar_select %p279, %s278, 3
      %p281 = scmp.lt.s32.totalorder %s21, 0
      %s282 = scalar_select %p281, %s21, 0
      %s283 = sadd.s32 %s282, %s280
      %s284 = smul.addr %s283, 8
      %s285 = scalar_lea.vmem %s5, %s284
      %s286 = smul.u32 2, %s20
      %p287 = scmp.lt.s32.totalorder %s286, 3
      %s288 = scalar_select %p287, %s286, 3
      %s289 = smul.addr %s288, 4
      %s290 = scalar_lea.vmem %s0, %s289
      %s291 = smul.u32 2, %s20
      %s292 = smul.u32 2, %s20
      %p293 = scmp.lt.s32.totalorder %s292, 3
      %s294 = scalar_select %p293, %s292, 3
      %s295 = smul.addr %s294, 4
      %s296 = scalar_lea.vmem %s1, %s295
      %s297 = smul.u32 2, %s20
      %p298 = scmp.lt.s32.totalorder %s21, 0
      %s299 = scalar_select %p298, %s21, 0
      %s300 = smul.addr %s299, 4
      %s301 = scalar_lea.vmem %s2, %s300
      %p302 = scmp.lt.s32.totalorder %s21, 0
      %s303 = scalar_select %p302, %s21, 0
      %s304 = smul.addr %s303, 4
      %s305 = scalar_lea.vmem %s3, %s304
      %p306 = scmp.lt.s32.totalorder %s21, 0
      %s307 = scalar_select %p306, %s21, 0
      %s308 = scalar_lea.vmem %s4, %s307
      %s309 = smul.u32 2, %s20
      %p310 = scmp.lt.s32.totalorder %s309, 3
      %s311 = scalar_select %p310, %s309, 3
      %p312 = scmp.lt.s32.totalorder %s21, 0
      %s313 = scalar_select %p312, %s21, 0
      %s314 = sadd.s32 %s313, %s311
      %s315 = smul.addr %s314, 8
      %s316 = scalar_lea.vmem %s5, %s315
      %s317 = smul.u32 2, %s20
      %v319 = vld [vmem:[%s290] sm:$0xf]
      %v320 = vld [vmem:[%s290 + $0x4] sm:$0xf]
      %v321 = vld [vmem:[%s301] sm:$0xf]
      %v322 = vld [vmem:[%s301 + $0x4] sm:$0xf]
      %v323 = vld [vmem:[%s296] sm:$0xf]
      %v324 = vld [vmem:[%s296 + $0x4] sm:$0xf]
      %v325 = vld [vmem:[%s305] sm:$0xf]
      %v326 = vld [vmem:[%s305 + $0x4] sm:$0xf]
      %v327 = vld [vmem:[%s305 + $0x8] sm:$0xf]
      %v328 = vld [vmem:[%s305 + $0xc] sm:$0xf]
      %v331 = vunpack.c.l.b16 %v323
      %v332 = vunpack.c.l.b16 %v324
      %v333 = vpack.c.b16 %v332, %v331
      %v338 = vunpack.c.l.b16 %v325
      %v339 = vunpack.c.l.b16 %v326
      %v340 = vunpack.c.l.b16 %v327
      %v341 = vunpack.c.l.b16 %v328
      %v342 = vpack.c.b16 %v339, %v338
      %v343 = vpack.c.b16 %v341, %v340
      %vm346 = vcmask 261120
      %v348 = vsel %vm346, %v333, 0
      %350 = vmatprep.subr.bf16.mxu0 0
      %351 = vmatpush1.bf16.msra.mxu0 0
      %352 = vmatprep.subr.bf16.mxu0 0
      %353 = vmatpush1.bf16.msra.mxu0 0
      %354 = vmatprep.subr.bf16.mxu0 0
      %355 = vmatpush1.bf16.msra.mxu0 0
      %356 = vmatprep.subr.bf16.mxu0 0
      %357 = vmatpush1.bf16.msra.mxu0 0
      %358 = vmatprep.subr.bf16.mxu0 0
      %359 = vmatpush1.bf16.msra.mxu0 0
      %360 = vmatprep.subr.bf16.mxu0 0
      %361 = vmatpush1.bf16.msra.mxu0 0
      %362 = vmatprep.subr.bf16.mxu0 0
      %363 = vmatpush1.bf16.msra.mxu0 %v343
      %364 = vmatprep.subr.bf16.mxu0 0
      %365 = vmatpush1.bf16.msra.mxu0 %v342
      %366 = vmatprep.subr.bf16.mxu0 0
      %367 = vmatpush2.bf16.msra.mxu0 0
      %368 = vmatprep.subr.bf16.mxu0 0
      %369 = vmatpush2.bf16.msra.mxu0 0
      %370 = vmatprep.subr.bf16.mxu0 0
      %371 = vmatpush2.bf16.msra.mxu0 0
      %372 = vmatprep.subr.bf16.mxu0 0
      %373 = vmatpush2.bf16.msra.mxu0 0
      %374 = vmatprep.subr.bf16.mxu0 0
      %375 = vmatpush2.bf16.msra.mxu0 0
      %376 = vmatprep.subr.bf16.mxu0 0
      %377 = vmatpush2.bf16.msra.mxu0 0
      %378 = vmatprep.subr.bf16.mxu0 0
      %379 = vmatpush2.bf16.msra.mxu0 0
      %380 = vmatprep.subr.bf16.mxu0 0
      %381 = vmatpush2.bf16.msra.mxu0 0
      %382 = vmatprep.mubr.bf16.mxu0 0
      %383 = vmatmul.mubr.bf16.gmra.mxu0 %v348
      %v384 = vpop.f32.mrf.mxu0
      %v385 = vadd.f32 0.0, %v384
      %v386 = vpop.f32.mrf.mxu0
      %v387 = vpop.f32.mrf.mxu0
      %v388 = vadd.f32 0.0, %v387
      %v389 = vpop.f32.mrf.mxu0
      %390 = vdwg.mxu0
      %v393 = vunpack.c.l.b16 %v319
      %v394 = vunpack.c.l.b16 %v320
      %v395 = vpack.c.b16 %v394, %v393
      %v398 = vunpack.c.l.b16 %v321
      %v399 = vunpack.c.l.b16 %v322
      %v400 = vpack.c.b16 %v399, %v398
      %vm402 = vcmask 130048
      %v404 = vsel %vm402, %v395, 0
      %406 = vmatprep.subr.bf16.mxu0 0
      %407 = vmatpush1.bf16.msra.mxu0 0
      %408 = vmatprep.subr.bf16.mxu0 0
      %409 = vmatpush1.bf16.msra.mxu0 0
      %410 = vmatprep.subr.bf16.mxu0 0
      %411 = vmatpush1.bf16.msra.mxu0 0
      %412 = vmatprep.subr.bf16.mxu0 0
      %413 = vmatpush1.bf16.msra.mxu0 0
      %414 = vmatprep.subr.bf16.mxu0 0
      %415 = vmatpush1.bf16.msra.mxu0 0
      %416 = vmatprep.subr.bf16.mxu0 0
      %417 = vmatpush1.bf16.msra.mxu0 0
      %418 = vmatprep.subr.bf16.mxu0 0
      %419 = vmatpush1.bf16.msra.mxu0 0
      %420 = vmatprep.subr.bf16.mxu0 0
      %421 = vmatpush1.bf16.msra.mxu0 %v400
      %422 = vmatprep.subr.bf16.mxu0 0
      %423 = vmatpush2.bf16.msra.mxu0 0
      %424 = vmatprep.subr.bf16.mxu0 0
      %425 = vmatpush2.bf16.msra.mxu0 0
      %426 = vmatprep.subr.bf16.mxu0 0
      %427 = vmatpush2.bf16.msra.mxu0 0
      %428 = vmatprep.subr.bf16.mxu0 0
      %429 = vmatpush2.bf16.msra.mxu0 0
      %430 = vmatprep.subr.bf16.mxu0 0
      %431 = vmatpush2.bf16.msra.mxu0 0
      %432 = vmatprep.subr.bf16.mxu0 0
      %433 = vmatpush2.bf16.msra.mxu0 0
      %434 = vmatprep.subr.bf16.mxu0 0
      %435 = vmatpush2.bf16.msra.mxu0 0
      %436 = vmatprep.subr.bf16.mxu0 0
      %437 = vmatpush2.bf16.msra.mxu0 0
      %438 = vmatprep.mubr.bf16.mxu0 0
      %439 = vmatmul.mubr.bf16.gmra.mxu0 %v404
      %v440 = vpop.f32.mrf.mxu0
      %v441 = vadd.f32 %v385, %v440
      %v442 = vpop.f32.mrf.mxu0
      %v443 = vpop.f32.mrf.mxu0
      %v444 = vadd.f32 %v388, %v443
      %v445 = vpop.f32.mrf.mxu0
      %446 = vdwg.mxu0
      %v447 = vld [vmem:[%s308] sm:$0x1]
      %v449 = vlaneseq
      %v450 = vshrl.u32 %v449, 7
      %v451 = vsub.s32 0, %v450
      %v452 = vrot.slane %v447, %v451
      %v454 = vadd.f32 %v441, %v452
      %v455 = vadd.f32 %v444, %v452
      %v456 = vsub.f32 0.0, %v454
      %v457 = vsub.f32 0.0, %v455
      %v458 = vmul.f32 %v456, 1.442695
      %v459 = vpow.pop %v458
      %v460 = vmul.f32 %v457, 1.442695
      %v461 = vpow.pop %v460
      %v462 = vadd.f32 %v459, 1.0
      %v463 = vadd.f32 %v461, 1.0
      %v464 = vrcp.pop %v462
      %v465 = vrcp.pop %v463
      %v466 = vmul.f32 %v454, %v464
      %v467 = vmul.f32 %v455, %v465
      %468 = vst [vmem:[%s316] sm:$0xff] %v466
      %469 = vst [vmem:[%s316 + $0x8] sm:$0xff] %v467
      %s470 = smul.u32 2, %s20
      %p471 = scmp.lt.s32.totalorder %s470, 3
      %s472 = scalar_select %p471, %s470, 3
      %p473 = scmp.lt.s32.totalorder %s21, 0
      %s474 = scalar_select %p473, %s21, 0
      %s475 = sadd.s32 %s474, %s472
      %s476 = smul.addr %s475, 8
      %s477 = scalar_lea.vmem %s5, %s476
      // Predicated region
      $region41: #{_lambda_.36} parent=39 // pred_check
        %p478 = pneg %p178
      $region42: #{_lambda_.36} parent=39 // pred_check_branch
        %480 = sbr.rel (%p478) target = $region44
      $region43: #{_lambda_.36} parent=39 // pred_region
        %s481 = smul.u32 2, %s20
      $region44: #{_lambda_.36} parent=39 // pred_fallthru
        _
    $region40: #{_lambda_.36} parent=5 // pred_fallthru
      _
    %p482 = scmp.le.s32.totalorder 2, %s11
    // Predicated region
    $region45: #{_lambda_.36} parent=5 // pred_check
      %p483 = pneg %p482
    $region46: #{_lambda_.36} parent=5 // pred_check_branch
      %485 = sbr.rel (%p483) target = $region48
    $region47: #{_lambda_.36} parent=5 // pred_region
      %s486 = ssub.s32 %s11, 2
      // Predicated region
      $region49: #{_lambda_.36} parent=47 // pred_check
        %p487 = pneg %p184
      $region50: #{_lambda_.36} parent=47 // pred_check_branch
        %489 = sbr.rel (%p487) target = $region52
      $region51: #{_lambda_.36} parent=47 // pred_region
        %s490 = smul.u32 2, %s22
        %p491 = scmp.lt.s32.totalorder %s490, 3
        %s492 = scalar_select %p491, %s490, 3
        %p493 = scmp.lt.s32.totalorder %s23, 0
        %s494 = scalar_select %p493, %s23, 0
        %s495 = sadd.s32 %s494, %s492
        %s496 = smul.addr %s495, 8
        %s497 = scalar_lea.vmem %s5, %s496
      $region52: #{_lambda_.36} parent=47 // pred_fallthru
        _
    $region48: #{_lambda_.36} parent=5 // pred_fallthru
      _
  $region6: #{_lambda_.36} parent=0 // loop_footer
    %s15 = sadd.s32 1, %s11
  $region7: #{_lambda_.36} parent=0 // loop_footer_branch
    %10 = sbr.rel target = $region3
  $region8: #{_lambda_.36} parent=0 // loop_exit
    _

// kernel: _lambda_.35
$region0: #{_lambda_.35}
  #allocation0 [shape = 'u32[]', space=smem, size = 0x4, offset = 0x4, fixed_abs, tag = 'smem constant byte address 0x4 - core index']
  #allocation1 [shape = 'u32[144,128]{1,0:T(1,128)}', space=vmem, size = 0x12000, scoped, tag = 'internal scratch']
  #allocation2 [shape = 'f32[16,128]{1,0:T(8,128)}', space=vmem, size = 0x2000, scoped, tag = 'scratch operand']
  %s0 = inlined_call_operand.vmem [shape: bf16[32,144], index: 0, kind: input, shape index: {}]
  %s1 = inlined_call_operand.vmem [shape: bf16[144,128], index: 1, kind: input, shape index: {}]
  %s2 = inlined_call_operand.vmem [shape: f32[1,128], index: 2, kind: input, shape index: {}]
  %s3 = inlined_call_operand.vmem [shape: f32[32,128], index: 3, kind: output, shape index: {}]
  %s4 = sld [smem:[#allocation0]]
  $region53: #{_lambda_.35} parent=0
    _
  %s6 = ssub.s32 1, %s4
  %s7 = scalar_select 0, %s6, %s4
  loop: start=0, step=1, limit=4
  $region2: #{_lambda_.35} parent=0 // loop_pre_header
    _
  $region3: #{_lambda_.35} parent=0 // loop_header
    %s9 = sphi 0, %s13
    %p10 = scmp.ge.s32.totalorder %s9, 4
    %s16 = sphi 0, %s35
    %s17 = sphi 0, %s31
    %s18 = sphi 0, %s27
    %s19 = sphi 0, %s16
    %s20 = sphi 0, %s17
    %s21 = sphi 0, %s18
    %s22 = sphi 0, %s19
    %s23 = sphi 0, %s20
    %s24 = sphi 0, %s21
    %s40 = sphi 0, %s42
    %s43 = sphi 0, %s40
    %s44 = sphi 0, %s43
    %s60 = sphi 0, %s44
    %s68 = sphi 0, %s70
    %s71 = sphi 0, %s68
    %s72 = sphi 0, %s71
    %s88 = sphi 0, %s72
    %s94 = sphi 0, %s96
    %s97 = sphi 0, %s94
    %s98 = sphi 0, %s97
    %s114 = sphi 0, %s98
    %s122 = sphi 0, %s124
    %s125 = sphi 0, %s122
    %s126 = sphi 0, %s125
    %s142 = sphi 0, %s126
  $region4: #{_lambda_.35} parent=0 // loop_header_branch
    %12 = sbr.rel (%p10) target = $region8
  $region5: #{_lambda_.35} parent=0 // loop_body
    %s14 = ssub.s32 %s9, 1
    %s15 = ssub.s32 %s9, 2
    %s25 = sadd.s32 1, %s18
    %p26 = scmp.ge.s32.totalorder %s25, 1
    %s27 = scalar_select %p26, 0, %s25
    %s28 = sadd.s32 1, %s17
    %s29 = scalar_select %p26, %s28, %s17
    %p30 = scmp.ge.s32.totalorder %s29, 1
    %s31 = scalar_select %p30, 0, %s29
    %s32 = sadd.s32 1, %s16
    %s33 = scalar_select %p30, %s32, %s16
    %p34 = scmp.ge.s32.totalorder %s33, 2
    %s35 = scalar_select %p34, 0, %s33
    %s36 = ssub.s32 %s16, %s35
    %s37 = ssub.s32 %s18, %s27
    %s38 = sor.u32 %s36, %s37
    %p39 = scmp.eq.s32.totalorder %s38, 0
    %s41 = sadd.s32 %s40, 1
    %s42 = scalar_select %p39, %s40, %s41
    %p45 = pneg %p39
    %p46 = scmp.eq.s32.totalorder %s9, 1
    %p47 = por %p45, %p46
    %p48 = scmp.ne.s32.totalorder %s40, %s43
    %p49 = scmp.eq.s32.totalorder %s9, 0
    %p50 = por %p48, %p49
    %p51 = scmp.ne.s32.totalorder %s40, %s43
    %p52 = scmp.eq.s32.totalorder %s14, 1
    %p53 = por %p51, %p52
    %p54 = scmp.ne.s32.totalorder %s43, %s44
    %p55 = scmp.eq.s32.totalorder %s14, 0
    %p56 = por %p54, %p55
    %p57 = scmp.ne.s32.totalorder %s43, %s44
    %p58 = scmp.eq.s32.totalorder %s15, 1
    %p59 = por %p57, %p58
    %p61 = scmp.ne.s32.totalorder %s44, %s60
    %p62 = scmp.eq.s32.totalorder %s15, 0
    %p63 = por %p61, %p62
    %s64 = ssub.s32 %s18, %s27
    %s65 = ssub.s32 %s17, %s31
    %s66 = sor.u32 %s64, %s65
    %p67 = scmp.eq.s32.totalorder %s66, 0
    %s69 = sadd.s32 %s68, 1
    %s70 = scalar_select %p67, %s68, %s69
    %p73 = pneg %p67
    %p74 = scmp.eq.s32.totalorder %s9, 1
    %p75 = por %p73, %p74
    %p76 = scmp.ne.s32.totalorder %s68, %s71
    %p77 = scmp.eq.s32.totalorder %s9, 0
    %p78 = por %p76, %p77
    %p79 = scmp.ne.s32.totalorder %s68, %s71
    %p80 = scmp.eq.s32.totalorder %s14, 1
    %p81 = por %p79, %p80
    %p82 = scmp.ne.s32.totalorder %s71, %s72
    %p83 = scmp.eq.s32.totalorder %s14, 0
    %p84 = por %p82, %p83
    %p85 = scmp.ne.s32.totalorder %s71, %s72
    %p86 = scmp.eq.s32.totalorder %s15, 1
    %p87 = por %p85, %p86
    %p89 = scmp.ne.s32.totalorder %s72, %s88
    %p90 = scmp.eq.s32.totalorder %s15, 0
    %p91 = por %p89, %p90
    %s92 = ssub.s32 %s17, %s31
    %p93 = scmp.eq.s32.totalorder %s92, 0
    %s95 = sadd.s32 %s94, 1
    %s96 = scalar_select %p93, %s94, %s95
    %p99 = pneg %p93
    %p100 = scmp.eq.s32.totalorder %s9, 1
    %p101 = por %p99, %p100
    %p102 = scmp.ne.s32.totalorder %s94, %s97
    %p103 = scmp.eq.s32.totalorder %s9, 0
    %p104 = por %p102, %p103
    %p105 = scmp.ne.s32.totalorder %s94, %s97
    %p106 = scmp.eq.s32.totalorder %s14, 1
    %p107 = por %p105, %p106
    %p108 = scmp.ne.s32.totalorder %s97, %s98
    %p109 = scmp.eq.s32.totalorder %s14, 0
    %p110 = por %p108, %p109
    %p111 = scmp.ne.s32.totalorder %s97, %s98
    %p112 = scmp.eq.s32.totalorder %s15, 1
    %p113 = por %p111, %p112
    %p115 = scmp.ne.s32.totalorder %s98, %s114
    %p116 = scmp.eq.s32.totalorder %s15, 0
    %p117 = por %p115, %p116
    %s118 = ssub.s32 %s16, %s35
    %s119 = ssub.s32 %s17, %s31
    %s120 = sor.u32 %s118, %s119
    %p121 = scmp.eq.s32.totalorder %s120, 0
    %s123 = sadd.s32 %s122, 1
    %s124 = scalar_select %p121, %s122, %s123
    %p127 = pneg %p121
    %p128 = scmp.eq.s32.totalorder %s9, 1
    %p129 = por %p127, %p128
    %p130 = scmp.ne.s32.totalorder %s122, %s125
    %p131 = scmp.eq.s32.totalorder %s9, 0
    %p132 = por %p130, %p131
    %p133 = scmp.ne.s32.totalorder %s122, %s125
    %p134 = scmp.eq.s32.totalorder %s14, 1
    %p135 = por %p133, %p134
    %p136 = scmp.ne.s32.totalorder %s125, %s126
    %p137 = scmp.eq.s32.totalorder %s14, 0
    %p138 = por %p136, %p137
    %p139 = scmp.ne.s32.totalorder %s125, %s126
    %p140 = scmp.eq.s32.totalorder %s15, 1
    %p141 = por %p139, %p140
    %p143 = scmp.ne.s32.totalorder %s126, %s142
    %p144 = scmp.eq.s32.totalorder %s15, 0
    %p145 = por %p143, %p144
    %p146 = scmp.le.s32.totalorder 1, %s9
    %p147 = scmp.lt.s32.totalorder %s9, 3
    %p148 = pnand %p146, %p147
    %p149 = pneg %p148
    // Predicated region
    $region9: #{_lambda_.35} parent=5 // pred_check
      _
    $region10: #{_lambda_.35} parent=5 // pred_check_branch
      %151 = sbr.rel (%p148) target = $region12
    $region11: #{_lambda_.35} parent=5 // pred_region
      %s152 = ssub.s32 %s9, 1
      // Predicated region
      $region13: #{_lambda_.35} parent=11 // pred_check
        %p153 = pneg %p84
      $region14: #{_lambda_.35} parent=11 // pred_check_branch
        %155 = sbr.rel (%p153) target = $region16
      $region15: #{_lambda_.35} parent=11 // pred_region
        %s156 = smul.u32 18, %s21
        %p157 = scmp.lt.s32.totalorder %s156, 17
        %s158 = scalar_select %p157, %s156, 17
        %p159 = scmp.lt.s32.totalorder %s20, 0
        %s160 = scalar_select %p159, %s20, 0
        %s161 = sadd.s32 %s160, %s158
        %s162 = smul.addr %s161, 4
        %s163 = scalar_lea.vmem %s1, %s162
        %s164 = smul.u32 18, %s21
      $region16: #{_lambda_.35} parent=11 // pred_fallthru
        _
      // Predicated region
      $region17: #{_lambda_.35} parent=11 // pred_check
        %p165 = pneg %p110
      $region18: #{_lambda_.35} parent=11 // pred_check_branch
        %167 = sbr.rel (%p165) target = $region20
      $region19: #{_lambda_.35} parent=11 // pred_region
        %p168 = scmp.lt.s32.totalorder %s20, 0
        %s169 = scalar_select %p168, %s20, 0
        %s170 = scalar_lea.vmem %s2, %s169
      $region20: #{_lambda_.35} parent=11 // pred_fallthru
        _
    $region12: #{_lambda_.35} parent=5 // pred_fallthru
      _
    %p171 = scmp.lt.s32.totalorder %s9, 2
    // Predicated region
    $region21: #{_lambda_.35} parent=5 // pred_check
      %p172 = pneg %p171
    $region22: #{_lambda_.35} parent=5 // pred_check_branch
      %174 = sbr.rel (%p172) target = $region24
    $region23: #{_lambda_.35} parent=5 // pred_region
      // Predicated region
      $region25: #{_lambda_.35} parent=23 // pred_check
        %p175 = pneg %p50
      $region26: #{_lambda_.35} parent=23 // pred_check_branch
        %177 = sbr.rel (%p175) target = $region28
      $region27: #{_lambda_.35} parent=23 // pred_region
        %s178 = smul.u32 2, %s16
        %s179 = smul.u32 2, %s18
        %p180 = scmp.lt.s32.totalorder %s178, 3
        %s181 = scalar_select %p180, %s178, 3
        %p182 = scmp.lt.s32.totalorder %s179, 1
        %s183 = scalar_select %p182, %s179, 1
        %s184 = smul.addr %s181, 2
        %s185 = sadd.s32 %s183, %s184
        %s186 = smul.addr %s185, 4
        %s187 = scalar_lea.vmem %s0, %s186
        %s188 = smul.u32 2, %s16
        %s189 = smul.u32 2, %s18
      $region28: #{_lambda_.35} parent=23 // pred_fallthru
        _
    $region24: #{_lambda_.35} parent=5 // pred_fallthru
      _
    %p190 = scmp.le.s32.totalorder 1, %s9
    %p191 = scmp.lt.s32.totalorder %s9, 3
    %p192 = pnand %p190, %p191
    %p193 = pneg %p192
    // Predicated region
    $region29: #{_lambda_.35} parent=5 // pred_check
      _
    $region30: #{_lambda_.35} parent=5 // pred_check_branch
      %195 = sbr.rel (%p192) target = $region32
    $region31: #{_lambda_.35} parent=5 // pred_region
      %s196 = ssub.s32 %s9, 1
      %s197 = smul.u32 2, %s19
      %s198 = smul.u32 2, %s21
      %p199 = scmp.lt.s32.totalorder %s197, 3
      %s200 = scalar_select %p199, %s197, 3
      %p201 = scmp.lt.s32.totalorder %s198, 1
      %s202 = scalar_select %p201, %s198, 1
      %s203 = smul.addr %s200, 2
      %s204 = sadd.s32 %s202, %s203
      %s205 = smul.addr %s204, 4
      %s206 = scalar_lea.vmem %s0, %s205
      %p207 = pneg %p56
      %p208 = pneg %p53
      %s209 = smul.u32 18, %s21
      %p210 = scmp.lt.s32.totalorder %s209, 17
      %s211 = scalar_select %p210, %s209, 17
      %p212 = scmp.lt.s32.totalorder %s20, 0
      %s213 = scalar_select %p212, %s20, 0
      %s214 = sadd.s32 %s213, %s211
      %s215 = smul.addr %s214, 4
      %s216 = scalar_lea.vmem %s1, %s215
      %p217 = pneg %p84
      %p218 = pneg %p81
      %p219 = scmp.lt.s32.totalorder %s20, 0
      %s220 = scalar_select %p219, %s20, 0
      %s221 = scalar_lea.vmem %s2, %s220
      %p222 = pneg %p110
      %p223 = pneg %p107
      %p224 = pneg %p138
      %p225 = pneg %p135
      %s226 = smul.u32 2, %s19
      %p227 = scmp.lt.s32.totalorder %s226, 3
      %s228 = scalar_select %p227, %s226, 3
      %p229 = scmp.lt.s32.totalorder %s20, 0
      %s230 = scalar_select %p229, %s20, 0
      %s231 = sadd.s32 %s230, %s228
      %s232 = smul.addr %s231, 8
      %s233 = scalar_lea.vmem %s3, %s232
      %s234 = smul.u32 2, %s19
      %s235 = smul.u32 2, %s21
      %p236 = scmp.lt.s32.totalorder %s234, 3
      %s237 = scalar_select %p236, %s234, 3
      %p238 = scmp.lt.s32.totalorder %s235, 1
      %s239 = scalar_select %p238, %s235, 1
      %s240 = smul.addr %s237, 2
      %s241 = sadd.s32 %s239, %s240
      %s242 = smul.addr %s241, 4
      %s243 = scalar_lea.vmem %s0, %s242
      %s244 = smul.u32 2, %s19
      %s245 = smul.u32 2, %s21
      %s246 = smul.u32 18, %s21
      %p247 = scmp.lt.s32.totalorder %s246, 17
      %s248 = scalar_select %p247, %s246, 17
      %p249 = scmp.lt.s32.totalorder %s20, 0
      %s250 = scalar_select %p249, %s20, 0
      %s251 = sadd.s32 %s250, %s248
      %s252 = smul.addr %s251, 4
      %s253 = scalar_lea.vmem %s1, %s252
      %s254 = smul.u32 18, %s21
      %p255 = scmp.lt.s32.totalorder %s20, 0
      %s256 = scalar_select %p255, %s20, 0
      %s257 = scalar_lea.vmem %s2, %s256
      %s258 = smul.u32 2, %s19
      %p259 = scmp.lt.s32.totalorder %s258, 3
      %s260 = scalar_select %p259, %s258, 3
      %p261 = scmp.lt.s32.totalorder %s20, 0
      %s262 = scalar_select %p261, %s20, 0
      %s263 = sadd.s32 %s262, %s260
      %s264 = smul.addr %s263, 8
      %s265 = scalar_lea.vmem %s3, %s264
      %s266 = smul.u32 2, %s19
      %p268 = scmp.eq.s32.totalorder %s21, 0
      // Predicated region
      $region33: #{_lambda_.35} parent=31 // pred_check
        %p269 = pneg %p268
      $region34: #{_lambda_.35} parent=31 // pred_check_branch
        %271 = sbr.rel (%p269) target = $region36
      $region35: #{_lambda_.35} parent=31 // pred_region
        %272 = vst [vmem:[#allocation2] sm:$0xff] 0.0
        %273 = vst [vmem:[#allocation2 + $0x8] sm:$0xff] 0.0
      $region36: #{_lambda_.35} parent=31 // pred_fallthru
        _
      %v274 = vld [vmem:[#allocation2] sm:$0xff]
      %v275 = vld [vmem:[#allocation2 + $0x8] sm:$0xff]
      %v276 = vld [vmem:[%s243] sm:$0xff]
      %v277 = vld [vmem:[%s243 + $0x8] sm:$0xff]
      %v278 = vld [vmem:[%s253] sm:$0xf]
      %v279 = vld [vmem:[%s253 + $0x4] sm:$0xf]
      %v280 = vld [vmem:[%s253 + $0x8] sm:$0xf]
      %v281 = vld [vmem:[%s253 + $0xc] sm:$0xf]
      %v282 = vld [vmem:[%s253 + $0x10] sm:$0xf]
      %v283 = vld [vmem:[%s253 + $0x14] sm:$0xf]
      %v284 = vld [vmem:[%s253 + $0x18] sm:$0xf]
      %v285 = vld [vmem:[%s253 + $0x1c] sm:$0xf]
      %v286 = vld [vmem:[%s253 + $0x20] sm:$0xf]
      %v287 = vld [vmem:[%s253 + $0x24] sm:$0xf]
      %v288 = vld [vmem:[%s253 + $0x28] sm:$0xf]
      %v289 = vld [vmem:[%s253 + $0x2c] sm:$0xf]
      %v290 = vld [vmem:[%s253 + $0x30] sm:$0xf]
      %v291 = vld [vmem:[%s253 + $0x34] sm:$0xf]
      %v292 = vld [vmem:[%s253 + $0x38] sm:$0xf]
      %v293 = vld [vmem:[%s253 + $0x3c] sm:$0xf]
      %v294 = vld [vmem:[%s253 + $0x40] sm:$0xf]
      %v295 = vld [vmem:[%s253 + $0x44] sm:$0xf]
      %v298 = vunpack.c.l.b16 %v276
      %v299 = vunpack.c.h.b16 %v276
      %v300 = vunpack.c.l.b16 %v277
      %v301 = vunpack.c.h.b16 %v277
      %v302 = vpack.c.b16 %v300, %v298
      %v303 = vpack.c.b16 %v301, %v299
      %v323 = vunpack.c.l.b16 %v278
      %v324 = vunpack.c.l.b16 %v279
      %v325 = vunpack.c.l.b16 %v280
      %v326 = vunpack.c.l.b16 %v281
      %v327 = vunpack.c.l.b16 %v282
      %v328 = vunpack.c.l.b16 %v283
      %v329 = vunpack.c.l.b16 %v284
      %v330 = vunpack.c.l.b16 %v285
      %v331 = vunpack.c.l.b16 %v286
      %v332 = vunpack.c.l.b16 %v287
      %v333 = vunpack.c.l.b16 %v288
      %v334 = vunpack.c.l.b16 %v289
      %v335 = vunpack.c.l.b16 %v290
      %v336 = vunpack.c.l.b16 %v291
      %v337 = vunpack.c.l.b16 %v292
      %v338 = vunpack.c.l.b16 %v293
      %v339 = vunpack.c.l.b16 %v294
      %v340 = vunpack.c.l.b16 %v295
      %v341 = vpack.c.b16 %v324, %v323
      %v342 = vpack.c.b16 %v326, %v325
      %v343 = vpack.c.b16 %v328, %v327
      %v344 = vpack.c.b16 %v330, %v329
      %v345 = vpack.c.b16 %v332, %v331
      %v346 = vpack.c.b16 %v334, %v333
      %v347 = vpack.c.b16 %v336, %v335
      %v348 = vpack.c.b16 %v338, %v337
      %v349 = vpack.c.b16 %v340, %v339
      %vm359 = vcmask 130048
      %v361 = vsel %vm359, %v303, 0
      %363 = vmatprep.subr.bf16.mxu0 0
      %364 = vmatpush1.bf16.msra.mxu0 %v348
      %365 = vmatprep.subr.bf16.mxu0 0
      %366 = vmatpush1.bf16.msra.mxu0 %v347
      %367 = vmatprep.subr.bf16.mxu0 0
      %368 = vmatpush1.bf16.msra.mxu0 %v346
      %369 = vmatprep.subr.bf16.mxu0 0
      %370 = vmatpush1.bf16.msra.mxu0 %v345
      %371 = vmatprep.subr.bf16.mxu0 0
      %372 = vmatpush1.bf16.msra.mxu0 %v344
      %373 = vmatprep.subr.bf16.mxu0 0
      %374 = vmatpush1.bf16.msra.mxu0 %v343
      %375 = vmatprep.subr.bf16.mxu0 0
      %376 = vmatpush1.bf16.msra.mxu0 %v342
      %377 = vmatprep.subr.bf16.mxu0 0
      %378 = vmatpush1.bf16.msra.mxu0 %v341
      %379 = vmatprep.subr.bf16.mxu0 0
      %380 = vmatpush2.bf16.msra.mxu0 0
      %381 = vmatprep.subr.bf16.mxu0 0
      %382 = vmatpush2.bf16.msra.mxu0 0
      %383 = vmatprep.subr.bf16.mxu0 0
      %384 = vmatpush2.bf16.msra.mxu0 0
      %385 = vmatprep.subr.bf16.mxu0 0
      %386 = vmatpush2.bf16.msra.mxu0 0
      %387 = vmatprep.subr.bf16.mxu0 0
      %388 = vmatpush2.bf16.msra.mxu0 0
      %389 = vmatprep.subr.bf16.mxu0 0
      %390 = vmatpush2.bf16.msra.mxu0 0
      %391 = vmatprep.subr.bf16.mxu0 0
      %392 = vmatpush2.bf16.msra.mxu0 0
      %393 = vmatprep.subr.bf16.mxu0 0
      %394 = vmatpush2.bf16.msra.mxu0 %v349
      %395 = vmatprep.mubr.bf16.mxu0 %v361
      %396 = vmatmul.mubr.bf16.gmra.mxu0 %v302
      %v397 = vpop.f32.mrf.mxu0
      %v398 = vadd.f32 0.0, %v397
      %v399 = vpop.f32.mrf.mxu0
      %v400 = vpop.f32.mrf.mxu0
      %v401 = vadd.f32 0.0, %v400
      %v402 = vpop.f32.mrf.mxu0
      %403 = vdwg.mxu0
      %v404 = vadd.f32 %v274, %v398
      %v405 = vadd.f32 %v275, %v401
      %406 = vst [vmem:[#allocation2] sm:$0xff] %v404
      %407 = vst [vmem:[#allocation2 + $0x8] sm:$0xff] %v405
      // Predicated region
      $region37: #{_lambda_.35} parent=31 // pred_check
        %p408 = pneg %p268
      $region38: #{_lambda_.35} parent=31 // pred_check_branch
        %410 = sbr.rel (%p408) target = $region40
      $region39: #{_lambda_.35} parent=31 // pred_region
        %v411 = vld [vmem:[#allocation2] sm:$0xff]
        %v412 = vld [vmem:[#allocation2 + $0x8] sm:$0xff]
        %v413 = vld [vmem:[%s257] sm:$0x1]
        %v415 = vlaneseq
        %v416 = vshrl.u32 %v415, 7
        %v417 = vsub.s32 0, %v416
        %v418 = vrot.slane %v413, %v417
        %v420 = vadd.f32 %v411, %v418
        %v421 = vadd.f32 %v412, %v418
        %v422 = vsub.f32 0.0, %v420
        %v423 = vsub.f32 0.0, %v421
        %v424 = vmul.f32 %v422, 1.442695
        %v425 = vpow.pop %v424
        %v426 = vmul.f32 %v423, 1.442695
        %v427 = vpow.pop %v426
        %v428 = vadd.f32 %v425, 1.0
        %v429 = vadd.f32 %v427, 1.0
        %v430 = vrcp.pop %v428
        %v431 = vrcp.pop %v429
        %v432 = vmul.f32 %v420, %v430
        %v433 = vmul.f32 %v421, %v431
        %434 = vst [vmem:[%s265] sm:$0xff] %v432
        %435 = vst [vmem:[%s265 + $0x8] sm:$0xff] %v433
      $region40: #{_lambda_.35} parent=31 // pred_fallthru
        _
      %s436 = smul.u32 2, %s19
      %p437 = scmp.lt.s32.totalorder %s436, 3
      %s438 = scalar_select %p437, %s436, 3
      %p439 = scmp.lt.s32.totalorder %s20, 0
      %s440 = scalar_select %p439, %s20, 0
      %s441 = sadd.s32 %s440, %s438
      %s442 = smul.addr %s441, 8
      %s443 = scalar_lea.vmem %s3, %s442
      // Predicated region
      $region41: #{_lambda_.35} parent=31 // pred_check
        %p444 = pneg %p135
      $region42: #{_lambda_.35} parent=31 // pred_check_branch
        %446 = sbr.rel (%p444) target = $region44
      $region43: #{_lambda_.35} parent=31 // pred_region
        %s447 = smul.u32 2, %s19
      $region44: #{_lambda_.35} parent=31 // pred_fallthru
        _
    $region32: #{_lambda_.35} parent=5 // pred_fallthru
      _
    %p448 = scmp.le.s32.totalorder 2, %s9
    // Predicated region
    $region45: #{_lambda_.35} parent=5 // pred_check
      %p449 = pneg %p448
    $region46: #{_lambda_.35} parent=5 // pred_check_branch
      %451 = sbr.rel (%p449) target = $region48
    $region47: #{_lambda_.35} parent=5 // pred_region
      %s452 = ssub.s32 %s9, 2
      // Predicated region
      $region49: #{_lambda_.35} parent=47 // pred_check
        %p453 = pneg %p141
      $region50: #{_lambda_.35} parent=47 // pred_check_branch
        %455 = sbr.rel (%p453) target = $region52
      $region51: #{_lambda_.35} parent=47 // pred_region
        %s456 = smul.u32 2, %s22
        %p457 = scmp.lt.s32.totalorder %s456, 3
        %s458 = scalar_select %p457, %s456, 3
        %p459 = scmp.lt.s32.totalorder %s23, 0
        %s460 = scalar_select %p459, %s23, 0
        %s461 = sadd.s32 %s460, %s458
        %s462 = smul.addr %s461, 8
        %s463 = scalar_lea.vmem %s3, %s462
      $region52: #{_lambda_.35} parent=47 // pred_fallthru
        _
    $region48: #{_lambda_.35} parent=5 // pred_fallthru
      _
  $region6: #{_lambda_.35} parent=0 // loop_footer
    %s13 = sadd.s32 1, %s9
  $region7: #{_lambda_.35} parent=0 // loop_footer_branch
    %8 = sbr.rel target = $region3
  $region8: #{_lambda_.35} parent=0 // loop_exit
    _

// kernel: _lambda_.31
$region0: #{_lambda_.31}
  #allocation0 [shape = 'u32[]', space=smem, size = 0x4, offset = 0x4, fixed_abs, tag = 'smem constant byte address 0x4 - core index']
  #allocation1 [shape = 'u32[144,128]{1,0:T(1,128)}', space=vmem, size = 0x12000, scoped, tag = 'internal scratch']
  %s0 = inlined_call_operand.vmem [shape: bf16[128,8], index: 0, kind: input, shape index: {}]
  %s1 = inlined_call_operand.vmem [shape: bf16[128,16], index: 1, kind: input, shape index: {}]
  %s2 = inlined_call_operand.vmem [shape: bf16[8,128], index: 2, kind: input, shape index: {}]
  %s3 = inlined_call_operand.vmem [shape: bf16[16,128], index: 3, kind: input, shape index: {}]
  %s4 = inlined_call_operand.vmem [shape: f32[1,128], index: 4, kind: input, shape index: {}]
  %s5 = inlined_call_operand.vmem [shape: f32[128,128], index: 5, kind: output, shape index: {}]
  %s6 = sld [smem:[#allocation0]]
  $region53: #{_lambda_.31} parent=0
    _
  %s8 = ssub.s32 1, %s6
  %s9 = scalar_select 0, %s8, %s6
  loop: start=0, step=1, limit=4
  $region2: #{_lambda_.31} parent=0 // loop_pre_header
    _
  $region3: #{_lambda_.31} parent=0 // loop_header
    %s11 = sphi 0, %s15
    %p12 = scmp.ge.s32.totalorder %s11, 4
    %s18 = sphi 0, %s30
    %s19 = sphi 0, %s26
    %s20 = sphi 0, %s18
    %s21 = sphi 0, %s19
    %s22 = sphi 0, %s20
    %s23 = sphi 0, %s21
    %s33 = sphi 0, %s35
    %s36 = sphi 0, %s33
    %s37 = sphi 0, %s36
    %s53 = sphi 0, %s37
    %s59 = sphi 0, %s61
    %s62 = sphi 0, %s59
    %s63 = sphi 0, %s62
    %s79 = sphi 0, %s63
    %s85 = sphi 0, %s87
    %s88 = sphi 0, %s85
    %s89 = sphi 0, %s88
    %s105 = sphi 0, %s89
    %s111 = sphi 0, %s113
    %s114 = sphi 0, %s111
    %s115 = sphi 0, %s114
    %s131 = sphi 0, %s115
    %s137 = sphi 0, %s139
    %s140 = sphi 0, %s137
    %s141 = sphi 0, %s140
    %s157 = sphi 0, %s141
    %s165 = sphi 0, %s167
    %s168 = sphi 0, %s165
    %s169 = sphi 0, %s168
    %s185 = sphi 0, %s169
  $region4: #{_lambda_.31} parent=0 // loop_header_branch
    %14 = sbr.rel (%p12) target = $region8
  $region5: #{_lambda_.31} parent=0 // loop_body
    %s16 = ssub.s32 %s11, 1
    %s17 = ssub.s32 %s11, 2
    %s24 = sadd.s32 1, %s19
    %p25 = scmp.ge.s32.totalorder %s24, 1
    %s26 = scalar_select %p25, 0, %s24
    %s27 = sadd.s32 1, %s18
    %s28 = scalar_select %p25, %s27, %s18
    %p29 = scmp.ge.s32.totalorder %s28, 2
    %s30 = scalar_select %p29, 0, %s28
    %s31 = ssub.s32 %s18, %s30
    %p32 = scmp.eq.s32.totalorder %s31, 0
    %s34 = sadd.s32 %s33, 1
    %s35 = scalar_select %p32, %s33, %s34
    %p38 = pneg %p32
    %p39 = scmp.eq.s32.totalorder %s11, 1
    %p40 = por %p38, %p39
    %p41 = scmp.ne.s32.totalorder %s33, %s36
    %p42 = scmp.eq.s32.totalorder %s11, 0
    %p43 = por %p41, %p42
    %p44 = scmp.ne.s32.totalorder %s33, %s36
    %p45 = scmp.eq.s32.totalorder %s16, 1
    %p46 = por %p44, %p45
    %p47 = scmp.ne.s32.totalorder %s36, %s37
    %p48 = scmp.eq.s32.totalorder %s16, 0
    %p49 = por %p47, %p48
    %p50 = scmp.ne.s32.totalorder %s36, %s37
    %p51 = scmp.eq.s32.totalorder %s17, 1
    %p52 = por %p50, %p51
    %p54 = scmp.ne.s32.totalorder %s37, %s53
    %p55 = scmp.eq.s32.totalorder %s17, 0
    %p56 = por %p54, %p55
    %s57 = ssub.s32 %s18, %s30
    %p58 = scmp.eq.s32.totalorder %s57, 0
    %s60 = sadd.s32 %s59, 1
    %s61 = scalar_select %p58, %s59, %s60
    %p64 = pneg %p58
    %p65 = scmp.eq.s32.totalorder %s11, 1
    %p66 = por %p64, %p65
    %p67 = scmp.ne.s32.totalorder %s59, %s62
    %p68 = scmp.eq.s32.totalorder %s11, 0
    %p69 = por %p67, %p68
    %p70 = scmp.ne.s32.totalorder %s59, %s62
    %p71 = scmp.eq.s32.totalorder %s16, 1
    %p72 = por %p70, %p71
    %p73 = scmp.ne.s32.totalorder %s62, %s63
    %p74 = scmp.eq.s32.totalorder %s16, 0
    %p75 = por %p73, %p74
    %p76 = scmp.ne.s32.totalorder %s62, %s63
    %p77 = scmp.eq.s32.totalorder %s17, 1
    %p78 = por %p76, %p77
    %p80 = scmp.ne.s32.totalorder %s63, %s79
    %p81 = scmp.eq.s32.totalorder %s17, 0
    %p82 = por %p80, %p81
    %s83 = ssub.s32 %s19, %s26
    %p84 = scmp.eq.s32.totalorder %s83, 0
    %s86 = sadd.s32 %s85, 1
    %s87 = scalar_select %p84, %s85, %s86
    %p90 = pneg %p84
    %p91 = scmp.eq.s32.totalorder %s11, 1
    %p92 = por %p90, %p91
    %p93 = scmp.ne.s32.totalorder %s85, %s88
    %p94 = scmp.eq.s32.totalorder %s11, 0
    %p95 = por %p93, %p94
    %p96 = scmp.ne.s32.totalorder %s85, %s88
    %p97 = scmp.eq.s32.totalorder %s16, 1
    %p98 = por %p96, %p97
    %p99 = scmp.ne.s32.totalorder %s88, %s89
    %p100 = scmp.eq.s32.totalorder %s16, 0
    %p101 = por %p99, %p100
    %p102 = scmp.ne.s32.totalorder %s88, %s89
    %p103 = scmp.eq.s32.totalorder %s17, 1
    %p104 = por %p102, %p103
    %p106 = scmp.ne.s32.totalorder %s89, %s105
    %p107 = scmp.eq.s32.totalorder %s17, 0
    %p108 = por %p106, %p107
    %s109 = ssub.s32 %s19, %s26
    %p110 = scmp.eq.s32.totalorder %s109, 0
    %s112 = sadd.s32 %s111, 1
    %s113 = scalar_select %p110, %s111, %s112
    %p116 = pneg %p110
    %p117 = scmp.eq.s32.totalorder %s11, 1
    %p118 = por %p116, %p117
    %p119 = scmp.ne.s32.totalorder %s111, %s114
    %p120 = scmp.eq.s32.totalorder %s11, 0
    %p121 = por %p119, %p120
    %p122 = scmp.ne.s32.totalorder %s111, %s114
    %p123 = scmp.eq.s32.totalorder %s16, 1
    %p124 = por %p122, %p123
    %p125 = scmp.ne.s32.totalorder %s114, %s115
    %p126 = scmp.eq.s32.totalorder %s16, 0
    %p127 = por %p125, %p126
    %p128 = scmp.ne.s32.totalorder %s114, %s115
    %p129 = scmp.eq.s32.totalorder %s17, 1
    %p130 = por %p128, %p129
    %p132 = scmp.ne.s32.totalorder %s115, %s131
    %p133 = scmp.eq.s32.totalorder %s17, 0
    %p134 = por %p132, %p133
    %s135 = ssub.s32 %s19, %s26
    %p136 = scmp.eq.s32.totalorder %s135, 0
    %s138 = sadd.s32 %s137, 1
    %s139 = scalar_select %p136, %s137, %s138
    %p142 = pneg %p136
    %p143 = scmp.eq.s32.totalorder %s11, 1
    %p144 = por %p142, %p143
    %p145 = scmp.ne.s32.totalorder %s137, %s140
    %p146 = scmp.eq.s32.totalorder %s11, 0
    %p147 = por %p145, %p146
    %p148 = scmp.ne.s32.totalorder %s137, %s140
    %p149 = scmp.eq.s32.totalorder %s16, 1
    %p150 = por %p148, %p149
    %p151 = scmp.ne.s32.totalorder %s140, %s141
    %p152 = scmp.eq.s32.totalorder %s16, 0
    %p153 = por %p151, %p152
    %p154 = scmp.ne.s32.totalorder %s140, %s141
    %p155 = scmp.eq.s32.totalorder %s17, 1
    %p156 = por %p154, %p155
    %p158 = scmp.ne.s32.totalorder %s141, %s157
    %p159 = scmp.eq.s32.totalorder %s17, 0
    %p160 = por %p158, %p159
    %s161 = ssub.s32 %s18, %s30
    %s162 = ssub.s32 %s19, %s26
    %s163 = sor.u32 %s161, %s162
    %p164 = scmp.eq.s32.totalorder %s163, 0
    %s166 = sadd.s32 %s165, 1
    %s167 = scalar_select %p164, %s165, %s166
    %p170 = pneg %p164
    %p171 = scmp.eq.s32.totalorder %s11, 1
    %p172 = por %p170, %p171
    %p173 = scmp.ne.s32.totalorder %s165, %s168
    %p174 = scmp.eq.s32.totalorder %s11, 0
    %p175 = por %p173, %p174
    %p176 = scmp.ne.s32.totalorder %s165, %s168
    %p177 = scmp.eq.s32.totalorder %s16, 1
    %p178 = por %p176, %p177
    %p179 = scmp.ne.s32.totalorder %s168, %s169
    %p180 = scmp.eq.s32.totalorder %s16, 0
    %p181 = por %p179, %p180
    %p182 = scmp.ne.s32.totalorder %s168, %s169
    %p183 = scmp.eq.s32.totalorder %s17, 1
    %p184 = por %p182, %p183
    %p186 = scmp.ne.s32.totalorder %s169, %s185
    %p187 = scmp.eq.s32.totalorder %s17, 0
    %p188 = por %p186, %p187
    %p189 = scmp.le.s32.totalorder 1, %s11
    %p190 = scmp.lt.s32.totalorder %s11, 3
    %p191 = pnand %p189, %p190
    %p192 = pneg %p191
    // Predicated region
    $region9: #{_lambda_.31} parent=5 // pred_check
      _
    $region10: #{_lambda_.31} parent=5 // pred_check_branch
      %194 = sbr.rel (%p191) target = $region12
    $region11: #{_lambda_.31} parent=5 // pred_region
      %s195 = ssub.s32 %s11, 1
      // Predicated region
      $region13: #{_lambda_.31} parent=11 // pred_check
        %p196 = pneg %p101
      $region14: #{_lambda_.31} parent=11 // pred_check_branch
        %198 = sbr.rel (%p196) target = $region16
      $region15: #{_lambda_.31} parent=11 // pred_region
        %p199 = scmp.lt.s32.totalorder %s21, 0
        %s200 = scalar_select %p199, %s21, 0
        %s201 = smul.addr %s200, 4
        %s202 = scalar_lea.vmem %s2, %s201
      $region16: #{_lambda_.31} parent=11 // pred_fallthru
        _
      // Predicated region
      $region17: #{_lambda_.31} parent=11 // pred_check
        %p203 = pneg %p127
      $region18: #{_lambda_.31} parent=11 // pred_check_branch
        %205 = sbr.rel (%p203) target = $region20
      $region19: #{_lambda_.31} parent=11 // pred_region
        %p206 = scmp.lt.s32.totalorder %s21, 0
        %s207 = scalar_select %p206, %s21, 0
        %s208 = smul.addr %s207, 4
        %s209 = scalar_lea.vmem %s3, %s208
      $region20: #{_lambda_.31} parent=11 // pred_fallthru
        _
      // Predicated region
      $region21: #{_lambda_.31} parent=11 // pred_check
        %p210 = pneg %p153
      $region22: #{_lambda_.31} parent=11 // pred_check_branch
        %212 = sbr.rel (%p210) target = $region24
      $region23: #{_lambda_.31} parent=11 // pred_region
        %p213 = scmp.lt.s32.totalorder %s21, 0
        %s214 = scalar_select %p213, %s21, 0
        %s215 = scalar_lea.vmem %s4, %s214
      $region24: #{_lambda_.31} parent=11 // pred_fallthru
        _
    $region12: #{_lambda_.31} parent=5 // pred_fallthru
      _
    %p216 = scmp.lt.s32.totalorder %s11, 2
    // Predicated region
    $region25: #{_lambda_.31} parent=5 // pred_check
      %p217 = pneg %p216
    $region26: #{_lambda_.31} parent=5 // pred_check_branch
      %219 = sbr.rel (%p217) target = $region28
    $region27: #{_lambda_.31} parent=5 // pred_region
      // Predicated region
      $region29: #{_lambda_.31} parent=27 // pred_check
        %p220 = pneg %p43
      $region30: #{_lambda_.31} parent=27 // pred_check_branch
        %222 = sbr.rel (%p220) target = $region32
      $region31: #{_lambda_.31} parent=27 // pred_region
        %s223 = smul.u32 8, %s18
        %p224 = scmp.lt.s32.totalorder %s223, 15
        %s225 = scalar_select %p224, %s223, 15
        %s226 = smul.addr %s225, 4
        %s227 = scalar_lea.vmem %s0, %s226
        %s228 = smul.u32 8, %s18
      $region32: #{_lambda_.31} parent=27 // pred_fallthru
        _
      // Predicated region
      $region33: #{_lambda_.31} parent=27 // pred_check
        %p229 = pneg %p69
      $region34: #{_lambda_.31} parent=27 // pred_check_branch
        %231 = sbr.rel (%p229) target = $region36
      $region35: #{_lambda_.31} parent=27 // pred_region
        %s232 = smul.u32 8, %s18
        %p233 = scmp.lt.s32.totalorder %s232, 15
        %s234 = scalar_select %p233, %s232, 15
        %s235 = smul.addr %s234, 4
        %s236 = scalar_lea.vmem %s1, %s235
        %s237 = smul.u32 8, %s18
      $region36: #{_lambda_.31} parent=27 // pred_fallthru
        _
    $region28: #{_lambda_.31} parent=5 // pred_fallthru
      _
    %p238 = scmp.le.s32.totalorder 1, %s11
    %p239 = scmp.lt.s32.totalorder %s11, 3
    %p240 = pnand %p238, %p239
    %p241 = pneg %p240
    // Predicated region
    $region37: #{_lambda_.31} parent=5 // pred_check
      _
    $region38: #{_lambda_.31} parent=5 // pred_check_branch
      %243 = sbr.rel (%p240) target = $region40
    $region39: #{_lambda_.31} parent=5 // pred_region
      %s244 = ssub.s32 %s11, 1
      %s245 = smul.u32 8, %s20
      %p246 = scmp.lt.s32.totalorder %s245, 15
      %s247 = scalar_select %p246, %s245, 15
      %s248 = smul.addr %s247, 4
      %s249 = scalar_lea.vmem %s0, %s248
      %p250 = pneg %p49
      %p251 = pneg %p46
      %s252 = smul.u32 8, %s20
      %p253 = scmp.lt.s32.totalorder %s252, 15
      %s254 = scalar_select %p253, %s252, 15
      %s255 = smul.addr %s254, 4
      %s256 = scalar_lea.vmem %s1, %s255
      %p257 = pneg %p75
      %p258 = pneg %p72
      %p259 = scmp.lt.s32.totalorder %s21, 0
      %s260 = scalar_select %p259, %s21, 0
      %s261 = smul.addr %s260, 4
      %s262 = scalar_lea.vmem %s2, %s261
      %p263 = pneg %p101
      %p264 = pneg %p98
      %p265 = scmp.lt.s32.totalorder %s21, 0
      %s266 = scalar_select %p265, %s21, 0
      %s267 = smul.addr %s266, 4
      %s268 = scalar_lea.vmem %s3, %s267
      %p269 = pneg %p127
      %p270 = pneg %p124
      %p271 = scmp.lt.s32.totalorder %s21, 0
      %s272 = scalar_select %p271, %s21, 0
      %s273 = scalar_lea.vmem %s4, %s272
      %p274 = pneg %p153
      %p275 = pneg %p150
      %p276 = pneg %p181
      %p277 = pneg %p178
      %s278 = smul.u32 8, %s20
      %p279 = scmp.lt.s32.totalorder %s278, 15
      %s280 = scalar_select %p279, %s278, 15
      %p281 = scmp.lt.s32.totalorder %s21, 0
      %s282 = scalar_select %p281, %s21, 0
      %s283 = sadd.s32 %s282, %s280
      %s284 = smul.addr %s283, 8
      %s285 = scalar_lea.vmem %s5, %s284
      %s286 = smul.u32 8, %s20
      %p287 = scmp.lt.s32.totalorder %s286, 15
      %s288 = scalar_select %p287, %s286, 15
      %s289 = smul.addr %s288, 4
      %s290 = scalar_lea.vmem %s0, %s289
      %s291 = smul.u32 8, %s20
      %s292 = smul.u32 8, %s20
      %p293 = scmp.lt.s32.totalorder %s292, 15
      %s294 = scalar_select %p293, %s292, 15
      %s295 = smul.addr %s294, 4
      %s296 = scalar_lea.vmem %s1, %s295
      %s297 = smul.u32 8, %s20
      %p298 = scmp.lt.s32.totalorder %s21, 0
      %s299 = scalar_select %p298, %s21, 0
      %s300 = smul.addr %s299, 4
      %s301 = scalar_lea.vmem %s2, %s300
      %p302 = scmp.lt.s32.totalorder %s21, 0
      %s303 = scalar_select %p302, %s21, 0
      %s304 = smul.addr %s303, 4
      %s305 = scalar_lea.vmem %s3, %s304
      %p306 = scmp.lt.s32.totalorder %s21, 0
      %s307 = scalar_select %p306, %s21, 0
      %s308 = scalar_lea.vmem %s4, %s307
      %s309 = smul.u32 8, %s20
      %p310 = scmp.lt.s32.totalorder %s309, 15
      %s311 = scalar_select %p310, %s309, 15
      %p312 = scmp.lt.s32.totalorder %s21, 0
      %s313 = scalar_select %p312, %s21, 0
      %s314 = sadd.s32 %s313, %s311
      %s315 = smul.addr %s314, 8
      %s316 = scalar_lea.vmem %s5, %s315
      %s317 = smul.u32 8, %s20
      %v319 = vld [vmem:[%s290] sm:$0xf]
      %v320 = vld [vmem:[%s290 + $0x4] sm:$0xf]
      %v321 = vld [vmem:[%s290 + $0x8] sm:$0xf]
      %v322 = vld [vmem:[%s290 + $0xc] sm:$0xf]
      %v323 = vld [vmem:[%s290 + $0x10] sm:$0xf]
      %v324 = vld [vmem:[%s290 + $0x14] sm:$0xf]
      %v325 = vld [vmem:[%s290 + $0x18] sm:$0xf]
      %v326 = vld [vmem:[%s290 + $0x1c] sm:$0xf]
      %v327 = vld [vmem:[%s301] sm:$0xf]
      %v328 = vld [vmem:[%s296] sm:$0xf]
      %v329 = vld [vmem:[%s296 + $0x4] sm:$0xf]
      %v330 = vld [vmem:[%s296 + $0x8] sm:$0xf]
      %v331 = vld [vmem:[%s296 + $0xc] sm:$0xf]
      %v332 = vld [vmem:[%s296 + $0x10] sm:$0xf]
      %v333 = vld [vmem:[%s296 + $0x14] sm:$0xf]
      %v334 = vld [vmem:[%s296 + $0x18] sm:$0xf]
      %v335 = vld [vmem:[%s296 + $0x1c] sm:$0xf]
      %v336 = vld [vmem:[%s305] sm:$0xf]
      %v337 = vld [vmem:[%s305 + $0x4] sm:$0xf]
      %v346 = vunpack.c.l.b16 %v328
      %v347 = vunpack.c.l.b16 %v329
      %v348 = vunpack.c.l.b16 %v330
      %v349 = vunpack.c.l.b16 %v331
      %v350 = vunpack.c.l.b16 %v332
      %v351 = vunpack.c.l.b16 %v333
      %v352 = vunpack.c.l.b16 %v334
      %v353 = vunpack.c.l.b16 %v335
      %v354 = vpack.c.b16 %v347, %v346
      %v355 = vpack.c.b16 %v349, %v348
      %v356 = vpack.c.b16 %v351, %v350
      %v357 = vpack.c.b16 %v353, %v352
      %v360 = vunpack.c.l.b16 %v336
      %v361 = vunpack.c.l.b16 %v337
      %v362 = vpack.c.b16 %v361, %v360
      %vm364 = vcmask 130048
      %v366 = vsel %vm364, %v354, 0
      %v369 = vsel %vm364, %v355, 0
      %v372 = vsel %vm364, %v356, 0
      %v375 = vsel %vm364, %v357, 0
      %377 = vmatprep.subr.bf16.mxu0 0
      %378 = vmatpush1.bf16.msra.mxu0 0
      %379 = vmatprep.subr.bf16.mxu0 0
      %380 = vmatpush1.bf16.msra.mxu0 0
      %381 = vmatprep.subr.bf16.mxu0 0
      %382 = vmatpush1.bf16.msra.mxu0 0
      %383 = vmatprep.subr.bf16.mxu0 0
      %384 = vmatpush1.bf16.msra.mxu0 0
      %385 = vmatprep.subr.bf16.mxu0 0
      %386 = vmatpush1.bf16.msra.mxu0 0
      %387 = vmatprep.subr.bf16.mxu0 0
      %388 = vmatpush1.bf16.msra.mxu0 0
      %389 = vmatprep.subr.bf16.mxu0 0
      %390 = vmatpush1.bf16.msra.mxu0 0
      %391 = vmatprep.subr.bf16.mxu0 0
      %392 = vmatpush1.bf16.msra.mxu0 %v362
      %393 = vmatprep.subr.bf16.mxu0 0
      %394 = vmatpush2.bf16.msra.mxu0 0
      %395 = vmatprep.subr.bf16.mxu0 0
      %396 = vmatpush2.bf16.msra.mxu0 0
      %397 = vmatprep.subr.bf16.mxu0 0
      %398 = vmatpush2.bf16.msra.mxu0 0
      %399 = vmatprep.subr.bf16.mxu0 0
      %400 = vmatpush2.bf16.msra.mxu0 0
      %401 = vmatprep.subr.bf16.mxu0 0
      %402 = vmatpush2.bf16.msra.mxu0 0
      %403 = vmatprep.subr.bf16.mxu0 0
      %404 = vmatpush2.bf16.msra.mxu0 0
      %405 = vmatprep.subr.bf16.mxu0 0
      %406 = vmatpush2.bf16.msra.mxu0 0
      %407 = vmatprep.subr.bf16.mxu0 0
      %408 = vmatpush2.bf16.msra.mxu0 0
      %409 = vmatprep.mubr.bf16.mxu0 0
      %410 = vmatmul.mubr.bf16.gmra.mxu0 %v366
      %v411 = vpop.f32.mrf.mxu0
      %v412 = vadd.f32 0.0, %v411
      %v413 = vpop.f32.mrf.mxu0
      %v414 = vpop.f32.mrf.mxu0
      %v415 = vadd.f32 0.0, %v414
      %v416 = vpop.f32.mrf.mxu0
      %417 = vmatprep.mubr.bf16.mxu0 0
      %418 = vmatmul.mubr.bf16.gmra.mxu0 %v369
      %v419 = vpop.f32.mrf.mxu0
      %v420 = vadd.f32 0.0, %v419
      %v421 = vpop.f32.mrf.mxu0
      %v422 = vpop.f32.mrf.mxu0
      %v423 = vadd.f32 0.0, %v422
      %v424 = vpop.f32.mrf.mxu0
      %425 = vmatprep.mubr.bf16.mxu0 0
      %426 = vmatmul.mubr.bf16.gmra.mxu0 %v372
      %v427 = vpop.f32.mrf.mxu0
      %v428 = vadd.f32 0.0, %v427
      %v429 = vpop.f32.mrf.mxu0
      %v430 = vpop.f32.mrf.mxu0
      %v431 = vadd.f32 0.0, %v430
      %v432 = vpop.f32.mrf.mxu0
      %433 = vmatprep.mubr.bf16.mxu0 0
      %434 = vmatmul.mubr.bf16.gmra.mxu0 %v375
      %v435 = vpop.f32.mrf.mxu0
      %v436 = vadd.f32 0.0, %v435
      %v437 = vpop.f32.mrf.mxu0
      %v438 = vpop.f32.mrf.mxu0
      %v439 = vadd.f32 0.0, %v438
      %v440 = vpop.f32.mrf.mxu0
      %441 = vdwg.mxu0
      %v450 = vunpack.c.l.b16 %v319
      %v451 = vunpack.c.l.b16 %v320
      %v452 = vunpack.c.l.b16 %v321
      %v453 = vunpack.c.l.b16 %v322
      %v454 = vunpack.c.l.b16 %v323
      %v455 = vunpack.c.l.b16 %v324
      %v456 = vunpack.c.l.b16 %v325
      %v457 = vunpack.c.l.b16 %v326
      %v458 = vpack.c.b16 %v451, %v450
      %v459 = vpack.c.b16 %v453, %v452
      %v460 = vpack.c.b16 %v455, %v454
      %v461 = vpack.c.b16 %v457, %v456
      %vm462 = vcmask 64512
      %v464 = vsel %vm462, %v458, 0
      %v467 = vsel %vm462, %v459, 0
      %v470 = vsel %vm462, %v460, 0
      %v473 = vsel %vm462, %v461, 0
      %vm475 = vcmask 1043456
      %v477 = vsel %vm475, %v327, 0
      %479 = vmatprep.subr.bf16.mxu0 0
      %480 = vmatpush1.bf16.msra.mxu0 0
      %481 = vmatprep.subr.bf16.mxu0 0
      %482 = vmatpush1.bf16.msra.mxu0 0
      %483 = vmatprep.subr.bf16.mxu0 0
      %484 = vmatpush1.bf16.msra.mxu0 0
      %485 = vmatprep.subr.bf16.mxu0 0
      %486 = vmatpush1.bf16.msra.mxu0 0
      %487 = vmatprep.subr.bf16.mxu0 0
      %488 = vmatpush1.bf16.msra.mxu0 0
      %489 = vmatprep.subr.bf16.mxu0 0
      %490 = vmatpush1.bf16.msra.mxu0 0
      %491 = vmatprep.subr.bf16.mxu0 0
      %492 = vmatpush1.bf16.msra.mxu0 0
      %493 = vmatprep.subr.bf16.mxu0 0
      %494 = vmatpush1.bf16.msra.mxu0 %v477
      %495 = vmatprep.subr.bf16.mxu0 0
      %496 = vmatpush2.bf16.msra.mxu0 0
      %497 = vmatprep.subr.bf16.mxu0 0
      %498 = vmatpush2.bf16.msra.mxu0 0
      %499 = vmatprep.subr.bf16.mxu0 0
      %500 = vmatpush2.bf16.msra.mxu0 0
      %501 = vmatprep.subr.bf16.mxu0 0
      %502 = vmatpush2.bf16.msra.mxu0 0
      %503 = vmatprep.subr.bf16.mxu0 0
      %504 = vmatpush2.bf16.msra.mxu0 0
      %505 = vmatprep.subr.bf16.mxu0 0
      %506 = vmatpush2.bf16.msra.mxu0 0
      %507 = vmatprep.subr.bf16.mxu0 0
      %508 = vmatpush2.bf16.msra.mxu0 0
      %509 = vmatprep.subr.bf16.mxu0 0
      %510 = vmatpush2.bf16.msra.mxu0 0
      %511 = vmatprep.mubr.bf16.mxu0 0
      %512 = vmatmul.mubr.bf16.gmra.mxu0 %v464
      %v513 = vpop.f32.mrf.mxu0
      %v514 = vadd.f32 %v412, %v513
      %v515 = vpop.f32.mrf.mxu0
      %v516 = vpop.f32.mrf.mxu0
      %v517 = vadd.f32 %v415, %v516
      %v518 = vpop.f32.mrf.mxu0
      %519 = vmatprep.mubr.bf16.mxu0 0
      %520 = vmatmul.mubr.bf16.gmra.mxu0 %v467
      %v521 = vpop.f32.mrf.mxu0
      %v522 = vadd.f32 %v420, %v521
      %v523 = vpop.f32.mrf.mxu0
      %v524 = vpop.f32.mrf.mxu0
      %v525 = vadd.f32 %v423, %v524
      %v526 = vpop.f32.mrf.mxu0
      %527 = vmatprep.mubr.bf16.mxu0 0
      %528 = vmatmul.mubr.bf16.gmra.mxu0 %v470
      %v529 = vpop.f32.mrf.mxu0
      %v530 = vadd.f32 %v428, %v529
      %v531 = vpop.f32.mrf.mxu0
      %v532 = vpop.f32.mrf.mxu0
      %v533 = vadd.f32 %v431, %v532
      %v534 = vpop.f32.mrf.mxu0
      %535 = vmatprep.mubr.bf16.mxu0 0
      %536 = vmatmul.mubr.bf16.gmra.mxu0 %v473
      %v537 = vpop.f32.mrf.mxu0
      %v538 = vadd.f32 %v436, %v537
      %v539 = vpop.f32.mrf.mxu0
      %v540 = vpop.f32.mrf.mxu0
      %v541 = vadd.f32 %v439, %v540
      %v542 = vpop.f32.mrf.mxu0
      %543 = vdwg.mxu0
      %v544 = vld [vmem:[%s308] sm:$0x1]
      %v546 = vlaneseq
      %v547 = vshrl.u32 %v546, 7
      %v548 = vsub.s32 0, %v547
      %v549 = vrot.slane %v544, %v548
      %v551 = vadd.f32 %v514, %v549
      %v552 = vadd.f32 %v517, %v549
      %v553 = vadd.f32 %v522, %v549
      %v554 = vadd.f32 %v525, %v549
      %v555 = vadd.f32 %v530, %v549
      %v556 = vadd.f32 %v533, %v549
      %v557 = vadd.f32 %v538, %v549
      %v558 = vadd.f32 %v541, %v549
      %v559 = vsub.f32 0.0, %v551
      %v560 = vsub.f32 0.0, %v552
      %v561 = vsub.f32 0.0, %v553
      %v562 = vsub.f32 0.0, %v554
      %v563 = vsub.f32 0.0, %v555
      %v564 = vsub.f32 0.0, %v556
      %v565 = vsub.f32 0.0, %v557
      %v566 = vsub.f32 0.0, %v558
      %v567 = vmul.f32 %v559, 1.442695
      %v568 = vpow.pop %v567
      %v569 = vmul.f32 %v560, 1.442695
      %v570 = vpow.pop %v569
      %v571 = vmul.f32 %v561, 1.442695
      %v572 = vpow.pop %v571
      %v573 = vmul.f32 %v562, 1.442695
      %v574 = vpow.pop %v573
      %v575 = vmul.f32 %v563, 1.442695
      %v576 = vpow.pop %v575
      %v577 = vmul.f32 %v564, 1.442695
      %v578 = vpow.pop %v577
      %v579 = vmul.f32 %v565, 1.442695
      %v580 = vpow.pop %v579
      %v581 = vmul.f32 %v566, 1.442695
      %v582 = vpow.pop %v581
      %v583 = vadd.f32 %v568, 1.0
      %v584 = vadd.f32 %v570, 1.0
      %v585 = vadd.f32 %v572, 1.0
      %v586 = vadd.f32 %v574, 1.0
      %v587 = vadd.f32 %v576, 1.0
      %v588 = vadd.f32 %v578, 1.0
      %v589 = vadd.f32 %v580, 1.0
      %v590 = vadd.f32 %v582, 1.0
      %v591 = vrcp.pop %v583
      %v592 = vrcp.pop %v584
      %v593 = vrcp.pop %v585
      %v594 = vrcp.pop %v586
      %v595 = vrcp.pop %v587
      %v596 = vrcp.pop %v588
      %v597 = vrcp.pop %v589
      %v598 = vrcp.pop %v590
      %v599 = vmul.f32 %v551, %v591
      %v600 = vmul.f32 %v552, %v592
      %v601 = vmul.f32 %v553, %v593
      %v602 = vmul.f32 %v554, %v594
      %v603 = vmul.f32 %v555, %v595
      %v604 = vmul.f32 %v556, %v596
      %v605 = vmul.f32 %v557, %v597
      %v606 = vmul.f32 %v558, %v598
      %607 = vst [vmem:[%s316] sm:$0xff] %v599
      %608 = vst [vmem:[%s316 + $0x8] sm:$0xff] %v600
      %609 = vst [vmem:[%s316 + $0x10] sm:$0xff] %v601
      %610 = vst [vmem:[%s316 + $0x18] sm:$0xff] %v602
      %611 = vst [vmem:[%s316 + $0x20] sm:$0xff] %v603
      %612 = vst [vmem:[%s316 + $0x28] sm:$0xff] %v604
      %613 = vst [vmem:[%s316 + $0x30] sm:$0xff] %v605
      %614 = vst [vmem:[%s316 + $0x38] sm:$0xff] %v606
      %s615 = smul.u32 8, %s20
      %p616 = scmp.lt.s32.totalorder %s615, 15
      %s617 = scalar_select %p616, %s615, 15
      %p618 = scmp.lt.s32.totalorder %s21, 0
      %s619 = scalar_select %p618, %s21, 0
      %s620 = sadd.s32 %s619, %s617
      %s621 = smul.addr %s620, 8
      %s622 = scalar_lea.vmem %s5, %s621
      // Predicated region
      $region41: #{_lambda_.31} parent=39 // pred_check
        %p623 = pneg %p178
      $region42: #{_lambda_.31} parent=39 // pred_check_branch
        %625 = sbr.rel (%p623) target = $region44
      $region43: #{_lambda_.31} parent=39 // pred_region
        %s626 = smul.u32 8, %s20
      $region44: #{_lambda_.31} parent=39 // pred_fallthru
        _
    $region40: #{_lambda_.31} parent=5 // pred_fallthru
      _
    %p627 = scmp.le.s32.totalorder 2, %s11
    // Predicated region
    $region45: #{_lambda_.31} parent=5 // pred_check
      %p628 = pneg %p627
    $region46: #{_lambda_.31} parent=5 // pred_check_branch
      %630 = sbr.rel (%p628) target = $region48
    $region47: #{_lambda_.31} parent=5 // pred_region
      %s631 = ssub.s32 %s11, 2
      // Predicated region
      $region49: #{_lambda_.31} parent=47 // pred_check
        %p632 = pneg %p184
      $region50: #{_lambda_.31} parent=47 // pred_check_branch
        %634 = sbr.rel (%p632) target = $region52
      $region51: #{_lambda_.31} parent=47 // pred_region
        %s635 = smul.u32 8, %s22
        %p636 = scmp.lt.s32.totalorder %s635, 15
        %s637 = scalar_select %p636, %s635, 15
        %p638 = scmp.lt.s32.totalorder %s23, 0
        %s639 = scalar_select %p638, %s23, 0
        %s640 = sadd.s32 %s639, %s637
        %s641 = smul.addr %s640, 8
        %s642 = scalar_lea.vmem %s5, %s641
      $region52: #{_lambda_.31} parent=47 // pred_fallthru
        _
    $region48: #{_lambda_.31} parent=5 // pred_fallthru
      _
  $region6: #{_lambda_.31} parent=0 // loop_footer
    %s15 = sadd.s32 1, %s11
  $region7: #{_lambda_.31} parent=0 // loop_footer_branch
    %10 = sbr.rel target = $region3
  $region8: #{_lambda_.31} parent=0 // loop_exit
    _

// kernel: _lambda_.39
$region0: #{_lambda_.39}
  #allocation0 [shape = 'u32[]', space=smem, size = 0x4, offset = 0x4, fixed_abs, tag = 'smem constant byte address 0x4 - core index']
  #allocation1 [shape = 'u32[144,128]{1,0:T(1,128)}', space=vmem, size = 0x12000, scoped, tag = 'internal scratch']
  %s0 = inlined_call_operand.vmem [shape: bf16[32,32], index: 0, kind: input, shape index: {}]
  %s1 = inlined_call_operand.vmem [shape: bf16[32,16], index: 1, kind: input, shape index: {}]
  %s2 = inlined_call_operand.vmem [shape: bf16[32,128], index: 2, kind: input, shape index: {}]
  %s3 = inlined_call_operand.vmem [shape: bf16[16,128], index: 3, kind: input, shape index: {}]
  %s4 = inlined_call_operand.vmem [shape: f32[1,128], index: 4, kind: input, shape index: {}]
  %s5 = inlined_call_operand.hbm [shape: f32[32,128], index: 5, kind: output, shape index: {}]
  %s6 = sld [smem:[#allocation0]]
  $region53: #{_lambda_.39} parent=0
    _
  %s8 = ssub.s32 1, %s6
  %s9 = scalar_select 0, %s8, %s6
  $region1: #{_lambda_.39} parent=0
    #allocation2 [shape = 'u8[16384]{0}', space=vmem, size = 0x4000, scoped, tag = 'output window, operand 0']
    #allocation3 [shape = 's32[2]{0}', space=sflag, size = 0x8, scoped, tag = 'scoped memory for _lambda_.39']
    %10 = vsyncpa [#allocation3], 0
    %s11 = scalar_lea.sflag [#allocation3], 1
    %12 = vsyncpa %s11, 0
    loop: start=0, step=1, limit=4
    $region2: #{_lambda_.39} parent=1 // loop_pre_header
      _
    $region3: #{_lambda_.39} parent=1 // loop_header
      %s14 = sphi 0, %s18
      %p15 = scmp.ge.s32.totalorder %s14, 4
      %s21 = sphi 0, %s33
      %s22 = sphi 0, %s29
      %s23 = sphi 0, %s21
      %s24 = sphi 0, %s22
      %s25 = sphi 0, %s23
      %s26 = sphi 0, %s24
      %s36 = sphi 0, %s38
      %s39 = sphi 0, %s36
      %s40 = sphi 0, %s39
      %s56 = sphi 0, %s40
      %s62 = sphi 0, %s64
      %s65 = sphi 0, %s62
      %s66 = sphi 0, %s65
      %s82 = sphi 0, %s66
      %s88 = sphi 0, %s90
      %s91 = sphi 0, %s88
      %s92 = sphi 0, %s91
      %s108 = sphi 0, %s92
      %s114 = sphi 0, %s116
      %s117 = sphi 0, %s114
      %s118 = sphi 0, %s117
      %s134 = sphi 0, %s118
      %s140 = sphi 0, %s142
      %s143 = sphi 0, %s140
      %s144 = sphi 0, %s143
      %s160 = sphi 0, %s144
      %s168 = sphi 0, %s170
      %s171 = sphi 0, %s168
      %s172 = sphi 0, %s171
      %s188 = sphi 0, %s172
    $region4: #{_lambda_.39} parent=1 // loop_header_branch
      %17 = sbr.rel (%p15) target = $region8
    $region5: #{_lambda_.39} parent=1 // loop_body
      %s19 = ssub.s32 %s14, 1
      %s20 = ssub.s32 %s14, 2
      %s27 = sadd.s32 1, %s22
      %p28 = scmp.ge.s32.totalorder %s27, 1
      %s29 = scalar_select %p28, 0, %s27
      %s30 = sadd.s32 1, %s21
      %s31 = scalar_select %p28, %s30, %s21
      %p32 = scmp.ge.s32.totalorder %s31, 2
      %s33 = scalar_select %p32, 0, %s31
      %s34 = ssub.s32 %s21, %s33
      %p35 = scmp.eq.s32.totalorder %s34, 0
      %s37 = sadd.s32 %s36, 1
      %s38 = scalar_select %p35, %s36, %s37
      %p41 = pneg %p35
      %p42 = scmp.eq.s32.totalorder %s14, 1
      %p43 = por %p41, %p42
      %p44 = scmp.ne.s32.totalorder %s36, %s39
      %p45 = scmp.eq.s32.totalorder %s14, 0
      %p46 = por %p44, %p45
      %p47 = scmp.ne.s32.totalorder %s36, %s39
      %p48 = scmp.eq.s32.totalorder %s19, 1
      %p49 = por %p47, %p48
      %p50 = scmp.ne.s32.totalorder %s39, %s40
      %p51 = scmp.eq.s32.totalorder %s19, 0
      %p52 = por %p50, %p51
      %p53 = scmp.ne.s32.totalorder %s39, %s40
      %p54 = scmp.eq.s32.totalorder %s20, 1
      %p55 = por %p53, %p54
      %p57 = scmp.ne.s32.totalorder %s40, %s56
      %p58 = scmp.eq.s32.totalorder %s20, 0
      %p59 = por %p57, %p58
      %s60 = ssub.s32 %s21, %s33
      %p61 = scmp.eq.s32.totalorder %s60, 0
      %s63 = sadd.s32 %s62, 1
      %s64 = scalar_select %p61, %s62, %s63
      %p67 = pneg %p61
      %p68 = scmp.eq.s32.totalorder %s14, 1
      %p69 = por %p67, %p68
      %p70 = scmp.ne.s32.totalorder %s62, %s65
      %p71 = scmp.eq.s32.totalorder %s14, 0
      %p72 = por %p70, %p71
      %p73 = scmp.ne.s32.totalorder %s62, %s65
      %p74 = scmp.eq.s32.totalorder %s19, 1
      %p75 = por %p73, %p74
      %p76 = scmp.ne.s32.totalorder %s65, %s66
      %p77 = scmp.eq.s32.totalorder %s19, 0
      %p78 = por %p76, %p77
      %p79 = scmp.ne.s32.totalorder %s65, %s66
      %p80 = scmp.eq.s32.totalorder %s20, 1
      %p81 = por %p79, %p80
      %p83 = scmp.ne.s32.totalorder %s66, %s82
      %p84 = scmp.eq.s32.totalorder %s20, 0
      %p85 = por %p83, %p84
      %s86 = ssub.s32 %s22, %s29
      %p87 = scmp.eq.s32.totalorder %s86, 0
      %s89 = sadd.s32 %s88, 1
      %s90 = scalar_select %p87, %s88, %s89
      %p93 = pneg %p87
      %p94 = scmp.eq.s32.totalorder %s14, 1
      %p95 = por %p93, %p94
      %p96 = scmp.ne.s32.totalorder %s88, %s91
      %p97 = scmp.eq.s32.totalorder %s14, 0
      %p98 = por %p96, %p97
      %p99 = scmp.ne.s32.totalorder %s88, %s91
      %p100 = scmp.eq.s32.totalorder %s19, 1
      %p101 = por %p99, %p100
      %p102 = scmp.ne.s32.totalorder %s91, %s92
      %p103 = scmp.eq.s32.totalorder %s19, 0
      %p104 = por %p102, %p103
      %p105 = scmp.ne.s32.totalorder %s91, %s92
      %p106 = scmp.eq.s32.totalorder %s20, 1
      %p107 = por %p105, %p106
      %p109 = scmp.ne.s32.totalorder %s92, %s108
      %p110 = scmp.eq.s32.totalorder %s20, 0
      %p111 = por %p109, %p110
      %s112 = ssub.s32 %s22, %s29
      %p113 = scmp.eq.s32.totalorder %s112, 0
      %s115 = sadd.s32 %s114, 1
      %s116 = scalar_select %p113, %s114, %s115
      %p119 = pneg %p113
      %p120 = scmp.eq.s32.totalorder %s14, 1
      %p121 = por %p119, %p120
      %p122 = scmp.ne.s32.totalorder %s114, %s117
      %p123 = scmp.eq.s32.totalorder %s14, 0
      %p124 = por %p122, %p123
      %p125 = scmp.ne.s32.totalorder %s114, %s117
      %p126 = scmp.eq.s32.totalorder %s19, 1
      %p127 = por %p125, %p126
      %p128 = scmp.ne.s32.totalorder %s117, %s118
      %p129 = scmp.eq.s32.totalorder %s19, 0
      %p130 = por %p128, %p129
      %p131 = scmp.ne.s32.totalorder %s117, %s118
      %p132 = scmp.eq.s32.totalorder %s20, 1
      %p133 = por %p131, %p132
      %p135 = scmp.ne.s32.totalorder %s118, %s134
      %p136 = scmp.eq.s32.totalorder %s20, 0
      %p137 = por %p135, %p136
      %s138 = ssub.s32 %s22, %s29
      %p139 = scmp.eq.s32.totalorder %s138, 0
      %s141 = sadd.s32 %s140, 1
      %s142 = scalar_select %p139, %s140, %s141
      %p145 = pneg %p139
      %p146 = scmp.eq.s32.totalorder %s14, 1
      %p147 = por %p145, %p146
      %p148 = scmp.ne.s32.totalorder %s140, %s143
      %p149 = scmp.eq.s32.totalorder %s14, 0
      %p150 = por %p148, %p149
      %p151 = scmp.ne.s32.totalorder %s140, %s143
      %p152 = scmp.eq.s32.totalorder %s19, 1
      %p153 = por %p151, %p152
      %p154 = scmp.ne.s32.totalorder %s143, %s144
      %p155 = scmp.eq.s32.totalorder %s19, 0
      %p156 = por %p154, %p155
      %p157 = scmp.ne.s32.totalorder %s143, %s144
      %p158 = scmp.eq.s32.totalorder %s20, 1
      %p159 = por %p157, %p158
      %p161 = scmp.ne.s32.totalorder %s144, %s160
      %p162 = scmp.eq.s32.totalorder %s20, 0
      %p163 = por %p161, %p162
      %s164 = ssub.s32 %s21, %s33
      %s165 = ssub.s32 %s22, %s29
      %s166 = sor.u32 %s164, %s165
      %p167 = scmp.eq.s32.totalorder %s166, 0
      %s169 = sadd.s32 %s168, 1
      %s170 = scalar_select %p167, %s168, %s169
      %p173 = pneg %p167
      %p174 = scmp.eq.s32.totalorder %s14, 1
      %p175 = por %p173, %p174
      %p176 = scmp.ne.s32.totalorder %s168, %s171
      %p177 = scmp.eq.s32.totalorder %s14, 0
      %p178 = por %p176, %p177
      %p179 = scmp.ne.s32.totalorder %s168, %s171
      %p180 = scmp.eq.s32.totalorder %s19, 1
      %p181 = por %p179, %p180
      %p182 = scmp.ne.s32.totalorder %s171, %s172
      %p183 = scmp.eq.s32.totalorder %s19, 0
      %p184 = por %p182, %p183
      %p185 = scmp.ne.s32.totalorder %s171, %s172
      %p186 = scmp.eq.s32.totalorder %s20, 1
      %p187 = por %p185, %p186
      %p189 = scmp.ne.s32.totalorder %s172, %s188
      %p190 = scmp.eq.s32.totalorder %s20, 0
      %p191 = por %p189, %p190
      %p192 = scmp.le.s32.totalorder 1, %s14
      %p193 = scmp.lt.s32.totalorder %s14, 3
      %p194 = pnand %p192, %p193
      %p195 = pneg %p194
      // Predicated region
      $region9: #{_lambda_.39} parent=5 // pred_check
        _
      $region10: #{_lambda_.39} parent=5 // pred_check_branch
        %197 = sbr.rel (%p194) target = $region12
      $region11: #{_lambda_.39} parent=5 // pred_region
        %s198 = ssub.s32 %s14, 1
        // Predicated region
        $region13: #{_lambda_.39} parent=11 // pred_check
          %p199 = pneg %p104
        $region14: #{_lambda_.39} parent=11 // pred_check_branch
          %201 = sbr.rel (%p199) target = $region16
        $region15: #{_lambda_.39} parent=11 // pred_region
          %p202 = scmp.lt.s32.totalorder %s24, 0
          %s203 = scalar_select %p202, %s24, 0
          %s204 = smul.addr %s203, 4
          %s205 = scalar_lea.vmem %s2, %s204
        $region16: #{_lambda_.39} parent=11 // pred_fallthru
          _
        // Predicated region
        $region17: #{_lambda_.39} parent=11 // pred_check
          %p206 = pneg %p130
        $region18: #{_lambda_.39} parent=11 // pred_check_branch
          %208 = sbr.rel (%p206) target = $region20
        $region19: #{_lambda_.39} parent=11 // pred_region
          %p209 = scmp.lt.s32.totalorder %s24, 0
          %s210 = scalar_select %p209, %s24, 0
          %s211 = smul.addr %s210, 4
          %s212 = scalar_lea.vmem %s3, %s211
        $region20: #{_lambda_.39} parent=11 // pred_fallthru
          _
        // Predicated region
        $region21: #{_lambda_.39} parent=11 // pred_check
          %p213 = pneg %p156
        $region22: #{_lambda_.39} parent=11 // pred_check_branch
          %215 = sbr.rel (%p213) target = $region24
        $region23: #{_lambda_.39} parent=11 // pred_region
          %p216 = scmp.lt.s32.totalorder %s24, 0
          %s217 = scalar_select %p216, %s24, 0
          %s218 = scalar_lea.vmem %s4, %s217
        $region24: #{_lambda_.39} parent=11 // pred_fallthru
          _
      $region12: #{_lambda_.39} parent=5 // pred_fallthru
        _
      %p219 = scmp.lt.s32.totalorder %s14, 2
      // Predicated region
      $region25: #{_lambda_.39} parent=5 // pred_check
        %p220 = pneg %p219
      $region26: #{_lambda_.39} parent=5 // pred_check_branch
        %222 = sbr.rel (%p220) target = $region28
      $region27: #{_lambda_.39} parent=5 // pred_region
        // Predicated region
        $region29: #{_lambda_.39} parent=27 // pred_check
          %p223 = pneg %p46
        $region30: #{_lambda_.39} parent=27 // pred_check_branch
          %225 = sbr.rel (%p223) target = $region32
        $region31: #{_lambda_.39} parent=27 // pred_region
          %s226 = smul.u32 2, %s21
          %p227 = scmp.lt.s32.totalorder %s226, 3
          %s228 = scalar_select %p227, %s226, 3
          %s229 = smul.addr %s228, 4
          %s230 = scalar_lea.vmem %s0, %s229
          %s231 = smul.u32 2, %s21
        $region32: #{_lambda_.39} parent=27 // pred_fallthru
          _
        // Predicated region
        $region33: #{_lambda_.39} parent=27 // pred_check
          %p232 = pneg %p72
        $region34: #{_lambda_.39} parent=27 // pred_check_branch
          %234 = sbr.rel (%p232) target = $region36
        $region35: #{_lambda_.39} parent=27 // pred_region
          %s235 = smul.u32 2, %s21
          %p236 = scmp.lt.s32.totalorder %s235, 3
          %s237 = scalar_select %p236, %s235, 3
          %s238 = smul.addr %s237, 4
          %s239 = scalar_lea.vmem %s1, %s238
          %s240 = smul.u32 2, %s21
        $region36: #{_lambda_.39} parent=27 // pred_fallthru
          _
      $region28: #{_lambda_.39} parent=5 // pred_fallthru
        _
      %p241 = scmp.le.s32.totalorder 1, %s14
      %p242 = scmp.lt.s32.totalorder %s14, 3
      %p243 = pnand %p241, %p242
      %p244 = pneg %p243
      // Predicated region
      $region37: #{_lambda_.39} parent=5 // pred_check
        _
      $region38: #{_lambda_.39} parent=5 // pred_check_branch
        %246 = sbr.rel (%p243) target = $region40
      $region39: #{_lambda_.39} parent=5 // pred_region
        %s247 = ssub.s32 %s14, 1
        %s248 = smul.u32 2, %s23
        %p249 = scmp.lt.s32.totalorder %s248, 3
        %s250 = scalar_select %p249, %s248, 3
        %s251 = smul.addr %s250, 4
        %s252 = scalar_lea.vmem %s0, %s251
        %p253 = pneg %p52
        %p254 = pneg %p49
        %s255 = smul.u32 2, %s23
        %p256 = scmp.lt.s32.totalorder %s255, 3
        %s257 = scalar_select %p256, %s255, 3
        %s258 = smul.addr %s257, 4
        %s259 = scalar_lea.vmem %s1, %s258
        %p260 = pneg %p78
        %p261 = pneg %p75
        %p262 = scmp.lt.s32.totalorder %s24, 0
        %s263 = scalar_select %p262, %s24, 0
        %s264 = smul.addr %s263, 4
        %s265 = scalar_lea.vmem %s2, %s264
        %p266 = pneg %p104
        %p267 = pneg %p101
        %p268 = scmp.lt.s32.totalorder %s24, 0
        %s269 = scalar_select %p268, %s24, 0
        %s270 = smul.addr %s269, 4
        %s271 = scalar_lea.vmem %s3, %s270
        %p272 = pneg %p130
        %p273 = pneg %p127
        %p274 = scmp.lt.s32.totalorder %s24, 0
        %s275 = scalar_select %p274, %s24, 0
        %s276 = scalar_lea.vmem %s4, %s275
        %p277 = pneg %p156
        %p278 = pneg %p153
        %p279 = pneg %p184
        %p280 = pneg %p181
        %s281 = sand.u32 %s171, 1
        %s282 = scalar_lea.sflag [#allocation3], %s281
        %s283 = sand.u32 %s171, 1
        %s284 = smul.addr %s283, 16
        %s285 = scalar_lea.vmem [#allocation2], %s284
        %s286 = smul.u32 2, %s23
        %p287 = scmp.lt.s32.totalorder %s286, 3
        %s288 = scalar_select %p287, %s286, 3
        %s289 = smul.addr %s288, 4
        %s290 = scalar_lea.vmem %s0, %s289
        %s291 = smul.u32 2, %s23
        %s292 = smul.u32 2, %s23
        %p293 = scmp.lt.s32.totalorder %s292, 3
        %s294 = scalar_select %p293, %s292, 3
        %s295 = smul.addr %s294, 4
        %s296 = scalar_lea.vmem %s1, %s295
        %s297 = smul.u32 2, %s23
        %p298 = scmp.lt.s32.totalorder %s24, 0
        %s299 = scalar_select %p298, %s24, 0
        %s300 = smul.addr %s299, 4
        %s301 = scalar_lea.vmem %s2, %s300
        %p302 = scmp.lt.s32.totalorder %s24, 0
        %s303 = scalar_select %p302, %s24, 0
        %s304 = smul.addr %s303, 4
        %s305 = scalar_lea.vmem %s3, %s304
        %p306 = scmp.lt.s32.totalorder %s24, 0
        %s307 = scalar_select %p306, %s24, 0
        %s308 = scalar_lea.vmem %s4, %s307
        %s309 = smul.u32 2, %s23
        %v311 = vld [vmem:[%s290] sm:$0xf]
        %v312 = vld [vmem:[%s290 + $0x4] sm:$0xf]
        %v313 = vld [vmem:[%s301] sm:$0xf]
        %v314 = vld [vmem:[%s301 + $0x4] sm:$0xf]
        %v315 = vld [vmem:[%s301 + $0x8] sm:$0xf]
        %v316 = vld [vmem:[%s301 + $0xc] sm:$0xf]
        %v317 = vld [vmem:[%s296] sm:$0xf]
        %v318 = vld [vmem:[%s296 + $0x4] sm:$0xf]
        %v319 = vld [vmem:[%s305] sm:$0xf]
        %v320 = vld [vmem:[%s305 + $0x4] sm:$0xf]
        %v323 = vunpack.c.l.b16 %v317
        %v324 = vunpack.c.l.b16 %v318
        %v325 = vpack.c.b16 %v324, %v323
        %v328 = vunpack.c.l.b16 %v319
        %v329 = vunpack.c.l.b16 %v320
        %v330 = vpack.c.b16 %v329, %v328
        %vm332 = vcmask 130048
        %v334 = vsel %vm332, %v325, 0
        %336 = vmatprep.subr.bf16.mxu0 0
        %337 = vmatpush1.bf16.msra.mxu0 0
        %338 = vmatprep.subr.bf16.mxu0 0
        %339 = vmatpush1.bf16.msra.mxu0 0
        %340 = vmatprep.subr.bf16.mxu0 0
        %341 = vmatpush1.bf16.msra.mxu0 0
        %342 = vmatprep.subr.bf16.mxu0 0
        %343 = vmatpush1.bf16.msra.mxu0 0
        %344 = vmatprep.subr.bf16.mxu0 0
        %345 = vmatpush1.bf16.msra.mxu0 0
        %346 = vmatprep.subr.bf16.mxu0 0
        %347 = vmatpush1.bf16.msra.mxu0 0
        %348 = vmatprep.subr.bf16.mxu0 0
        %349 = vmatpush1.bf16.msra.mxu0 0
        %350 = vmatprep.subr.bf16.mxu0 0
        %351 = vmatpush1.bf16.msra.mxu0 %v330
        %352 = vmatprep.subr.bf16.mxu0 0
        %353 = vmatpush2.bf16.msra.mxu0 0
        %354 = vmatprep.subr.bf16.mxu0 0
        %355 = vmatpush2.bf16.msra.mxu0 0
        %356 = vmatprep.subr.bf16.mxu0 0
        %357 = vmatpush2.bf16.msra.mxu0 0
        %358 = vmatprep.subr.bf16.mxu0 0
        %359 = vmatpush2.bf16.msra.mxu0 0
        %360 = vmatprep.subr.bf16.mxu0 0
        %361 = vmatpush2.bf16.msra.mxu0 0
        %362 = vmatprep.subr.bf16.mxu0 0
        %363 = vmatpush2.bf16.msra.mxu0 0
        %364 = vmatprep.subr.bf16.mxu0 0
        %365 = vmatpush2.bf16.msra.mxu0 0
        %366 = vmatprep.subr.bf16.mxu0 0
        %367 = vmatpush2.bf16.msra.mxu0 0
        %368 = vmatprep.mubr.bf16.mxu0 0
        %369 = vmatmul.mubr.bf16.gmra.mxu0 %v334
        %v370 = vpop.f32.mrf.mxu0
        %v371 = vadd.f32 0.0, %v370
        %v372 = vpop.f32.mrf.mxu0
        %v373 = vpop.f32.mrf.mxu0
        %v374 = vadd.f32 0.0, %v373
        %v375 = vpop.f32.mrf.mxu0
        %376 = vdwg.mxu0
        %v379 = vunpack.c.l.b16 %v311
        %v380 = vunpack.c.l.b16 %v312
        %v381 = vpack.c.b16 %v380, %v379
        %v386 = vunpack.c.l.b16 %v313
        %v387 = vunpack.c.l.b16 %v314
        %v388 = vunpack.c.l.b16 %v315
        %v389 = vunpack.c.l.b16 %v316
        %v390 = vpack.c.b16 %v387, %v386
        %v391 = vpack.c.b16 %v389, %v388
        %vm394 = vcmask 261120
        %v396 = vsel %vm394, %v381, 0
        %398 = vmatprep.subr.bf16.mxu0 0
        %399 = vmatpush1.bf16.msra.mxu0 0
        %400 = vmatprep.subr.bf16.mxu0 0
        %401 = vmatpush1.bf16.msra.mxu0 0
        %402 = vmatprep.subr.bf16.mxu0 0
        %403 = vmatpush1.bf16.msra.mxu0 0
        %404 = vmatprep.subr.bf16.mxu0 0
        %405 = vmatpush1.bf16.msra.mxu0 0
        %406 = vmatprep.subr.bf16.mxu0 0
        %407 = vmatpush1.bf16.msra.mxu0 0
        %408 = vmatprep.subr.bf16.mxu0 0
        %409 = vmatpush1.bf16.msra.mxu0 0
        %410 = vmatprep.subr.bf16.mxu0 0
        %411 = vmatpush1.bf16.msra.mxu0 %v391
        %412 = vmatprep.subr.bf16.mxu0 0
        %413 = vmatpush1.bf16.msra.mxu0 %v390
        %414 = vmatprep.subr.bf16.mxu0 0
        %415 = vmatpush2.bf16.msra.mxu0 0
        %416 = vmatprep.subr.bf16.mxu0 0
        %417 = vmatpush2.bf16.msra.mxu0 0
        %418 = vmatprep.subr.bf16.mxu0 0
        %419 = vmatpush2.bf16.msra.mxu0 0
        %420 = vmatprep.subr.bf16.mxu0 0
        %421 = vmatpush2.bf16.msra.mxu0 0
        %422 = vmatprep.subr.bf16.mxu0 0
        %423 = vmatpush2.bf16.msra.mxu0 0
        %424 = vmatprep.subr.bf16.mxu0 0
        %425 = vmatpush2.bf16.msra.mxu0 0
        %426 = vmatprep.subr.bf16.mxu0 0
        %427 = vmatpush2.bf16.msra.mxu0 0
        %428 = vmatprep.subr.bf16.mxu0 0
        %429 = vmatpush2.bf16.msra.mxu0 0
        %430 = vmatprep.mubr.bf16.mxu0 0
        %431 = vmatmul.mubr.bf16.gmra.mxu0 %v396
        %v432 = vpop.f32.mrf.mxu0
        %v433 = vadd.f32 %v371, %v432
        %v434 = vpop.f32.mrf.mxu0
        %v435 = vpop.f32.mrf.mxu0
        %v436 = vadd.f32 %v374, %v435
        %v437 = vpop.f32.mrf.mxu0
        %438 = vdwg.mxu0
        %v439 = vld [vmem:[%s308] sm:$0x1]
        %v441 = vlaneseq
        %v442 = vshrl.u32 %v441, 7
        %v443 = vsub.s32 0, %v442
        %v444 = vrot.slane %v439, %v443
        %v446 = vadd.f32 %v433, %v444
        %v447 = vadd.f32 %v436, %v444
        %v448 = vsub.f32 0.0, %v446
        %v449 = vsub.f32 0.0, %v447
        %v450 = vmul.f32 %v448, 1.442695
        %v451 = vpow.pop %v450
        %v452 = vmul.f32 %v449, 1.442695
        %v453 = vpow.pop %v452
        %v454 = vadd.f32 %v451, 1.0
        %v455 = vadd.f32 %v453, 1.0
        %v456 = vrcp.pop %v454
        %v457 = vrcp.pop %v455
        %v458 = vmul.f32 %v446, %v456
        %v459 = vmul.f32 %v447, %v457
        %460 = vst [vmem:[%s285] sm:$0xff] %v458
        %461 = vst [vmem:[%s285 + $0x8] sm:$0xff] %v459
        %s462 = sand.u32 %s171, 1
        %s463 = scalar_lea.sflag [#allocation3], %s462
        %s464 = sand.u32 %s171, 1
        %s465 = smul.addr %s464, 16
        %s466 = scalar_lea.vmem [#allocation2], %s465
        // Predicated region
        $region41: #{_lambda_.39} parent=39 // pred_check
          %p467 = pneg %p181
        $region42: #{_lambda_.39} parent=39 // pred_check_branch
          %469 = sbr.rel (%p467) target = $region44
        $region43: #{_lambda_.39} parent=39 // pred_region
          %s470 = smul.u32 2, %s23
          %s472 = ssub.s32 256, 256
          %473 = vsyncadd %s463, %s472
          %s474 = sadd.s32 %s24, %s470
          %s475 = smul.addr %s474, 128
          %s476 = scalar_lea.hbm %s5, %s475
          %s477 = sshll.u32 %s466, 4
          %s478 = int_to_ptr.vmem [resolvable:$true] %s477
          %483 = dma.vmem_to_hbm [thread:$0]  %s478, 256, %s476, %s463, 128, 128, 8
        $region44: #{_lambda_.39} parent=39 // pred_fallthru
          _
      $region40: #{_lambda_.39} parent=5 // pred_fallthru
        _
      %p484 = scmp.le.s32.totalorder 2, %s14
      // Predicated region
      $region45: #{_lambda_.39} parent=5 // pred_check
        %p485 = pneg %p484
      $region46: #{_lambda_.39} parent=5 // pred_check_branch
        %487 = sbr.rel (%p485) target = $region48
      $region47: #{_lambda_.39} parent=5 // pred_region
        %s488 = ssub.s32 %s14, 2
        // Predicated region
        $region49: #{_lambda_.39} parent=47 // pred_check
          %p489 = pneg %p187
        $region50: #{_lambda_.39} parent=47 // pred_check_branch
          %491 = sbr.rel (%p489) target = $region52
        $region51: #{_lambda_.39} parent=47 // pred_region
          %s492 = sand.u32 %s172, 1
          %s493 = scalar_lea.sflag [#allocation3], %s492
          %s494 = sand.u32 %s172, 1
          %s495 = smul.addr %s494, 16
          %s496 = scalar_lea.vmem [#allocation2], %s495
          %497 = dma.done %s493, 256
        $region52: #{_lambda_.39} parent=47 // pred_fallthru
          _
      $region48: #{_lambda_.39} parent=5 // pred_fallthru
        _
    $region6: #{_lambda_.39} parent=1 // loop_footer
      %s18 = sadd.s32 1, %s14
    $region7: #{_lambda_.39} parent=1 // loop_footer_branch
      %13 = sbr.rel target = $region3
    $region8: #{_lambda_.39} parent=1 // loop_exit
      _
    %498 = vsyncpa [#allocation3], 1
    %s499 = scalar_lea.sflag [#allocation3], 1
    %500 = vsyncpa %s499, 1

</llo_original>
